<compile_context>
chip_gen: v6e
topology: v6e:2x2x1
jax: 0.10.0
libtpu: 0.0.40
codegen_flags: <defaults>
</compile_context>

<pallas_src>
import numpy as np
import jax
import jax.numpy as jnp
from jax.experimental import pallas as pl
from jax.experimental.pallas import tpu as pltpu


# ----------------------------------------------------------------------------
# Model config (builder input, mirrors the original YAML-style config)
# ----------------------------------------------------------------------------

MODEL_CFG = {
    "nc": 4,
    "model": {
        "backbone": [
            {"Conv": {"args": {"out_channels": 16, "kernel_size": 3, "stride": 1, "padding": 1},
                      "source": -1, "tags": "b1"}},
            {"MaxPool": {"args": {}, "source": -1}},
            {"Conv": {"args": {"out_channels": 32, "kernel_size": 3, "stride": 1, "padding": 1},
                      "source": -1, "tags": "b2"}},
            {"MaxPool": {"args": {}, "source": -1}},
            {"Conv": {"args": {"out_channels": 32, "kernel_size": 1, "stride": 1, "padding": 0},
                      "source": -1}},
        ],
        "head": [
            {"UpSample": {"args": {}, "source": -1}},
            {"Concat": {"args": {}, "source": [-1, "b2"]}},
            {"Conv": {"args": {"out_channels": 16, "kernel_size": 3, "stride": 1, "padding": 1},
                      "source": -1, "output": True}},
            {"Conv": {"args": {"out_channels": 8, "kernel_size": 1, "stride": 1, "padding": 0},
                      "source": "b1", "output": True}},
        ],
    },
}


# ----------------------------------------------------------------------------
# Builder: mirror of YOLO.build_model (resolve sources/tags, init params)
# ----------------------------------------------------------------------------

def build_yolo(model_cfg, key):
    layers = []
    output_dim = [3]                      # input has 3 channels
    layer_indices_by_tag = {}
    layer_idx = 0
    for arch_name in model_cfg["model"]:
        for layer_spec in model_cfg["model"][arch_name]:
            layer_idx += 1
            layer_type, layer_info = next(iter(layer_spec.items()))
            args = dict(layer_info.get("args", {}))
            source = layer_info.get("source", -1)
            output = layer_info.get("output", False)
            if isinstance(source, str):
                source = layer_indices_by_tag[source]
            if isinstance(source, list):
                source = [layer_indices_by_tag[s] if isinstance(s, str) else s for s in source]

            params = None
            if "Conv" in layer_type:
                in_channels = output_dim[source]
                cout, k = args["out_channels"], args["kernel_size"]
                key, kw_, kb_ = jax.random.split(key, 3)
                w = jax.random.normal(kw_, (cout, in_channels, k, k), jnp.float32) * 0.1
                bias = jax.random.normal(kb_, (cout,), jnp.float32) * 0.01
                params = (w, bias)
                out_channels = cout
            elif layer_type in ("MaxPool", "UpSample"):
                out_channels = output_dim[source]
            elif layer_type == "Concat":
                out_channels = sum(output_dim[idx] for idx in source)
            else:
                raise ValueError(f"Unsupported layer type: {layer_type}")

            if "tags" in layer_info:
                if layer_info["tags"] in layer_indices_by_tag:
                    raise ValueError(f"Duplicate tag '{layer_info['tags']}' found.")
                layer_indices_by_tag[layer_info["tags"]] = layer_idx

            layers.append({"type": layer_type, "args": args, "source": source,
                           "output": output, "params": params})
            output_dim.append(out_channels)
    return layers


# ----------------------------------------------------------------------------
# Trace-time constant selection matrices (0/1, exact for bf16 data)
# ----------------------------------------------------------------------------

def _shift_matrices(h, w, kh, kw, stride, pad):
    """Per-tap spatial shift matrices S_t (H*W, Ho*Wo); zero columns encode padding."""
    ho = (h + 2 * pad - kh) // stride + 1
    wo = (w + 2 * pad - kw) // stride + 1
    mats = []
    for i in range(kh):
        for j in range(kw):
            s = np.zeros((h * w, ho * wo), np.float32)
            for oh in range(ho):
                ih = oh * stride + i - pad
                if ih < 0 or ih >= h:
                    continue
                for ow in range(wo):
                    iw = ow * stride + j - pad
                    if iw < 0 or iw >= w:
                        continue
                    s[ih * w + iw, oh * wo + ow] = 1.0
            mats.append(s)
    return np.stack(mats), ho, wo


def _pool_matrices(h, w):
    """Four corner-selection matrices for MaxPool2d(k=2, s=2), floor mode."""
    ho, wo = h // 2, w // 2
    mats = []
    for di in range(2):
        for dj in range(2):
            p = np.zeros((h * w, ho * wo), np.float32)
            for oh in range(ho):
                for ow in range(wo):
                    p[(2 * oh + di) * w + (2 * ow + dj), oh * wo + ow] = 1.0
            mats.append(p)
    return np.stack(mats), ho, wo


def _upsample_matrix(h, w):
    """Nearest-neighbor 2x upsample selection matrix (H*W, 2H*2W)."""
    ho, wo = 2 * h, 2 * w
    u = np.zeros((h * w, ho * wo), np.float32)
    for oh in range(ho):
        for ow in range(wo):
            u[(oh // 2) * w + (ow // 2), oh * wo + ow] = 1.0
    return u, ho, wo


# ----------------------------------------------------------------------------
# Fused forward: one pallas_call for the whole network
# ----------------------------------------------------------------------------

def make_fused_forward(layers, batch, in_channels, height, width):
    """Precompute constant operands, build the fused kernel, return forward(x)."""
    shapes = [(in_channels, height, width)]   # parallels y = [x]
    operands = []                             # constant kernel inputs
    ops = []                                  # per-layer kernel descriptors

    def add(arr):
        operands.append(arr)
        return len(operands) - 1

    for layer in layers:
        ltype, src, args = layer["type"], layer["source"], layer["args"]
        if "Conv" in ltype:
            assert isinstance(src, int), "Conv expects a single source"
            ci, hi, wi = shapes[src]
            w, b = layer["params"]                      # (Cout, Ci, kh, kw), (Cout,)
            cout, _, kh, kw = w.shape
            stride, pad = args.get("stride", 1), args.get("padding", 0)
            # Packed per-tap weights (kh*kw, Cout, Ci); tap t = i*kw + j.
            w_taps = jnp.transpose(w.reshape(cout, ci, kh * kw), (2, 0, 1)).astype(jnp.bfloat16)
            desc = {"op": "conv", "src": src, "kk": kh * kw,
                    "w": add(w_taps),
                    "b": add(b.reshape(cout, 1).astype(jnp.float32)),
                    "s": None}
            if kh * kw > 1 or stride != 1 or pad != 0:
                s_np, ho, wo = _shift_matrices(hi, wi, kh, kw, stride, pad)
                desc["s"] = add(jnp.asarray(s_np, jnp.bfloat16))
            else:
                ho, wo = hi, wi
            ops.append(desc)
            shapes.append((cout, ho, wo))
        elif ltype == "MaxPool":
            ci, hi, wi = shapes[src]
            p_np, ho, wo = _pool_matrices(hi, wi)
            ops.append({"op": "maxpool", "src": src, "p": add(jnp.asarray(p_np, jnp.bfloat16))})
            shapes.append((ci, ho, wo))
        elif ltype == "UpSample":
            ci, hi, wi = shapes[src]
            u_np, ho, wo = _upsample_matrix(hi, wi)
            ops.append({"op": "upsample", "src": src, "u": add(jnp.asarray(u_np, jnp.bfloat16))})
            shapes.append((ci, ho, wo))
        elif ltype == "Concat":
            chans = [shapes[s][0] for s in src]
            hi, wi = shapes[src[0]][1], shapes[src[0]][2]
            ctot, off, e_ids = sum(chans), 0, []
            for ck in chans:                            # channel-placement matrices
                e = np.zeros((ctot, ck), np.float32)
                e[off:off + ck, :] = np.eye(ck, dtype=np.float32)
                e_ids.append(add(jnp.asarray(e, jnp.bfloat16)))
                off += ck
            ops.append({"op": "concat", "src": list(src), "e": e_ids})
            shapes.append((ctot, hi, wi))
        else:
            raise ValueError(f"Unsupported layer type: {ltype}")

    out_ids = [i for i, l in enumerate(layers) if l["output"]]
    n_ops = len(operands)

    def kernel(x_ref, *refs):
        op_refs, out_refs = refs[:n_ops], refs[n_ops:]
        acts = [x_ref[0]]                  # (C, H*W) bf16; parallels y = [x]
        write_slot = 0
        for layer, desc in zip(layers, ops):
            kind = desc["op"]
            if kind == "conv":
                a = acts[desc["src"]]
                w_ref, b_ref = op_refs[desc["w"]], op_refs[desc["b"]]
                acc = None
                for t in range(desc["kk"]):            # kh*kw accumulating matmuls
                    if desc["s"] is not None:
                        shifted = jnp.dot(a, op_refs[desc["s"]][t],
                                          preferred_element_type=jnp.float32
                                          ).astype(jnp.bfloat16)   # exact selection
                    else:
                        shifted = a                    # 1x1 conv: no spatial shift
                    part = jnp.dot(w_ref[t], shifted, preferred_element_type=jnp.float32)
                    acc = part if acc is None else acc + part
                acc = acc + b_ref[...]
                # SiLU in f32; exp + approx reciprocal stay on the EUP slot.
                val_f32 = acc * pl.reciprocal(1.0 + jnp.exp(-acc), approx=True)
                new = val_f32.astype(jnp.bfloat16)
            elif kind == "maxpool":
                a = acts[desc["src"]]
                p_ref = op_refs[desc["p"]]
                m = None
                for t in range(4):
                    v = jnp.dot(a, p_ref[t], preferred_element_type=jnp.float32)
                    m = v if m is None else jnp.maximum(m, v)
                val_f32, new = m, m.astype(jnp.bfloat16)
            elif kind == "upsample":
                v = jnp.dot(acts[desc["src"]], op_refs[desc["u"]][...],
                            preferred_element_type=jnp.float32)
                val_f32, new = v, v.astype(jnp.bfloat16)
            else:  # concat: channel placement via selection matmuls (no reshapes)
                tot = None
                for s_i, e_i in zip(desc["src"], desc["e"]):
                    v = jnp.dot(op_refs[e_i][...], acts[s_i],
                                preferred_element_type=jnp.float32)
                    tot = v if tot is None else tot + v
                val_f32, new = tot, tot.astype(jnp.bfloat16)

            acts.append(new)
            if layer["output"]:
                out_refs[write_slot][0] = val_f32      # f32 store at model boundary
                write_slot += 1

    hw_in = height * width

    def _const_map(ndim):
        return lambda n: (0,) * ndim

    in_specs = [pl.BlockSpec((1, in_channels, hw_in), lambda n: (n, 0, 0))]
    in_specs += [pl.BlockSpec(arr.shape, _const_map(arr.ndim)) for arr in operands]

    out_specs, out_shapes = [], []
    for li in out_ids:
        co, ho, wo = shapes[li + 1]
        out_specs.append(pl.BlockSpec((1, co, ho * wo), lambda n: (n, 0, 0)))
        out_shapes.append(jax.ShapeDtypeStruct((batch, co, ho * wo), jnp.float32))

    fused = pl.pallas_call(
        kernel,
        grid=(batch,),
        in_specs=in_specs,
        out_specs=tuple(out_specs),
        out_shape=tuple(out_shapes),
        compiler_params=pltpu.CompilerParams(
            dimension_semantics=("parallel",)),   # batch shards across v7x's 2 TCs
    )

    @jax.jit
    def forward(x):
        # Model-boundary layout change only: NCHW -> (N, C, H*W) bf16.
        xb = x.astype(jnp.bfloat16).reshape(batch, in_channels, hw_in)
        outs = fused(xb, *operands)
        result = []
        for o, li in zip(outs, out_ids):
            co, ho, wo = shapes[li + 1]
            result.append(o.reshape(batch, co, ho, wo))
        return result

    return forward


# ----------------------------------------------------------------------------
# Plain-JAX reference (mirror of YOLO.forward) for a correctness cross-check
# ----------------------------------------------------------------------------

def yolo_forward_reference(layers, x):
    y = [x]
    outputs = []
    for layer in layers:
        src = layer["source"]
        inp = [y[i] for i in src] if isinstance(src, list) else y[src]
        ltype = layer["type"]
        if "Conv" in ltype:
            w, b = layer["params"]
            s = layer["args"].get("stride", 1)
            p = layer["args"].get("padding", 0)
            z = jax.lax.conv_general_dilated(
                inp, w, window_strides=(s, s), padding=[(p, p), (p, p)],
                dimension_numbers=("NCHW", "OIHW", "NCHW"))
            z = z + b.reshape(1, -1, 1, 1)
            out = z * jax.nn.sigmoid(z)
        elif ltype == "MaxPool":
            out = jax.lax.reduce_window(inp, -jnp.inf, jax.lax.max,
                                        (1, 1, 2, 2), (1, 1, 2, 2), "VALID")
        elif ltype == "UpSample":
            out = jnp.repeat(jnp.repeat(inp, 2, axis=2), 2, axis=3)
        elif ltype == "Concat":
            out = jnp.concatenate(inp, axis=1)
        else:
            raise ValueError(ltype)
        y.append(out)
        if layer["output"]:
            outputs.append(out)
    return outputs


if __name__ == "__main__":
    key = jax.random.PRNGKey(0)
    key, kx = jax.random.split(key)
    N, C, H, W = 2, 3, 16, 16
    x = jax.random.normal(kx, (N, C, H, W), jnp.float32)   # NCHW, small shapes

    layers = build_yolo(MODEL_CFG, key)
    forward = make_fused_forward(layers, N, C, H, W)
    outs = jax.block_until_ready(forward(x))

    # Expected output shapes: [(2, 16, 8, 8), (2, 8, 16, 16)]
    assert outs[0].shape == (2, 16, 8, 8)
    assert outs[1].shape == (2, 8, 16, 16)
    assert all(bool(jnp.all(jnp.isfinite(o))) for o in outs)

    # Cross-check vs f32 XLA reference (bf16 MXU + approx-reciprocal SiLU -> loose tol).
    refs = yolo_forward_reference(layers, x)
    for o, r in zip(outs, refs):
        assert float(jnp.max(jnp.abs(o - r))) < 1e-1

    print("KERNEL_OK")
</pallas_src>

<mosaic_0001>
module attributes {stable_mosaic.version = 11 : i64} {
  func.func @kernel(%arg0: i32, %arg1: memref<1x3x256xbf16, #tpu.memory_space<vmem>>, %arg2: memref<9x16x3xbf16, #tpu.memory_space<vmem>>, %arg3: memref<16x1xf32, #tpu.memory_space<vmem>>, %arg4: memref<9x256x256xbf16, #tpu.memory_space<vmem>>, %arg5: memref<4x256x64xbf16, #tpu.memory_space<vmem>>, %arg6: memref<9x32x16xbf16, #tpu.memory_space<vmem>>, %arg7: memref<32x1xf32, #tpu.memory_space<vmem>>, %arg8: memref<9x64x64xbf16, #tpu.memory_space<vmem>>, %arg9: memref<4x64x16xbf16, #tpu.memory_space<vmem>>, %arg10: memref<1x32x32xbf16, #tpu.memory_space<vmem>>, %arg11: memref<32x1xf32, #tpu.memory_space<vmem>>, %arg12: memref<16x64xbf16, #tpu.memory_space<vmem>>, %arg13: memref<64x32xbf16, #tpu.memory_space<vmem>>, %arg14: memref<64x32xbf16, #tpu.memory_space<vmem>>, %arg15: memref<9x16x64xbf16, #tpu.memory_space<vmem>>, %arg16: memref<16x1xf32, #tpu.memory_space<vmem>>, %arg17: memref<9x64x64xbf16, #tpu.memory_space<vmem>>, %arg18: memref<1x8x16xbf16, #tpu.memory_space<vmem>>, %arg19: memref<8x1xf32, #tpu.memory_space<vmem>>, %arg20: memref<1x16x64xf32, #tpu.memory_space<vmem>>, %arg21: memref<1x8x256xf32, #tpu.memory_space<vmem>>) attributes {dimension_semantics = [#tpu.dimension_semantics<parallel>], iteration_bounds = array<i64: 2>, scalar_prefetch = 0 : i64, scratch_operands = 0 : i64, tpu.core_type = #tpu.core_type<tc>, window_params = [{transform_indices = @transform_0, window_bounds = array<i64: 1, 3, 256>}, {pipeline_mode = #tpu.pipeline_mode<synchronous>, transform_indices = @transform_1, window_bounds = array<i64: 9, 16, 3>}, {pipeline_mode = #tpu.pipeline_mode<synchronous>, transform_indices = @transform_2, window_bounds = array<i64: 16, 1>}, {pipeline_mode = #tpu.pipeline_mode<synchronous>, transform_indices = @transform_3, window_bounds = array<i64: 9, 256, 256>}, {pipeline_mode = #tpu.pipeline_mode<synchronous>, transform_indices = @transform_4, window_bounds = array<i64: 4, 256, 64>}, {pipeline_mode = #tpu.pipeline_mode<synchronous>, transform_indices = @transform_5, window_bounds = array<i64: 9, 32, 16>}, {pipeline_mode = #tpu.pipeline_mode<synchronous>, transform_indices = @transform_6, window_bounds = array<i64: 32, 1>}, {pipeline_mode = #tpu.pipeline_mode<synchronous>, transform_indices = @transform_7, window_bounds = array<i64: 9, 64, 64>}, {pipeline_mode = #tpu.pipeline_mode<synchronous>, transform_indices = @transform_8, window_bounds = array<i64: 4, 64, 16>}, {pipeline_mode = #tpu.pipeline_mode<synchronous>, transform_indices = @transform_9, window_bounds = array<i64: 1, 32, 32>}, {pipeline_mode = #tpu.pipeline_mode<synchronous>, transform_indices = @transform_10, window_bounds = array<i64: 32, 1>}, {pipeline_mode = #tpu.pipeline_mode<synchronous>, transform_indices = @transform_11, window_bounds = array<i64: 16, 64>}, {pipeline_mode = #tpu.pipeline_mode<synchronous>, transform_indices = @transform_12, window_bounds = array<i64: 64, 32>}, {pipeline_mode = #tpu.pipeline_mode<synchronous>, transform_indices = @transform_13, window_bounds = array<i64: 64, 32>}, {pipeline_mode = #tpu.pipeline_mode<synchronous>, transform_indices = @transform_14, window_bounds = array<i64: 9, 16, 64>}, {pipeline_mode = #tpu.pipeline_mode<synchronous>, transform_indices = @transform_15, window_bounds = array<i64: 16, 1>}, {pipeline_mode = #tpu.pipeline_mode<synchronous>, transform_indices = @transform_16, window_bounds = array<i64: 9, 64, 64>}, {pipeline_mode = #tpu.pipeline_mode<synchronous>, transform_indices = @transform_17, window_bounds = array<i64: 1, 8, 16>}, {pipeline_mode = #tpu.pipeline_mode<synchronous>, transform_indices = @transform_18, window_bounds = array<i64: 8, 1>}, {transform_indices = @transform_19, window_bounds = array<i64: 1, 16, 64>}, {transform_indices = @transform_20, window_bounds = array<i64: 1, 8, 256>}]} {
    %c0 = arith.constant 0 : index
    %c0_0 = arith.constant 0 : index
    %c0_1 = arith.constant 0 : index
    %0 = vector.load %arg1[%c0, %c0_0, %c0_1] : memref<1x3x256xbf16, #tpu.memory_space<vmem>>, vector<1x3x256xbf16>
    %1 = vector.shape_cast %0 : vector<1x3x256xbf16> to vector<3x256xbf16>
    %c0_2 = arith.constant 0 : index
    %c0_3 = arith.constant 0 : index
    %c0_4 = arith.constant 0 : index
    %2 = vector.load %arg4[%c0_2, %c0_3, %c0_4] : memref<9x256x256xbf16, #tpu.memory_space<vmem>>, vector<1x256x256xbf16>
    %3 = vector.shape_cast %2 : vector<1x256x256xbf16> to vector<256x256xbf16>
    %cst = arith.constant dense<0.000000e+00> : vector<3x256xf32>
    %4 = tpu.matmul %1, %3, %cst {dimension_numbers = #tpu.dot_dimension_numbers<[1], [0], [0], [1], [0, 0, 1, 1], [], []>} : vector<3x256xbf16>, vector<256x256xbf16>, vector<3x256xf32> -> vector<3x256xf32>
    %5 = arith.truncf %4 : vector<3x256xf32> to vector<3x256xbf16>
    %c0_5 = arith.constant 0 : index
    %c0_6 = arith.constant 0 : index
    %c0_7 = arith.constant 0 : index
    %6 = vector.load %arg2[%c0_5, %c0_6, %c0_7] : memref<9x16x3xbf16, #tpu.memory_space<vmem>>, vector<1x16x3xbf16>
    %7 = vector.shape_cast %6 : vector<1x16x3xbf16> to vector<16x3xbf16>
    %cst_8 = arith.constant dense<0.000000e+00> : vector<16x256xf32>
    %8 = tpu.matmul %7, %5, %cst_8 {dimension_numbers = #tpu.dot_dimension_numbers<[1], [0], [0], [1], [0, 0, 1, 1], [], []>} : vector<16x3xbf16>, vector<3x256xbf16>, vector<16x256xf32> -> vector<16x256xf32>
    %c1 = arith.constant 1 : index
    %c0_9 = arith.constant 0 : index
    %c0_10 = arith.constant 0 : index
    %9 = vector.load %arg4[%c1, %c0_9, %c0_10] : memref<9x256x256xbf16, #tpu.memory_space<vmem>>, vector<1x256x256xbf16>
    %10 = vector.shape_cast %9 : vector<1x256x256xbf16> to vector<256x256xbf16>
    %cst_11 = arith.constant dense<0.000000e+00> : vector<3x256xf32>
    %11 = tpu.matmul %1, %10, %cst_11 {dimension_numbers = #tpu.dot_dimension_numbers<[1], [0], [0], [1], [0, 0, 1, 1], [], []>} : vector<3x256xbf16>, vector<256x256xbf16>, vector<3x256xf32> -> vector<3x256xf32>
    %12 = arith.truncf %11 : vector<3x256xf32> to vector<3x256xbf16>
    %c1_12 = arith.constant 1 : index
    %c0_13 = arith.constant 0 : index
    %c0_14 = arith.constant 0 : index
    %13 = vector.load %arg2[%c1_12, %c0_13, %c0_14] : memref<9x16x3xbf16, #tpu.memory_space<vmem>>, vector<1x16x3xbf16>
    %14 = vector.shape_cast %13 : vector<1x16x3xbf16> to vector<16x3xbf16>
    %cst_15 = arith.constant dense<0.000000e+00> : vector<16x256xf32>
    %15 = tpu.matmul %14, %12, %cst_15 {dimension_numbers = #tpu.dot_dimension_numbers<[1], [0], [0], [1], [0, 0, 1, 1], [], []>} : vector<16x3xbf16>, vector<3x256xbf16>, vector<16x256xf32> -> vector<16x256xf32>
    %16 = arith.addf %8, %15 : vector<16x256xf32>
    %c2 = arith.constant 2 : index
    %c0_16 = arith.constant 0 : index
    %c0_17 = arith.constant 0 : index
    %17 = vector.load %arg4[%c2, %c0_16, %c0_17] : memref<9x256x256xbf16, #tpu.memory_space<vmem>>, vector<1x256x256xbf16>
    %18 = vector.shape_cast %17 : vector<1x256x256xbf16> to vector<256x256xbf16>
    %cst_18 = arith.constant dense<0.000000e+00> : vector<3x256xf32>
    %19 = tpu.matmul %1, %18, %cst_18 {dimension_numbers = #tpu.dot_dimension_numbers<[1], [0], [0], [1], [0, 0, 1, 1], [], []>} : vector<3x256xbf16>, vector<256x256xbf16>, vector<3x256xf32> -> vector<3x256xf32>
    %20 = arith.truncf %19 : vector<3x256xf32> to vector<3x256xbf16>
    %c2_19 = arith.constant 2 : index
    %c0_20 = arith.constant 0 : index
    %c0_21 = arith.constant 0 : index
    %21 = vector.load %arg2[%c2_19, %c0_20, %c0_21] : memref<9x16x3xbf16, #tpu.memory_space<vmem>>, vector<1x16x3xbf16>
    %22 = vector.shape_cast %21 : vector<1x16x3xbf16> to vector<16x3xbf16>
    %cst_22 = arith.constant dense<0.000000e+00> : vector<16x256xf32>
    %23 = tpu.matmul %22, %20, %cst_22 {dimension_numbers = #tpu.dot_dimension_numbers<[1], [0], [0], [1], [0, 0, 1, 1], [], []>} : vector<16x3xbf16>, vector<3x256xbf16>, vector<16x256xf32> -> vector<16x256xf32>
    %24 = arith.addf %16, %23 : vector<16x256xf32>
    %c3 = arith.constant 3 : index
    %c0_23 = arith.constant 0 : index
    %c0_24 = arith.constant 0 : index
    %25 = vector.load %arg4[%c3, %c0_23, %c0_24] : memref<9x256x256xbf16, #tpu.memory_space<vmem>>, vector<1x256x256xbf16>
    %26 = vector.shape_cast %25 : vector<1x256x256xbf16> to vector<256x256xbf16>
    %cst_25 = arith.constant dense<0.000000e+00> : vector<3x256xf32>
    %27 = tpu.matmul %1, %26, %cst_25 {dimension_numbers = #tpu.dot_dimension_numbers<[1], [0], [0], [1], [0, 0, 1, 1], [], []>} : vector<3x256xbf16>, vector<256x256xbf16>, vector<3x256xf32> -> vector<3x256xf32>
    %28 = arith.truncf %27 : vector<3x256xf32> to vector<3x256xbf16>
    %c3_26 = arith.constant 3 : index
    %c0_27 = arith.constant 0 : index
    %c0_28 = arith.constant 0 : index
    %29 = vector.load %arg2[%c3_26, %c0_27, %c0_28] : memref<9x16x3xbf16, #tpu.memory_space<vmem>>, vector<1x16x3xbf16>
    %30 = vector.shape_cast %29 : vector<1x16x3xbf16> to vector<16x3xbf16>
    %cst_29 = arith.constant dense<0.000000e+00> : vector<16x256xf32>
    %31 = tpu.matmul %30, %28, %cst_29 {dimension_numbers = #tpu.dot_dimension_numbers<[1], [0], [0], [1], [0, 0, 1, 1], [], []>} : vector<16x3xbf16>, vector<3x256xbf16>, vector<16x256xf32> -> vector<16x256xf32>
    %32 = arith.addf %24, %31 : vector<16x256xf32>
    %c4 = arith.constant 4 : index
    %c0_30 = arith.constant 0 : index
    %c0_31 = arith.constant 0 : index
    %33 = vector.load %arg4[%c4, %c0_30, %c0_31] : memref<9x256x256xbf16, #tpu.memory_space<vmem>>, vector<1x256x256xbf16>
    %34 = vector.shape_cast %33 : vector<1x256x256xbf16> to vector<256x256xbf16>
    %cst_32 = arith.constant dense<0.000000e+00> : vector<3x256xf32>
    %35 = tpu.matmul %1, %34, %cst_32 {dimension_numbers = #tpu.dot_dimension_numbers<[1], [0], [0], [1], [0, 0, 1, 1], [], []>} : vector<3x256xbf16>, vector<256x256xbf16>, vector<3x256xf32> -> vector<3x256xf32>
    %36 = arith.truncf %35 : vector<3x256xf32> to vector<3x256xbf16>
    %c4_33 = arith.constant 4 : index
    %c0_34 = arith.constant 0 : index
    %c0_35 = arith.constant 0 : index
    %37 = vector.load %arg2[%c4_33, %c0_34, %c0_35] : memref<9x16x3xbf16, #tpu.memory_space<vmem>>, vector<1x16x3xbf16>
    %38 = vector.shape_cast %37 : vector<1x16x3xbf16> to vector<16x3xbf16>
    %cst_36 = arith.constant dense<0.000000e+00> : vector<16x256xf32>
    %39 = tpu.matmul %38, %36, %cst_36 {dimension_numbers = #tpu.dot_dimension_numbers<[1], [0], [0], [1], [0, 0, 1, 1], [], []>} : vector<16x3xbf16>, vector<3x256xbf16>, vector<16x256xf32> -> vector<16x256xf32>
    %40 = arith.addf %32, %39 : vector<16x256xf32>
    %c5 = arith.constant 5 : index
    %c0_37 = arith.constant 0 : index
    %c0_38 = arith.constant 0 : index
    %41 = vector.load %arg4[%c5, %c0_37, %c0_38] : memref<9x256x256xbf16, #tpu.memory_space<vmem>>, vector<1x256x256xbf16>
    %42 = vector.shape_cast %41 : vector<1x256x256xbf16> to vector<256x256xbf16>
    %cst_39 = arith.constant dense<0.000000e+00> : vector<3x256xf32>
    %43 = tpu.matmul %1, %42, %cst_39 {dimension_numbers = #tpu.dot_dimension_numbers<[1], [0], [0], [1], [0, 0, 1, 1], [], []>} : vector<3x256xbf16>, vector<256x256xbf16>, vector<3x256xf32> -> vector<3x256xf32>
    %44 = arith.truncf %43 : vector<3x256xf32> to vector<3x256xbf16>
    %c5_40 = arith.constant 5 : index
    %c0_41 = arith.constant 0 : index
    %c0_42 = arith.constant 0 : index
    %45 = vector.load %arg2[%c5_40, %c0_41, %c0_42] : memref<9x16x3xbf16, #tpu.memory_space<vmem>>, vector<1x16x3xbf16>
    %46 = vector.shape_cast %45 : vector<1x16x3xbf16> to vector<16x3xbf16>
    %cst_43 = arith.constant dense<0.000000e+00> : vector<16x256xf32>
    %47 = tpu.matmul %46, %44, %cst_43 {dimension_numbers = #tpu.dot_dimension_numbers<[1], [0], [0], [1], [0, 0, 1, 1], [], []>} : vector<16x3xbf16>, vector<3x256xbf16>, vector<16x256xf32> -> vector<16x256xf32>
    %48 = arith.addf %40, %47 : vector<16x256xf32>
    %c6 = arith.constant 6 : index
    %c0_44 = arith.constant 0 : index
    %c0_45 = arith.constant 0 : index
    %49 = vector.load %arg4[%c6, %c0_44, %c0_45] : memref<9x256x256xbf16, #tpu.memory_space<vmem>>, vector<1x256x256xbf16>
    %50 = vector.shape_cast %49 : vector<1x256x256xbf16> to vector<256x256xbf16>
    %cst_46 = arith.constant dense<0.000000e+00> : vector<3x256xf32>
    %51 = tpu.matmul %1, %50, %cst_46 {dimension_numbers = #tpu.dot_dimension_numbers<[1], [0], [0], [1], [0, 0, 1, 1], [], []>} : vector<3x256xbf16>, vector<256x256xbf16>, vector<3x256xf32> -> vector<3x256xf32>
    %52 = arith.truncf %51 : vector<3x256xf32> to vector<3x256xbf16>
    %c6_47 = arith.constant 6 : index
    %c0_48 = arith.constant 0 : index
    %c0_49 = arith.constant 0 : index
    %53 = vector.load %arg2[%c6_47, %c0_48, %c0_49] : memref<9x16x3xbf16, #tpu.memory_space<vmem>>, vector<1x16x3xbf16>
    %54 = vector.shape_cast %53 : vector<1x16x3xbf16> to vector<16x3xbf16>
    %cst_50 = arith.constant dense<0.000000e+00> : vector<16x256xf32>
    %55 = tpu.matmul %54, %52, %cst_50 {dimension_numbers = #tpu.dot_dimension_numbers<[1], [0], [0], [1], [0, 0, 1, 1], [], []>} : vector<16x3xbf16>, vector<3x256xbf16>, vector<16x256xf32> -> vector<16x256xf32>
    %56 = arith.addf %48, %55 : vector<16x256xf32>
    %c7 = arith.constant 7 : index
    %c0_51 = arith.constant 0 : index
    %c0_52 = arith.constant 0 : index
    %57 = vector.load %arg4[%c7, %c0_51, %c0_52] : memref<9x256x256xbf16, #tpu.memory_space<vmem>>, vector<1x256x256xbf16>
    %58 = vector.shape_cast %57 : vector<1x256x256xbf16> to vector<256x256xbf16>
    %cst_53 = arith.constant dense<0.000000e+00> : vector<3x256xf32>
    %59 = tpu.matmul %1, %58, %cst_53 {dimension_numbers = #tpu.dot_dimension_numbers<[1], [0], [0], [1], [0, 0, 1, 1], [], []>} : vector<3x256xbf16>, vector<256x256xbf16>, vector<3x256xf32> -> vector<3x256xf32>
    %60 = arith.truncf %59 : vector<3x256xf32> to vector<3x256xbf16>
    %c7_54 = arith.constant 7 : index
    %c0_55 = arith.constant 0 : index
    %c0_56 = arith.constant 0 : index
    %61 = vector.load %arg2[%c7_54, %c0_55, %c0_56] : memref<9x16x3xbf16, #tpu.memory_space<vmem>>, vector<1x16x3xbf16>
    %62 = vector.shape_cast %61 : vector<1x16x3xbf16> to vector<16x3xbf16>
    %cst_57 = arith.constant dense<0.000000e+00> : vector<16x256xf32>
    %63 = tpu.matmul %62, %60, %cst_57 {dimension_numbers = #tpu.dot_dimension_numbers<[1], [0], [0], [1], [0, 0, 1, 1], [], []>} : vector<16x3xbf16>, vector<3x256xbf16>, vector<16x256xf32> -> vector<16x256xf32>
    %64 = arith.addf %56, %63 : vector<16x256xf32>
    %c8 = arith.constant 8 : index
    %c0_58 = arith.constant 0 : index
    %c0_59 = arith.constant 0 : index
    %65 = vector.load %arg4[%c8, %c0_58, %c0_59] : memref<9x256x256xbf16, #tpu.memory_space<vmem>>, vector<1x256x256xbf16>
    %66 = vector.shape_cast %65 : vector<1x256x256xbf16> to vector<256x256xbf16>
    %cst_60 = arith.constant dense<0.000000e+00> : vector<3x256xf32>
    %67 = tpu.matmul %1, %66, %cst_60 {dimension_numbers = #tpu.dot_dimension_numbers<[1], [0], [0], [1], [0, 0, 1, 1], [], []>} : vector<3x256xbf16>, vector<256x256xbf16>, vector<3x256xf32> -> vector<3x256xf32>
    %68 = arith.truncf %67 : vector<3x256xf32> to vector<3x256xbf16>
    %c8_61 = arith.constant 8 : index
    %c0_62 = arith.constant 0 : index
    %c0_63 = arith.constant 0 : index
    %69 = vector.load %arg2[%c8_61, %c0_62, %c0_63] : memref<9x16x3xbf16, #tpu.memory_space<vmem>>, vector<1x16x3xbf16>
    %70 = vector.shape_cast %69 : vector<1x16x3xbf16> to vector<16x3xbf16>
    %cst_64 = arith.constant dense<0.000000e+00> : vector<16x256xf32>
    %71 = tpu.matmul %70, %68, %cst_64 {dimension_numbers = #tpu.dot_dimension_numbers<[1], [0], [0], [1], [0, 0, 1, 1], [], []>} : vector<16x3xbf16>, vector<3x256xbf16>, vector<16x256xf32> -> vector<16x256xf32>
    %72 = arith.addf %64, %71 : vector<16x256xf32>
    %c0_65 = arith.constant 0 : index
    %c0_66 = arith.constant 0 : index
    %73 = vector.load %arg3[%c0_65, %c0_66] : memref<16x1xf32, #tpu.memory_space<vmem>>, vector<16x1xf32>
    %74 = vector.broadcast %73 : vector<16x1xf32> to vector<16x256xf32>
    %75 = arith.addf %72, %74 : vector<16x256xf32>
    %cst_67 = arith.constant 0.000000e+00 : f32
    %76 = vector.broadcast %cst_67 : f32 to vector<16x256xf32>
    %77 = arith.subf %76, %75 : vector<16x256xf32>
    %78 = math.exp %77 : vector<16x256xf32>
    %cst_68 = arith.constant 1.000000e+00 : f32
    %79 = vector.broadcast %cst_68 : f32 to vector<16x256xf32>
    %80 = arith.addf %79, %78 : vector<16x256xf32>
    %81 = tpu.reciprocal %80 {approx = true} : vector<16x256xf32> -> vector<16x256xf32>
    %82 = arith.mulf %75, %81 : vector<16x256xf32>
    %83 = arith.truncf %82 : vector<16x256xf32> to vector<16x256xbf16>
    %c0_69 = arith.constant 0 : index
    %c0_70 = arith.constant 0 : index
    %c0_71 = arith.constant 0 : index
    %84 = vector.load %arg5[%c0_69, %c0_70, %c0_71] : memref<4x256x64xbf16, #tpu.memory_space<vmem>>, vector<1x256x64xbf16>
    %85 = vector.shape_cast %84 : vector<1x256x64xbf16> to vector<256x64xbf16>
    %cst_72 = arith.constant dense<0.000000e+00> : vector<16x64xf32>
    %86 = tpu.matmul %83, %85, %cst_72 {dimension_numbers = #tpu.dot_dimension_numbers<[1], [0], [0], [1], [0, 0, 1, 1], [], []>} : vector<16x256xbf16>, vector<256x64xbf16>, vector<16x64xf32> -> vector<16x64xf32>
    %c1_73 = arith.constant 1 : index
    %c0_74 = arith.constant 0 : index
    %c0_75 = arith.constant 0 : index
    %87 = vector.load %arg5[%c1_73, %c0_74, %c0_75] : memref<4x256x64xbf16, #tpu.memory_space<vmem>>, vector<1x256x64xbf16>
    %88 = vector.shape_cast %87 : vector<1x256x64xbf16> to vector<256x64xbf16>
    %cst_76 = arith.constant dense<0.000000e+00> : vector<16x64xf32>
    %89 = tpu.matmul %83, %88, %cst_76 {dimension_numbers = #tpu.dot_dimension_numbers<[1], [0], [0], [1], [0, 0, 1, 1], [], []>} : vector<16x256xbf16>, vector<256x64xbf16>, vector<16x64xf32> -> vector<16x64xf32>
    %90 = arith.maximumf %86, %89 : vector<16x64xf32>
    %c2_77 = arith.constant 2 : index
    %c0_78 = arith.constant 0 : index
    %c0_79 = arith.constant 0 : index
    %91 = vector.load %arg5[%c2_77, %c0_78, %c0_79] : memref<4x256x64xbf16, #tpu.memory_space<vmem>>, vector<1x256x64xbf16>
    %92 = vector.shape_cast %91 : vector<1x256x64xbf16> to vector<256x64xbf16>
    %cst_80 = arith.constant dense<0.000000e+00> : vector<16x64xf32>
    %93 = tpu.matmul %83, %92, %cst_80 {dimension_numbers = #tpu.dot_dimension_numbers<[1], [0], [0], [1], [0, 0, 1, 1], [], []>} : vector<16x256xbf16>, vector<256x64xbf16>, vector<16x64xf32> -> vector<16x64xf32>
    %94 = arith.maximumf %90, %93 : vector<16x64xf32>
    %c3_81 = arith.constant 3 : index
    %c0_82 = arith.constant 0 : index
    %c0_83 = arith.constant 0 : index
    %95 = vector.load %arg5[%c3_81, %c0_82, %c0_83] : memref<4x256x64xbf16, #tpu.memory_space<vmem>>, vector<1x256x64xbf16>
    %96 = vector.shape_cast %95 : vector<1x256x64xbf16> to vector<256x64xbf16>
    %cst_84 = arith.constant dense<0.000000e+00> : vector<16x64xf32>
    %97 = tpu.matmul %83, %96, %cst_84 {dimension_numbers = #tpu.dot_dimension_numbers<[1], [0], [0], [1], [0, 0, 1, 1], [], []>} : vector<16x256xbf16>, vector<256x64xbf16>, vector<16x64xf32> -> vector<16x64xf32>
    %98 = arith.maximumf %94, %97 : vector<16x64xf32>
    %99 = arith.truncf %98 : vector<16x64xf32> to vector<16x64xbf16>
    %c0_85 = arith.constant 0 : index
    %c0_86 = arith.constant 0 : index
    %c0_87 = arith.constant 0 : index
    %100 = vector.load %arg8[%c0_85, %c0_86, %c0_87] : memref<9x64x64xbf16, #tpu.memory_space<vmem>>, vector<1x64x64xbf16>
    %101 = vector.shape_cast %100 : vector<1x64x64xbf16> to vector<64x64xbf16>
    %cst_88 = arith.constant dense<0.000000e+00> : vector<16x64xf32>
    %102 = tpu.matmul %99, %101, %cst_88 {dimension_numbers = #tpu.dot_dimension_numbers<[1], [0], [0], [1], [0, 0, 1, 1], [], []>} : vector<16x64xbf16>, vector<64x64xbf16>, vector<16x64xf32> -> vector<16x64xf32>
    %103 = arith.truncf %102 : vector<16x64xf32> to vector<16x64xbf16>
    %c0_89 = arith.constant 0 : index
    %c0_90 = arith.constant 0 : index
    %c0_91 = arith.constant 0 : index
    %104 = vector.load %arg6[%c0_89, %c0_90, %c0_91] : memref<9x32x16xbf16, #tpu.memory_space<vmem>>, vector<1x32x16xbf16>
    %105 = vector.shape_cast %104 : vector<1x32x16xbf16> to vector<32x16xbf16>
    %cst_92 = arith.constant dense<0.000000e+00> : vector<32x64xf32>
    %106 = tpu.matmul %105, %103, %cst_92 {dimension_numbers = #tpu.dot_dimension_numbers<[1], [0], [0], [1], [0, 0, 1, 1], [], []>} : vector<32x16xbf16>, vector<16x64xbf16>, vector<32x64xf32> -> vector<32x64xf32>
    %c1_93 = arith.constant 1 : index
    %c0_94 = arith.constant 0 : index
    %c0_95 = arith.constant 0 : index
    %107 = vector.load %arg8[%c1_93, %c0_94, %c0_95] : memref<9x64x64xbf16, #tpu.memory_space<vmem>>, vector<1x64x64xbf16>
    %108 = vector.shape_cast %107 : vector<1x64x64xbf16> to vector<64x64xbf16>
    %cst_96 = arith.constant dense<0.000000e+00> : vector<16x64xf32>
    %109 = tpu.matmul %99, %108, %cst_96 {dimension_numbers = #tpu.dot_dimension_numbers<[1], [0], [0], [1], [0, 0, 1, 1], [], []>} : vector<16x64xbf16>, vector<64x64xbf16>, vector<16x64xf32> -> vector<16x64xf32>
    %110 = arith.truncf %109 : vector<16x64xf32> to vector<16x64xbf16>
    %c1_97 = arith.constant 1 : index
    %c0_98 = arith.constant 0 : index
    %c0_99 = arith.constant 0 : index
    %111 = vector.load %arg6[%c1_97, %c0_98, %c0_99] : memref<9x32x16xbf16, #tpu.memory_space<vmem>>, vector<1x32x16xbf16>
    %112 = vector.shape_cast %111 : vector<1x32x16xbf16> to vector<32x16xbf16>
    %cst_100 = arith.constant dense<0.000000e+00> : vector<32x64xf32>
    %113 = tpu.matmul %112, %110, %cst_100 {dimension_numbers = #tpu.dot_dimension_numbers<[1], [0], [0], [1], [0, 0, 1, 1], [], []>} : vector<32x16xbf16>, vector<16x64xbf16>, vector<32x64xf32> -> vector<32x64xf32>
    %114 = arith.addf %106, %113 : vector<32x64xf32>
    %c2_101 = arith.constant 2 : index
    %c0_102 = arith.constant 0 : index
    %c0_103 = arith.constant 0 : index
    %115 = vector.load %arg8[%c2_101, %c0_102, %c0_103] : memref<9x64x64xbf16, #tpu.memory_space<vmem>>, vector<1x64x64xbf16>
    %116 = vector.shape_cast %115 : vector<1x64x64xbf16> to vector<64x64xbf16>
    %cst_104 = arith.constant dense<0.000000e+00> : vector<16x64xf32>
    %117 = tpu.matmul %99, %116, %cst_104 {dimension_numbers = #tpu.dot_dimension_numbers<[1], [0], [0], [1], [0, 0, 1, 1], [], []>} : vector<16x64xbf16>, vector<64x64xbf16>, vector<16x64xf32> -> vector<16x64xf32>
    %118 = arith.truncf %117 : vector<16x64xf32> to vector<16x64xbf16>
    %c2_105 = arith.constant 2 : index
    %c0_106 = arith.constant 0 : index
    %c0_107 = arith.constant 0 : index
    %119 = vector.load %arg6[%c2_105, %c0_106, %c0_107] : memref<9x32x16xbf16, #tpu.memory_space<vmem>>, vector<1x32x16xbf16>
    %120 = vector.shape_cast %119 : vector<1x32x16xbf16> to vector<32x16xbf16>
    %cst_108 = arith.constant dense<0.000000e+00> : vector<32x64xf32>
    %121 = tpu.matmul %120, %118, %cst_108 {dimension_numbers = #tpu.dot_dimension_numbers<[1], [0], [0], [1], [0, 0, 1, 1], [], []>} : vector<32x16xbf16>, vector<16x64xbf16>, vector<32x64xf32> -> vector<32x64xf32>
    %122 = arith.addf %114, %121 : vector<32x64xf32>
    %c3_109 = arith.constant 3 : index
    %c0_110 = arith.constant 0 : index
    %c0_111 = arith.constant 0 : index
    %123 = vector.load %arg8[%c3_109, %c0_110, %c0_111] : memref<9x64x64xbf16, #tpu.memory_space<vmem>>, vector<1x64x64xbf16>
    %124 = vector.shape_cast %123 : vector<1x64x64xbf16> to vector<64x64xbf16>
    %cst_112 = arith.constant dense<0.000000e+00> : vector<16x64xf32>
    %125 = tpu.matmul %99, %124, %cst_112 {dimension_numbers = #tpu.dot_dimension_numbers<[1], [0], [0], [1], [0, 0, 1, 1], [], []>} : vector<16x64xbf16>, vector<64x64xbf16>, vector<16x64xf32> -> vector<16x64xf32>
    %126 = arith.truncf %125 : vector<16x64xf32> to vector<16x64xbf16>
    %c3_113 = arith.constant 3 : index
    %c0_114 = arith.constant 0 : index
    %c0_115 = arith.constant 0 : index
    %127 = vector.load %arg6[%c3_113, %c0_114, %c0_115] : memref<9x32x16xbf16, #tpu.memory_space<vmem>>, vector<1x32x16xbf16>
    %128 = vector.shape_cast %127 : vector<1x32x16xbf16> to vector<32x16xbf16>
    %cst_116 = arith.constant dense<0.000000e+00> : vector<32x64xf32>
    %129 = tpu.matmul %128, %126, %cst_116 {dimension_numbers = #tpu.dot_dimension_numbers<[1], [0], [0], [1], [0, 0, 1, 1], [], []>} : vector<32x16xbf16>, vector<16x64xbf16>, vector<32x64xf32> -> vector<32x64xf32>
    %130 = arith.addf %122, %129 : vector<32x64xf32>
    %c4_117 = arith.constant 4 : index
    %c0_118 = arith.constant 0 : index
    %c0_119 = arith.constant 0 : index
    %131 = vector.load %arg8[%c4_117, %c0_118, %c0_119] : memref<9x64x64xbf16, #tpu.memory_space<vmem>>, vector<1x64x64xbf16>
    %132 = vector.shape_cast %131 : vector<1x64x64xbf16> to vector<64x64xbf16>
    %cst_120 = arith.constant dense<0.000000e+00> : vector<16x64xf32>
    %133 = tpu.matmul %99, %132, %cst_120 {dimension_numbers = #tpu.dot_dimension_numbers<[1], [0], [0], [1], [0, 0, 1, 1], [], []>} : vector<16x64xbf16>, vector<64x64xbf16>, vector<16x64xf32> -> vector<16x64xf32>
    %134 = arith.truncf %133 : vector<16x64xf32> to vector<16x64xbf16>
    %c4_121 = arith.constant 4 : index
    %c0_122 = arith.constant 0 : index
    %c0_123 = arith.constant 0 : index
    %135 = vector.load %arg6[%c4_121, %c0_122, %c0_123] : memref<9x32x16xbf16, #tpu.memory_space<vmem>>, vector<1x32x16xbf16>
    %136 = vector.shape_cast %135 : vector<1x32x16xbf16> to vector<32x16xbf16>
    %cst_124 = arith.constant dense<0.000000e+00> : vector<32x64xf32>
    %137 = tpu.matmul %136, %134, %cst_124 {dimension_numbers = #tpu.dot_dimension_numbers<[1], [0], [0], [1], [0, 0, 1, 1], [], []>} : vector<32x16xbf16>, vector<16x64xbf16>, vector<32x64xf32> -> vector<32x64xf32>
    %138 = arith.addf %130, %137 : vector<32x64xf32>
    %c5_125 = arith.constant 5 : index
    %c0_126 = arith.constant 0 : index
    %c0_127 = arith.constant 0 : index
    %139 = vector.load %arg8[%c5_125, %c0_126, %c0_127] : memref<9x64x64xbf16, #tpu.memory_space<vmem>>, vector<1x64x64xbf16>
    %140 = vector.shape_cast %139 : vector<1x64x64xbf16> to vector<64x64xbf16>
    %cst_128 = arith.constant dense<0.000000e+00> : vector<16x64xf32>
    %141 = tpu.matmul %99, %140, %cst_128 {dimension_numbers = #tpu.dot_dimension_numbers<[1], [0], [0], [1], [0, 0, 1, 1], [], []>} : vector<16x64xbf16>, vector<64x64xbf16>, vector<16x64xf32> -> vector<16x64xf32>
    %142 = arith.truncf %141 : vector<16x64xf32> to vector<16x64xbf16>
    %c5_129 = arith.constant 5 : index
    %c0_130 = arith.constant 0 : index
    %c0_131 = arith.constant 0 : index
    %143 = vector.load %arg6[%c5_129, %c0_130, %c0_131] : memref<9x32x16xbf16, #tpu.memory_space<vmem>>, vector<1x32x16xbf16>
    %144 = vector.shape_cast %143 : vector<1x32x16xbf16> to vector<32x16xbf16>
    %cst_132 = arith.constant dense<0.000000e+00> : vector<32x64xf32>
    %145 = tpu.matmul %144, %142, %cst_132 {dimension_numbers = #tpu.dot_dimension_numbers<[1], [0], [0], [1], [0, 0, 1, 1], [], []>} : vector<32x16xbf16>, vector<16x64xbf16>, vector<32x64xf32> -> vector<32x64xf32>
    %146 = arith.addf %138, %145 : vector<32x64xf32>
    %c6_133 = arith.constant 6 : index
    %c0_134 = arith.constant 0 : index
    %c0_135 = arith.constant 0 : index
    %147 = vector.load %arg8[%c6_133, %c0_134, %c0_135] : memref<9x64x64xbf16, #tpu.memory_space<vmem>>, vector<1x64x64xbf16>
    %148 = vector.shape_cast %147 : vector<1x64x64xbf16> to vector<64x64xbf16>
    %cst_136 = arith.constant dense<0.000000e+00> : vector<16x64xf32>
    %149 = tpu.matmul %99, %148, %cst_136 {dimension_numbers = #tpu.dot_dimension_numbers<[1], [0], [0], [1], [0, 0, 1, 1], [], []>} : vector<16x64xbf16>, vector<64x64xbf16>, vector<16x64xf32> -> vector<16x64xf32>
    %150 = arith.truncf %149 : vector<16x64xf32> to vector<16x64xbf16>
    %c6_137 = arith.constant 6 : index
    %c0_138 = arith.constant 0 : index
    %c0_139 = arith.constant 0 : index
    %151 = vector.load %arg6[%c6_137, %c0_138, %c0_139] : memref<9x32x16xbf16, #tpu.memory_space<vmem>>, vector<1x32x16xbf16>
    %152 = vector.shape_cast %151 : vector<1x32x16xbf16> to vector<32x16xbf16>
    %cst_140 = arith.constant dense<0.000000e+00> : vector<32x64xf32>
    %153 = tpu.matmul %152, %150, %cst_140 {dimension_numbers = #tpu.dot_dimension_numbers<[1], [0], [0], [1], [0, 0, 1, 1], [], []>} : vector<32x16xbf16>, vector<16x64xbf16>, vector<32x64xf32> -> vector<32x64xf32>
    %154 = arith.addf %146, %153 : vector<32x64xf32>
    %c7_141 = arith.constant 7 : index
    %c0_142 = arith.constant 0 : index
    %c0_143 = arith.constant 0 : index
    %155 = vector.load %arg8[%c7_141, %c0_142, %c0_143] : memref<9x64x64xbf16, #tpu.memory_space<vmem>>, vector<1x64x64xbf16>
    %156 = vector.shape_cast %155 : vector<1x64x64xbf16> to vector<64x64xbf16>
    %cst_144 = arith.constant dense<0.000000e+00> : vector<16x64xf32>
    %157 = tpu.matmul %99, %156, %cst_144 {dimension_numbers = #tpu.dot_dimension_numbers<[1], [0], [0], [1], [0, 0, 1, 1], [], []>} : vector<16x64xbf16>, vector<64x64xbf16>, vector<16x64xf32> -> vector<16x64xf32>
    %158 = arith.truncf %157 : vector<16x64xf32> to vector<16x64xbf16>
    %c7_145 = arith.constant 7 : index
    %c0_146 = arith.constant 0 : index
    %c0_147 = arith.constant 0 : index
    %159 = vector.load %arg6[%c7_145, %c0_146, %c0_147] : memref<9x32x16xbf16, #tpu.memory_space<vmem>>, vector<1x32x16xbf16>
    %160 = vector.shape_cast %159 : vector<1x32x16xbf16> to vector<32x16xbf16>
    %cst_148 = arith.constant dense<0.000000e+00> : vector<32x64xf32>
    %161 = tpu.matmul %160, %158, %cst_148 {dimension_numbers = #tpu.dot_dimension_numbers<[1], [0], [0], [1], [0, 0, 1, 1], [], []>} : vector<32x16xbf16>, vector<16x64xbf16>, vector<32x64xf32> -> vector<32x64xf32>
    %162 = arith.addf %154, %161 : vector<32x64xf32>
    %c8_149 = arith.constant 8 : index
    %c0_150 = arith.constant 0 : index
    %c0_151 = arith.constant 0 : index
    %163 = vector.load %arg8[%c8_149, %c0_150, %c0_151] : memref<9x64x64xbf16, #tpu.memory_space<vmem>>, vector<1x64x64xbf16>
    %164 = vector.shape_cast %163 : vector<1x64x64xbf16> to vector<64x64xbf16>
    %cst_152 = arith.constant dense<0.000000e+00> : vector<16x64xf32>
    %165 = tpu.matmul %99, %164, %cst_152 {dimension_numbers = #tpu.dot_dimension_numbers<[1], [0], [0], [1], [0, 0, 1, 1], [], []>} : vector<16x64xbf16>, vector<64x64xbf16>, vector<16x64xf32> -> vector<16x64xf32>
    %166 = arith.truncf %165 : vector<16x64xf32> to vector<16x64xbf16>
    %c8_153 = arith.constant 8 : index
    %c0_154 = arith.constant 0 : index
    %c0_155 = arith.constant 0 : index
    %167 = vector.load %arg6[%c8_153, %c0_154, %c0_155] : memref<9x32x16xbf16, #tpu.memory_space<vmem>>, vector<1x32x16xbf16>
    %168 = vector.shape_cast %167 : vector<1x32x16xbf16> to vector<32x16xbf16>
    %cst_156 = arith.constant dense<0.000000e+00> : vector<32x64xf32>
    %169 = tpu.matmul %168, %166, %cst_156 {dimension_numbers = #tpu.dot_dimension_numbers<[1], [0], [0], [1], [0, 0, 1, 1], [], []>} : vector<32x16xbf16>, vector<16x64xbf16>, vector<32x64xf32> -> vector<32x64xf32>
    %170 = arith.addf %162, %169 : vector<32x64xf32>
    %c0_157 = arith.constant 0 : index
    %c0_158 = arith.constant 0 : index
    %171 = vector.load %arg7[%c0_157, %c0_158] : memref<32x1xf32, #tpu.memory_space<vmem>>, vector<32x1xf32>
    %172 = vector.broadcast %171 : vector<32x1xf32> to vector<32x64xf32>
    %173 = arith.addf %170, %172 : vector<32x64xf32>
    %cst_159 = arith.constant 0.000000e+00 : f32
    %174 = vector.broadcast %cst_159 : f32 to vector<32x64xf32>
    %175 = arith.subf %174, %173 : vector<32x64xf32>
    %176 = math.exp %175 : vector<32x64xf32>
    %cst_160 = arith.constant 1.000000e+00 : f32
    %177 = vector.broadcast %cst_160 : f32 to vector<32x64xf32>
    %178 = arith.addf %177, %176 : vector<32x64xf32>
    %179 = tpu.reciprocal %178 {approx = true} : vector<32x64xf32> -> vector<32x64xf32>
    %180 = arith.mulf %173, %179 : vector<32x64xf32>
    %181 = arith.truncf %180 : vector<32x64xf32> to vector<32x64xbf16>
    %c0_161 = arith.constant 0 : index
    %c0_162 = arith.constant 0 : index
    %c0_163 = arith.constant 0 : index
    %182 = vector.load %arg9[%c0_161, %c0_162, %c0_163] : memref<4x64x16xbf16, #tpu.memory_space<vmem>>, vector<1x64x16xbf16>
    %183 = vector.shape_cast %182 : vector<1x64x16xbf16> to vector<64x16xbf16>
    %cst_164 = arith.constant dense<0.000000e+00> : vector<32x16xf32>
    %184 = tpu.matmul %181, %183, %cst_164 {dimension_numbers = #tpu.dot_dimension_numbers<[1], [0], [0], [1], [0, 0, 1, 1], [], []>} : vector<32x64xbf16>, vector<64x16xbf16>, vector<32x16xf32> -> vector<32x16xf32>
    %c1_165 = arith.constant 1 : index
    %c0_166 = arith.constant 0 : index
    %c0_167 = arith.constant 0 : index
    %185 = vector.load %arg9[%c1_165, %c0_166, %c0_167] : memref<4x64x16xbf16, #tpu.memory_space<vmem>>, vector<1x64x16xbf16>
    %186 = vector.shape_cast %185 : vector<1x64x16xbf16> to vector<64x16xbf16>
    %cst_168 = arith.constant dense<0.000000e+00> : vector<32x16xf32>
    %187 = tpu.matmul %181, %186, %cst_168 {dimension_numbers = #tpu.dot_dimension_numbers<[1], [0], [0], [1], [0, 0, 1, 1], [], []>} : vector<32x64xbf16>, vector<64x16xbf16>, vector<32x16xf32> -> vector<32x16xf32>
    %188 = arith.maximumf %184, %187 : vector<32x16xf32>
    %c2_169 = arith.constant 2 : index
    %c0_170 = arith.constant 0 : index
    %c0_171 = arith.constant 0 : index
    %189 = vector.load %arg9[%c2_169, %c0_170, %c0_171] : memref<4x64x16xbf16, #tpu.memory_space<vmem>>, vector<1x64x16xbf16>
    %190 = vector.shape_cast %189 : vector<1x64x16xbf16> to vector<64x16xbf16>
    %cst_172 = arith.constant dense<0.000000e+00> : vector<32x16xf32>
    %191 = tpu.matmul %181, %190, %cst_172 {dimension_numbers = #tpu.dot_dimension_numbers<[1], [0], [0], [1], [0, 0, 1, 1], [], []>} : vector<32x64xbf16>, vector<64x16xbf16>, vector<32x16xf32> -> vector<32x16xf32>
    %192 = arith.maximumf %188, %191 : vector<32x16xf32>
    %c3_173 = arith.constant 3 : index
    %c0_174 = arith.constant 0 : index
    %c0_175 = arith.constant 0 : index
    %193 = vector.load %arg9[%c3_173, %c0_174, %c0_175] : memref<4x64x16xbf16, #tpu.memory_space<vmem>>, vector<1x64x16xbf16>
    %194 = vector.shape_cast %193 : vector<1x64x16xbf16> to vector<64x16xbf16>
    %cst_176 = arith.constant dense<0.000000e+00> : vector<32x16xf32>
    %195 = tpu.matmul %181, %194, %cst_176 {dimension_numbers = #tpu.dot_dimension_numbers<[1], [0], [0], [1], [0, 0, 1, 1], [], []>} : vector<32x64xbf16>, vector<64x16xbf16>, vector<32x16xf32> -> vector<32x16xf32>
    %196 = arith.maximumf %192, %195 : vector<32x16xf32>
    %197 = arith.truncf %196 : vector<32x16xf32> to vector<32x16xbf16>
    %c0_177 = arith.constant 0 : index
    %c0_178 = arith.constant 0 : index
    %c0_179 = arith.constant 0 : index
    %198 = vector.load %arg10[%c0_177, %c0_178, %c0_179] : memref<1x32x32xbf16, #tpu.memory_space<vmem>>, vector<1x32x32xbf16>
    %199 = vector.shape_cast %198 : vector<1x32x32xbf16> to vector<32x32xbf16>
    %cst_180 = arith.constant dense<0.000000e+00> : vector<32x16xf32>
    %200 = tpu.matmul %199, %197, %cst_180 {dimension_numbers = #tpu.dot_dimension_numbers<[1], [0], [0], [1], [0, 0, 1, 1], [], []>} : vector<32x32xbf16>, vector<32x16xbf16>, vector<32x16xf32> -> vector<32x16xf32>
    %c0_181 = arith.constant 0 : index
    %c0_182 = arith.constant 0 : index
    %201 = vector.load %arg11[%c0_181, %c0_182] : memref<32x1xf32, #tpu.memory_space<vmem>>, vector<32x1xf32>
    %202 = vector.broadcast %201 : vector<32x1xf32> to vector<32x16xf32>
    %203 = arith.addf %200, %202 : vector<32x16xf32>
    %cst_183 = arith.constant 0.000000e+00 : f32
    %204 = vector.broadcast %cst_183 : f32 to vector<32x16xf32>
    %205 = arith.subf %204, %203 : vector<32x16xf32>
    %206 = math.exp %205 : vector<32x16xf32>
    %cst_184 = arith.constant 1.000000e+00 : f32
    %207 = vector.broadcast %cst_184 : f32 to vector<32x16xf32>
    %208 = arith.addf %207, %206 : vector<32x16xf32>
    %209 = tpu.reciprocal %208 {approx = true} : vector<32x16xf32> -> vector<32x16xf32>
    %210 = arith.mulf %203, %209 : vector<32x16xf32>
    %211 = arith.truncf %210 : vector<32x16xf32> to vector<32x16xbf16>
    %c0_185 = arith.constant 0 : index
    %c0_186 = arith.constant 0 : index
    %212 = vector.load %arg12[%c0_185, %c0_186] : memref<16x64xbf16, #tpu.memory_space<vmem>>, vector<16x64xbf16>
    %cst_187 = arith.constant dense<0.000000e+00> : vector<32x64xf32>
    %213 = tpu.matmul %211, %212, %cst_187 {dimension_numbers = #tpu.dot_dimension_numbers<[1], [0], [0], [1], [0, 0, 1, 1], [], []>} : vector<32x16xbf16>, vector<16x64xbf16>, vector<32x64xf32> -> vector<32x64xf32>
    %214 = arith.truncf %213 : vector<32x64xf32> to vector<32x64xbf16>
    %c0_188 = arith.constant 0 : index
    %c0_189 = arith.constant 0 : index
    %215 = vector.load %arg13[%c0_188, %c0_189] : memref<64x32xbf16, #tpu.memory_space<vmem>>, vector<64x32xbf16>
    %cst_190 = arith.constant dense<0.000000e+00> : vector<64x64xf32>
    %216 = tpu.matmul %215, %214, %cst_190 {dimension_numbers = #tpu.dot_dimension_numbers<[1], [0], [0], [1], [0, 0, 1, 1], [], []>} : vector<64x32xbf16>, vector<32x64xbf16>, vector<64x64xf32> -> vector<64x64xf32>
    %c0_191 = arith.constant 0 : index
    %c0_192 = arith.constant 0 : index
    %217 = vector.load %arg14[%c0_191, %c0_192] : memref<64x32xbf16, #tpu.memory_space<vmem>>, vector<64x32xbf16>
    %cst_193 = arith.constant dense<0.000000e+00> : vector<64x64xf32>
    %218 = tpu.matmul %217, %181, %cst_193 {dimension_numbers = #tpu.dot_dimension_numbers<[1], [0], [0], [1], [0, 0, 1, 1], [], []>} : vector<64x32xbf16>, vector<32x64xbf16>, vector<64x64xf32> -> vector<64x64xf32>
    %219 = arith.addf %216, %218 : vector<64x64xf32>
    %220 = arith.truncf %219 : vector<64x64xf32> to vector<64x64xbf16>
    %c0_194 = arith.constant 0 : index
    %c0_195 = arith.constant 0 : index
    %c0_196 = arith.constant 0 : index
    %221 = vector.load %arg17[%c0_194, %c0_195, %c0_196] : memref<9x64x64xbf16, #tpu.memory_space<vmem>>, vector<1x64x64xbf16>
    %222 = vector.shape_cast %221 : vector<1x64x64xbf16> to vector<64x64xbf16>
    %cst_197 = arith.constant dense<0.000000e+00> : vector<64x64xf32>
    %223 = tpu.matmul %220, %222, %cst_197 {dimension_numbers = #tpu.dot_dimension_numbers<[1], [0], [0], [1], [0, 0, 1, 1], [], []>} : vector<64x64xbf16>, vector<64x64xbf16>, vector<64x64xf32> -> vector<64x64xf32>
    %224 = arith.truncf %223 : vector<64x64xf32> to vector<64x64xbf16>
    %c0_198 = arith.constant 0 : index
    %c0_199 = arith.constant 0 : index
    %c0_200 = arith.constant 0 : index
    %225 = vector.load %arg15[%c0_198, %c0_199, %c0_200] : memref<9x16x64xbf16, #tpu.memory_space<vmem>>, vector<1x16x64xbf16>
    %226 = vector.shape_cast %225 : vector<1x16x64xbf16> to vector<16x64xbf16>
    %cst_201 = arith.constant dense<0.000000e+00> : vector<16x64xf32>
    %227 = tpu.matmul %226, %224, %cst_201 {dimension_numbers = #tpu.dot_dimension_numbers<[1], [0], [0], [1], [0, 0, 1, 1], [], []>} : vector<16x64xbf16>, vector<64x64xbf16>, vector<16x64xf32> -> vector<16x64xf32>
    %c1_202 = arith.constant 1 : index
    %c0_203 = arith.constant 0 : index
    %c0_204 = arith.constant 0 : index
    %228 = vector.load %arg17[%c1_202, %c0_203, %c0_204] : memref<9x64x64xbf16, #tpu.memory_space<vmem>>, vector<1x64x64xbf16>
    %229 = vector.shape_cast %228 : vector<1x64x64xbf16> to vector<64x64xbf16>
    %cst_205 = arith.constant dense<0.000000e+00> : vector<64x64xf32>
    %230 = tpu.matmul %220, %229, %cst_205 {dimension_numbers = #tpu.dot_dimension_numbers<[1], [0], [0], [1], [0, 0, 1, 1], [], []>} : vector<64x64xbf16>, vector<64x64xbf16>, vector<64x64xf32> -> vector<64x64xf32>
    %231 = arith.truncf %230 : vector<64x64xf32> to vector<64x64xbf16>
    %c1_206 = arith.constant 1 : index
    %c0_207 = arith.constant 0 : index
    %c0_208 = arith.constant 0 : index
    %232 = vector.load %arg15[%c1_206, %c0_207, %c0_208] : memref<9x16x64xbf16, #tpu.memory_space<vmem>>, vector<1x16x64xbf16>
    %233 = vector.shape_cast %232 : vector<1x16x64xbf16> to vector<16x64xbf16>
    %cst_209 = arith.constant dense<0.000000e+00> : vector<16x64xf32>
    %234 = tpu.matmul %233, %231, %cst_209 {dimension_numbers = #tpu.dot_dimension_numbers<[1], [0], [0], [1], [0, 0, 1, 1], [], []>} : vector<16x64xbf16>, vector<64x64xbf16>, vector<16x64xf32> -> vector<16x64xf32>
    %235 = arith.addf %227, %234 : vector<16x64xf32>
    %c2_210 = arith.constant 2 : index
    %c0_211 = arith.constant 0 : index
    %c0_212 = arith.constant 0 : index
    %236 = vector.load %arg17[%c2_210, %c0_211, %c0_212] : memref<9x64x64xbf16, #tpu.memory_space<vmem>>, vector<1x64x64xbf16>
    %237 = vector.shape_cast %236 : vector<1x64x64xbf16> to vector<64x64xbf16>
    %cst_213 = arith.constant dense<0.000000e+00> : vector<64x64xf32>
    %238 = tpu.matmul %220, %237, %cst_213 {dimension_numbers = #tpu.dot_dimension_numbers<[1], [0], [0], [1], [0, 0, 1, 1], [], []>} : vector<64x64xbf16>, vector<64x64xbf16>, vector<64x64xf32> -> vector<64x64xf32>
    %239 = arith.truncf %238 : vector<64x64xf32> to vector<64x64xbf16>
    %c2_214 = arith.constant 2 : index
    %c0_215 = arith.constant 0 : index
    %c0_216 = arith.constant 0 : index
    %240 = vector.load %arg15[%c2_214, %c0_215, %c0_216] : memref<9x16x64xbf16, #tpu.memory_space<vmem>>, vector<1x16x64xbf16>
    %241 = vector.shape_cast %240 : vector<1x16x64xbf16> to vector<16x64xbf16>
    %cst_217 = arith.constant dense<0.000000e+00> : vector<16x64xf32>
    %242 = tpu.matmul %241, %239, %cst_217 {dimension_numbers = #tpu.dot_dimension_numbers<[1], [0], [0], [1], [0, 0, 1, 1], [], []>} : vector<16x64xbf16>, vector<64x64xbf16>, vector<16x64xf32> -> vector<16x64xf32>
    %243 = arith.addf %235, %242 : vector<16x64xf32>
    %c3_218 = arith.constant 3 : index
    %c0_219 = arith.constant 0 : index
    %c0_220 = arith.constant 0 : index
    %244 = vector.load %arg17[%c3_218, %c0_219, %c0_220] : memref<9x64x64xbf16, #tpu.memory_space<vmem>>, vector<1x64x64xbf16>
    %245 = vector.shape_cast %244 : vector<1x64x64xbf16> to vector<64x64xbf16>
    %cst_221 = arith.constant dense<0.000000e+00> : vector<64x64xf32>
    %246 = tpu.matmul %220, %245, %cst_221 {dimension_numbers = #tpu.dot_dimension_numbers<[1], [0], [0], [1], [0, 0, 1, 1], [], []>} : vector<64x64xbf16>, vector<64x64xbf16>, vector<64x64xf32> -> vector<64x64xf32>
    %247 = arith.truncf %246 : vector<64x64xf32> to vector<64x64xbf16>
    %c3_222 = arith.constant 3 : index
    %c0_223 = arith.constant 0 : index
    %c0_224 = arith.constant 0 : index
    %248 = vector.load %arg15[%c3_222, %c0_223, %c0_224] : memref<9x16x64xbf16, #tpu.memory_space<vmem>>, vector<1x16x64xbf16>
    %249 = vector.shape_cast %248 : vector<1x16x64xbf16> to vector<16x64xbf16>
    %cst_225 = arith.constant dense<0.000000e+00> : vector<16x64xf32>
    %250 = tpu.matmul %249, %247, %cst_225 {dimension_numbers = #tpu.dot_dimension_numbers<[1], [0], [0], [1], [0, 0, 1, 1], [], []>} : vector<16x64xbf16>, vector<64x64xbf16>, vector<16x64xf32> -> vector<16x64xf32>
    %251 = arith.addf %243, %250 : vector<16x64xf32>
    %c4_226 = arith.constant 4 : index
    %c0_227 = arith.constant 0 : index
    %c0_228 = arith.constant 0 : index
    %252 = vector.load %arg17[%c4_226, %c0_227, %c0_228] : memref<9x64x64xbf16, #tpu.memory_space<vmem>>, vector<1x64x64xbf16>
    %253 = vector.shape_cast %252 : vector<1x64x64xbf16> to vector<64x64xbf16>
    %cst_229 = arith.constant dense<0.000000e+00> : vector<64x64xf32>
    %254 = tpu.matmul %220, %253, %cst_229 {dimension_numbers = #tpu.dot_dimension_numbers<[1], [0], [0], [1], [0, 0, 1, 1], [], []>} : vector<64x64xbf16>, vector<64x64xbf16>, vector<64x64xf32> -> vector<64x64xf32>
    %255 = arith.truncf %254 : vector<64x64xf32> to vector<64x64xbf16>
    %c4_230 = arith.constant 4 : index
    %c0_231 = arith.constant 0 : index
    %c0_232 = arith.constant 0 : index
    %256 = vector.load %arg15[%c4_230, %c0_231, %c0_232] : memref<9x16x64xbf16, #tpu.memory_space<vmem>>, vector<1x16x64xbf16>
    %257 = vector.shape_cast %256 : vector<1x16x64xbf16> to vector<16x64xbf16>
    %cst_233 = arith.constant dense<0.000000e+00> : vector<16x64xf32>
    %258 = tpu.matmul %257, %255, %cst_233 {dimension_numbers = #tpu.dot_dimension_numbers<[1], [0], [0], [1], [0, 0, 1, 1], [], []>} : vector<16x64xbf16>, vector<64x64xbf16>, vector<16x64xf32> -> vector<16x64xf32>
    %259 = arith.addf %251, %258 : vector<16x64xf32>
    %c5_234 = arith.constant 5 : index
    %c0_235 = arith.constant 0 : index
    %c0_236 = arith.constant 0 : index
    %260 = vector.load %arg17[%c5_234, %c0_235, %c0_236] : memref<9x64x64xbf16, #tpu.memory_space<vmem>>, vector<1x64x64xbf16>
    %261 = vector.shape_cast %260 : vector<1x64x64xbf16> to vector<64x64xbf16>
    %cst_237 = arith.constant dense<0.000000e+00> : vector<64x64xf32>
    %262 = tpu.matmul %220, %261, %cst_237 {dimension_numbers = #tpu.dot_dimension_numbers<[1], [0], [0], [1], [0, 0, 1, 1], [], []>} : vector<64x64xbf16>, vector<64x64xbf16>, vector<64x64xf32> -> vector<64x64xf32>
    %263 = arith.truncf %262 : vector<64x64xf32> to vector<64x64xbf16>
    %c5_238 = arith.constant 5 : index
    %c0_239 = arith.constant 0 : index
    %c0_240 = arith.constant 0 : index
    %264 = vector.load %arg15[%c5_238, %c0_239, %c0_240] : memref<9x16x64xbf16, #tpu.memory_space<vmem>>, vector<1x16x64xbf16>
    %265 = vector.shape_cast %264 : vector<1x16x64xbf16> to vector<16x64xbf16>
    %cst_241 = arith.constant dense<0.000000e+00> : vector<16x64xf32>
    %266 = tpu.matmul %265, %263, %cst_241 {dimension_numbers = #tpu.dot_dimension_numbers<[1], [0], [0], [1], [0, 0, 1, 1], [], []>} : vector<16x64xbf16>, vector<64x64xbf16>, vector<16x64xf32> -> vector<16x64xf32>
    %267 = arith.addf %259, %266 : vector<16x64xf32>
    %c6_242 = arith.constant 6 : index
    %c0_243 = arith.constant 0 : index
    %c0_244 = arith.constant 0 : index
    %268 = vector.load %arg17[%c6_242, %c0_243, %c0_244] : memref<9x64x64xbf16, #tpu.memory_space<vmem>>, vector<1x64x64xbf16>
    %269 = vector.shape_cast %268 : vector<1x64x64xbf16> to vector<64x64xbf16>
    %cst_245 = arith.constant dense<0.000000e+00> : vector<64x64xf32>
    %270 = tpu.matmul %220, %269, %cst_245 {dimension_numbers = #tpu.dot_dimension_numbers<[1], [0], [0], [1], [0, 0, 1, 1], [], []>} : vector<64x64xbf16>, vector<64x64xbf16>, vector<64x64xf32> -> vector<64x64xf32>
    %271 = arith.truncf %270 : vector<64x64xf32> to vector<64x64xbf16>
    %c6_246 = arith.constant 6 : index
    %c0_247 = arith.constant 0 : index
    %c0_248 = arith.constant 0 : index
    %272 = vector.load %arg15[%c6_246, %c0_247, %c0_248] : memref<9x16x64xbf16, #tpu.memory_space<vmem>>, vector<1x16x64xbf16>
    %273 = vector.shape_cast %272 : vector<1x16x64xbf16> to vector<16x64xbf16>
    %cst_249 = arith.constant dense<0.000000e+00> : vector<16x64xf32>
    %274 = tpu.matmul %273, %271, %cst_249 {dimension_numbers = #tpu.dot_dimension_numbers<[1], [0], [0], [1], [0, 0, 1, 1], [], []>} : vector<16x64xbf16>, vector<64x64xbf16>, vector<16x64xf32> -> vector<16x64xf32>
    %275 = arith.addf %267, %274 : vector<16x64xf32>
    %c7_250 = arith.constant 7 : index
    %c0_251 = arith.constant 0 : index
    %c0_252 = arith.constant 0 : index
    %276 = vector.load %arg17[%c7_250, %c0_251, %c0_252] : memref<9x64x64xbf16, #tpu.memory_space<vmem>>, vector<1x64x64xbf16>
    %277 = vector.shape_cast %276 : vector<1x64x64xbf16> to vector<64x64xbf16>
    %cst_253 = arith.constant dense<0.000000e+00> : vector<64x64xf32>
    %278 = tpu.matmul %220, %277, %cst_253 {dimension_numbers = #tpu.dot_dimension_numbers<[1], [0], [0], [1], [0, 0, 1, 1], [], []>} : vector<64x64xbf16>, vector<64x64xbf16>, vector<64x64xf32> -> vector<64x64xf32>
    %279 = arith.truncf %278 : vector<64x64xf32> to vector<64x64xbf16>
    %c7_254 = arith.constant 7 : index
    %c0_255 = arith.constant 0 : index
    %c0_256 = arith.constant 0 : index
    %280 = vector.load %arg15[%c7_254, %c0_255, %c0_256] : memref<9x16x64xbf16, #tpu.memory_space<vmem>>, vector<1x16x64xbf16>
    %281 = vector.shape_cast %280 : vector<1x16x64xbf16> to vector<16x64xbf16>
    %cst_257 = arith.constant dense<0.000000e+00> : vector<16x64xf32>
    %282 = tpu.matmul %281, %279, %cst_257 {dimension_numbers = #tpu.dot_dimension_numbers<[1], [0], [0], [1], [0, 0, 1, 1], [], []>} : vector<16x64xbf16>, vector<64x64xbf16>, vector<16x64xf32> -> vector<16x64xf32>
    %283 = arith.addf %275, %282 : vector<16x64xf32>
    %c8_258 = arith.constant 8 : index
    %c0_259 = arith.constant 0 : index
    %c0_260 = arith.constant 0 : index
    %284 = vector.load %arg17[%c8_258, %c0_259, %c0_260] : memref<9x64x64xbf16, #tpu.memory_space<vmem>>, vector<1x64x64xbf16>
    %285 = vector.shape_cast %284 : vector<1x64x64xbf16> to vector<64x64xbf16>
    %cst_261 = arith.constant dense<0.000000e+00> : vector<64x64xf32>
    %286 = tpu.matmul %220, %285, %cst_261 {dimension_numbers = #tpu.dot_dimension_numbers<[1], [0], [0], [1], [0, 0, 1, 1], [], []>} : vector<64x64xbf16>, vector<64x64xbf16>, vector<64x64xf32> -> vector<64x64xf32>
    %287 = arith.truncf %286 : vector<64x64xf32> to vector<64x64xbf16>
    %c8_262 = arith.constant 8 : index
    %c0_263 = arith.constant 0 : index
    %c0_264 = arith.constant 0 : index
    %288 = vector.load %arg15[%c8_262, %c0_263, %c0_264] : memref<9x16x64xbf16, #tpu.memory_space<vmem>>, vector<1x16x64xbf16>
    %289 = vector.shape_cast %288 : vector<1x16x64xbf16> to vector<16x64xbf16>
    %cst_265 = arith.constant dense<0.000000e+00> : vector<16x64xf32>
    %290 = tpu.matmul %289, %287, %cst_265 {dimension_numbers = #tpu.dot_dimension_numbers<[1], [0], [0], [1], [0, 0, 1, 1], [], []>} : vector<16x64xbf16>, vector<64x64xbf16>, vector<16x64xf32> -> vector<16x64xf32>
    %291 = arith.addf %283, %290 : vector<16x64xf32>
    %c0_266 = arith.constant 0 : index
    %c0_267 = arith.constant 0 : index
    %292 = vector.load %arg16[%c0_266, %c0_267] : memref<16x1xf32, #tpu.memory_space<vmem>>, vector<16x1xf32>
    %293 = vector.broadcast %292 : vector<16x1xf32> to vector<16x64xf32>
    %294 = arith.addf %291, %293 : vector<16x64xf32>
    %cst_268 = arith.constant 0.000000e+00 : f32
    %295 = vector.broadcast %cst_268 : f32 to vector<16x64xf32>
    %296 = arith.subf %295, %294 : vector<16x64xf32>
    %297 = math.exp %296 : vector<16x64xf32>
    %cst_269 = arith.constant 1.000000e+00 : f32
    %298 = vector.broadcast %cst_269 : f32 to vector<16x64xf32>
    %299 = arith.addf %298, %297 : vector<16x64xf32>
    %300 = tpu.reciprocal %299 {approx = true} : vector<16x64xf32> -> vector<16x64xf32>
    %301 = arith.mulf %294, %300 : vector<16x64xf32>
    %c0_270 = arith.constant 0 : index
    %c0_271 = arith.constant 0 : index
    %c0_272 = arith.constant 0 : index
    %302 = vector.load %arg20[%c0_270, %c0_271, %c0_272] : memref<1x16x64xf32, #tpu.memory_space<vmem>>, vector<1x16x64xf32>
    %303 = vector.shape_cast %302 : vector<1x16x64xf32> to vector<16x64xf32>
    %304 = vector.shape_cast %301 : vector<16x64xf32> to vector<1x16x64xf32>
    tpu.vector_store %arg20[%c0_270, %c0_271, %c0_272], %304 {strides = array<i32>} : memref<1x16x64xf32, #tpu.memory_space<vmem>>, vector<1x16x64xf32>,
    %c0_273 = arith.constant 0 : index
    %c0_274 = arith.constant 0 : index
    %c0_275 = arith.constant 0 : index
    %305 = vector.load %arg18[%c0_273, %c0_274, %c0_275] : memref<1x8x16xbf16, #tpu.memory_space<vmem>>, vector<1x8x16xbf16>
    %306 = vector.shape_cast %305 : vector<1x8x16xbf16> to vector<8x16xbf16>
    %cst_276 = arith.constant dense<0.000000e+00> : vector<8x256xf32>
    %307 = tpu.matmul %306, %83, %cst_276 {dimension_numbers = #tpu.dot_dimension_numbers<[1], [0], [0], [1], [0, 0, 1, 1], [], []>} : vector<8x16xbf16>, vector<16x256xbf16>, vector<8x256xf32> -> vector<8x256xf32>
    %c0_277 = arith.constant 0 : index
    %c0_278 = arith.constant 0 : index
    %308 = vector.load %arg19[%c0_277, %c0_278] : memref<8x1xf32, #tpu.memory_space<vmem>>, vector<8x1xf32>
    %309 = vector.broadcast %308 : vector<8x1xf32> to vector<8x256xf32>
    %310 = arith.addf %307, %309 : vector<8x256xf32>
    %cst_279 = arith.constant 0.000000e+00 : f32
    %311 = vector.broadcast %cst_279 : f32 to vector<8x256xf32>
    %312 = arith.subf %311, %310 : vector<8x256xf32>
    %313 = math.exp %312 : vector<8x256xf32>
    %cst_280 = arith.constant 1.000000e+00 : f32
    %314 = vector.broadcast %cst_280 : f32 to vector<8x256xf32>
    %315 = arith.addf %314, %313 : vector<8x256xf32>
    %316 = tpu.reciprocal %315 {approx = true} : vector<8x256xf32> -> vector<8x256xf32>
    %317 = arith.mulf %310, %316 : vector<8x256xf32>
    %c0_281 = arith.constant 0 : index
    %c0_282 = arith.constant 0 : index
    %c0_283 = arith.constant 0 : index
    %318 = vector.load %arg21[%c0_281, %c0_282, %c0_283] : memref<1x8x256xf32, #tpu.memory_space<vmem>>, vector<1x8x256xf32>
    %319 = vector.shape_cast %318 : vector<1x8x256xf32> to vector<8x256xf32>
    %320 = vector.shape_cast %317 : vector<8x256xf32> to vector<1x8x256xf32>
    tpu.vector_store %arg21[%c0_281, %c0_282, %c0_283], %320 {strides = array<i32>} : memref<1x8x256xf32, #tpu.memory_space<vmem>>, vector<1x8x256xf32>,
    return
  }
  func.func @transform_0(%arg0: i32) -> (i32, i32, i32) {
    %c0_i32 = arith.constant 0 : i32
    %c0_i32_0 = arith.constant 0 : i32
    %c0_i32_1 = arith.constant 0 : i32
    return %arg0, %c0_i32, %c0_i32_0 : i32, i32, i32
  }
  func.func @transform_1(%arg0: i32) -> (i32, i32, i32) {
    %c0_i32 = arith.constant 0 : i32
    %c0_i32_0 = arith.constant 0 : i32
    %c0_i32_1 = arith.constant 0 : i32
    %c0_i32_2 = arith.constant 0 : i32
    return %c0_i32, %c0_i32_0, %c0_i32_1 : i32, i32, i32
  }
  func.func @transform_2(%arg0: i32) -> (i32, i32) {
    %c0_i32 = arith.constant 0 : i32
    %c0_i32_0 = arith.constant 0 : i32
    %c0_i32_1 = arith.constant 0 : i32
    return %c0_i32, %c0_i32_0 : i32, i32
  }
  func.func @transform_3(%arg0: i32) -> (i32, i32, i32) {
    %c0_i32 = arith.constant 0 : i32
    %c0_i32_0 = arith.constant 0 : i32
    %c0_i32_1 = arith.constant 0 : i32
    %c0_i32_2 = arith.constant 0 : i32
    return %c0_i32, %c0_i32_0, %c0_i32_1 : i32, i32, i32
  }
  func.func @transform_4(%arg0: i32) -> (i32, i32, i32) {
    %c0_i32 = arith.constant 0 : i32
    %c0_i32_0 = arith.constant 0 : i32
    %c0_i32_1 = arith.constant 0 : i32
    %c0_i32_2 = arith.constant 0 : i32
    return %c0_i32, %c0_i32_0, %c0_i32_1 : i32, i32, i32
  }
  func.func @transform_5(%arg0: i32) -> (i32, i32, i32) {
    %c0_i32 = arith.constant 0 : i32
    %c0_i32_0 = arith.constant 0 : i32
    %c0_i32_1 = arith.constant 0 : i32
    %c0_i32_2 = arith.constant 0 : i32
    return %c0_i32, %c0_i32_0, %c0_i32_1 : i32, i32, i32
  }
  func.func @transform_6(%arg0: i32) -> (i32, i32) {
    %c0_i32 = arith.constant 0 : i32
    %c0_i32_0 = arith.constant 0 : i32
    %c0_i32_1 = arith.constant 0 : i32
    return %c0_i32, %c0_i32_0 : i32, i32
  }
  func.func @transform_7(%arg0: i32) -> (i32, i32, i32) {
    %c0_i32 = arith.constant 0 : i32
    %c0_i32_0 = arith.constant 0 : i32
    %c0_i32_1 = arith.constant 0 : i32
    %c0_i32_2 = arith.constant 0 : i32
    return %c0_i32, %c0_i32_0, %c0_i32_1 : i32, i32, i32
  }
  func.func @transform_8(%arg0: i32) -> (i32, i32, i32) {
    %c0_i32 = arith.constant 0 : i32
    %c0_i32_0 = arith.constant 0 : i32
    %c0_i32_1 = arith.constant 0 : i32
    %c0_i32_2 = arith.constant 0 : i32
    return %c0_i32, %c0_i32_0, %c0_i32_1 : i32, i32, i32
  }
  func.func @transform_9(%arg0: i32) -> (i32, i32, i32) {
    %c0_i32 = arith.constant 0 : i32
    %c0_i32_0 = arith.constant 0 : i32
    %c0_i32_1 = arith.constant 0 : i32
    %c0_i32_2 = arith.constant 0 : i32
    return %c0_i32, %c0_i32_0, %c0_i32_1 : i32, i32, i32
  }
  func.func @transform_10(%arg0: i32) -> (i32, i32) {
    %c0_i32 = arith.constant 0 : i32
    %c0_i32_0 = arith.constant 0 : i32
    %c0_i32_1 = arith.constant 0 : i32
    return %c0_i32, %c0_i32_0 : i32, i32
  }
  func.func @transform_11(%arg0: i32) -> (i32, i32) {
    %c0_i32 = arith.constant 0 : i32
    %c0_i32_0 = arith.constant 0 : i32
    %c0_i32_1 = arith.constant 0 : i32
    return %c0_i32, %c0_i32_0 : i32, i32
  }
  func.func @transform_12(%arg0: i32) -> (i32, i32) {
    %c0_i32 = arith.constant 0 : i32
    %c0_i32_0 = arith.constant 0 : i32
    %c0_i32_1 = arith.constant 0 : i32
    return %c0_i32, %c0_i32_0 : i32, i32
  }
  func.func @transform_13(%arg0: i32) -> (i32, i32) {
    %c0_i32 = arith.constant 0 : i32
    %c0_i32_0 = arith.constant 0 : i32
    %c0_i32_1 = arith.constant 0 : i32
    return %c0_i32, %c0_i32_0 : i32, i32
  }
  func.func @transform_14(%arg0: i32) -> (i32, i32, i32) {
    %c0_i32 = arith.constant 0 : i32
    %c0_i32_0 = arith.constant 0 : i32
    %c0_i32_1 = arith.constant 0 : i32
    %c0_i32_2 = arith.constant 0 : i32
    return %c0_i32, %c0_i32_0, %c0_i32_1 : i32, i32, i32
  }
  func.func @transform_15(%arg0: i32) -> (i32, i32) {
    %c0_i32 = arith.constant 0 : i32
    %c0_i32_0 = arith.constant 0 : i32
    %c0_i32_1 = arith.constant 0 : i32
    return %c0_i32, %c0_i32_0 : i32, i32
  }
  func.func @transform_16(%arg0: i32) -> (i32, i32, i32) {
    %c0_i32 = arith.constant 0 : i32
    %c0_i32_0 = arith.constant 0 : i32
    %c0_i32_1 = arith.constant 0 : i32
    %c0_i32_2 = arith.constant 0 : i32
    return %c0_i32, %c0_i32_0, %c0_i32_1 : i32, i32, i32
  }
  func.func @transform_17(%arg0: i32) -> (i32, i32, i32) {
    %c0_i32 = arith.constant 0 : i32
    %c0_i32_0 = arith.constant 0 : i32
    %c0_i32_1 = arith.constant 0 : i32
    %c0_i32_2 = arith.constant 0 : i32
    return %c0_i32, %c0_i32_0, %c0_i32_1 : i32, i32, i32
  }
  func.func @transform_18(%arg0: i32) -> (i32, i32) {
    %c0_i32 = arith.constant 0 : i32
    %c0_i32_0 = arith.constant 0 : i32
    %c0_i32_1 = arith.constant 0 : i32
    return %c0_i32, %c0_i32_0 : i32, i32
  }
  func.func @transform_19(%arg0: i32) -> (i32, i32, i32) {
    %c0_i32 = arith.constant 0 : i32
    %c0_i32_0 = arith.constant 0 : i32
    %c0_i32_1 = arith.constant 0 : i32
    return %arg0, %c0_i32, %c0_i32_0 : i32, i32, i32
  }
  func.func @transform_20(%arg0: i32) -> (i32, i32, i32) {
    %c0_i32 = arith.constant 0 : i32
    %c0_i32_0 = arith.constant 0 : i32
    %c0_i32_1 = arith.constant 0 : i32
    return %arg0, %c0_i32, %c0_i32_0 : i32, i32, i32
  }
}

</mosaic_0001>

<llo_original>
// kernel: forward.1
$region0: #{forward.1}
  #allocation0 [shape = 'u32[]', space=smem, size = 0x4, offset = 0x4, fixed_abs, tag = 'smem constant byte address 0x4 - core index']
  #allocation1 [shape = 'u32[144,128]{1,0:T(1,128)}', space=vmem, size = 0x12000, scoped, tag = 'internal scratch']
  %s0 = inlined_call_operand.vmem [shape: bf16[2,3,256], index: 0, kind: input, shape index: {}]
  %s1 = inlined_call_operand.hbm [shape: bf16[9,16,3], index: 1, kind: input, shape index: {}]
  %s2 = inlined_call_operand.hbm [shape: f32[16,1], index: 2, kind: input, shape index: {}]
  %s3 = inlined_call_operand.hbm [shape: bf16[9,256,256], index: 3, kind: input, shape index: {}]
  %s4 = inlined_call_operand.hbm [shape: bf16[4,256,64], index: 4, kind: input, shape index: {}]
  %s5 = inlined_call_operand.hbm [shape: bf16[9,32,16], index: 5, kind: input, shape index: {}]
  %s6 = inlined_call_operand.hbm [shape: f32[32,1], index: 6, kind: input, shape index: {}]
  %s7 = inlined_call_operand.hbm [shape: bf16[9,64,64], index: 7, kind: input, shape index: {}, may-alias: {7,16}]
  %s8 = inlined_call_operand.hbm [shape: bf16[4,64,16], index: 8, kind: input, shape index: {}]
  %s9 = inlined_call_operand.hbm [shape: bf16[1,32,32], index: 9, kind: input, shape index: {}]
  %s10 = inlined_call_operand.hbm [shape: f32[32,1], index: 10, kind: input, shape index: {}]
  %s11 = inlined_call_operand.hbm [shape: bf16[16,64], index: 11, kind: input, shape index: {}]
  %s12 = inlined_call_operand.hbm [shape: bf16[64,32], index: 12, kind: input, shape index: {}]
  %s13 = inlined_call_operand.hbm [shape: bf16[64,32], index: 13, kind: input, shape index: {}]
  %s14 = inlined_call_operand.hbm [shape: bf16[9,16,64], index: 14, kind: input, shape index: {}]
  %s15 = inlined_call_operand.hbm [shape: f32[16,1], index: 15, kind: input, shape index: {}]
  %s16 = inlined_call_operand.hbm [shape: bf16[9,64,64], index: 16, kind: input, shape index: {}, may-alias: {7,16}]
  %s17 = inlined_call_operand.hbm [shape: bf16[1,8,16], index: 17, kind: input, shape index: {}]
  %s18 = inlined_call_operand.hbm [shape: f32[8,1], index: 18, kind: input, shape index: {}]
  %s19 = inlined_call_operand.vmem [shape: f32[2,16,64], index: 19, kind: output, shape index: {0}]
  %s20 = inlined_call_operand.vmem [shape: f32[2,8,256], index: 20, kind: output, shape index: {1}]
  %21 = xla_tuple %s19, %s20
  %s22 = sld [smem:[#allocation0]]
  $region189: #{forward.1} parent=0
    _
  %s24 = ssub.s32 1, %s22
  %s25 = scalar_select 0, %s24, %s22
  $region1: #{forward.1} parent=0
    #allocation2 [shape = 'u8[36864]{0}', space=vmem, size = 0x9000, scoped, tag = 'input window, operand 1, single buffered']
    #allocation3 [shape = 's32[2]{0}', space=sflag, size = 0x8, scoped, tag = 'scoped memory for forward.1']
    #allocation4 [shape = 'u8[8192]{0}', space=vmem, size = 0x2000, scoped, tag = 'input window, operand 2, single buffered']
    #allocation5 [shape = 's32[1]{0}', space=sflag, size = 0x4, scoped, tag = 'scoped memory for forward.1']
    #allocation6 [shape = 'u8[1179648]{0}', space=vmem, size = 0x120000, scoped, tag = 'input window, operand 3, single buffered']
    #allocation7 [shape = 'u8[262144]{0}', space=vmem, size = 0x40000, scoped, tag = 'input window, operand 4, single buffered']
    #allocation8 [shape = 's32[1]{0}', space=sflag, size = 0x4, scoped, tag = 'scoped memory for forward.1']
    #allocation9 [shape = 'u8[73728]{0}', space=vmem, size = 0x12000, scoped, tag = 'input window, operand 5, single buffered']
    #allocation10 [shape = 'u8[16384]{0}', space=vmem, size = 0x4000, scoped, tag = 'input window, operand 6, single buffered']
    #allocation11 [shape = 's32[1]{0}', space=sflag, size = 0x4, scoped, tag = 'scoped memory for forward.1']
    #allocation12 [shape = 'u8[147456]{0}', space=vmem, size = 0x24000, scoped, tag = 'input window, operand 7, single buffered']
    #allocation13 [shape = 'u8[65536]{0}', space=vmem, size = 0x10000, scoped, tag = 'input window, operand 8, single buffered']
    #allocation14 [shape = 's32[1]{0}', space=sflag, size = 0x4, scoped, tag = 'scoped memory for forward.1']
    #allocation15 [shape = 'u8[8192]{0}', space=vmem, size = 0x2000, scoped, tag = 'input window, operand 9, single buffered']
    #allocation16 [shape = 'u8[16384]{0}', space=vmem, size = 0x4000, scoped, tag = 'input window, operand 10, single buffered']
    #allocation17 [shape = 's32[1]{0}', space=sflag, size = 0x4, scoped, tag = 'scoped memory for forward.1']
    #allocation18 [shape = 'u8[4096]{0}', space=vmem, size = 0x1000, scoped, tag = 'input window, operand 11, single buffered']
    #allocation19 [shape = 'u8[16384]{0}', space=vmem, size = 0x4000, scoped, tag = 'input window, operand 12, single buffered']
    #allocation20 [shape = 's32[1]{0}', space=sflag, size = 0x4, scoped, tag = 'scoped memory for forward.1']
    #allocation21 [shape = 'u8[16384]{0}', space=vmem, size = 0x4000, scoped, tag = 'input window, operand 13, single buffered']
    #allocation22 [shape = 'u8[36864]{0}', space=vmem, size = 0x9000, scoped, tag = 'input window, operand 14, single buffered']
    #allocation23 [shape = 's32[1]{0}', space=sflag, size = 0x4, scoped, tag = 'scoped memory for forward.1']
    #allocation24 [shape = 'u8[8192]{0}', space=vmem, size = 0x2000, scoped, tag = 'input window, operand 15, single buffered']
    #allocation25 [shape = 'u8[147456]{0}', space=vmem, size = 0x24000, scoped, tag = 'input window, operand 16, single buffered']
    #allocation26 [shape = 's32[1]{0}', space=sflag, size = 0x4, scoped, tag = 'scoped memory for forward.1']
    #allocation27 [shape = 'u8[2048]{0}', space=vmem, size = 0x800, scoped, tag = 'input window, operand 17, single buffered']
    #allocation28 [shape = 'u8[4096]{0}', space=vmem, size = 0x1000, scoped, tag = 'input window, operand 18, single buffered']
    #allocation29 [shape = 's32[1]{0}', space=sflag, size = 0x4, scoped, tag = 'scoped memory for forward.1']
    %26 = vsyncpa [#allocation3], 0
    %27 = vsyncpa [#allocation5], 0
    %28 = vsyncpa [#allocation8], 0
    %29 = vsyncpa [#allocation11], 0
    %30 = vsyncpa [#allocation14], 0
    %31 = vsyncpa [#allocation17], 0
    %32 = vsyncpa [#allocation20], 0
    %33 = vsyncpa [#allocation23], 0
    %34 = vsyncpa [#allocation26], 0
    %35 = vsyncpa [#allocation29], 0
    loop: start=0, step=1, limit=4
    $region2: #{forward.1} parent=1 // loop_pre_header
      _
    $region3: #{forward.1} parent=1 // loop_header
      %s37 = sphi 0, %s41
      %p38 = scmp.ge.s32.totalorder %s37, 4
      %s47 = sphi 0, %s49
      %s50 = sphi 0, %s47
      %s51 = sphi 0, %s50
      %s67 = sphi 0, %s51
      %s71 = sphi 0, %s71
      %s73 = sphi 0, %s71
      %s74 = sphi 0, %s73
      %s88 = sphi 0, %s74
      %s92 = sphi 0, %s92
      %s94 = sphi 0, %s92
      %s95 = sphi 0, %s94
      %s109 = sphi 0, %s95
      %s113 = sphi 0, %s113
      %s115 = sphi 0, %s113
      %s116 = sphi 0, %s115
      %s130 = sphi 0, %s116
      %s134 = sphi 0, %s134
      %s136 = sphi 0, %s134
      %s137 = sphi 0, %s136
      %s151 = sphi 0, %s137
      %s155 = sphi 0, %s155
      %s157 = sphi 0, %s155
      %s158 = sphi 0, %s157
      %s172 = sphi 0, %s158
      %s176 = sphi 0, %s176
      %s178 = sphi 0, %s176
      %s179 = sphi 0, %s178
      %s193 = sphi 0, %s179
      %s197 = sphi 0, %s197
      %s199 = sphi 0, %s197
      %s200 = sphi 0, %s199
      %s214 = sphi 0, %s200
      %s218 = sphi 0, %s218
      %s220 = sphi 0, %s218
      %s221 = sphi 0, %s220
      %s235 = sphi 0, %s221
      %s239 = sphi 0, %s239
      %s241 = sphi 0, %s239
      %s242 = sphi 0, %s241
      %s256 = sphi 0, %s242
      %s260 = sphi 0, %s260
      %s262 = sphi 0, %s260
      %s263 = sphi 0, %s262
      %s277 = sphi 0, %s263
      %s281 = sphi 0, %s281
      %s283 = sphi 0, %s281
      %s284 = sphi 0, %s283
      %s298 = sphi 0, %s284
      %s302 = sphi 0, %s302
      %s304 = sphi 0, %s302
      %s305 = sphi 0, %s304
      %s319 = sphi 0, %s305
      %s323 = sphi 0, %s323
      %s325 = sphi 0, %s323
      %s326 = sphi 0, %s325
      %s340 = sphi 0, %s326
      %s344 = sphi 0, %s344
      %s346 = sphi 0, %s344
      %s347 = sphi 0, %s346
      %s361 = sphi 0, %s347
      %s365 = sphi 0, %s365
      %s367 = sphi 0, %s365
      %s368 = sphi 0, %s367
      %s382 = sphi 0, %s368
      %s386 = sphi 0, %s386
      %s388 = sphi 0, %s386
      %s389 = sphi 0, %s388
      %s403 = sphi 0, %s389
      %s407 = sphi 0, %s407
      %s409 = sphi 0, %s407
      %s410 = sphi 0, %s409
      %s424 = sphi 0, %s410
      %s428 = sphi 0, %s428
      %s430 = sphi 0, %s428
      %s431 = sphi 0, %s430
      %s445 = sphi 0, %s431
      %s451 = sphi 0, %s453
      %s454 = sphi 0, %s451
      %s455 = sphi 0, %s454
      %s471 = sphi 0, %s455
      %s477 = sphi 0, %s479
      %s480 = sphi 0, %s477
      %s481 = sphi 0, %s480
      %s497 = sphi 0, %s481
    $region4: #{forward.1} parent=1 // loop_header_branch
      %40 = sbr.rel (%p38) target = $region8
    $region5: #{forward.1} parent=1 // loop_body
      %s42 = ssub.s32 %s37, 1
      %s43 = ssub.s32 %s37, 2
      %s44 = sadd.s32 %s37, 1
      %s45 = ssub.s32 %s37, %s44
      %p46 = scmp.eq.s32.totalorder %s45, 0
      %s48 = sadd.s32 %s47, 1
      %s49 = scalar_select %p46, %s47, %s48
      %p52 = pneg %p46
      %p53 = scmp.eq.s32.totalorder %s37, 1
      %p54 = por %p52, %p53
      %p55 = scmp.ne.s32.totalorder %s47, %s50
      %p56 = scmp.eq.s32.totalorder %s37, 0
      %p57 = por %p55, %p56
      %p58 = scmp.ne.s32.totalorder %s47, %s50
      %p59 = scmp.eq.s32.totalorder %s42, 1
      %p60 = por %p58, %p59
      %p61 = scmp.ne.s32.totalorder %s50, %s51
      %p62 = scmp.eq.s32.totalorder %s42, 0
      %p63 = por %p61, %p62
      %p64 = scmp.ne.s32.totalorder %s50, %s51
      %p65 = scmp.eq.s32.totalorder %s43, 1
      %p66 = por %p64, %p65
      %p68 = scmp.ne.s32.totalorder %s51, %s67
      %p69 = scmp.eq.s32.totalorder %s43, 0
      %p70 = por %p68, %p69
      %s72 = sadd.s32 %s71, 1
      %p75 = scmp.eq.s32.totalorder %s37, 1
      %p76 = scmp.ne.s32.totalorder %s71, %s73
      %p77 = scmp.eq.s32.totalorder %s37, 0
      %p78 = por %p76, %p77
      %p79 = scmp.ne.s32.totalorder %s71, %s73
      %p80 = scmp.eq.s32.totalorder %s42, 1
      %p81 = por %p79, %p80
      %p82 = scmp.ne.s32.totalorder %s73, %s74
      %p83 = scmp.eq.s32.totalorder %s42, 0
      %p84 = por %p82, %p83
      %p85 = scmp.ne.s32.totalorder %s73, %s74
      %p86 = scmp.eq.s32.totalorder %s43, 1
      %p87 = por %p85, %p86
      %p89 = scmp.ne.s32.totalorder %s74, %s88
      %p90 = scmp.eq.s32.totalorder %s43, 0
      %p91 = por %p89, %p90
      %s93 = sadd.s32 %s92, 1
      %p96 = scmp.eq.s32.totalorder %s37, 1
      %p97 = scmp.ne.s32.totalorder %s92, %s94
      %p98 = scmp.eq.s32.totalorder %s37, 0
      %p99 = por %p97, %p98
      %p100 = scmp.ne.s32.totalorder %s92, %s94
      %p101 = scmp.eq.s32.totalorder %s42, 1
      %p102 = por %p100, %p101
      %p103 = scmp.ne.s32.totalorder %s94, %s95
      %p104 = scmp.eq.s32.totalorder %s42, 0
      %p105 = por %p103, %p104
      %p106 = scmp.ne.s32.totalorder %s94, %s95
      %p107 = scmp.eq.s32.totalorder %s43, 1
      %p108 = por %p106, %p107
      %p110 = scmp.ne.s32.totalorder %s95, %s109
      %p111 = scmp.eq.s32.totalorder %s43, 0
      %p112 = por %p110, %p111
      %s114 = sadd.s32 %s113, 1
      %p117 = scmp.eq.s32.totalorder %s37, 1
      %p118 = scmp.ne.s32.totalorder %s113, %s115
      %p119 = scmp.eq.s32.totalorder %s37, 0
      %p120 = por %p118, %p119
      %p121 = scmp.ne.s32.totalorder %s113, %s115
      %p122 = scmp.eq.s32.totalorder %s42, 1
      %p123 = por %p121, %p122
      %p124 = scmp.ne.s32.totalorder %s115, %s116
      %p125 = scmp.eq.s32.totalorder %s42, 0
      %p126 = por %p124, %p125
      %p127 = scmp.ne.s32.totalorder %s115, %s116
      %p128 = scmp.eq.s32.totalorder %s43, 1
      %p129 = por %p127, %p128
      %p131 = scmp.ne.s32.totalorder %s116, %s130
      %p132 = scmp.eq.s32.totalorder %s43, 0
      %p133 = por %p131, %p132
      %s135 = sadd.s32 %s134, 1
      %p138 = scmp.eq.s32.totalorder %s37, 1
      %p139 = scmp.ne.s32.totalorder %s134, %s136
      %p140 = scmp.eq.s32.totalorder %s37, 0
      %p141 = por %p139, %p140
      %p142 = scmp.ne.s32.totalorder %s134, %s136
      %p143 = scmp.eq.s32.totalorder %s42, 1
      %p144 = por %p142, %p143
      %p145 = scmp.ne.s32.totalorder %s136, %s137
      %p146 = scmp.eq.s32.totalorder %s42, 0
      %p147 = por %p145, %p146
      %p148 = scmp.ne.s32.totalorder %s136, %s137
      %p149 = scmp.eq.s32.totalorder %s43, 1
      %p150 = por %p148, %p149
      %p152 = scmp.ne.s32.totalorder %s137, %s151
      %p153 = scmp.eq.s32.totalorder %s43, 0
      %p154 = por %p152, %p153
      %s156 = sadd.s32 %s155, 1
      %p159 = scmp.eq.s32.totalorder %s37, 1
      %p160 = scmp.ne.s32.totalorder %s155, %s157
      %p161 = scmp.eq.s32.totalorder %s37, 0
      %p162 = por %p160, %p161
      %p163 = scmp.ne.s32.totalorder %s155, %s157
      %p164 = scmp.eq.s32.totalorder %s42, 1
      %p165 = por %p163, %p164
      %p166 = scmp.ne.s32.totalorder %s157, %s158
      %p167 = scmp.eq.s32.totalorder %s42, 0
      %p168 = por %p166, %p167
      %p169 = scmp.ne.s32.totalorder %s157, %s158
      %p170 = scmp.eq.s32.totalorder %s43, 1
      %p171 = por %p169, %p170
      %p173 = scmp.ne.s32.totalorder %s158, %s172
      %p174 = scmp.eq.s32.totalorder %s43, 0
      %p175 = por %p173, %p174
      %s177 = sadd.s32 %s176, 1
      %p180 = scmp.eq.s32.totalorder %s37, 1
      %p181 = scmp.ne.s32.totalorder %s176, %s178
      %p182 = scmp.eq.s32.totalorder %s37, 0
      %p183 = por %p181, %p182
      %p184 = scmp.ne.s32.totalorder %s176, %s178
      %p185 = scmp.eq.s32.totalorder %s42, 1
      %p186 = por %p184, %p185
      %p187 = scmp.ne.s32.totalorder %s178, %s179
      %p188 = scmp.eq.s32.totalorder %s42, 0
      %p189 = por %p187, %p188
      %p190 = scmp.ne.s32.totalorder %s178, %s179
      %p191 = scmp.eq.s32.totalorder %s43, 1
      %p192 = por %p190, %p191
      %p194 = scmp.ne.s32.totalorder %s179, %s193
      %p195 = scmp.eq.s32.totalorder %s43, 0
      %p196 = por %p194, %p195
      %s198 = sadd.s32 %s197, 1
      %p201 = scmp.eq.s32.totalorder %s37, 1
      %p202 = scmp.ne.s32.totalorder %s197, %s199
      %p203 = scmp.eq.s32.totalorder %s37, 0
      %p204 = por %p202, %p203
      %p205 = scmp.ne.s32.totalorder %s197, %s199
      %p206 = scmp.eq.s32.totalorder %s42, 1
      %p207 = por %p205, %p206
      %p208 = scmp.ne.s32.totalorder %s199, %s200
      %p209 = scmp.eq.s32.totalorder %s42, 0
      %p210 = por %p208, %p209
      %p211 = scmp.ne.s32.totalorder %s199, %s200
      %p212 = scmp.eq.s32.totalorder %s43, 1
      %p213 = por %p211, %p212
      %p215 = scmp.ne.s32.totalorder %s200, %s214
      %p216 = scmp.eq.s32.totalorder %s43, 0
      %p217 = por %p215, %p216
      %s219 = sadd.s32 %s218, 1
      %p222 = scmp.eq.s32.totalorder %s37, 1
      %p223 = scmp.ne.s32.totalorder %s218, %s220
      %p224 = scmp.eq.s32.totalorder %s37, 0
      %p225 = por %p223, %p224
      %p226 = scmp.ne.s32.totalorder %s218, %s220
      %p227 = scmp.eq.s32.totalorder %s42, 1
      %p228 = por %p226, %p227
      %p229 = scmp.ne.s32.totalorder %s220, %s221
      %p230 = scmp.eq.s32.totalorder %s42, 0
      %p231 = por %p229, %p230
      %p232 = scmp.ne.s32.totalorder %s220, %s221
      %p233 = scmp.eq.s32.totalorder %s43, 1
      %p234 = por %p232, %p233
      %p236 = scmp.ne.s32.totalorder %s221, %s235
      %p237 = scmp.eq.s32.totalorder %s43, 0
      %p238 = por %p236, %p237
      %s240 = sadd.s32 %s239, 1
      %p243 = scmp.eq.s32.totalorder %s37, 1
      %p244 = scmp.ne.s32.totalorder %s239, %s241
      %p245 = scmp.eq.s32.totalorder %s37, 0
      %p246 = por %p244, %p245
      %p247 = scmp.ne.s32.totalorder %s239, %s241
      %p248 = scmp.eq.s32.totalorder %s42, 1
      %p249 = por %p247, %p248
      %p250 = scmp.ne.s32.totalorder %s241, %s242
      %p251 = scmp.eq.s32.totalorder %s42, 0
      %p252 = por %p250, %p251
      %p253 = scmp.ne.s32.totalorder %s241, %s242
      %p254 = scmp.eq.s32.totalorder %s43, 1
      %p255 = por %p253, %p254
      %p257 = scmp.ne.s32.totalorder %s242, %s256
      %p258 = scmp.eq.s32.totalorder %s43, 0
      %p259 = por %p257, %p258
      %s261 = sadd.s32 %s260, 1
      %p264 = scmp.eq.s32.totalorder %s37, 1
      %p265 = scmp.ne.s32.totalorder %s260, %s262
      %p266 = scmp.eq.s32.totalorder %s37, 0
      %p267 = por %p265, %p266
      %p268 = scmp.ne.s32.totalorder %s260, %s262
      %p269 = scmp.eq.s32.totalorder %s42, 1
      %p270 = por %p268, %p269
      %p271 = scmp.ne.s32.totalorder %s262, %s263
      %p272 = scmp.eq.s32.totalorder %s42, 0
      %p273 = por %p271, %p272
      %p274 = scmp.ne.s32.totalorder %s262, %s263
      %p275 = scmp.eq.s32.totalorder %s43, 1
      %p276 = por %p274, %p275
      %p278 = scmp.ne.s32.totalorder %s263, %s277
      %p279 = scmp.eq.s32.totalorder %s43, 0
      %p280 = por %p278, %p279
      %s282 = sadd.s32 %s281, 1
      %p285 = scmp.eq.s32.totalorder %s37, 1
      %p286 = scmp.ne.s32.totalorder %s281, %s283
      %p287 = scmp.eq.s32.totalorder %s37, 0
      %p288 = por %p286, %p287
      %p289 = scmp.ne.s32.totalorder %s281, %s283
      %p290 = scmp.eq.s32.totalorder %s42, 1
      %p291 = por %p289, %p290
      %p292 = scmp.ne.s32.totalorder %s283, %s284
      %p293 = scmp.eq.s32.totalorder %s42, 0
      %p294 = por %p292, %p293
      %p295 = scmp.ne.s32.totalorder %s283, %s284
      %p296 = scmp.eq.s32.totalorder %s43, 1
      %p297 = por %p295, %p296
      %p299 = scmp.ne.s32.totalorder %s284, %s298
      %p300 = scmp.eq.s32.totalorder %s43, 0
      %p301 = por %p299, %p300
      %s303 = sadd.s32 %s302, 1
      %p306 = scmp.eq.s32.totalorder %s37, 1
      %p307 = scmp.ne.s32.totalorder %s302, %s304
      %p308 = scmp.eq.s32.totalorder %s37, 0
      %p309 = por %p307, %p308
      %p310 = scmp.ne.s32.totalorder %s302, %s304
      %p311 = scmp.eq.s32.totalorder %s42, 1
      %p312 = por %p310, %p311
      %p313 = scmp.ne.s32.totalorder %s304, %s305
      %p314 = scmp.eq.s32.totalorder %s42, 0
      %p315 = por %p313, %p314
      %p316 = scmp.ne.s32.totalorder %s304, %s305
      %p317 = scmp.eq.s32.totalorder %s43, 1
      %p318 = por %p316, %p317
      %p320 = scmp.ne.s32.totalorder %s305, %s319
      %p321 = scmp.eq.s32.totalorder %s43, 0
      %p322 = por %p320, %p321
      %s324 = sadd.s32 %s323, 1
      %p327 = scmp.eq.s32.totalorder %s37, 1
      %p328 = scmp.ne.s32.totalorder %s323, %s325
      %p329 = scmp.eq.s32.totalorder %s37, 0
      %p330 = por %p328, %p329
      %p331 = scmp.ne.s32.totalorder %s323, %s325
      %p332 = scmp.eq.s32.totalorder %s42, 1
      %p333 = por %p331, %p332
      %p334 = scmp.ne.s32.totalorder %s325, %s326
      %p335 = scmp.eq.s32.totalorder %s42, 0
      %p336 = por %p334, %p335
      %p337 = scmp.ne.s32.totalorder %s325, %s326
      %p338 = scmp.eq.s32.totalorder %s43, 1
      %p339 = por %p337, %p338
      %p341 = scmp.ne.s32.totalorder %s326, %s340
      %p342 = scmp.eq.s32.totalorder %s43, 0
      %p343 = por %p341, %p342
      %s345 = sadd.s32 %s344, 1
      %p348 = scmp.eq.s32.totalorder %s37, 1
      %p349 = scmp.ne.s32.totalorder %s344, %s346
      %p350 = scmp.eq.s32.totalorder %s37, 0
      %p351 = por %p349, %p350
      %p352 = scmp.ne.s32.totalorder %s344, %s346
      %p353 = scmp.eq.s32.totalorder %s42, 1
      %p354 = por %p352, %p353
      %p355 = scmp.ne.s32.totalorder %s346, %s347
      %p356 = scmp.eq.s32.totalorder %s42, 0
      %p357 = por %p355, %p356
      %p358 = scmp.ne.s32.totalorder %s346, %s347
      %p359 = scmp.eq.s32.totalorder %s43, 1
      %p360 = por %p358, %p359
      %p362 = scmp.ne.s32.totalorder %s347, %s361
      %p363 = scmp.eq.s32.totalorder %s43, 0
      %p364 = por %p362, %p363
      %s366 = sadd.s32 %s365, 1
      %p369 = scmp.eq.s32.totalorder %s37, 1
      %p370 = scmp.ne.s32.totalorder %s365, %s367
      %p371 = scmp.eq.s32.totalorder %s37, 0
      %p372 = por %p370, %p371
      %p373 = scmp.ne.s32.totalorder %s365, %s367
      %p374 = scmp.eq.s32.totalorder %s42, 1
      %p375 = por %p373, %p374
      %p376 = scmp.ne.s32.totalorder %s367, %s368
      %p377 = scmp.eq.s32.totalorder %s42, 0
      %p378 = por %p376, %p377
      %p379 = scmp.ne.s32.totalorder %s367, %s368
      %p380 = scmp.eq.s32.totalorder %s43, 1
      %p381 = por %p379, %p380
      %p383 = scmp.ne.s32.totalorder %s368, %s382
      %p384 = scmp.eq.s32.totalorder %s43, 0
      %p385 = por %p383, %p384
      %s387 = sadd.s32 %s386, 1
      %p390 = scmp.eq.s32.totalorder %s37, 1
      %p391 = scmp.ne.s32.totalorder %s386, %s388
      %p392 = scmp.eq.s32.totalorder %s37, 0
      %p393 = por %p391, %p392
      %p394 = scmp.ne.s32.totalorder %s386, %s388
      %p395 = scmp.eq.s32.totalorder %s42, 1
      %p396 = por %p394, %p395
      %p397 = scmp.ne.s32.totalorder %s388, %s389
      %p398 = scmp.eq.s32.totalorder %s42, 0
      %p399 = por %p397, %p398
      %p400 = scmp.ne.s32.totalorder %s388, %s389
      %p401 = scmp.eq.s32.totalorder %s43, 1
      %p402 = por %p400, %p401
      %p404 = scmp.ne.s32.totalorder %s389, %s403
      %p405 = scmp.eq.s32.totalorder %s43, 0
      %p406 = por %p404, %p405
      %s408 = sadd.s32 %s407, 1
      %p411 = scmp.eq.s32.totalorder %s37, 1
      %p412 = scmp.ne.s32.totalorder %s407, %s409
      %p413 = scmp.eq.s32.totalorder %s37, 0
      %p414 = por %p412, %p413
      %p415 = scmp.ne.s32.totalorder %s407, %s409
      %p416 = scmp.eq.s32.totalorder %s42, 1
      %p417 = por %p415, %p416
      %p418 = scmp.ne.s32.totalorder %s409, %s410
      %p419 = scmp.eq.s32.totalorder %s42, 0
      %p420 = por %p418, %p419
      %p421 = scmp.ne.s32.totalorder %s409, %s410
      %p422 = scmp.eq.s32.totalorder %s43, 1
      %p423 = por %p421, %p422
      %p425 = scmp.ne.s32.totalorder %s410, %s424
      %p426 = scmp.eq.s32.totalorder %s43, 0
      %p427 = por %p425, %p426
      %s429 = sadd.s32 %s428, 1
      %p432 = scmp.eq.s32.totalorder %s37, 1
      %p433 = scmp.ne.s32.totalorder %s428, %s430
      %p434 = scmp.eq.s32.totalorder %s37, 0
      %p435 = por %p433, %p434
      %p436 = scmp.ne.s32.totalorder %s428, %s430
      %p437 = scmp.eq.s32.totalorder %s42, 1
      %p438 = por %p436, %p437
      %p439 = scmp.ne.s32.totalorder %s430, %s431
      %p440 = scmp.eq.s32.totalorder %s42, 0
      %p441 = por %p439, %p440
      %p442 = scmp.ne.s32.totalorder %s430, %s431
      %p443 = scmp.eq.s32.totalorder %s43, 1
      %p444 = por %p442, %p443
      %p446 = scmp.ne.s32.totalorder %s431, %s445
      %p447 = scmp.eq.s32.totalorder %s43, 0
      %p448 = por %p446, %p447
      %s449 = ssub.s32 %s37, %s44
      %p450 = scmp.eq.s32.totalorder %s449, 0
      %s452 = sadd.s32 %s451, 1
      %s453 = scalar_select %p450, %s451, %s452
      %p456 = pneg %p450
      %p457 = scmp.eq.s32.totalorder %s37, 1
      %p458 = por %p456, %p457
      %p459 = scmp.ne.s32.totalorder %s451, %s454
      %p460 = scmp.eq.s32.totalorder %s37, 0
      %p461 = por %p459, %p460
      %p462 = scmp.ne.s32.totalorder %s451, %s454
      %p463 = scmp.eq.s32.totalorder %s42, 1
      %p464 = por %p462, %p463
      %p465 = scmp.ne.s32.totalorder %s454, %s455
      %p466 = scmp.eq.s32.totalorder %s42, 0
      %p467 = por %p465, %p466
      %p468 = scmp.ne.s32.totalorder %s454, %s455
      %p469 = scmp.eq.s32.totalorder %s43, 1
      %p470 = por %p468, %p469
      %p472 = scmp.ne.s32.totalorder %s455, %s471
      %p473 = scmp.eq.s32.totalorder %s43, 0
      %p474 = por %p472, %p473
      %s475 = ssub.s32 %s37, %s44
      %p476 = scmp.eq.s32.totalorder %s475, 0
      %s478 = sadd.s32 %s477, 1
      %s479 = scalar_select %p476, %s477, %s478
      %p482 = pneg %p476
      %p483 = scmp.eq.s32.totalorder %s37, 1
      %p484 = por %p482, %p483
      %p485 = scmp.ne.s32.totalorder %s477, %s480
      %p486 = scmp.eq.s32.totalorder %s37, 0
      %p487 = por %p485, %p486
      %p488 = scmp.ne.s32.totalorder %s477, %s480
      %p489 = scmp.eq.s32.totalorder %s42, 1
      %p490 = por %p488, %p489
      %p491 = scmp.ne.s32.totalorder %s480, %s481
      %p492 = scmp.eq.s32.totalorder %s42, 0
      %p493 = por %p491, %p492
      %p494 = scmp.ne.s32.totalorder %s480, %s481
      %p495 = scmp.eq.s32.totalorder %s43, 1
      %p496 = por %p494, %p495
      %p498 = scmp.ne.s32.totalorder %s481, %s497
      %p499 = scmp.eq.s32.totalorder %s43, 0
      %p500 = por %p498, %p499
      %p501 = scmp.le.s32.totalorder 1, %s37
      %p502 = scmp.lt.s32.totalorder %s37, 3
      %p503 = pnand %p501, %p502
      %p504 = pneg %p503
      // Predicated region
      $region9: #{forward.1} parent=5 // pred_check
        _
      $region10: #{forward.1} parent=5 // pred_check_branch
        %506 = sbr.rel (%p503) target = $region12
      $region11: #{forward.1} parent=5 // pred_region
        %s507 = ssub.s32 %s37, 1
        // Predicated region
        $region13: #{forward.1} parent=11 // pred_check
          %p508 = pneg %p84
        $region14: #{forward.1} parent=11 // pred_check_branch
          %510 = sbr.rel (%p508) target = $region16
        $region15: #{forward.1} parent=11 // pred_region
          %s512 = ssub.s32 1152, 1152
          %513 = vsyncadd [#allocation3], %s512
          %s514 = sshll.u32 [#allocation2], 4
          %s515 = int_to_ptr.vmem [resolvable:$true] %s514
          %520 = dma.hbm_to_vmem [thread:$0]  %s1, 1152, %s515, [#allocation3], 64, 64, 4
        $region16: #{forward.1} parent=11 // pred_fallthru
          _
        // Predicated region
        $region17: #{forward.1} parent=11 // pred_check
          %p521 = pneg %p105
        $region18: #{forward.1} parent=11 // pred_check_branch
          %523 = sbr.rel (%p521) target = $region20
        $region19: #{forward.1} parent=11 // pred_region
          %s525 = ssub.s32 256, 256
          %526 = vsyncadd [#allocation5], %s525
          %s527 = sshll.u32 [#allocation4], 4
          %s528 = int_to_ptr.vmem [resolvable:$true] %s527
          %533 = dma.hbm_to_vmem [thread:$0]  %s2, 256, %s528, [#allocation5], 128, 128, 8
        $region20: #{forward.1} parent=11 // pred_fallthru
          _
        // Predicated region
        $region21: #{forward.1} parent=11 // pred_check
          %p534 = pneg %p126
        $region22: #{forward.1} parent=11 // pred_check_branch
          %536 = sbr.rel (%p534) target = $region24
        $region23: #{forward.1} parent=11 // pred_region
          %s538 = ssub.s32 36864, 36864
          %539 = vsyncadd [#allocation5], %s538
          %s540 = sshll.u32 [#allocation6], 4
          %s541 = int_to_ptr.vmem [resolvable:$true] %s540
          %546 = dma.hbm_to_vmem [thread:$0]  %s3, 36864, %s541, [#allocation5], 128, 128, 8
        $region24: #{forward.1} parent=11 // pred_fallthru
          _
        // Predicated region
        $region25: #{forward.1} parent=11 // pred_check
          %p547 = pneg %p147
        $region26: #{forward.1} parent=11 // pred_check_branch
          %549 = sbr.rel (%p547) target = $region28
        $region27: #{forward.1} parent=11 // pred_region
          %s551 = ssub.s32 8192, 8192
          %552 = vsyncadd [#allocation8], %s551
          %s553 = sshll.u32 [#allocation7], 4
          %s554 = int_to_ptr.vmem [resolvable:$true] %s553
          %559 = dma.hbm_to_vmem [thread:$0]  %s4, 8192, %s554, [#allocation8], 64, 64, 4
        $region28: #{forward.1} parent=11 // pred_fallthru
          _
        // Predicated region
        $region29: #{forward.1} parent=11 // pred_check
          %p560 = pneg %p168
        $region30: #{forward.1} parent=11 // pred_check_branch
          %562 = sbr.rel (%p560) target = $region32
        $region31: #{forward.1} parent=11 // pred_region
          %s564 = ssub.s32 2304, 2304
          %565 = vsyncadd [#allocation8], %s564
          %s566 = sshll.u32 [#allocation9], 4
          %s567 = int_to_ptr.vmem [resolvable:$true] %s566
          %572 = dma.hbm_to_vmem [thread:$0]  %s5, 2304, %s567, [#allocation8], 64, 64, 4
        $region32: #{forward.1} parent=11 // pred_fallthru
          _
        // Predicated region
        $region33: #{forward.1} parent=11 // pred_check
          %p573 = pneg %p189
        $region34: #{forward.1} parent=11 // pred_check_branch
          %575 = sbr.rel (%p573) target = $region36
        $region35: #{forward.1} parent=11 // pred_region
          %s577 = ssub.s32 512, 512
          %578 = vsyncadd [#allocation11], %s577
          %s579 = sshll.u32 [#allocation10], 4
          %s580 = int_to_ptr.vmem [resolvable:$true] %s579
          %585 = dma.hbm_to_vmem [thread:$0]  %s6, 512, %s580, [#allocation11], 128, 128, 8
        $region36: #{forward.1} parent=11 // pred_fallthru
          _
        // Predicated region
        $region37: #{forward.1} parent=11 // pred_check
          %p586 = pneg %p210
        $region38: #{forward.1} parent=11 // pred_check_branch
          %588 = sbr.rel (%p586) target = $region40
        $region39: #{forward.1} parent=11 // pred_region
          %s590 = ssub.s32 4608, 4608
          %591 = vsyncadd [#allocation11], %s590
          %s592 = sshll.u32 [#allocation12], 4
          %s593 = int_to_ptr.vmem [resolvable:$true] %s592
          %598 = dma.hbm_to_vmem [thread:$0]  %s7, 4608, %s593, [#allocation11], 64, 64, 4
        $region40: #{forward.1} parent=11 // pred_fallthru
          _
        // Predicated region
        $region41: #{forward.1} parent=11 // pred_check
          %p599 = pneg %p231
        $region42: #{forward.1} parent=11 // pred_check_branch
          %601 = sbr.rel (%p599) target = $region44
        $region43: #{forward.1} parent=11 // pred_region
          %s603 = ssub.s32 2048, 2048
          %604 = vsyncadd [#allocation14], %s603
          %s605 = sshll.u32 [#allocation13], 4
          %s606 = int_to_ptr.vmem [resolvable:$true] %s605
          %611 = dma.hbm_to_vmem [thread:$0]  %s8, 2048, %s606, [#allocation14], 64, 64, 4
        $region44: #{forward.1} parent=11 // pred_fallthru
          _
        // Predicated region
        $region45: #{forward.1} parent=11 // pred_check
          %p612 = pneg %p252
        $region46: #{forward.1} parent=11 // pred_check_branch
          %614 = sbr.rel (%p612) target = $region48
        $region47: #{forward.1} parent=11 // pred_region
          %s616 = ssub.s32 256, 256
          %617 = vsyncadd [#allocation14], %s616
          %s618 = sshll.u32 [#allocation15], 4
          %s619 = int_to_ptr.vmem [resolvable:$true] %s618
          %624 = dma.hbm_to_vmem [thread:$0]  %s9, 256, %s619, [#allocation14], 64, 64, 4
        $region48: #{forward.1} parent=11 // pred_fallthru
          _
        // Predicated region
        $region49: #{forward.1} parent=11 // pred_check
          %p625 = pneg %p273
        $region50: #{forward.1} parent=11 // pred_check_branch
          %627 = sbr.rel (%p625) target = $region52
        $region51: #{forward.1} parent=11 // pred_region
          %s629 = ssub.s32 512, 512
          %630 = vsyncadd [#allocation17], %s629
          %s631 = sshll.u32 [#allocation16], 4
          %s632 = int_to_ptr.vmem [resolvable:$true] %s631
          %637 = dma.hbm_to_vmem [thread:$0]  %s10, 512, %s632, [#allocation17], 128, 128, 8
        $region52: #{forward.1} parent=11 // pred_fallthru
          _
        // Predicated region
        $region53: #{forward.1} parent=11 // pred_check
          %p638 = pneg %p294
        $region54: #{forward.1} parent=11 // pred_check_branch
          %640 = sbr.rel (%p638) target = $region56
        $region55: #{forward.1} parent=11 // pred_region
          %s642 = ssub.s32 128, 128
          %643 = vsyncadd [#allocation17], %s642
          %s644 = sshll.u32 [#allocation18], 4
          %s645 = int_to_ptr.vmem [resolvable:$true] %s644
          %650 = dma.hbm_to_vmem [thread:$0]  %s11, 128, %s645, [#allocation17], 64, 64, 4
        $region56: #{forward.1} parent=11 // pred_fallthru
          _
        // Predicated region
        $region57: #{forward.1} parent=11 // pred_check
          %p651 = pneg %p315
        $region58: #{forward.1} parent=11 // pred_check_branch
          %653 = sbr.rel (%p651) target = $region60
        $region59: #{forward.1} parent=11 // pred_region
          %s655 = ssub.s32 512, 512
          %656 = vsyncadd [#allocation20], %s655
          %s657 = sshll.u32 [#allocation19], 4
          %s658 = int_to_ptr.vmem [resolvable:$true] %s657
          %663 = dma.hbm_to_vmem [thread:$0]  %s12, 512, %s658, [#allocation20], 64, 64, 4
        $region60: #{forward.1} parent=11 // pred_fallthru
          _
        // Predicated region
        $region61: #{forward.1} parent=11 // pred_check
          %p664 = pneg %p336
        $region62: #{forward.1} parent=11 // pred_check_branch
          %666 = sbr.rel (%p664) target = $region64
        $region63: #{forward.1} parent=11 // pred_region
          %s668 = ssub.s32 512, 512
          %669 = vsyncadd [#allocation20], %s668
          %s670 = sshll.u32 [#allocation21], 4
          %s671 = int_to_ptr.vmem [resolvable:$true] %s670
          %676 = dma.hbm_to_vmem [thread:$0]  %s13, 512, %s671, [#allocation20], 64, 64, 4
        $region64: #{forward.1} parent=11 // pred_fallthru
          _
        // Predicated region
        $region65: #{forward.1} parent=11 // pred_check
          %p677 = pneg %p357
        $region66: #{forward.1} parent=11 // pred_check_branch
          %679 = sbr.rel (%p677) target = $region68
        $region67: #{forward.1} parent=11 // pred_region
          %s681 = ssub.s32 1152, 1152
          %682 = vsyncadd [#allocation23], %s681
          %s683 = sshll.u32 [#allocation22], 4
          %s684 = int_to_ptr.vmem [resolvable:$true] %s683
          %689 = dma.hbm_to_vmem [thread:$0]  %s14, 1152, %s684, [#allocation23], 64, 64, 4
        $region68: #{forward.1} parent=11 // pred_fallthru
          _
        // Predicated region
        $region69: #{forward.1} parent=11 // pred_check
          %p690 = pneg %p378
        $region70: #{forward.1} parent=11 // pred_check_branch
          %692 = sbr.rel (%p690) target = $region72
        $region71: #{forward.1} parent=11 // pred_region
          %s694 = ssub.s32 256, 256
          %695 = vsyncadd [#allocation23], %s694
          %s696 = sshll.u32 [#allocation24], 4
          %s697 = int_to_ptr.vmem [resolvable:$true] %s696
          %702 = dma.hbm_to_vmem [thread:$0]  %s15, 256, %s697, [#allocation23], 128, 128, 8
        $region72: #{forward.1} parent=11 // pred_fallthru
          _
        // Predicated region
        $region73: #{forward.1} parent=11 // pred_check
          %p703 = pneg %p399
        $region74: #{forward.1} parent=11 // pred_check_branch
          %705 = sbr.rel (%p703) target = $region76
        $region75: #{forward.1} parent=11 // pred_region
          %s707 = ssub.s32 4608, 4608
          %708 = vsyncadd [#allocation26], %s707
          %s709 = sshll.u32 [#allocation25], 4
          %s710 = int_to_ptr.vmem [resolvable:$true] %s709
          %715 = dma.hbm_to_vmem [thread:$0]  %s16, 4608, %s710, [#allocation26], 64, 64, 4
        $region76: #{forward.1} parent=11 // pred_fallthru
          _
        // Predicated region
        $region77: #{forward.1} parent=11 // pred_check
          %p716 = pneg %p420
        $region78: #{forward.1} parent=11 // pred_check_branch
          %718 = sbr.rel (%p716) target = $region80
        $region79: #{forward.1} parent=11 // pred_region
          %s720 = ssub.s32 64, 64
          %721 = vsyncadd [#allocation26], %s720
          %s723 = sshll.u32 [#allocation27], 4
          %s724 = int_to_ptr.vmem [resolvable:$true] %s723
          %726 = dma.hbm_to_vmem [thread:$0]  %s17, 64, %s724, [#allocation26]
        $region80: #{forward.1} parent=11 // pred_fallthru
          _
        // Predicated region
        $region81: #{forward.1} parent=11 // pred_check
          %p727 = pneg %p441
        $region82: #{forward.1} parent=11 // pred_check_branch
          %729 = sbr.rel (%p727) target = $region84
        $region83: #{forward.1} parent=11 // pred_region
          %s731 = ssub.s32 128, 128
          %732 = vsyncadd [#allocation29], %s731
          %s734 = sshll.u32 [#allocation28], 4
          %s735 = int_to_ptr.vmem [resolvable:$true] %s734
          %737 = dma.hbm_to_vmem [thread:$0]  %s18, 128, %s735, [#allocation29]
        $region84: #{forward.1} parent=11 // pred_fallthru
          _
      $region12: #{forward.1} parent=5 // pred_fallthru
        _
      %p738 = scmp.lt.s32.totalorder %s37, 2
      // Predicated region
      $region85: #{forward.1} parent=5 // pred_check
        %p739 = pneg %p738
      $region86: #{forward.1} parent=5 // pred_check_branch
        %741 = sbr.rel (%p739) target = $region88
      $region87: #{forward.1} parent=5 // pred_region
        // Predicated region
        $region89: #{forward.1} parent=87 // pred_check
          %p742 = pneg %p57
        $region90: #{forward.1} parent=87 // pred_check_branch
          %744 = sbr.rel (%p742) target = $region92
        $region91: #{forward.1} parent=87 // pred_region
          %p745 = scmp.lt.s32.totalorder %s37, 1
          %s746 = scalar_select %p745, %s37, 1
          %s747 = smul.addr %s746, 2
          %s748 = smul.addr %s747, 2
          %s749 = scalar_lea.vmem %s0, %s748
        $region92: #{forward.1} parent=87 // pred_fallthru
          _
      $region88: #{forward.1} parent=5 // pred_fallthru
        _
      %p750 = scmp.le.s32.totalorder 1, %s37
      %p751 = scmp.lt.s32.totalorder %s37, 3
      %p752 = pnand %p750, %p751
      %p753 = pneg %p752
      // Predicated region
      $region93: #{forward.1} parent=5 // pred_check
        _
      $region94: #{forward.1} parent=5 // pred_check_branch
        %755 = sbr.rel (%p752) target = $region96
      $region95: #{forward.1} parent=5 // pred_region
        %s756 = ssub.s32 %s37, 1
        // Predicated region
        $region97: #{forward.1} parent=95 // pred_check
          %p757 = pneg %p84
        $region98: #{forward.1} parent=95 // pred_check_branch
          %759 = sbr.rel (%p757) target = $region100
        $region99: #{forward.1} parent=95 // pred_region
          %760 = dma.done [#allocation3], 1152
        $region100: #{forward.1} parent=95 // pred_fallthru
          _
        // Predicated region
        $region101: #{forward.1} parent=95 // pred_check
          %p761 = pneg %p105
        $region102: #{forward.1} parent=95 // pred_check_branch
          %763 = sbr.rel (%p761) target = $region104
        $region103: #{forward.1} parent=95 // pred_region
          %764 = dma.done [#allocation5], 256
        $region104: #{forward.1} parent=95 // pred_fallthru
          _
        // Predicated region
        $region105: #{forward.1} parent=95 // pred_check
          %p765 = pneg %p126
        $region106: #{forward.1} parent=95 // pred_check_branch
          %767 = sbr.rel (%p765) target = $region108
        $region107: #{forward.1} parent=95 // pred_region
          %768 = dma.done [#allocation5], 36864
        $region108: #{forward.1} parent=95 // pred_fallthru
          _
        // Predicated region
        $region109: #{forward.1} parent=95 // pred_check
          %p769 = pneg %p147
        $region110: #{forward.1} parent=95 // pred_check_branch
          %771 = sbr.rel (%p769) target = $region112
        $region111: #{forward.1} parent=95 // pred_region
          %772 = dma.done [#allocation8], 8192
        $region112: #{forward.1} parent=95 // pred_fallthru
          _
        // Predicated region
        $region113: #{forward.1} parent=95 // pred_check
          %p773 = pneg %p168
        $region114: #{forward.1} parent=95 // pred_check_branch
          %775 = sbr.rel (%p773) target = $region116
        $region115: #{forward.1} parent=95 // pred_region
          %776 = dma.done [#allocation8], 2304
        $region116: #{forward.1} parent=95 // pred_fallthru
          _
        // Predicated region
        $region117: #{forward.1} parent=95 // pred_check
          %p777 = pneg %p189
        $region118: #{forward.1} parent=95 // pred_check_branch
          %779 = sbr.rel (%p777) target = $region120
        $region119: #{forward.1} parent=95 // pred_region
          %780 = dma.done [#allocation11], 512
        $region120: #{forward.1} parent=95 // pred_fallthru
          _
        // Predicated region
        $region121: #{forward.1} parent=95 // pred_check
          %p781 = pneg %p210
        $region122: #{forward.1} parent=95 // pred_check_branch
          %783 = sbr.rel (%p781) target = $region124
        $region123: #{forward.1} parent=95 // pred_region
          %784 = dma.done [#allocation11], 4608
        $region124: #{forward.1} parent=95 // pred_fallthru
          _
        // Predicated region
        $region125: #{forward.1} parent=95 // pred_check
          %p785 = pneg %p231
        $region126: #{forward.1} parent=95 // pred_check_branch
          %787 = sbr.rel (%p785) target = $region128
        $region127: #{forward.1} parent=95 // pred_region
          %788 = dma.done [#allocation14], 2048
        $region128: #{forward.1} parent=95 // pred_fallthru
          _
        // Predicated region
        $region129: #{forward.1} parent=95 // pred_check
          %p789 = pneg %p252
        $region130: #{forward.1} parent=95 // pred_check_branch
          %791 = sbr.rel (%p789) target = $region132
        $region131: #{forward.1} parent=95 // pred_region
          %792 = dma.done [#allocation14], 256
        $region132: #{forward.1} parent=95 // pred_fallthru
          _
        // Predicated region
        $region133: #{forward.1} parent=95 // pred_check
          %p793 = pneg %p273
        $region134: #{forward.1} parent=95 // pred_check_branch
          %795 = sbr.rel (%p793) target = $region136
        $region135: #{forward.1} parent=95 // pred_region
          %796 = dma.done [#allocation17], 512
        $region136: #{forward.1} parent=95 // pred_fallthru
          _
        // Predicated region
        $region137: #{forward.1} parent=95 // pred_check
          %p797 = pneg %p294
        $region138: #{forward.1} parent=95 // pred_check_branch
          %799 = sbr.rel (%p797) target = $region140
        $region139: #{forward.1} parent=95 // pred_region
          %800 = dma.done [#allocation17], 128
        $region140: #{forward.1} parent=95 // pred_fallthru
          _
        // Predicated region
        $region141: #{forward.1} parent=95 // pred_check
          %p801 = pneg %p315
        $region142: #{forward.1} parent=95 // pred_check_branch
          %803 = sbr.rel (%p801) target = $region144
        $region143: #{forward.1} parent=95 // pred_region
          %804 = dma.done [#allocation20], 512
        $region144: #{forward.1} parent=95 // pred_fallthru
          _
        // Predicated region
        $region145: #{forward.1} parent=95 // pred_check
          %p805 = pneg %p336
        $region146: #{forward.1} parent=95 // pred_check_branch
          %807 = sbr.rel (%p805) target = $region148
        $region147: #{forward.1} parent=95 // pred_region
          %808 = dma.done [#allocation20], 512
        $region148: #{forward.1} parent=95 // pred_fallthru
          _
        // Predicated region
        $region149: #{forward.1} parent=95 // pred_check
          %p809 = pneg %p357
        $region150: #{forward.1} parent=95 // pred_check_branch
          %811 = sbr.rel (%p809) target = $region152
        $region151: #{forward.1} parent=95 // pred_region
          %812 = dma.done [#allocation23], 1152
        $region152: #{forward.1} parent=95 // pred_fallthru
          _
        // Predicated region
        $region153: #{forward.1} parent=95 // pred_check
          %p813 = pneg %p378
        $region154: #{forward.1} parent=95 // pred_check_branch
          %815 = sbr.rel (%p813) target = $region156
        $region155: #{forward.1} parent=95 // pred_region
          %816 = dma.done [#allocation23], 256
        $region156: #{forward.1} parent=95 // pred_fallthru
          _
        // Predicated region
        $region157: #{forward.1} parent=95 // pred_check
          %p817 = pneg %p399
        $region158: #{forward.1} parent=95 // pred_check_branch
          %819 = sbr.rel (%p817) target = $region160
        $region159: #{forward.1} parent=95 // pred_region
          %820 = dma.done [#allocation26], 4608
        $region160: #{forward.1} parent=95 // pred_fallthru
          _
        // Predicated region
        $region161: #{forward.1} parent=95 // pred_check
          %p821 = pneg %p420
        $region162: #{forward.1} parent=95 // pred_check_branch
          %823 = sbr.rel (%p821) target = $region164
        $region163: #{forward.1} parent=95 // pred_region
          %824 = dma.done [#allocation26], 64
        $region164: #{forward.1} parent=95 // pred_fallthru
          _
        // Predicated region
        $region165: #{forward.1} parent=95 // pred_check
          %p825 = pneg %p441
        $region166: #{forward.1} parent=95 // pred_check_branch
          %827 = sbr.rel (%p825) target = $region168
        $region167: #{forward.1} parent=95 // pred_region
          %828 = dma.done [#allocation29], 128
        $region168: #{forward.1} parent=95 // pred_fallthru
          _
        %p829 = scmp.lt.s32.totalorder %s42, 1
        %s830 = scalar_select %p829, %s42, 1
        %s831 = smul.addr %s830, 2
        %s832 = smul.addr %s831, 2
        %s833 = scalar_lea.vmem %s0, %s832
        %p834 = pneg %p63
        %p835 = pneg %p60
        %p836 = pneg %p84
        %p837 = pneg %p81
        %p838 = pneg %p105
        %p839 = pneg %p102
        %p840 = pneg %p126
        %p841 = pneg %p123
        %p842 = pneg %p147
        %p843 = pneg %p144
        %p844 = pneg %p168
        %p845 = pneg %p165
        %p846 = pneg %p189
        %p847 = pneg %p186
        %p848 = pneg %p210
        %p849 = pneg %p207
        %p850 = pneg %p231
        %p851 = pneg %p228
        %p852 = pneg %p252
        %p853 = pneg %p249
        %p854 = pneg %p273
        %p855 = pneg %p270
        %p856 = pneg %p294
        %p857 = pneg %p291
        %p858 = pneg %p315
        %p859 = pneg %p312
        %p860 = pneg %p336
        %p861 = pneg %p333
        %p862 = pneg %p357
        %p863 = pneg %p354
        %p864 = pneg %p378
        %p865 = pneg %p375
        %p866 = pneg %p399
        %p867 = pneg %p396
        %p868 = pneg %p420
        %p869 = pneg %p417
        %p870 = pneg %p441
        %p871 = pneg %p438
        %p872 = pneg %p467
        %p873 = pneg %p464
        %p874 = scmp.lt.s32.totalorder %s42, 1
        %s875 = scalar_select %p874, %s42, 1
        %s876 = smul.addr %s875, 2
        %s877 = smul.addr %s876, 8
        %s878 = scalar_lea.vmem %s19, %s877
        %p879 = pneg %p493
        %p880 = pneg %p490
        %p881 = scmp.lt.s32.totalorder %s42, 1
        %s882 = scalar_select %p881, %s42, 1
        %s883 = smul.addr %s882, 2
        %s884 = smul.addr %s883, 8
        %s885 = scalar_lea.vmem %s20, %s884
        %p886 = scmp.lt.s32.totalorder %s42, 1
        %s887 = scalar_select %p886, %s42, 1
        %s888 = smul.addr %s887, 2
        %s889 = smul.addr %s888, 2
        %s890 = scalar_lea.vmem %s0, %s889
        %p891 = scmp.lt.s32.totalorder %s42, 1
        %s892 = scalar_select %p891, %s42, 1
        %s893 = smul.addr %s892, 2
        %s894 = smul.addr %s893, 8
        %s895 = scalar_lea.vmem %s19, %s894
        %p896 = scmp.lt.s32.totalorder %s42, 1
        %s897 = scalar_select %p896, %s42, 1
        %s898 = smul.addr %s897, 2
        %s899 = smul.addr %s898, 8
        %s900 = scalar_lea.vmem %s20, %s899
        %v902 = vld [vmem:[%s890] sm:$0xf]
        %v903 = vld [vmem:[#allocation6] sm:$0xff]
        %v904 = vld [vmem:[#allocation6 + $0x8] sm:$0xff]
        %v905 = vld [vmem:[#allocation6 + $0x10] sm:$0xff]
        %v906 = vld [vmem:[#allocation6 + $0x18] sm:$0xff]
        %v907 = vld [vmem:[#allocation6 + $0x20] sm:$0xff]
        %v908 = vld [vmem:[#allocation6 + $0x28] sm:$0xff]
        %v909 = vld [vmem:[#allocation6 + $0x30] sm:$0xff]
        %v910 = vld [vmem:[#allocation6 + $0x38] sm:$0xff]
        %v911 = vld [vmem:[#allocation6 + $0x40] sm:$0xff]
        %v912 = vld [vmem:[#allocation6 + $0x48] sm:$0xff]
        %v913 = vld [vmem:[#allocation6 + $0x50] sm:$0xff]
        %v914 = vld [vmem:[#allocation6 + $0x58] sm:$0xff]
        %v915 = vld [vmem:[#allocation6 + $0x60] sm:$0xff]
        %v916 = vld [vmem:[#allocation6 + $0x68] sm:$0xff]
        %v917 = vld [vmem:[#allocation6 + $0x70] sm:$0xff]
        %v918 = vld [vmem:[#allocation6 + $0x78] sm:$0xff]
        %v919 = vld [vmem:[#allocation6 + $0x80] sm:$0xff]
        %v920 = vld [vmem:[#allocation6 + $0x88] sm:$0xff]
        %v921 = vld [vmem:[#allocation6 + $0x90] sm:$0xff]
        %v922 = vld [vmem:[#allocation6 + $0x98] sm:$0xff]
        %v923 = vld [vmem:[#allocation6 + $0xa0] sm:$0xff]
        %v924 = vld [vmem:[#allocation6 + $0xa8] sm:$0xff]
        %v925 = vld [vmem:[#allocation6 + $0xb0] sm:$0xff]
        %v926 = vld [vmem:[#allocation6 + $0xb8] sm:$0xff]
        %v927 = vld [vmem:[#allocation6 + $0xc0] sm:$0xff]
        %v928 = vld [vmem:[#allocation6 + $0xc8] sm:$0xff]
        %v929 = vld [vmem:[#allocation6 + $0xd0] sm:$0xff]
        %v930 = vld [vmem:[#allocation6 + $0xd8] sm:$0xff]
        %v931 = vld [vmem:[#allocation6 + $0xe0] sm:$0xff]
        %v932 = vld [vmem:[#allocation6 + $0xe8] sm:$0xff]
        %v933 = vld [vmem:[#allocation6 + $0xf0] sm:$0xff]
        %v934 = vld [vmem:[#allocation6 + $0xf8] sm:$0xff]
        %v937 = vunpack.c.l.s4 1983009808
        %v938 = vunpack.c.0.s8 %v937
        %v939 = vlaneseq
        %v940 = vshrl.u32 %v939, 7
        %v941 = vsub.s32 %v938, %v940
        %v942 = vrot.slane %v902, %v941
        %v943 = vcombine.high %v942, %v942
        %v978 = vunpack.c.l.b16 %v903
        %v979 = vunpack.c.h.b16 %v903
        %v980 = vunpack.c.l.b16 %v904
        %v981 = vunpack.c.h.b16 %v904
        %v982 = vunpack.c.l.b16 %v905
        %v983 = vunpack.c.h.b16 %v905
        %v984 = vunpack.c.l.b16 %v906
        %v985 = vunpack.c.h.b16 %v906
        %v986 = vunpack.c.l.b16 %v907
        %v987 = vunpack.c.h.b16 %v907
        %v988 = vunpack.c.l.b16 %v908
        %v989 = vunpack.c.h.b16 %v908
        %v990 = vunpack.c.l.b16 %v909
        %v991 = vunpack.c.h.b16 %v909
        %v992 = vunpack.c.l.b16 %v910
        %v993 = vunpack.c.h.b16 %v910
        %v994 = vunpack.c.l.b16 %v911
        %v995 = vunpack.c.h.b16 %v911
        %v996 = vunpack.c.l.b16 %v912
        %v997 = vunpack.c.h.b16 %v912
        %v998 = vunpack.c.l.b16 %v913
        %v999 = vunpack.c.h.b16 %v913
        %v1000 = vunpack.c.l.b16 %v914
        %v1001 = vunpack.c.h.b16 %v914
        %v1002 = vunpack.c.l.b16 %v915
        %v1003 = vunpack.c.h.b16 %v915
        %v1004 = vunpack.c.l.b16 %v916
        %v1005 = vunpack.c.h.b16 %v916
        %v1006 = vunpack.c.l.b16 %v917
        %v1007 = vunpack.c.h.b16 %v917
        %v1008 = vunpack.c.l.b16 %v918
        %v1009 = vunpack.c.h.b16 %v918
        %v1010 = vunpack.c.l.b16 %v919
        %v1011 = vunpack.c.h.b16 %v919
        %v1012 = vunpack.c.l.b16 %v920
        %v1013 = vunpack.c.h.b16 %v920
        %v1014 = vunpack.c.l.b16 %v921
        %v1015 = vunpack.c.h.b16 %v921
        %v1016 = vunpack.c.l.b16 %v922
        %v1017 = vunpack.c.h.b16 %v922
        %v1018 = vunpack.c.l.b16 %v923
        %v1019 = vunpack.c.h.b16 %v923
        %v1020 = vunpack.c.l.b16 %v924
        %v1021 = vunpack.c.h.b16 %v924
        %v1022 = vunpack.c.l.b16 %v925
        %v1023 = vunpack.c.h.b16 %v925
        %v1024 = vunpack.c.l.b16 %v926
        %v1025 = vunpack.c.h.b16 %v926
        %v1026 = vunpack.c.l.b16 %v927
        %v1027 = vunpack.c.h.b16 %v927
        %v1028 = vunpack.c.l.b16 %v928
        %v1029 = vunpack.c.h.b16 %v928
        %v1030 = vunpack.c.l.b16 %v929
        %v1031 = vunpack.c.h.b16 %v929
        %v1032 = vunpack.c.l.b16 %v930
        %v1033 = vunpack.c.h.b16 %v930
        %v1034 = vunpack.c.l.b16 %v931
        %v1035 = vunpack.c.h.b16 %v931
        %v1036 = vunpack.c.l.b16 %v932
        %v1037 = vunpack.c.h.b16 %v932
        %v1038 = vunpack.c.l.b16 %v933
        %v1039 = vunpack.c.h.b16 %v933
        %v1040 = vunpack.c.l.b16 %v934
        %v1041 = vunpack.c.h.b16 %v934
        %v1042 = vpack.c.b16 %v980, %v978
        %v1043 = vpack.c.b16 %v981, %v979
        %v1044 = vpack.c.b16 %v984, %v982
        %v1045 = vpack.c.b16 %v985, %v983
        %v1046 = vpack.c.b16 %v988, %v986
        %v1047 = vpack.c.b16 %v989, %v987
        %v1048 = vpack.c.b16 %v992, %v990
        %v1049 = vpack.c.b16 %v993, %v991
        %v1050 = vpack.c.b16 %v996, %v994
        %v1051 = vpack.c.b16 %v997, %v995
        %v1052 = vpack.c.b16 %v1000, %v998
        %v1053 = vpack.c.b16 %v1001, %v999
        %v1054 = vpack.c.b16 %v1004, %v1002
        %v1055 = vpack.c.b16 %v1005, %v1003
        %v1056 = vpack.c.b16 %v1008, %v1006
        %v1057 = vpack.c.b16 %v1009, %v1007
        %v1058 = vpack.c.b16 %v1012, %v1010
        %v1059 = vpack.c.b16 %v1013, %v1011
        %v1060 = vpack.c.b16 %v1016, %v1014
        %v1061 = vpack.c.b16 %v1017, %v1015
        %v1062 = vpack.c.b16 %v1020, %v1018
        %v1063 = vpack.c.b16 %v1021, %v1019
        %v1064 = vpack.c.b16 %v1024, %v1022
        %v1065 = vpack.c.b16 %v1025, %v1023
        %v1066 = vpack.c.b16 %v1028, %v1026
        %v1067 = vpack.c.b16 %v1029, %v1027
        %v1068 = vpack.c.b16 %v1032, %v1030
        %v1069 = vpack.c.b16 %v1033, %v1031
        %v1070 = vpack.c.b16 %v1036, %v1034
        %v1071 = vpack.c.b16 %v1037, %v1035
        %v1072 = vpack.c.b16 %v1040, %v1038
        %v1073 = vpack.c.b16 %v1041, %v1039
        %1106 = vmatprep.subr.bf16.mxu0 %v1057
        %1107 = vmatpush1.bf16.msra.mxu0 %v1056
        %1108 = vmatprep.subr.bf16.mxu0 %v1055
        %1109 = vmatpush1.bf16.msra.mxu0 %v1054
        %1110 = vmatprep.subr.bf16.mxu0 %v1053
        %1111 = vmatpush1.bf16.msra.mxu0 %v1052
        %1112 = vmatprep.subr.bf16.mxu0 %v1051
        %1113 = vmatpush1.bf16.msra.mxu0 %v1050
        %1114 = vmatprep.subr.bf16.mxu0 %v1049
        %1115 = vmatpush1.bf16.msra.mxu0 %v1048
        %1116 = vmatprep.subr.bf16.mxu0 %v1047
        %1117 = vmatpush1.bf16.msra.mxu0 %v1046
        %1118 = vmatprep.subr.bf16.mxu0 %v1045
        %1119 = vmatpush1.bf16.msra.mxu0 %v1044
        %1120 = vmatprep.subr.bf16.mxu0 %v1043
        %1121 = vmatpush1.bf16.msra.mxu0 %v1042
        %1122 = vmatprep.subr.bf16.mxu0 %v1073
        %1123 = vmatpush2.bf16.msra.mxu0 %v1072
        %1124 = vmatprep.subr.bf16.mxu0 %v1071
        %1125 = vmatpush2.bf16.msra.mxu0 %v1070
        %1126 = vmatprep.subr.bf16.mxu0 %v1069
        %1127 = vmatpush2.bf16.msra.mxu0 %v1068
        %1128 = vmatprep.subr.bf16.mxu0 %v1067
        %1129 = vmatpush2.bf16.msra.mxu0 %v1066
        %1130 = vmatprep.subr.bf16.mxu0 %v1065
        %1131 = vmatpush2.bf16.msra.mxu0 %v1064
        %1132 = vmatprep.subr.bf16.mxu0 %v1063
        %1133 = vmatpush2.bf16.msra.mxu0 %v1062
        %1134 = vmatprep.subr.bf16.mxu0 %v1061
        %1135 = vmatpush2.bf16.msra.mxu0 %v1060
        %1136 = vmatprep.subr.bf16.mxu0 %v1059
        %1137 = vmatpush2.bf16.msra.mxu0 %v1058
        %1138 = vmatprep.mubr.bf16.mxu0 %v943
        %1139 = vmatmul.mubr.bf16.gmra.mxu0 %v942
        %v1140 = vpop.f32.mrf.mxu0
        %v1141 = vadd.f32 0.0, %v1140
        %v1142 = vpop.f32.mrf.mxu0
        %v1143 = vadd.f32 0.0, %v1142
        %v1144 = vpop.f32.mrf.mxu0
        %v1145 = vpop.f32.mrf.mxu0
        %1146 = vdwg.mxu0
        %v1147 = vpack.c.bf16 %v1141, %v1141
        %v1148 = vpack.c.bf16 %v1143, %v1143
        %v1149 = vld [vmem:[#allocation2] sm:$0xf]
        %v1150 = vld [vmem:[#allocation2 + $0x4] sm:$0xf]
        %s1151 = scalar_lea.vmem [#allocation6], 256
        %v1152 = vld [vmem:[%s1151] sm:$0xff]
        %v1153 = vld [vmem:[%s1151 + $0x8] sm:$0xff]
        %v1154 = vld [vmem:[%s1151 + $0x10] sm:$0xff]
        %v1155 = vld [vmem:[%s1151 + $0x18] sm:$0xff]
        %v1156 = vld [vmem:[%s1151 + $0x20] sm:$0xff]
        %v1157 = vld [vmem:[%s1151 + $0x28] sm:$0xff]
        %v1158 = vld [vmem:[%s1151 + $0x30] sm:$0xff]
        %v1159 = vld [vmem:[%s1151 + $0x38] sm:$0xff]
        %v1160 = vld [vmem:[%s1151 + $0x40] sm:$0xff]
        %v1161 = vld [vmem:[%s1151 + $0x48] sm:$0xff]
        %v1162 = vld [vmem:[%s1151 + $0x50] sm:$0xff]
        %v1163 = vld [vmem:[%s1151 + $0x58] sm:$0xff]
        %v1164 = vld [vmem:[%s1151 + $0x60] sm:$0xff]
        %v1165 = vld [vmem:[%s1151 + $0x68] sm:$0xff]
        %v1166 = vld [vmem:[%s1151 + $0x70] sm:$0xff]
        %v1167 = vld [vmem:[%s1151 + $0x78] sm:$0xff]
        %v1168 = vld [vmem:[%s1151 + $0x80] sm:$0xff]
        %v1169 = vld [vmem:[%s1151 + $0x88] sm:$0xff]
        %v1170 = vld [vmem:[%s1151 + $0x90] sm:$0xff]
        %v1171 = vld [vmem:[%s1151 + $0x98] sm:$0xff]
        %v1172 = vld [vmem:[%s1151 + $0xa0] sm:$0xff]
        %v1173 = vld [vmem:[%s1151 + $0xa8] sm:$0xff]
        %v1174 = vld [vmem:[%s1151 + $0xb0] sm:$0xff]
        %v1175 = vld [vmem:[%s1151 + $0xb8] sm:$0xff]
        %v1176 = vld [vmem:[%s1151 + $0xc0] sm:$0xff]
        %v1177 = vld [vmem:[%s1151 + $0xc8] sm:$0xff]
        %v1178 = vld [vmem:[%s1151 + $0xd0] sm:$0xff]
        %v1179 = vld [vmem:[%s1151 + $0xd8] sm:$0xff]
        %v1180 = vld [vmem:[%s1151 + $0xe0] sm:$0xff]
        %v1181 = vld [vmem:[%s1151 + $0xe8] sm:$0xff]
        %v1182 = vld [vmem:[%s1151 + $0xf0] sm:$0xff]
        %v1183 = vld [vmem:[%s1151 + $0xf8] sm:$0xff]
        %v1216 = vunpack.c.l.b16 %v1152
        %v1217 = vunpack.c.h.b16 %v1152
        %v1218 = vunpack.c.l.b16 %v1153
        %v1219 = vunpack.c.h.b16 %v1153
        %v1220 = vunpack.c.l.b16 %v1154
        %v1221 = vunpack.c.h.b16 %v1154
        %v1222 = vunpack.c.l.b16 %v1155
        %v1223 = vunpack.c.h.b16 %v1155
        %v1224 = vunpack.c.l.b16 %v1156
        %v1225 = vunpack.c.h.b16 %v1156
        %v1226 = vunpack.c.l.b16 %v1157
        %v1227 = vunpack.c.h.b16 %v1157
        %v1228 = vunpack.c.l.b16 %v1158
        %v1229 = vunpack.c.h.b16 %v1158
        %v1230 = vunpack.c.l.b16 %v1159
        %v1231 = vunpack.c.h.b16 %v1159
        %v1232 = vunpack.c.l.b16 %v1160
        %v1233 = vunpack.c.h.b16 %v1160
        %v1234 = vunpack.c.l.b16 %v1161
        %v1235 = vunpack.c.h.b16 %v1161
        %v1236 = vunpack.c.l.b16 %v1162
        %v1237 = vunpack.c.h.b16 %v1162
        %v1238 = vunpack.c.l.b16 %v1163
        %v1239 = vunpack.c.h.b16 %v1163
        %v1240 = vunpack.c.l.b16 %v1164
        %v1241 = vunpack.c.h.b16 %v1164
        %v1242 = vunpack.c.l.b16 %v1165
        %v1243 = vunpack.c.h.b16 %v1165
        %v1244 = vunpack.c.l.b16 %v1166
        %v1245 = vunpack.c.h.b16 %v1166
        %v1246 = vunpack.c.l.b16 %v1167
        %v1247 = vunpack.c.h.b16 %v1167
        %v1248 = vunpack.c.l.b16 %v1168
        %v1249 = vunpack.c.h.b16 %v1168
        %v1250 = vunpack.c.l.b16 %v1169
        %v1251 = vunpack.c.h.b16 %v1169
        %v1252 = vunpack.c.l.b16 %v1170
        %v1253 = vunpack.c.h.b16 %v1170
        %v1254 = vunpack.c.l.b16 %v1171
        %v1255 = vunpack.c.h.b16 %v1171
        %v1256 = vunpack.c.l.b16 %v1172
        %v1257 = vunpack.c.h.b16 %v1172
        %v1258 = vunpack.c.l.b16 %v1173
        %v1259 = vunpack.c.h.b16 %v1173
        %v1260 = vunpack.c.l.b16 %v1174
        %v1261 = vunpack.c.h.b16 %v1174
        %v1262 = vunpack.c.l.b16 %v1175
        %v1263 = vunpack.c.h.b16 %v1175
        %v1264 = vunpack.c.l.b16 %v1176
        %v1265 = vunpack.c.h.b16 %v1176
        %v1266 = vunpack.c.l.b16 %v1177
        %v1267 = vunpack.c.h.b16 %v1177
        %v1268 = vunpack.c.l.b16 %v1178
        %v1269 = vunpack.c.h.b16 %v1178
        %v1270 = vunpack.c.l.b16 %v1179
        %v1271 = vunpack.c.h.b16 %v1179
        %v1272 = vunpack.c.l.b16 %v1180
        %v1273 = vunpack.c.h.b16 %v1180
        %v1274 = vunpack.c.l.b16 %v1181
        %v1275 = vunpack.c.h.b16 %v1181
        %v1276 = vunpack.c.l.b16 %v1182
        %v1277 = vunpack.c.h.b16 %v1182
        %v1278 = vunpack.c.l.b16 %v1183
        %v1279 = vunpack.c.h.b16 %v1183
        %v1280 = vpack.c.b16 %v1218, %v1216
        %v1281 = vpack.c.b16 %v1219, %v1217
        %v1282 = vpack.c.b16 %v1222, %v1220
        %v1283 = vpack.c.b16 %v1223, %v1221
        %v1284 = vpack.c.b16 %v1226, %v1224
        %v1285 = vpack.c.b16 %v1227, %v1225
        %v1286 = vpack.c.b16 %v1230, %v1228
        %v1287 = vpack.c.b16 %v1231, %v1229
        %v1288 = vpack.c.b16 %v1234, %v1232
        %v1289 = vpack.c.b16 %v1235, %v1233
        %v1290 = vpack.c.b16 %v1238, %v1236
        %v1291 = vpack.c.b16 %v1239, %v1237
        %v1292 = vpack.c.b16 %v1242, %v1240
        %v1293 = vpack.c.b16 %v1243, %v1241
        %v1294 = vpack.c.b16 %v1246, %v1244
        %v1295 = vpack.c.b16 %v1247, %v1245
        %v1296 = vpack.c.b16 %v1250, %v1248
        %v1297 = vpack.c.b16 %v1251, %v1249
        %v1298 = vpack.c.b16 %v1254, %v1252
        %v1299 = vpack.c.b16 %v1255, %v1253
        %v1300 = vpack.c.b16 %v1258, %v1256
        %v1301 = vpack.c.b16 %v1259, %v1257
        %v1302 = vpack.c.b16 %v1262, %v1260
        %v1303 = vpack.c.b16 %v1263, %v1261
        %v1304 = vpack.c.b16 %v1266, %v1264
        %v1305 = vpack.c.b16 %v1267, %v1265
        %v1306 = vpack.c.b16 %v1270, %v1268
        %v1307 = vpack.c.b16 %v1271, %v1269
        %v1308 = vpack.c.b16 %v1274, %v1272
        %v1309 = vpack.c.b16 %v1275, %v1273
        %v1310 = vpack.c.b16 %v1278, %v1276
        %v1311 = vpack.c.b16 %v1279, %v1277
        %1344 = vmatprep.subr.bf16.mxu0 %v1295
        %1345 = vmatpush1.bf16.msra.mxu0 %v1294
        %1346 = vmatprep.subr.bf16.mxu0 %v1293
        %1347 = vmatpush1.bf16.msra.mxu0 %v1292
        %1348 = vmatprep.subr.bf16.mxu0 %v1291
        %1349 = vmatpush1.bf16.msra.mxu0 %v1290
        %1350 = vmatprep.subr.bf16.mxu0 %v1289
        %1351 = vmatpush1.bf16.msra.mxu0 %v1288
        %1352 = vmatprep.subr.bf16.mxu0 %v1287
        %1353 = vmatpush1.bf16.msra.mxu0 %v1286
        %1354 = vmatprep.subr.bf16.mxu0 %v1285
        %1355 = vmatpush1.bf16.msra.mxu0 %v1284
        %1356 = vmatprep.subr.bf16.mxu0 %v1283
        %1357 = vmatpush1.bf16.msra.mxu0 %v1282
        %1358 = vmatprep.subr.bf16.mxu0 %v1281
        %1359 = vmatpush1.bf16.msra.mxu0 %v1280
        %1360 = vmatprep.subr.bf16.mxu0 %v1311
        %1361 = vmatpush2.bf16.msra.mxu0 %v1310
        %1362 = vmatprep.subr.bf16.mxu0 %v1309
        %1363 = vmatpush2.bf16.msra.mxu0 %v1308
        %1364 = vmatprep.subr.bf16.mxu0 %v1307
        %1365 = vmatpush2.bf16.msra.mxu0 %v1306
        %1366 = vmatprep.subr.bf16.mxu0 %v1305
        %1367 = vmatpush2.bf16.msra.mxu0 %v1304
        %1368 = vmatprep.subr.bf16.mxu0 %v1303
        %1369 = vmatpush2.bf16.msra.mxu0 %v1302
        %1370 = vmatprep.subr.bf16.mxu0 %v1301
        %1371 = vmatpush2.bf16.msra.mxu0 %v1300
        %1372 = vmatprep.subr.bf16.mxu0 %v1299
        %1373 = vmatpush2.bf16.msra.mxu0 %v1298
        %1374 = vmatprep.subr.bf16.mxu0 %v1297
        %1375 = vmatpush2.bf16.msra.mxu0 %v1296
        %1376 = vmatprep.mubr.bf16.mxu0 %v943
        %1377 = vmatmul.mubr.bf16.gmra.mxu0 %v942
        %v1378 = vpop.f32.mrf.mxu0
        %v1379 = vadd.f32 0.0, %v1378
        %v1380 = vpop.f32.mrf.mxu0
        %v1381 = vadd.f32 0.0, %v1380
        %v1382 = vpop.f32.mrf.mxu0
        %v1383 = vpop.f32.mrf.mxu0
        %1384 = vdwg.mxu0
        %v1385 = vpack.c.bf16 %v1379, %v1379
        %v1386 = vpack.c.bf16 %v1381, %v1381
        %s1387 = scalar_lea.vmem [#allocation2], 8
        %v1388 = vld [vmem:[%s1387] sm:$0xf]
        %v1389 = vld [vmem:[%s1387 + $0x4] sm:$0xf]
        %v1392 = vunpack.c.l.b16 %v1388
        %v1393 = vunpack.c.l.b16 %v1389
        %v1394 = vpack.c.b16 %v1393, %v1392
        %vm1395 = vcmask 23552
        %v1397 = vsel %vm1395, %v1394, 0
        %vm1399 = vcmask 1040384
        %vm1400 = vcmask 1041408
        %v1401 = vsel %vm1399, 4294967295, 65535
        %v1402 = vsel %vm1400, %v1401, 0
        %v1404 = vand.u32 %v1385, %v1402
        %v1407 = vand.u32 %v1386, %v1402
        %1409 = vmatprep.subr.bf16.mxu0 0
        %1410 = vmatpush1.bf16.msra.mxu0 0
        %1411 = vmatprep.subr.bf16.mxu0 0
        %1412 = vmatpush1.bf16.msra.mxu0 0
        %1413 = vmatprep.subr.bf16.mxu0 0
        %1414 = vmatpush1.bf16.msra.mxu0 0
        %1415 = vmatprep.subr.bf16.mxu0 0
        %1416 = vmatpush1.bf16.msra.mxu0 0
        %1417 = vmatprep.subr.bf16.mxu0 0
        %1418 = vmatpush1.bf16.msra.mxu0 0
        %1419 = vmatprep.subr.bf16.mxu0 0
        %1420 = vmatpush1.bf16.msra.mxu0 0
        %1421 = vmatprep.subr.bf16.mxu0 0
        %1422 = vmatpush1.bf16.msra.mxu0 0
        %1423 = vmatprep.subr.bf16.mxu0 %v1407
        %1424 = vmatpush1.bf16.msra.mxu0 %v1404
        %1425 = vmatprep.subr.bf16.mxu0 0
        %1426 = vmatpush2.bf16.msra.mxu0 0
        %1427 = vmatprep.subr.bf16.mxu0 0
        %1428 = vmatpush2.bf16.msra.mxu0 0
        %1429 = vmatprep.subr.bf16.mxu0 0
        %1430 = vmatpush2.bf16.msra.mxu0 0
        %1431 = vmatprep.subr.bf16.mxu0 0
        %1432 = vmatpush2.bf16.msra.mxu0 0
        %1433 = vmatprep.subr.bf16.mxu0 0
        %1434 = vmatpush2.bf16.msra.mxu0 0
        %1435 = vmatprep.subr.bf16.mxu0 0
        %1436 = vmatpush2.bf16.msra.mxu0 0
        %1437 = vmatprep.subr.bf16.mxu0 0
        %1438 = vmatpush2.bf16.msra.mxu0 0
        %1439 = vmatprep.subr.bf16.mxu0 0
        %1440 = vmatpush2.bf16.msra.mxu0 0
        %1441 = vmatprep.mubr.bf16.mxu0 0
        %1442 = vmatmul.mubr.bf16.gmra.mxu0 %v1397
        %v1443 = vpop.f32.mrf.mxu0
        %v1444 = vadd.f32 0.0, %v1443
        %v1445 = vpop.f32.mrf.mxu0
        %v1446 = vadd.f32 0.0, %v1445
        %v1447 = vpop.f32.mrf.mxu0
        %v1448 = vadd.f32 0.0, %v1447
        %v1449 = vpop.f32.mrf.mxu0
        %v1450 = vadd.f32 0.0, %v1449
        %1451 = vdwg.mxu0
        %v1454 = vunpack.c.l.b16 %v1149
        %v1455 = vunpack.c.l.b16 %v1150
        %v1456 = vpack.c.b16 %v1455, %v1454
        %v1458 = vsel %vm1395, %v1456, 0
        %v1461 = vand.u32 %v1147, %v1402
        %v1464 = vand.u32 %v1148, %v1402
        %1466 = vmatprep.subr.bf16.mxu0 0
        %1467 = vmatpush1.bf16.msra.mxu0 0
        %1468 = vmatprep.subr.bf16.mxu0 0
        %1469 = vmatpush1.bf16.msra.mxu0 0
        %1470 = vmatprep.subr.bf16.mxu0 0
        %1471 = vmatpush1.bf16.msra.mxu0 0
        %1472 = vmatprep.subr.bf16.mxu0 0
        %1473 = vmatpush1.bf16.msra.mxu0 0
        %1474 = vmatprep.subr.bf16.mxu0 0
        %1475 = vmatpush1.bf16.msra.mxu0 0
        %1476 = vmatprep.subr.bf16.mxu0 0
        %1477 = vmatpush1.bf16.msra.mxu0 0
        %1478 = vmatprep.subr.bf16.mxu0 0
        %1479 = vmatpush1.bf16.msra.mxu0 0
        %1480 = vmatprep.subr.bf16.mxu0 %v1464
        %1481 = vmatpush1.bf16.msra.mxu0 %v1461
        %1482 = vmatprep.subr.bf16.mxu0 0
        %1483 = vmatpush2.bf16.msra.mxu0 0
        %1484 = vmatprep.subr.bf16.mxu0 0
        %1485 = vmatpush2.bf16.msra.mxu0 0
        %1486 = vmatprep.subr.bf16.mxu0 0
        %1487 = vmatpush2.bf16.msra.mxu0 0
        %1488 = vmatprep.subr.bf16.mxu0 0
        %1489 = vmatpush2.bf16.msra.mxu0 0
        %1490 = vmatprep.subr.bf16.mxu0 0
        %1491 = vmatpush2.bf16.msra.mxu0 0
        %1492 = vmatprep.subr.bf16.mxu0 0
        %1493 = vmatpush2.bf16.msra.mxu0 0
        %1494 = vmatprep.subr.bf16.mxu0 0
        %1495 = vmatpush2.bf16.msra.mxu0 0
        %1496 = vmatprep.subr.bf16.mxu0 0
        %1497 = vmatpush2.bf16.msra.mxu0 0
        %1498 = vmatprep.mubr.bf16.mxu0 0
        %1499 = vmatmul.mubr.bf16.gmra.mxu0 %v1458
        %v1500 = vpop.f32.mrf.mxu0
        %v1501 = vadd.f32 %v1444, %v1500
        %v1502 = vpop.f32.mrf.mxu0
        %v1503 = vadd.f32 %v1446, %v1502
        %v1504 = vpop.f32.mrf.mxu0
        %v1505 = vadd.f32 %v1448, %v1504
        %v1506 = vpop.f32.mrf.mxu0
        %v1507 = vadd.f32 %v1450, %v1506
        %1508 = vdwg.mxu0
        %s1509 = scalar_lea.vmem [#allocation6], 512
        %v1510 = vld [vmem:[%s1509] sm:$0xff]
        %v1511 = vld [vmem:[%s1509 + $0x8] sm:$0xff]
        %v1512 = vld [vmem:[%s1509 + $0x10] sm:$0xff]
        %v1513 = vld [vmem:[%s1509 + $0x18] sm:$0xff]
        %v1514 = vld [vmem:[%s1509 + $0x20] sm:$0xff]
        %v1515 = vld [vmem:[%s1509 + $0x28] sm:$0xff]
        %v1516 = vld [vmem:[%s1509 + $0x30] sm:$0xff]
        %v1517 = vld [vmem:[%s1509 + $0x38] sm:$0xff]
        %v1518 = vld [vmem:[%s1509 + $0x40] sm:$0xff]
        %v1519 = vld [vmem:[%s1509 + $0x48] sm:$0xff]
        %v1520 = vld [vmem:[%s1509 + $0x50] sm:$0xff]
        %v1521 = vld [vmem:[%s1509 + $0x58] sm:$0xff]
        %v1522 = vld [vmem:[%s1509 + $0x60] sm:$0xff]
        %v1523 = vld [vmem:[%s1509 + $0x68] sm:$0xff]
        %v1524 = vld [vmem:[%s1509 + $0x70] sm:$0xff]
        %v1525 = vld [vmem:[%s1509 + $0x78] sm:$0xff]
        %v1526 = vld [vmem:[%s1509 + $0x80] sm:$0xff]
        %v1527 = vld [vmem:[%s1509 + $0x88] sm:$0xff]
        %v1528 = vld [vmem:[%s1509 + $0x90] sm:$0xff]
        %v1529 = vld [vmem:[%s1509 + $0x98] sm:$0xff]
        %v1530 = vld [vmem:[%s1509 + $0xa0] sm:$0xff]
        %v1531 = vld [vmem:[%s1509 + $0xa8] sm:$0xff]
        %v1532 = vld [vmem:[%s1509 + $0xb0] sm:$0xff]
        %v1533 = vld [vmem:[%s1509 + $0xb8] sm:$0xff]
        %v1534 = vld [vmem:[%s1509 + $0xc0] sm:$0xff]
        %v1535 = vld [vmem:[%s1509 + $0xc8] sm:$0xff]
        %v1536 = vld [vmem:[%s1509 + $0xd0] sm:$0xff]
        %v1537 = vld [vmem:[%s1509 + $0xd8] sm:$0xff]
        %v1538 = vld [vmem:[%s1509 + $0xe0] sm:$0xff]
        %v1539 = vld [vmem:[%s1509 + $0xe8] sm:$0xff]
        %v1540 = vld [vmem:[%s1509 + $0xf0] sm:$0xff]
        %v1541 = vld [vmem:[%s1509 + $0xf8] sm:$0xff]
        %v1574 = vunpack.c.l.b16 %v1510
        %v1575 = vunpack.c.h.b16 %v1510
        %v1576 = vunpack.c.l.b16 %v1511
        %v1577 = vunpack.c.h.b16 %v1511
        %v1578 = vunpack.c.l.b16 %v1512
        %v1579 = vunpack.c.h.b16 %v1512
        %v1580 = vunpack.c.l.b16 %v1513
        %v1581 = vunpack.c.h.b16 %v1513
        %v1582 = vunpack.c.l.b16 %v1514
        %v1583 = vunpack.c.h.b16 %v1514
        %v1584 = vunpack.c.l.b16 %v1515
        %v1585 = vunpack.c.h.b16 %v1515
        %v1586 = vunpack.c.l.b16 %v1516
        %v1587 = vunpack.c.h.b16 %v1516
        %v1588 = vunpack.c.l.b16 %v1517
        %v1589 = vunpack.c.h.b16 %v1517
        %v1590 = vunpack.c.l.b16 %v1518
        %v1591 = vunpack.c.h.b16 %v1518
        %v1592 = vunpack.c.l.b16 %v1519
        %v1593 = vunpack.c.h.b16 %v1519
        %v1594 = vunpack.c.l.b16 %v1520
        %v1595 = vunpack.c.h.b16 %v1520
        %v1596 = vunpack.c.l.b16 %v1521
        %v1597 = vunpack.c.h.b16 %v1521
        %v1598 = vunpack.c.l.b16 %v1522
        %v1599 = vunpack.c.h.b16 %v1522
        %v1600 = vunpack.c.l.b16 %v1523
        %v1601 = vunpack.c.h.b16 %v1523
        %v1602 = vunpack.c.l.b16 %v1524
        %v1603 = vunpack.c.h.b16 %v1524
        %v1604 = vunpack.c.l.b16 %v1525
        %v1605 = vunpack.c.h.b16 %v1525
        %v1606 = vunpack.c.l.b16 %v1526
        %v1607 = vunpack.c.h.b16 %v1526
        %v1608 = vunpack.c.l.b16 %v1527
        %v1609 = vunpack.c.h.b16 %v1527
        %v1610 = vunpack.c.l.b16 %v1528
        %v1611 = vunpack.c.h.b16 %v1528
        %v1612 = vunpack.c.l.b16 %v1529
        %v1613 = vunpack.c.h.b16 %v1529
        %v1614 = vunpack.c.l.b16 %v1530
        %v1615 = vunpack.c.h.b16 %v1530
        %v1616 = vunpack.c.l.b16 %v1531
        %v1617 = vunpack.c.h.b16 %v1531
        %v1618 = vunpack.c.l.b16 %v1532
        %v1619 = vunpack.c.h.b16 %v1532
        %v1620 = vunpack.c.l.b16 %v1533
        %v1621 = vunpack.c.h.b16 %v1533
        %v1622 = vunpack.c.l.b16 %v1534
        %v1623 = vunpack.c.h.b16 %v1534
        %v1624 = vunpack.c.l.b16 %v1535
        %v1625 = vunpack.c.h.b16 %v1535
        %v1626 = vunpack.c.l.b16 %v1536
        %v1627 = vunpack.c.h.b16 %v1536
        %v1628 = vunpack.c.l.b16 %v1537
        %v1629 = vunpack.c.h.b16 %v1537
        %v1630 = vunpack.c.l.b16 %v1538
        %v1631 = vunpack.c.h.b16 %v1538
        %v1632 = vunpack.c.l.b16 %v1539
        %v1633 = vunpack.c.h.b16 %v1539
        %v1634 = vunpack.c.l.b16 %v1540
        %v1635 = vunpack.c.h.b16 %v1540
        %v1636 = vunpack.c.l.b16 %v1541
        %v1637 = vunpack.c.h.b16 %v1541
        %v1638 = vpack.c.b16 %v1576, %v1574
        %v1639 = vpack.c.b16 %v1577, %v1575
        %v1640 = vpack.c.b16 %v1580, %v1578
        %v1641 = vpack.c.b16 %v1581, %v1579
        %v1642 = vpack.c.b16 %v1584, %v1582
        %v1643 = vpack.c.b16 %v1585, %v1583
        %v1644 = vpack.c.b16 %v1588, %v1586
        %v1645 = vpack.c.b16 %v1589, %v1587
        %v1646 = vpack.c.b16 %v1592, %v1590
        %v1647 = vpack.c.b16 %v1593, %v1591
        %v1648 = vpack.c.b16 %v1596, %v1594
        %v1649 = vpack.c.b16 %v1597, %v1595
        %v1650 = vpack.c.b16 %v1600, %v1598
        %v1651 = vpack.c.b16 %v1601, %v1599
        %v1652 = vpack.c.b16 %v1604, %v1602
        %v1653 = vpack.c.b16 %v1605, %v1603
        %v1654 = vpack.c.b16 %v1608, %v1606
        %v1655 = vpack.c.b16 %v1609, %v1607
        %v1656 = vpack.c.b16 %v1612, %v1610
        %v1657 = vpack.c.b16 %v1613, %v1611
        %v1658 = vpack.c.b16 %v1616, %v1614
        %v1659 = vpack.c.b16 %v1617, %v1615
        %v1660 = vpack.c.b16 %v1620, %v1618
        %v1661 = vpack.c.b16 %v1621, %v1619
        %v1662 = vpack.c.b16 %v1624, %v1622
        %v1663 = vpack.c.b16 %v1625, %v1623
        %v1664 = vpack.c.b16 %v1628, %v1626
        %v1665 = vpack.c.b16 %v1629, %v1627
        %v1666 = vpack.c.b16 %v1632, %v1630
        %v1667 = vpack.c.b16 %v1633, %v1631
        %v1668 = vpack.c.b16 %v1636, %v1634
        %v1669 = vpack.c.b16 %v1637, %v1635
        %1702 = vmatprep.subr.bf16.mxu0 %v1653
        %1703 = vmatpush1.bf16.msra.mxu0 %v1652
        %1704 = vmatprep.subr.bf16.mxu0 %v1651
        %1705 = vmatpush1.bf16.msra.mxu0 %v1650
        %1706 = vmatprep.subr.bf16.mxu0 %v1649
        %1707 = vmatpush1.bf16.msra.mxu0 %v1648
        %1708 = vmatprep.subr.bf16.mxu0 %v1647
        %1709 = vmatpush1.bf16.msra.mxu0 %v1646
        %1710 = vmatprep.subr.bf16.mxu0 %v1645
        %1711 = vmatpush1.bf16.msra.mxu0 %v1644
        %1712 = vmatprep.subr.bf16.mxu0 %v1643
        %1713 = vmatpush1.bf16.msra.mxu0 %v1642
        %1714 = vmatprep.subr.bf16.mxu0 %v1641
        %1715 = vmatpush1.bf16.msra.mxu0 %v1640
        %1716 = vmatprep.subr.bf16.mxu0 %v1639
        %1717 = vmatpush1.bf16.msra.mxu0 %v1638
        %1718 = vmatprep.subr.bf16.mxu0 %v1669
        %1719 = vmatpush2.bf16.msra.mxu0 %v1668
        %1720 = vmatprep.subr.bf16.mxu0 %v1667
        %1721 = vmatpush2.bf16.msra.mxu0 %v1666
        %1722 = vmatprep.subr.bf16.mxu0 %v1665
        %1723 = vmatpush2.bf16.msra.mxu0 %v1664
        %1724 = vmatprep.subr.bf16.mxu0 %v1663
        %1725 = vmatpush2.bf16.msra.mxu0 %v1662
        %1726 = vmatprep.subr.bf16.mxu0 %v1661
        %1727 = vmatpush2.bf16.msra.mxu0 %v1660
        %1728 = vmatprep.subr.bf16.mxu0 %v1659
        %1729 = vmatpush2.bf16.msra.mxu0 %v1658
        %1730 = vmatprep.subr.bf16.mxu0 %v1657
        %1731 = vmatpush2.bf16.msra.mxu0 %v1656
        %1732 = vmatprep.subr.bf16.mxu0 %v1655
        %1733 = vmatpush2.bf16.msra.mxu0 %v1654
        %1734 = vmatprep.mubr.bf16.mxu0 %v943
        %1735 = vmatmul.mubr.bf16.gmra.mxu0 %v942
        %v1736 = vpop.f32.mrf.mxu0
        %v1737 = vadd.f32 0.0, %v1736
        %v1738 = vpop.f32.mrf.mxu0
        %v1739 = vadd.f32 0.0, %v1738
        %v1740 = vpop.f32.mrf.mxu0
        %v1741 = vpop.f32.mrf.mxu0
        %1742 = vdwg.mxu0
        %v1743 = vpack.c.bf16 %v1737, %v1737
        %v1744 = vpack.c.bf16 %v1739, %v1739
        %s1745 = scalar_lea.vmem [#allocation2], 16
        %v1746 = vld [vmem:[%s1745] sm:$0xf]
        %v1747 = vld [vmem:[%s1745 + $0x4] sm:$0xf]
        %v1750 = vunpack.c.l.b16 %v1746
        %v1751 = vunpack.c.l.b16 %v1747
        %v1752 = vpack.c.b16 %v1751, %v1750
        %v1754 = vsel %vm1395, %v1752, 0
        %v1757 = vand.u32 %v1743, %v1402
        %v1760 = vand.u32 %v1744, %v1402
        %1762 = vmatprep.subr.bf16.mxu0 0
        %1763 = vmatpush1.bf16.msra.mxu0 0
        %1764 = vmatprep.subr.bf16.mxu0 0
        %1765 = vmatpush1.bf16.msra.mxu0 0
        %1766 = vmatprep.subr.bf16.mxu0 0
        %1767 = vmatpush1.bf16.msra.mxu0 0
        %1768 = vmatprep.subr.bf16.mxu0 0
        %1769 = vmatpush1.bf16.msra.mxu0 0
        %1770 = vmatprep.subr.bf16.mxu0 0
        %1771 = vmatpush1.bf16.msra.mxu0 0
        %1772 = vmatprep.subr.bf16.mxu0 0
        %1773 = vmatpush1.bf16.msra.mxu0 0
        %1774 = vmatprep.subr.bf16.mxu0 0
        %1775 = vmatpush1.bf16.msra.mxu0 0
        %1776 = vmatprep.subr.bf16.mxu0 %v1760
        %1777 = vmatpush1.bf16.msra.mxu0 %v1757
        %1778 = vmatprep.subr.bf16.mxu0 0
        %1779 = vmatpush2.bf16.msra.mxu0 0
        %1780 = vmatprep.subr.bf16.mxu0 0
        %1781 = vmatpush2.bf16.msra.mxu0 0
        %1782 = vmatprep.subr.bf16.mxu0 0
        %1783 = vmatpush2.bf16.msra.mxu0 0
        %1784 = vmatprep.subr.bf16.mxu0 0
        %1785 = vmatpush2.bf16.msra.mxu0 0
        %1786 = vmatprep.subr.bf16.mxu0 0
        %1787 = vmatpush2.bf16.msra.mxu0 0
        %1788 = vmatprep.subr.bf16.mxu0 0
        %1789 = vmatpush2.bf16.msra.mxu0 0
        %1790 = vmatprep.subr.bf16.mxu0 0
        %1791 = vmatpush2.bf16.msra.mxu0 0
        %1792 = vmatprep.subr.bf16.mxu0 0
        %1793 = vmatpush2.bf16.msra.mxu0 0
        %1794 = vmatprep.mubr.bf16.mxu0 0
        %1795 = vmatmul.mubr.bf16.gmra.mxu0 %v1754
        %v1796 = vpop.f32.mrf.mxu0
        %v1797 = vadd.f32 0.0, %v1796
        %v1798 = vpop.f32.mrf.mxu0
        %v1799 = vadd.f32 0.0, %v1798
        %v1800 = vpop.f32.mrf.mxu0
        %v1801 = vadd.f32 0.0, %v1800
        %v1802 = vpop.f32.mrf.mxu0
        %v1803 = vadd.f32 0.0, %v1802
        %1804 = vdwg.mxu0
        %v1805 = vadd.f32 %v1501, %v1797
        %v1806 = vadd.f32 %v1503, %v1799
        %v1807 = vadd.f32 %v1505, %v1801
        %v1808 = vadd.f32 %v1507, %v1803
        %s1809 = scalar_lea.vmem [#allocation6], 768
        %v1810 = vld [vmem:[%s1809] sm:$0xff]
        %v1811 = vld [vmem:[%s1809 + $0x8] sm:$0xff]
        %v1812 = vld [vmem:[%s1809 + $0x10] sm:$0xff]
        %v1813 = vld [vmem:[%s1809 + $0x18] sm:$0xff]
        %v1814 = vld [vmem:[%s1809 + $0x20] sm:$0xff]
        %v1815 = vld [vmem:[%s1809 + $0x28] sm:$0xff]
        %v1816 = vld [vmem:[%s1809 + $0x30] sm:$0xff]
        %v1817 = vld [vmem:[%s1809 + $0x38] sm:$0xff]
        %v1818 = vld [vmem:[%s1809 + $0x40] sm:$0xff]
        %v1819 = vld [vmem:[%s1809 + $0x48] sm:$0xff]
        %v1820 = vld [vmem:[%s1809 + $0x50] sm:$0xff]
        %v1821 = vld [vmem:[%s1809 + $0x58] sm:$0xff]
        %v1822 = vld [vmem:[%s1809 + $0x60] sm:$0xff]
        %v1823 = vld [vmem:[%s1809 + $0x68] sm:$0xff]
        %v1824 = vld [vmem:[%s1809 + $0x70] sm:$0xff]
        %v1825 = vld [vmem:[%s1809 + $0x78] sm:$0xff]
        %v1826 = vld [vmem:[%s1809 + $0x80] sm:$0xff]
        %v1827 = vld [vmem:[%s1809 + $0x88] sm:$0xff]
        %v1828 = vld [vmem:[%s1809 + $0x90] sm:$0xff]
        %v1829 = vld [vmem:[%s1809 + $0x98] sm:$0xff]
        %v1830 = vld [vmem:[%s1809 + $0xa0] sm:$0xff]
        %v1831 = vld [vmem:[%s1809 + $0xa8] sm:$0xff]
        %v1832 = vld [vmem:[%s1809 + $0xb0] sm:$0xff]
        %v1833 = vld [vmem:[%s1809 + $0xb8] sm:$0xff]
        %v1834 = vld [vmem:[%s1809 + $0xc0] sm:$0xff]
        %v1835 = vld [vmem:[%s1809 + $0xc8] sm:$0xff]
        %v1836 = vld [vmem:[%s1809 + $0xd0] sm:$0xff]
        %v1837 = vld [vmem:[%s1809 + $0xd8] sm:$0xff]
        %v1838 = vld [vmem:[%s1809 + $0xe0] sm:$0xff]
        %v1839 = vld [vmem:[%s1809 + $0xe8] sm:$0xff]
        %v1840 = vld [vmem:[%s1809 + $0xf0] sm:$0xff]
        %v1841 = vld [vmem:[%s1809 + $0xf8] sm:$0xff]
        %v1874 = vunpack.c.l.b16 %v1810
        %v1875 = vunpack.c.h.b16 %v1810
        %v1876 = vunpack.c.l.b16 %v1811
        %v1877 = vunpack.c.h.b16 %v1811
        %v1878 = vunpack.c.l.b16 %v1812
        %v1879 = vunpack.c.h.b16 %v1812
        %v1880 = vunpack.c.l.b16 %v1813
        %v1881 = vunpack.c.h.b16 %v1813
        %v1882 = vunpack.c.l.b16 %v1814
        %v1883 = vunpack.c.h.b16 %v1814
        %v1884 = vunpack.c.l.b16 %v1815
        %v1885 = vunpack.c.h.b16 %v1815
        %v1886 = vunpack.c.l.b16 %v1816
        %v1887 = vunpack.c.h.b16 %v1816
        %v1888 = vunpack.c.l.b16 %v1817
        %v1889 = vunpack.c.h.b16 %v1817
        %v1890 = vunpack.c.l.b16 %v1818
        %v1891 = vunpack.c.h.b16 %v1818
        %v1892 = vunpack.c.l.b16 %v1819
        %v1893 = vunpack.c.h.b16 %v1819
        %v1894 = vunpack.c.l.b16 %v1820
        %v1895 = vunpack.c.h.b16 %v1820
        %v1896 = vunpack.c.l.b16 %v1821
        %v1897 = vunpack.c.h.b16 %v1821
        %v1898 = vunpack.c.l.b16 %v1822
        %v1899 = vunpack.c.h.b16 %v1822
        %v1900 = vunpack.c.l.b16 %v1823
        %v1901 = vunpack.c.h.b16 %v1823
        %v1902 = vunpack.c.l.b16 %v1824
        %v1903 = vunpack.c.h.b16 %v1824
        %v1904 = vunpack.c.l.b16 %v1825
        %v1905 = vunpack.c.h.b16 %v1825
        %v1906 = vunpack.c.l.b16 %v1826
        %v1907 = vunpack.c.h.b16 %v1826
        %v1908 = vunpack.c.l.b16 %v1827
        %v1909 = vunpack.c.h.b16 %v1827
        %v1910 = vunpack.c.l.b16 %v1828
        %v1911 = vunpack.c.h.b16 %v1828
        %v1912 = vunpack.c.l.b16 %v1829
        %v1913 = vunpack.c.h.b16 %v1829
        %v1914 = vunpack.c.l.b16 %v1830
        %v1915 = vunpack.c.h.b16 %v1830
        %v1916 = vunpack.c.l.b16 %v1831
        %v1917 = vunpack.c.h.b16 %v1831
        %v1918 = vunpack.c.l.b16 %v1832
        %v1919 = vunpack.c.h.b16 %v1832
        %v1920 = vunpack.c.l.b16 %v1833
        %v1921 = vunpack.c.h.b16 %v1833
        %v1922 = vunpack.c.l.b16 %v1834
        %v1923 = vunpack.c.h.b16 %v1834
        %v1924 = vunpack.c.l.b16 %v1835
        %v1925 = vunpack.c.h.b16 %v1835
        %v1926 = vunpack.c.l.b16 %v1836
        %v1927 = vunpack.c.h.b16 %v1836
        %v1928 = vunpack.c.l.b16 %v1837
        %v1929 = vunpack.c.h.b16 %v1837
        %v1930 = vunpack.c.l.b16 %v1838
        %v1931 = vunpack.c.h.b16 %v1838
        %v1932 = vunpack.c.l.b16 %v1839
        %v1933 = vunpack.c.h.b16 %v1839
        %v1934 = vunpack.c.l.b16 %v1840
        %v1935 = vunpack.c.h.b16 %v1840
        %v1936 = vunpack.c.l.b16 %v1841
        %v1937 = vunpack.c.h.b16 %v1841
        %v1938 = vpack.c.b16 %v1876, %v1874
        %v1939 = vpack.c.b16 %v1877, %v1875
        %v1940 = vpack.c.b16 %v1880, %v1878
        %v1941 = vpack.c.b16 %v1881, %v1879
        %v1942 = vpack.c.b16 %v1884, %v1882
        %v1943 = vpack.c.b16 %v1885, %v1883
        %v1944 = vpack.c.b16 %v1888, %v1886
        %v1945 = vpack.c.b16 %v1889, %v1887
        %v1946 = vpack.c.b16 %v1892, %v1890
        %v1947 = vpack.c.b16 %v1893, %v1891
        %v1948 = vpack.c.b16 %v1896, %v1894
        %v1949 = vpack.c.b16 %v1897, %v1895
        %v1950 = vpack.c.b16 %v1900, %v1898
        %v1951 = vpack.c.b16 %v1901, %v1899
        %v1952 = vpack.c.b16 %v1904, %v1902
        %v1953 = vpack.c.b16 %v1905, %v1903
        %v1954 = vpack.c.b16 %v1908, %v1906
        %v1955 = vpack.c.b16 %v1909, %v1907
        %v1956 = vpack.c.b16 %v1912, %v1910
        %v1957 = vpack.c.b16 %v1913, %v1911
        %v1958 = vpack.c.b16 %v1916, %v1914
        %v1959 = vpack.c.b16 %v1917, %v1915
        %v1960 = vpack.c.b16 %v1920, %v1918
        %v1961 = vpack.c.b16 %v1921, %v1919
        %v1962 = vpack.c.b16 %v1924, %v1922
        %v1963 = vpack.c.b16 %v1925, %v1923
        %v1964 = vpack.c.b16 %v1928, %v1926
        %v1965 = vpack.c.b16 %v1929, %v1927
        %v1966 = vpack.c.b16 %v1932, %v1930
        %v1967 = vpack.c.b16 %v1933, %v1931
        %v1968 = vpack.c.b16 %v1936, %v1934
        %v1969 = vpack.c.b16 %v1937, %v1935
        %2002 = vmatprep.subr.bf16.mxu0 %v1953
        %2003 = vmatpush1.bf16.msra.mxu0 %v1952
        %2004 = vmatprep.subr.bf16.mxu0 %v1951
        %2005 = vmatpush1.bf16.msra.mxu0 %v1950
        %2006 = vmatprep.subr.bf16.mxu0 %v1949
        %2007 = vmatpush1.bf16.msra.mxu0 %v1948
        %2008 = vmatprep.subr.bf16.mxu0 %v1947
        %2009 = vmatpush1.bf16.msra.mxu0 %v1946
        %2010 = vmatprep.subr.bf16.mxu0 %v1945
        %2011 = vmatpush1.bf16.msra.mxu0 %v1944
        %2012 = vmatprep.subr.bf16.mxu0 %v1943
        %2013 = vmatpush1.bf16.msra.mxu0 %v1942
        %2014 = vmatprep.subr.bf16.mxu0 %v1941
        %2015 = vmatpush1.bf16.msra.mxu0 %v1940
        %2016 = vmatprep.subr.bf16.mxu0 %v1939
        %2017 = vmatpush1.bf16.msra.mxu0 %v1938
        %2018 = vmatprep.subr.bf16.mxu0 %v1969
        %2019 = vmatpush2.bf16.msra.mxu0 %v1968
        %2020 = vmatprep.subr.bf16.mxu0 %v1967
        %2021 = vmatpush2.bf16.msra.mxu0 %v1966
        %2022 = vmatprep.subr.bf16.mxu0 %v1965
        %2023 = vmatpush2.bf16.msra.mxu0 %v1964
        %2024 = vmatprep.subr.bf16.mxu0 %v1963
        %2025 = vmatpush2.bf16.msra.mxu0 %v1962
        %2026 = vmatprep.subr.bf16.mxu0 %v1961
        %2027 = vmatpush2.bf16.msra.mxu0 %v1960
        %2028 = vmatprep.subr.bf16.mxu0 %v1959
        %2029 = vmatpush2.bf16.msra.mxu0 %v1958
        %2030 = vmatprep.subr.bf16.mxu0 %v1957
        %2031 = vmatpush2.bf16.msra.mxu0 %v1956
        %2032 = vmatprep.subr.bf16.mxu0 %v1955
        %2033 = vmatpush2.bf16.msra.mxu0 %v1954
        %2034 = vmatprep.mubr.bf16.mxu0 %v943
        %2035 = vmatmul.mubr.bf16.gmra.mxu0 %v942
        %v2036 = vpop.f32.mrf.mxu0
        %v2037 = vadd.f32 0.0, %v2036
        %v2038 = vpop.f32.mrf.mxu0
        %v2039 = vadd.f32 0.0, %v2038
        %v2040 = vpop.f32.mrf.mxu0
        %v2041 = vpop.f32.mrf.mxu0
        %2042 = vdwg.mxu0
        %v2043 = vpack.c.bf16 %v2037, %v2037
        %v2044 = vpack.c.bf16 %v2039, %v2039
        %s2045 = scalar_lea.vmem [#allocation2], 24
        %v2046 = vld [vmem:[%s2045] sm:$0xf]
        %v2047 = vld [vmem:[%s2045 + $0x4] sm:$0xf]
        %v2050 = vunpack.c.l.b16 %v2046
        %v2051 = vunpack.c.l.b16 %v2047
        %v2052 = vpack.c.b16 %v2051, %v2050
        %v2054 = vsel %vm1395, %v2052, 0
        %v2057 = vand.u32 %v2043, %v1402
        %v2060 = vand.u32 %v2044, %v1402
        %2062 = vmatprep.subr.bf16.mxu0 0
        %2063 = vmatpush1.bf16.msra.mxu0 0
        %2064 = vmatprep.subr.bf16.mxu0 0
        %2065 = vmatpush1.bf16.msra.mxu0 0
        %2066 = vmatprep.subr.bf16.mxu0 0
        %2067 = vmatpush1.bf16.msra.mxu0 0
        %2068 = vmatprep.subr.bf16.mxu0 0
        %2069 = vmatpush1.bf16.msra.mxu0 0
        %2070 = vmatprep.subr.bf16.mxu0 0
        %2071 = vmatpush1.bf16.msra.mxu0 0
        %2072 = vmatprep.subr.bf16.mxu0 0
        %2073 = vmatpush1.bf16.msra.mxu0 0
        %2074 = vmatprep.subr.bf16.mxu0 0
        %2075 = vmatpush1.bf16.msra.mxu0 0
        %2076 = vmatprep.subr.bf16.mxu0 %v2060
        %2077 = vmatpush1.bf16.msra.mxu0 %v2057
        %2078 = vmatprep.subr.bf16.mxu0 0
        %2079 = vmatpush2.bf16.msra.mxu0 0
        %2080 = vmatprep.subr.bf16.mxu0 0
        %2081 = vmatpush2.bf16.msra.mxu0 0
        %2082 = vmatprep.subr.bf16.mxu0 0
        %2083 = vmatpush2.bf16.msra.mxu0 0
        %2084 = vmatprep.subr.bf16.mxu0 0
        %2085 = vmatpush2.bf16.msra.mxu0 0
        %2086 = vmatprep.subr.bf16.mxu0 0
        %2087 = vmatpush2.bf16.msra.mxu0 0
        %2088 = vmatprep.subr.bf16.mxu0 0
        %2089 = vmatpush2.bf16.msra.mxu0 0
        %2090 = vmatprep.subr.bf16.mxu0 0
        %2091 = vmatpush2.bf16.msra.mxu0 0
        %2092 = vmatprep.subr.bf16.mxu0 0
        %2093 = vmatpush2.bf16.msra.mxu0 0
        %2094 = vmatprep.mubr.bf16.mxu0 0
        %2095 = vmatmul.mubr.bf16.gmra.mxu0 %v2054
        %v2096 = vpop.f32.mrf.mxu0
        %v2097 = vadd.f32 0.0, %v2096
        %v2098 = vpop.f32.mrf.mxu0
        %v2099 = vadd.f32 0.0, %v2098
        %v2100 = vpop.f32.mrf.mxu0
        %v2101 = vadd.f32 0.0, %v2100
        %v2102 = vpop.f32.mrf.mxu0
        %v2103 = vadd.f32 0.0, %v2102
        %2104 = vdwg.mxu0
        %v2105 = vadd.f32 %v1805, %v2097
        %v2106 = vadd.f32 %v1806, %v2099
        %v2107 = vadd.f32 %v1807, %v2101
        %v2108 = vadd.f32 %v1808, %v2103
        %s2109 = scalar_lea.vmem [#allocation6], 1024
        %v2110 = vld [vmem:[%s2109] sm:$0xff]
        %v2111 = vld [vmem:[%s2109 + $0x8] sm:$0xff]
        %v2112 = vld [vmem:[%s2109 + $0x10] sm:$0xff]
        %v2113 = vld [vmem:[%s2109 + $0x18] sm:$0xff]
        %v2114 = vld [vmem:[%s2109 + $0x20] sm:$0xff]
        %v2115 = vld [vmem:[%s2109 + $0x28] sm:$0xff]
        %v2116 = vld [vmem:[%s2109 + $0x30] sm:$0xff]
        %v2117 = vld [vmem:[%s2109 + $0x38] sm:$0xff]
        %v2118 = vld [vmem:[%s2109 + $0x40] sm:$0xff]
        %v2119 = vld [vmem:[%s2109 + $0x48] sm:$0xff]
        %v2120 = vld [vmem:[%s2109 + $0x50] sm:$0xff]
        %v2121 = vld [vmem:[%s2109 + $0x58] sm:$0xff]
        %v2122 = vld [vmem:[%s2109 + $0x60] sm:$0xff]
        %v2123 = vld [vmem:[%s2109 + $0x68] sm:$0xff]
        %v2124 = vld [vmem:[%s2109 + $0x70] sm:$0xff]
        %v2125 = vld [vmem:[%s2109 + $0x78] sm:$0xff]
        %v2126 = vld [vmem:[%s2109 + $0x80] sm:$0xff]
        %v2127 = vld [vmem:[%s2109 + $0x88] sm:$0xff]
        %v2128 = vld [vmem:[%s2109 + $0x90] sm:$0xff]
        %v2129 = vld [vmem:[%s2109 + $0x98] sm:$0xff]
        %v2130 = vld [vmem:[%s2109 + $0xa0] sm:$0xff]
        %v2131 = vld [vmem:[%s2109 + $0xa8] sm:$0xff]
        %v2132 = vld [vmem:[%s2109 + $0xb0] sm:$0xff]
        %v2133 = vld [vmem:[%s2109 + $0xb8] sm:$0xff]
        %v2134 = vld [vmem:[%s2109 + $0xc0] sm:$0xff]
        %v2135 = vld [vmem:[%s2109 + $0xc8] sm:$0xff]
        %v2136 = vld [vmem:[%s2109 + $0xd0] sm:$0xff]
        %v2137 = vld [vmem:[%s2109 + $0xd8] sm:$0xff]
        %v2138 = vld [vmem:[%s2109 + $0xe0] sm:$0xff]
        %v2139 = vld [vmem:[%s2109 + $0xe8] sm:$0xff]
        %v2140 = vld [vmem:[%s2109 + $0xf0] sm:$0xff]
        %v2141 = vld [vmem:[%s2109 + $0xf8] sm:$0xff]
        %v2174 = vunpack.c.l.b16 %v2110
        %v2175 = vunpack.c.h.b16 %v2110
        %v2176 = vunpack.c.l.b16 %v2111
        %v2177 = vunpack.c.h.b16 %v2111
        %v2178 = vunpack.c.l.b16 %v2112
        %v2179 = vunpack.c.h.b16 %v2112
        %v2180 = vunpack.c.l.b16 %v2113
        %v2181 = vunpack.c.h.b16 %v2113
        %v2182 = vunpack.c.l.b16 %v2114
        %v2183 = vunpack.c.h.b16 %v2114
        %v2184 = vunpack.c.l.b16 %v2115
        %v2185 = vunpack.c.h.b16 %v2115
        %v2186 = vunpack.c.l.b16 %v2116
        %v2187 = vunpack.c.h.b16 %v2116
        %v2188 = vunpack.c.l.b16 %v2117
        %v2189 = vunpack.c.h.b16 %v2117
        %v2190 = vunpack.c.l.b16 %v2118
        %v2191 = vunpack.c.h.b16 %v2118
        %v2192 = vunpack.c.l.b16 %v2119
        %v2193 = vunpack.c.h.b16 %v2119
        %v2194 = vunpack.c.l.b16 %v2120
        %v2195 = vunpack.c.h.b16 %v2120
        %v2196 = vunpack.c.l.b16 %v2121
        %v2197 = vunpack.c.h.b16 %v2121
        %v2198 = vunpack.c.l.b16 %v2122
        %v2199 = vunpack.c.h.b16 %v2122
        %v2200 = vunpack.c.l.b16 %v2123
        %v2201 = vunpack.c.h.b16 %v2123
        %v2202 = vunpack.c.l.b16 %v2124
        %v2203 = vunpack.c.h.b16 %v2124
        %v2204 = vunpack.c.l.b16 %v2125
        %v2205 = vunpack.c.h.b16 %v2125
        %v2206 = vunpack.c.l.b16 %v2126
        %v2207 = vunpack.c.h.b16 %v2126
        %v2208 = vunpack.c.l.b16 %v2127
        %v2209 = vunpack.c.h.b16 %v2127
        %v2210 = vunpack.c.l.b16 %v2128
        %v2211 = vunpack.c.h.b16 %v2128
        %v2212 = vunpack.c.l.b16 %v2129
        %v2213 = vunpack.c.h.b16 %v2129
        %v2214 = vunpack.c.l.b16 %v2130
        %v2215 = vunpack.c.h.b16 %v2130
        %v2216 = vunpack.c.l.b16 %v2131
        %v2217 = vunpack.c.h.b16 %v2131
        %v2218 = vunpack.c.l.b16 %v2132
        %v2219 = vunpack.c.h.b16 %v2132
        %v2220 = vunpack.c.l.b16 %v2133
        %v2221 = vunpack.c.h.b16 %v2133
        %v2222 = vunpack.c.l.b16 %v2134
        %v2223 = vunpack.c.h.b16 %v2134
        %v2224 = vunpack.c.l.b16 %v2135
        %v2225 = vunpack.c.h.b16 %v2135
        %v2226 = vunpack.c.l.b16 %v2136
        %v2227 = vunpack.c.h.b16 %v2136
        %v2228 = vunpack.c.l.b16 %v2137
        %v2229 = vunpack.c.h.b16 %v2137
        %v2230 = vunpack.c.l.b16 %v2138
        %v2231 = vunpack.c.h.b16 %v2138
        %v2232 = vunpack.c.l.b16 %v2139
        %v2233 = vunpack.c.h.b16 %v2139
        %v2234 = vunpack.c.l.b16 %v2140
        %v2235 = vunpack.c.h.b16 %v2140
        %v2236 = vunpack.c.l.b16 %v2141
        %v2237 = vunpack.c.h.b16 %v2141
        %v2238 = vpack.c.b16 %v2176, %v2174
        %v2239 = vpack.c.b16 %v2177, %v2175
        %v2240 = vpack.c.b16 %v2180, %v2178
        %v2241 = vpack.c.b16 %v2181, %v2179
        %v2242 = vpack.c.b16 %v2184, %v2182
        %v2243 = vpack.c.b16 %v2185, %v2183
        %v2244 = vpack.c.b16 %v2188, %v2186
        %v2245 = vpack.c.b16 %v2189, %v2187
        %v2246 = vpack.c.b16 %v2192, %v2190
        %v2247 = vpack.c.b16 %v2193, %v2191
        %v2248 = vpack.c.b16 %v2196, %v2194
        %v2249 = vpack.c.b16 %v2197, %v2195
        %v2250 = vpack.c.b16 %v2200, %v2198
        %v2251 = vpack.c.b16 %v2201, %v2199
        %v2252 = vpack.c.b16 %v2204, %v2202
        %v2253 = vpack.c.b16 %v2205, %v2203
        %v2254 = vpack.c.b16 %v2208, %v2206
        %v2255 = vpack.c.b16 %v2209, %v2207
        %v2256 = vpack.c.b16 %v2212, %v2210
        %v2257 = vpack.c.b16 %v2213, %v2211
        %v2258 = vpack.c.b16 %v2216, %v2214
        %v2259 = vpack.c.b16 %v2217, %v2215
        %v2260 = vpack.c.b16 %v2220, %v2218
        %v2261 = vpack.c.b16 %v2221, %v2219
        %v2262 = vpack.c.b16 %v2224, %v2222
        %v2263 = vpack.c.b16 %v2225, %v2223
        %v2264 = vpack.c.b16 %v2228, %v2226
        %v2265 = vpack.c.b16 %v2229, %v2227
        %v2266 = vpack.c.b16 %v2232, %v2230
        %v2267 = vpack.c.b16 %v2233, %v2231
        %v2268 = vpack.c.b16 %v2236, %v2234
        %v2269 = vpack.c.b16 %v2237, %v2235
        %2302 = vmatprep.subr.bf16.mxu0 %v2253
        %2303 = vmatpush1.bf16.msra.mxu0 %v2252
        %2304 = vmatprep.subr.bf16.mxu0 %v2251
        %2305 = vmatpush1.bf16.msra.mxu0 %v2250
        %2306 = vmatprep.subr.bf16.mxu0 %v2249
        %2307 = vmatpush1.bf16.msra.mxu0 %v2248
        %2308 = vmatprep.subr.bf16.mxu0 %v2247
        %2309 = vmatpush1.bf16.msra.mxu0 %v2246
        %2310 = vmatprep.subr.bf16.mxu0 %v2245
        %2311 = vmatpush1.bf16.msra.mxu0 %v2244
        %2312 = vmatprep.subr.bf16.mxu0 %v2243
        %2313 = vmatpush1.bf16.msra.mxu0 %v2242
        %2314 = vmatprep.subr.bf16.mxu0 %v2241
        %2315 = vmatpush1.bf16.msra.mxu0 %v2240
        %2316 = vmatprep.subr.bf16.mxu0 %v2239
        %2317 = vmatpush1.bf16.msra.mxu0 %v2238
        %2318 = vmatprep.subr.bf16.mxu0 %v2269
        %2319 = vmatpush2.bf16.msra.mxu0 %v2268
        %2320 = vmatprep.subr.bf16.mxu0 %v2267
        %2321 = vmatpush2.bf16.msra.mxu0 %v2266
        %2322 = vmatprep.subr.bf16.mxu0 %v2265
        %2323 = vmatpush2.bf16.msra.mxu0 %v2264
        %2324 = vmatprep.subr.bf16.mxu0 %v2263
        %2325 = vmatpush2.bf16.msra.mxu0 %v2262
        %2326 = vmatprep.subr.bf16.mxu0 %v2261
        %2327 = vmatpush2.bf16.msra.mxu0 %v2260
        %2328 = vmatprep.subr.bf16.mxu0 %v2259
        %2329 = vmatpush2.bf16.msra.mxu0 %v2258
        %2330 = vmatprep.subr.bf16.mxu0 %v2257
        %2331 = vmatpush2.bf16.msra.mxu0 %v2256
        %2332 = vmatprep.subr.bf16.mxu0 %v2255
        %2333 = vmatpush2.bf16.msra.mxu0 %v2254
        %2334 = vmatprep.mubr.bf16.mxu0 %v943
        %2335 = vmatmul.mubr.bf16.gmra.mxu0 %v942
        %v2336 = vpop.f32.mrf.mxu0
        %v2337 = vadd.f32 0.0, %v2336
        %v2338 = vpop.f32.mrf.mxu0
        %v2339 = vadd.f32 0.0, %v2338
        %v2340 = vpop.f32.mrf.mxu0
        %v2341 = vpop.f32.mrf.mxu0
        %2342 = vdwg.mxu0
        %v2343 = vpack.c.bf16 %v2337, %v2337
        %v2344 = vpack.c.bf16 %v2339, %v2339
        %s2345 = scalar_lea.vmem [#allocation2], 32
        %v2346 = vld [vmem:[%s2345] sm:$0xf]
        %v2347 = vld [vmem:[%s2345 + $0x4] sm:$0xf]
        %v2350 = vunpack.c.l.b16 %v2346
        %v2351 = vunpack.c.l.b16 %v2347
        %v2352 = vpack.c.b16 %v2351, %v2350
        %v2354 = vsel %vm1395, %v2352, 0
        %v2357 = vand.u32 %v2343, %v1402
        %v2360 = vand.u32 %v2344, %v1402
        %2362 = vmatprep.subr.bf16.mxu0 0
        %2363 = vmatpush1.bf16.msra.mxu0 0
        %2364 = vmatprep.subr.bf16.mxu0 0
        %2365 = vmatpush1.bf16.msra.mxu0 0
        %2366 = vmatprep.subr.bf16.mxu0 0
        %2367 = vmatpush1.bf16.msra.mxu0 0
        %2368 = vmatprep.subr.bf16.mxu0 0
        %2369 = vmatpush1.bf16.msra.mxu0 0
        %2370 = vmatprep.subr.bf16.mxu0 0
        %2371 = vmatpush1.bf16.msra.mxu0 0
        %2372 = vmatprep.subr.bf16.mxu0 0
        %2373 = vmatpush1.bf16.msra.mxu0 0
        %2374 = vmatprep.subr.bf16.mxu0 0
        %2375 = vmatpush1.bf16.msra.mxu0 0
        %2376 = vmatprep.subr.bf16.mxu0 %v2360
        %2377 = vmatpush1.bf16.msra.mxu0 %v2357
        %2378 = vmatprep.subr.bf16.mxu0 0
        %2379 = vmatpush2.bf16.msra.mxu0 0
        %2380 = vmatprep.subr.bf16.mxu0 0
        %2381 = vmatpush2.bf16.msra.mxu0 0
        %2382 = vmatprep.subr.bf16.mxu0 0
        %2383 = vmatpush2.bf16.msra.mxu0 0
        %2384 = vmatprep.subr.bf16.mxu0 0
        %2385 = vmatpush2.bf16.msra.mxu0 0
        %2386 = vmatprep.subr.bf16.mxu0 0
        %2387 = vmatpush2.bf16.msra.mxu0 0
        %2388 = vmatprep.subr.bf16.mxu0 0
        %2389 = vmatpush2.bf16.msra.mxu0 0
        %2390 = vmatprep.subr.bf16.mxu0 0
        %2391 = vmatpush2.bf16.msra.mxu0 0
        %2392 = vmatprep.subr.bf16.mxu0 0
        %2393 = vmatpush2.bf16.msra.mxu0 0
        %2394 = vmatprep.mubr.bf16.mxu0 0
        %2395 = vmatmul.mubr.bf16.gmra.mxu0 %v2354
        %v2396 = vpop.f32.mrf.mxu0
        %v2397 = vadd.f32 0.0, %v2396
        %v2398 = vpop.f32.mrf.mxu0
        %v2399 = vadd.f32 0.0, %v2398
        %v2400 = vpop.f32.mrf.mxu0
        %v2401 = vadd.f32 0.0, %v2400
        %v2402 = vpop.f32.mrf.mxu0
        %v2403 = vadd.f32 0.0, %v2402
        %2404 = vdwg.mxu0
        %v2405 = vadd.f32 %v2105, %v2397
        %v2406 = vadd.f32 %v2106, %v2399
        %v2407 = vadd.f32 %v2107, %v2401
        %v2408 = vadd.f32 %v2108, %v2403
        %s2409 = scalar_lea.vmem [#allocation6], 1280
        %v2410 = vld [vmem:[%s2409] sm:$0xff]
        %v2411 = vld [vmem:[%s2409 + $0x8] sm:$0xff]
        %v2412 = vld [vmem:[%s2409 + $0x10] sm:$0xff]
        %v2413 = vld [vmem:[%s2409 + $0x18] sm:$0xff]
        %v2414 = vld [vmem:[%s2409 + $0x20] sm:$0xff]
        %v2415 = vld [vmem:[%s2409 + $0x28] sm:$0xff]
        %v2416 = vld [vmem:[%s2409 + $0x30] sm:$0xff]
        %v2417 = vld [vmem:[%s2409 + $0x38] sm:$0xff]
        %v2418 = vld [vmem:[%s2409 + $0x40] sm:$0xff]
        %v2419 = vld [vmem:[%s2409 + $0x48] sm:$0xff]
        %v2420 = vld [vmem:[%s2409 + $0x50] sm:$0xff]
        %v2421 = vld [vmem:[%s2409 + $0x58] sm:$0xff]
        %v2422 = vld [vmem:[%s2409 + $0x60] sm:$0xff]
        %v2423 = vld [vmem:[%s2409 + $0x68] sm:$0xff]
        %v2424 = vld [vmem:[%s2409 + $0x70] sm:$0xff]
        %v2425 = vld [vmem:[%s2409 + $0x78] sm:$0xff]
        %v2426 = vld [vmem:[%s2409 + $0x80] sm:$0xff]
        %v2427 = vld [vmem:[%s2409 + $0x88] sm:$0xff]
        %v2428 = vld [vmem:[%s2409 + $0x90] sm:$0xff]
        %v2429 = vld [vmem:[%s2409 + $0x98] sm:$0xff]
        %v2430 = vld [vmem:[%s2409 + $0xa0] sm:$0xff]
        %v2431 = vld [vmem:[%s2409 + $0xa8] sm:$0xff]
        %v2432 = vld [vmem:[%s2409 + $0xb0] sm:$0xff]
        %v2433 = vld [vmem:[%s2409 + $0xb8] sm:$0xff]
        %v2434 = vld [vmem:[%s2409 + $0xc0] sm:$0xff]
        %v2435 = vld [vmem:[%s2409 + $0xc8] sm:$0xff]
        %v2436 = vld [vmem:[%s2409 + $0xd0] sm:$0xff]
        %v2437 = vld [vmem:[%s2409 + $0xd8] sm:$0xff]
        %v2438 = vld [vmem:[%s2409 + $0xe0] sm:$0xff]
        %v2439 = vld [vmem:[%s2409 + $0xe8] sm:$0xff]
        %v2440 = vld [vmem:[%s2409 + $0xf0] sm:$0xff]
        %v2441 = vld [vmem:[%s2409 + $0xf8] sm:$0xff]
        %v2474 = vunpack.c.l.b16 %v2410
        %v2475 = vunpack.c.h.b16 %v2410
        %v2476 = vunpack.c.l.b16 %v2411
        %v2477 = vunpack.c.h.b16 %v2411
        %v2478 = vunpack.c.l.b16 %v2412
        %v2479 = vunpack.c.h.b16 %v2412
        %v2480 = vunpack.c.l.b16 %v2413
        %v2481 = vunpack.c.h.b16 %v2413
        %v2482 = vunpack.c.l.b16 %v2414
        %v2483 = vunpack.c.h.b16 %v2414
        %v2484 = vunpack.c.l.b16 %v2415
        %v2485 = vunpack.c.h.b16 %v2415
        %v2486 = vunpack.c.l.b16 %v2416
        %v2487 = vunpack.c.h.b16 %v2416
        %v2488 = vunpack.c.l.b16 %v2417
        %v2489 = vunpack.c.h.b16 %v2417
        %v2490 = vunpack.c.l.b16 %v2418
        %v2491 = vunpack.c.h.b16 %v2418
        %v2492 = vunpack.c.l.b16 %v2419
        %v2493 = vunpack.c.h.b16 %v2419
        %v2494 = vunpack.c.l.b16 %v2420
        %v2495 = vunpack.c.h.b16 %v2420
        %v2496 = vunpack.c.l.b16 %v2421
        %v2497 = vunpack.c.h.b16 %v2421
        %v2498 = vunpack.c.l.b16 %v2422
        %v2499 = vunpack.c.h.b16 %v2422
        %v2500 = vunpack.c.l.b16 %v2423
        %v2501 = vunpack.c.h.b16 %v2423
        %v2502 = vunpack.c.l.b16 %v2424
        %v2503 = vunpack.c.h.b16 %v2424
        %v2504 = vunpack.c.l.b16 %v2425
        %v2505 = vunpack.c.h.b16 %v2425
        %v2506 = vunpack.c.l.b16 %v2426
        %v2507 = vunpack.c.h.b16 %v2426
        %v2508 = vunpack.c.l.b16 %v2427
        %v2509 = vunpack.c.h.b16 %v2427
        %v2510 = vunpack.c.l.b16 %v2428
        %v2511 = vunpack.c.h.b16 %v2428
        %v2512 = vunpack.c.l.b16 %v2429
        %v2513 = vunpack.c.h.b16 %v2429
        %v2514 = vunpack.c.l.b16 %v2430
        %v2515 = vunpack.c.h.b16 %v2430
        %v2516 = vunpack.c.l.b16 %v2431
        %v2517 = vunpack.c.h.b16 %v2431
        %v2518 = vunpack.c.l.b16 %v2432
        %v2519 = vunpack.c.h.b16 %v2432
        %v2520 = vunpack.c.l.b16 %v2433
        %v2521 = vunpack.c.h.b16 %v2433
        %v2522 = vunpack.c.l.b16 %v2434
        %v2523 = vunpack.c.h.b16 %v2434
        %v2524 = vunpack.c.l.b16 %v2435
        %v2525 = vunpack.c.h.b16 %v2435
        %v2526 = vunpack.c.l.b16 %v2436
        %v2527 = vunpack.c.h.b16 %v2436
        %v2528 = vunpack.c.l.b16 %v2437
        %v2529 = vunpack.c.h.b16 %v2437
        %v2530 = vunpack.c.l.b16 %v2438
        %v2531 = vunpack.c.h.b16 %v2438
        %v2532 = vunpack.c.l.b16 %v2439
        %v2533 = vunpack.c.h.b16 %v2439
        %v2534 = vunpack.c.l.b16 %v2440
        %v2535 = vunpack.c.h.b16 %v2440
        %v2536 = vunpack.c.l.b16 %v2441
        %v2537 = vunpack.c.h.b16 %v2441
        %v2538 = vpack.c.b16 %v2476, %v2474
        %v2539 = vpack.c.b16 %v2477, %v2475
        %v2540 = vpack.c.b16 %v2480, %v2478
        %v2541 = vpack.c.b16 %v2481, %v2479
        %v2542 = vpack.c.b16 %v2484, %v2482
        %v2543 = vpack.c.b16 %v2485, %v2483
        %v2544 = vpack.c.b16 %v2488, %v2486
        %v2545 = vpack.c.b16 %v2489, %v2487
        %v2546 = vpack.c.b16 %v2492, %v2490
        %v2547 = vpack.c.b16 %v2493, %v2491
        %v2548 = vpack.c.b16 %v2496, %v2494
        %v2549 = vpack.c.b16 %v2497, %v2495
        %v2550 = vpack.c.b16 %v2500, %v2498
        %v2551 = vpack.c.b16 %v2501, %v2499
        %v2552 = vpack.c.b16 %v2504, %v2502
        %v2553 = vpack.c.b16 %v2505, %v2503
        %v2554 = vpack.c.b16 %v2508, %v2506
        %v2555 = vpack.c.b16 %v2509, %v2507
        %v2556 = vpack.c.b16 %v2512, %v2510
        %v2557 = vpack.c.b16 %v2513, %v2511
        %v2558 = vpack.c.b16 %v2516, %v2514
        %v2559 = vpack.c.b16 %v2517, %v2515
        %v2560 = vpack.c.b16 %v2520, %v2518
        %v2561 = vpack.c.b16 %v2521, %v2519
        %v2562 = vpack.c.b16 %v2524, %v2522
        %v2563 = vpack.c.b16 %v2525, %v2523
        %v2564 = vpack.c.b16 %v2528, %v2526
        %v2565 = vpack.c.b16 %v2529, %v2527
        %v2566 = vpack.c.b16 %v2532, %v2530
        %v2567 = vpack.c.b16 %v2533, %v2531
        %v2568 = vpack.c.b16 %v2536, %v2534
        %v2569 = vpack.c.b16 %v2537, %v2535
        %2602 = vmatprep.subr.bf16.mxu0 %v2553
        %2603 = vmatpush1.bf16.msra.mxu0 %v2552
        %2604 = vmatprep.subr.bf16.mxu0 %v2551
        %2605 = vmatpush1.bf16.msra.mxu0 %v2550
        %2606 = vmatprep.subr.bf16.mxu0 %v2549
        %2607 = vmatpush1.bf16.msra.mxu0 %v2548
        %2608 = vmatprep.subr.bf16.mxu0 %v2547
        %2609 = vmatpush1.bf16.msra.mxu0 %v2546
        %2610 = vmatprep.subr.bf16.mxu0 %v2545
        %2611 = vmatpush1.bf16.msra.mxu0 %v2544
        %2612 = vmatprep.subr.bf16.mxu0 %v2543
        %2613 = vmatpush1.bf16.msra.mxu0 %v2542
        %2614 = vmatprep.subr.bf16.mxu0 %v2541
        %2615 = vmatpush1.bf16.msra.mxu0 %v2540
        %2616 = vmatprep.subr.bf16.mxu0 %v2539
        %2617 = vmatpush1.bf16.msra.mxu0 %v2538
        %2618 = vmatprep.subr.bf16.mxu0 %v2569
        %2619 = vmatpush2.bf16.msra.mxu0 %v2568
        %2620 = vmatprep.subr.bf16.mxu0 %v2567
        %2621 = vmatpush2.bf16.msra.mxu0 %v2566
        %2622 = vmatprep.subr.bf16.mxu0 %v2565
        %2623 = vmatpush2.bf16.msra.mxu0 %v2564
        %2624 = vmatprep.subr.bf16.mxu0 %v2563
        %2625 = vmatpush2.bf16.msra.mxu0 %v2562
        %2626 = vmatprep.subr.bf16.mxu0 %v2561
        %2627 = vmatpush2.bf16.msra.mxu0 %v2560
        %2628 = vmatprep.subr.bf16.mxu0 %v2559
        %2629 = vmatpush2.bf16.msra.mxu0 %v2558
        %2630 = vmatprep.subr.bf16.mxu0 %v2557
        %2631 = vmatpush2.bf16.msra.mxu0 %v2556
        %2632 = vmatprep.subr.bf16.mxu0 %v2555
        %2633 = vmatpush2.bf16.msra.mxu0 %v2554
        %2634 = vmatprep.mubr.bf16.mxu0 %v943
        %2635 = vmatmul.mubr.bf16.gmra.mxu0 %v942
        %v2636 = vpop.f32.mrf.mxu0
        %v2637 = vadd.f32 0.0, %v2636
        %v2638 = vpop.f32.mrf.mxu0
        %v2639 = vadd.f32 0.0, %v2638
        %v2640 = vpop.f32.mrf.mxu0
        %v2641 = vpop.f32.mrf.mxu0
        %2642 = vdwg.mxu0
        %v2643 = vpack.c.bf16 %v2637, %v2637
        %v2644 = vpack.c.bf16 %v2639, %v2639
        %s2645 = scalar_lea.vmem [#allocation2], 40
        %v2646 = vld [vmem:[%s2645] sm:$0xf]
        %v2647 = vld [vmem:[%s2645 + $0x4] sm:$0xf]
        %v2650 = vunpack.c.l.b16 %v2646
        %v2651 = vunpack.c.l.b16 %v2647
        %v2652 = vpack.c.b16 %v2651, %v2650
        %v2654 = vsel %vm1395, %v2652, 0
        %v2657 = vand.u32 %v2643, %v1402
        %v2660 = vand.u32 %v2644, %v1402
        %2662 = vmatprep.subr.bf16.mxu0 0
        %2663 = vmatpush1.bf16.msra.mxu0 0
        %2664 = vmatprep.subr.bf16.mxu0 0
        %2665 = vmatpush1.bf16.msra.mxu0 0
        %2666 = vmatprep.subr.bf16.mxu0 0
        %2667 = vmatpush1.bf16.msra.mxu0 0
        %2668 = vmatprep.subr.bf16.mxu0 0
        %2669 = vmatpush1.bf16.msra.mxu0 0
        %2670 = vmatprep.subr.bf16.mxu0 0
        %2671 = vmatpush1.bf16.msra.mxu0 0
        %2672 = vmatprep.subr.bf16.mxu0 0
        %2673 = vmatpush1.bf16.msra.mxu0 0
        %2674 = vmatprep.subr.bf16.mxu0 0
        %2675 = vmatpush1.bf16.msra.mxu0 0
        %2676 = vmatprep.subr.bf16.mxu0 %v2660
        %2677 = vmatpush1.bf16.msra.mxu0 %v2657
        %2678 = vmatprep.subr.bf16.mxu0 0
        %2679 = vmatpush2.bf16.msra.mxu0 0
        %2680 = vmatprep.subr.bf16.mxu0 0
        %2681 = vmatpush2.bf16.msra.mxu0 0
        %2682 = vmatprep.subr.bf16.mxu0 0
        %2683 = vmatpush2.bf16.msra.mxu0 0
        %2684 = vmatprep.subr.bf16.mxu0 0
        %2685 = vmatpush2.bf16.msra.mxu0 0
        %2686 = vmatprep.subr.bf16.mxu0 0
        %2687 = vmatpush2.bf16.msra.mxu0 0
        %2688 = vmatprep.subr.bf16.mxu0 0
        %2689 = vmatpush2.bf16.msra.mxu0 0
        %2690 = vmatprep.subr.bf16.mxu0 0
        %2691 = vmatpush2.bf16.msra.mxu0 0
        %2692 = vmatprep.subr.bf16.mxu0 0
        %2693 = vmatpush2.bf16.msra.mxu0 0
        %2694 = vmatprep.mubr.bf16.mxu0 0
        %2695 = vmatmul.mubr.bf16.gmra.mxu0 %v2654
        %v2696 = vpop.f32.mrf.mxu0
        %v2697 = vadd.f32 0.0, %v2696
        %v2698 = vpop.f32.mrf.mxu0
        %v2699 = vadd.f32 0.0, %v2698
        %v2700 = vpop.f32.mrf.mxu0
        %v2701 = vadd.f32 0.0, %v2700
        %v2702 = vpop.f32.mrf.mxu0
        %v2703 = vadd.f32 0.0, %v2702
        %2704 = vdwg.mxu0
        %v2705 = vadd.f32 %v2405, %v2697
        %v2706 = vadd.f32 %v2406, %v2699
        %v2707 = vadd.f32 %v2407, %v2701
        %v2708 = vadd.f32 %v2408, %v2703
        %s2709 = scalar_lea.vmem [#allocation6], 1536
        %v2710 = vld [vmem:[%s2709] sm:$0xff]
        %v2711 = vld [vmem:[%s2709 + $0x8] sm:$0xff]
        %v2712 = vld [vmem:[%s2709 + $0x10] sm:$0xff]
        %v2713 = vld [vmem:[%s2709 + $0x18] sm:$0xff]
        %v2714 = vld [vmem:[%s2709 + $0x20] sm:$0xff]
        %v2715 = vld [vmem:[%s2709 + $0x28] sm:$0xff]
        %v2716 = vld [vmem:[%s2709 + $0x30] sm:$0xff]
        %v2717 = vld [vmem:[%s2709 + $0x38] sm:$0xff]
        %v2718 = vld [vmem:[%s2709 + $0x40] sm:$0xff]
        %v2719 = vld [vmem:[%s2709 + $0x48] sm:$0xff]
        %v2720 = vld [vmem:[%s2709 + $0x50] sm:$0xff]
        %v2721 = vld [vmem:[%s2709 + $0x58] sm:$0xff]
        %v2722 = vld [vmem:[%s2709 + $0x60] sm:$0xff]
        %v2723 = vld [vmem:[%s2709 + $0x68] sm:$0xff]
        %v2724 = vld [vmem:[%s2709 + $0x70] sm:$0xff]
        %v2725 = vld [vmem:[%s2709 + $0x78] sm:$0xff]
        %v2726 = vld [vmem:[%s2709 + $0x80] sm:$0xff]
        %v2727 = vld [vmem:[%s2709 + $0x88] sm:$0xff]
        %v2728 = vld [vmem:[%s2709 + $0x90] sm:$0xff]
        %v2729 = vld [vmem:[%s2709 + $0x98] sm:$0xff]
        %v2730 = vld [vmem:[%s2709 + $0xa0] sm:$0xff]
        %v2731 = vld [vmem:[%s2709 + $0xa8] sm:$0xff]
        %v2732 = vld [vmem:[%s2709 + $0xb0] sm:$0xff]
        %v2733 = vld [vmem:[%s2709 + $0xb8] sm:$0xff]
        %v2734 = vld [vmem:[%s2709 + $0xc0] sm:$0xff]
        %v2735 = vld [vmem:[%s2709 + $0xc8] sm:$0xff]
        %v2736 = vld [vmem:[%s2709 + $0xd0] sm:$0xff]
        %v2737 = vld [vmem:[%s2709 + $0xd8] sm:$0xff]
        %v2738 = vld [vmem:[%s2709 + $0xe0] sm:$0xff]
        %v2739 = vld [vmem:[%s2709 + $0xe8] sm:$0xff]
        %v2740 = vld [vmem:[%s2709 + $0xf0] sm:$0xff]
        %v2741 = vld [vmem:[%s2709 + $0xf8] sm:$0xff]
        %v2774 = vunpack.c.l.b16 %v2710
        %v2775 = vunpack.c.h.b16 %v2710
        %v2776 = vunpack.c.l.b16 %v2711
        %v2777 = vunpack.c.h.b16 %v2711
        %v2778 = vunpack.c.l.b16 %v2712
        %v2779 = vunpack.c.h.b16 %v2712
        %v2780 = vunpack.c.l.b16 %v2713
        %v2781 = vunpack.c.h.b16 %v2713
        %v2782 = vunpack.c.l.b16 %v2714
        %v2783 = vunpack.c.h.b16 %v2714
        %v2784 = vunpack.c.l.b16 %v2715
        %v2785 = vunpack.c.h.b16 %v2715
        %v2786 = vunpack.c.l.b16 %v2716
        %v2787 = vunpack.c.h.b16 %v2716
        %v2788 = vunpack.c.l.b16 %v2717
        %v2789 = vunpack.c.h.b16 %v2717
        %v2790 = vunpack.c.l.b16 %v2718
        %v2791 = vunpack.c.h.b16 %v2718
        %v2792 = vunpack.c.l.b16 %v2719
        %v2793 = vunpack.c.h.b16 %v2719
        %v2794 = vunpack.c.l.b16 %v2720
        %v2795 = vunpack.c.h.b16 %v2720
        %v2796 = vunpack.c.l.b16 %v2721
        %v2797 = vunpack.c.h.b16 %v2721
        %v2798 = vunpack.c.l.b16 %v2722
        %v2799 = vunpack.c.h.b16 %v2722
        %v2800 = vunpack.c.l.b16 %v2723
        %v2801 = vunpack.c.h.b16 %v2723
        %v2802 = vunpack.c.l.b16 %v2724
        %v2803 = vunpack.c.h.b16 %v2724
        %v2804 = vunpack.c.l.b16 %v2725
        %v2805 = vunpack.c.h.b16 %v2725
        %v2806 = vunpack.c.l.b16 %v2726
        %v2807 = vunpack.c.h.b16 %v2726
        %v2808 = vunpack.c.l.b16 %v2727
        %v2809 = vunpack.c.h.b16 %v2727
        %v2810 = vunpack.c.l.b16 %v2728
        %v2811 = vunpack.c.h.b16 %v2728
        %v2812 = vunpack.c.l.b16 %v2729
        %v2813 = vunpack.c.h.b16 %v2729
        %v2814 = vunpack.c.l.b16 %v2730
        %v2815 = vunpack.c.h.b16 %v2730
        %v2816 = vunpack.c.l.b16 %v2731
        %v2817 = vunpack.c.h.b16 %v2731
        %v2818 = vunpack.c.l.b16 %v2732
        %v2819 = vunpack.c.h.b16 %v2732
        %v2820 = vunpack.c.l.b16 %v2733
        %v2821 = vunpack.c.h.b16 %v2733
        %v2822 = vunpack.c.l.b16 %v2734
        %v2823 = vunpack.c.h.b16 %v2734
        %v2824 = vunpack.c.l.b16 %v2735
        %v2825 = vunpack.c.h.b16 %v2735
        %v2826 = vunpack.c.l.b16 %v2736
        %v2827 = vunpack.c.h.b16 %v2736
        %v2828 = vunpack.c.l.b16 %v2737
        %v2829 = vunpack.c.h.b16 %v2737
        %v2830 = vunpack.c.l.b16 %v2738
        %v2831 = vunpack.c.h.b16 %v2738
        %v2832 = vunpack.c.l.b16 %v2739
        %v2833 = vunpack.c.h.b16 %v2739
        %v2834 = vunpack.c.l.b16 %v2740
        %v2835 = vunpack.c.h.b16 %v2740
        %v2836 = vunpack.c.l.b16 %v2741
        %v2837 = vunpack.c.h.b16 %v2741
        %v2838 = vpack.c.b16 %v2776, %v2774
        %v2839 = vpack.c.b16 %v2777, %v2775
        %v2840 = vpack.c.b16 %v2780, %v2778
        %v2841 = vpack.c.b16 %v2781, %v2779
        %v2842 = vpack.c.b16 %v2784, %v2782
        %v2843 = vpack.c.b16 %v2785, %v2783
        %v2844 = vpack.c.b16 %v2788, %v2786
        %v2845 = vpack.c.b16 %v2789, %v2787
        %v2846 = vpack.c.b16 %v2792, %v2790
        %v2847 = vpack.c.b16 %v2793, %v2791
        %v2848 = vpack.c.b16 %v2796, %v2794
        %v2849 = vpack.c.b16 %v2797, %v2795
        %v2850 = vpack.c.b16 %v2800, %v2798
        %v2851 = vpack.c.b16 %v2801, %v2799
        %v2852 = vpack.c.b16 %v2804, %v2802
        %v2853 = vpack.c.b16 %v2805, %v2803
        %v2854 = vpack.c.b16 %v2808, %v2806
        %v2855 = vpack.c.b16 %v2809, %v2807
        %v2856 = vpack.c.b16 %v2812, %v2810
        %v2857 = vpack.c.b16 %v2813, %v2811
        %v2858 = vpack.c.b16 %v2816, %v2814
        %v2859 = vpack.c.b16 %v2817, %v2815
        %v2860 = vpack.c.b16 %v2820, %v2818
        %v2861 = vpack.c.b16 %v2821, %v2819
        %v2862 = vpack.c.b16 %v2824, %v2822
        %v2863 = vpack.c.b16 %v2825, %v2823
        %v2864 = vpack.c.b16 %v2828, %v2826
        %v2865 = vpack.c.b16 %v2829, %v2827
        %v2866 = vpack.c.b16 %v2832, %v2830
        %v2867 = vpack.c.b16 %v2833, %v2831
        %v2868 = vpack.c.b16 %v2836, %v2834
        %v2869 = vpack.c.b16 %v2837, %v2835
        %2902 = vmatprep.subr.bf16.mxu0 %v2853
        %2903 = vmatpush1.bf16.msra.mxu0 %v2852
        %2904 = vmatprep.subr.bf16.mxu0 %v2851
        %2905 = vmatpush1.bf16.msra.mxu0 %v2850
        %2906 = vmatprep.subr.bf16.mxu0 %v2849
        %2907 = vmatpush1.bf16.msra.mxu0 %v2848
        %2908 = vmatprep.subr.bf16.mxu0 %v2847
        %2909 = vmatpush1.bf16.msra.mxu0 %v2846
        %2910 = vmatprep.subr.bf16.mxu0 %v2845
        %2911 = vmatpush1.bf16.msra.mxu0 %v2844
        %2912 = vmatprep.subr.bf16.mxu0 %v2843
        %2913 = vmatpush1.bf16.msra.mxu0 %v2842
        %2914 = vmatprep.subr.bf16.mxu0 %v2841
        %2915 = vmatpush1.bf16.msra.mxu0 %v2840
        %2916 = vmatprep.subr.bf16.mxu0 %v2839
        %2917 = vmatpush1.bf16.msra.mxu0 %v2838
        %2918 = vmatprep.subr.bf16.mxu0 %v2869
        %2919 = vmatpush2.bf16.msra.mxu0 %v2868
        %2920 = vmatprep.subr.bf16.mxu0 %v2867
        %2921 = vmatpush2.bf16.msra.mxu0 %v2866
        %2922 = vmatprep.subr.bf16.mxu0 %v2865
        %2923 = vmatpush2.bf16.msra.mxu0 %v2864
        %2924 = vmatprep.subr.bf16.mxu0 %v2863
        %2925 = vmatpush2.bf16.msra.mxu0 %v2862
        %2926 = vmatprep.subr.bf16.mxu0 %v2861
        %2927 = vmatpush2.bf16.msra.mxu0 %v2860
        %2928 = vmatprep.subr.bf16.mxu0 %v2859
        %2929 = vmatpush2.bf16.msra.mxu0 %v2858
        %2930 = vmatprep.subr.bf16.mxu0 %v2857
        %2931 = vmatpush2.bf16.msra.mxu0 %v2856
        %2932 = vmatprep.subr.bf16.mxu0 %v2855
        %2933 = vmatpush2.bf16.msra.mxu0 %v2854
        %2934 = vmatprep.mubr.bf16.mxu0 %v943
        %2935 = vmatmul.mubr.bf16.gmra.mxu0 %v942
        %v2936 = vpop.f32.mrf.mxu0
        %v2937 = vadd.f32 0.0, %v2936
        %v2938 = vpop.f32.mrf.mxu0
        %v2939 = vadd.f32 0.0, %v2938
        %v2940 = vpop.f32.mrf.mxu0
        %v2941 = vpop.f32.mrf.mxu0
        %2942 = vdwg.mxu0
        %v2943 = vpack.c.bf16 %v2937, %v2937
        %v2944 = vpack.c.bf16 %v2939, %v2939
        %s2945 = scalar_lea.vmem [#allocation2], 48
        %v2946 = vld [vmem:[%s2945] sm:$0xf]
        %v2947 = vld [vmem:[%s2945 + $0x4] sm:$0xf]
        %v2950 = vunpack.c.l.b16 %v2946
        %v2951 = vunpack.c.l.b16 %v2947
        %v2952 = vpack.c.b16 %v2951, %v2950
        %v2954 = vsel %vm1395, %v2952, 0
        %v2957 = vand.u32 %v2943, %v1402
        %v2960 = vand.u32 %v2944, %v1402
        %2962 = vmatprep.subr.bf16.mxu0 0
        %2963 = vmatpush1.bf16.msra.mxu0 0
        %2964 = vmatprep.subr.bf16.mxu0 0
        %2965 = vmatpush1.bf16.msra.mxu0 0
        %2966 = vmatprep.subr.bf16.mxu0 0
        %2967 = vmatpush1.bf16.msra.mxu0 0
        %2968 = vmatprep.subr.bf16.mxu0 0
        %2969 = vmatpush1.bf16.msra.mxu0 0
        %2970 = vmatprep.subr.bf16.mxu0 0
        %2971 = vmatpush1.bf16.msra.mxu0 0
        %2972 = vmatprep.subr.bf16.mxu0 0
        %2973 = vmatpush1.bf16.msra.mxu0 0
        %2974 = vmatprep.subr.bf16.mxu0 0
        %2975 = vmatpush1.bf16.msra.mxu0 0
        %2976 = vmatprep.subr.bf16.mxu0 %v2960
        %2977 = vmatpush1.bf16.msra.mxu0 %v2957
        %2978 = vmatprep.subr.bf16.mxu0 0
        %2979 = vmatpush2.bf16.msra.mxu0 0
        %2980 = vmatprep.subr.bf16.mxu0 0
        %2981 = vmatpush2.bf16.msra.mxu0 0
        %2982 = vmatprep.subr.bf16.mxu0 0
        %2983 = vmatpush2.bf16.msra.mxu0 0
        %2984 = vmatprep.subr.bf16.mxu0 0
        %2985 = vmatpush2.bf16.msra.mxu0 0
        %2986 = vmatprep.subr.bf16.mxu0 0
        %2987 = vmatpush2.bf16.msra.mxu0 0
        %2988 = vmatprep.subr.bf16.mxu0 0
        %2989 = vmatpush2.bf16.msra.mxu0 0
        %2990 = vmatprep.subr.bf16.mxu0 0
        %2991 = vmatpush2.bf16.msra.mxu0 0
        %2992 = vmatprep.subr.bf16.mxu0 0
        %2993 = vmatpush2.bf16.msra.mxu0 0
        %2994 = vmatprep.mubr.bf16.mxu0 0
        %2995 = vmatmul.mubr.bf16.gmra.mxu0 %v2954
        %v2996 = vpop.f32.mrf.mxu0
        %v2997 = vadd.f32 0.0, %v2996
        %v2998 = vpop.f32.mrf.mxu0
        %v2999 = vadd.f32 0.0, %v2998
        %v3000 = vpop.f32.mrf.mxu0
        %v3001 = vadd.f32 0.0, %v3000
        %v3002 = vpop.f32.mrf.mxu0
        %v3003 = vadd.f32 0.0, %v3002
        %3004 = vdwg.mxu0
        %v3005 = vadd.f32 %v2705, %v2997
        %v3006 = vadd.f32 %v2706, %v2999
        %v3007 = vadd.f32 %v2707, %v3001
        %v3008 = vadd.f32 %v2708, %v3003
        %s3009 = scalar_lea.vmem [#allocation6], 1792
        %v3010 = vld [vmem:[%s3009] sm:$0xff]
        %v3011 = vld [vmem:[%s3009 + $0x8] sm:$0xff]
        %v3012 = vld [vmem:[%s3009 + $0x10] sm:$0xff]
        %v3013 = vld [vmem:[%s3009 + $0x18] sm:$0xff]
        %v3014 = vld [vmem:[%s3009 + $0x20] sm:$0xff]
        %v3015 = vld [vmem:[%s3009 + $0x28] sm:$0xff]
        %v3016 = vld [vmem:[%s3009 + $0x30] sm:$0xff]
        %v3017 = vld [vmem:[%s3009 + $0x38] sm:$0xff]
        %v3018 = vld [vmem:[%s3009 + $0x40] sm:$0xff]
        %v3019 = vld [vmem:[%s3009 + $0x48] sm:$0xff]
        %v3020 = vld [vmem:[%s3009 + $0x50] sm:$0xff]
        %v3021 = vld [vmem:[%s3009 + $0x58] sm:$0xff]
        %v3022 = vld [vmem:[%s3009 + $0x60] sm:$0xff]
        %v3023 = vld [vmem:[%s3009 + $0x68] sm:$0xff]
        %v3024 = vld [vmem:[%s3009 + $0x70] sm:$0xff]
        %v3025 = vld [vmem:[%s3009 + $0x78] sm:$0xff]
        %v3026 = vld [vmem:[%s3009 + $0x80] sm:$0xff]
        %v3027 = vld [vmem:[%s3009 + $0x88] sm:$0xff]
        %v3028 = vld [vmem:[%s3009 + $0x90] sm:$0xff]
        %v3029 = vld [vmem:[%s3009 + $0x98] sm:$0xff]
        %v3030 = vld [vmem:[%s3009 + $0xa0] sm:$0xff]
        %v3031 = vld [vmem:[%s3009 + $0xa8] sm:$0xff]
        %v3032 = vld [vmem:[%s3009 + $0xb0] sm:$0xff]
        %v3033 = vld [vmem:[%s3009 + $0xb8] sm:$0xff]
        %v3034 = vld [vmem:[%s3009 + $0xc0] sm:$0xff]
        %v3035 = vld [vmem:[%s3009 + $0xc8] sm:$0xff]
        %v3036 = vld [vmem:[%s3009 + $0xd0] sm:$0xff]
        %v3037 = vld [vmem:[%s3009 + $0xd8] sm:$0xff]
        %v3038 = vld [vmem:[%s3009 + $0xe0] sm:$0xff]
        %v3039 = vld [vmem:[%s3009 + $0xe8] sm:$0xff]
        %v3040 = vld [vmem:[%s3009 + $0xf0] sm:$0xff]
        %v3041 = vld [vmem:[%s3009 + $0xf8] sm:$0xff]
        %v3074 = vunpack.c.l.b16 %v3010
        %v3075 = vunpack.c.h.b16 %v3010
        %v3076 = vunpack.c.l.b16 %v3011
        %v3077 = vunpack.c.h.b16 %v3011
        %v3078 = vunpack.c.l.b16 %v3012
        %v3079 = vunpack.c.h.b16 %v3012
        %v3080 = vunpack.c.l.b16 %v3013
        %v3081 = vunpack.c.h.b16 %v3013
        %v3082 = vunpack.c.l.b16 %v3014
        %v3083 = vunpack.c.h.b16 %v3014
        %v3084 = vunpack.c.l.b16 %v3015
        %v3085 = vunpack.c.h.b16 %v3015
        %v3086 = vunpack.c.l.b16 %v3016
        %v3087 = vunpack.c.h.b16 %v3016
        %v3088 = vunpack.c.l.b16 %v3017
        %v3089 = vunpack.c.h.b16 %v3017
        %v3090 = vunpack.c.l.b16 %v3018
        %v3091 = vunpack.c.h.b16 %v3018
        %v3092 = vunpack.c.l.b16 %v3019
        %v3093 = vunpack.c.h.b16 %v3019
        %v3094 = vunpack.c.l.b16 %v3020
        %v3095 = vunpack.c.h.b16 %v3020
        %v3096 = vunpack.c.l.b16 %v3021
        %v3097 = vunpack.c.h.b16 %v3021
        %v3098 = vunpack.c.l.b16 %v3022
        %v3099 = vunpack.c.h.b16 %v3022
        %v3100 = vunpack.c.l.b16 %v3023
        %v3101 = vunpack.c.h.b16 %v3023
        %v3102 = vunpack.c.l.b16 %v3024
        %v3103 = vunpack.c.h.b16 %v3024
        %v3104 = vunpack.c.l.b16 %v3025
        %v3105 = vunpack.c.h.b16 %v3025
        %v3106 = vunpack.c.l.b16 %v3026
        %v3107 = vunpack.c.h.b16 %v3026
        %v3108 = vunpack.c.l.b16 %v3027
        %v3109 = vunpack.c.h.b16 %v3027
        %v3110 = vunpack.c.l.b16 %v3028
        %v3111 = vunpack.c.h.b16 %v3028
        %v3112 = vunpack.c.l.b16 %v3029
        %v3113 = vunpack.c.h.b16 %v3029
        %v3114 = vunpack.c.l.b16 %v3030
        %v3115 = vunpack.c.h.b16 %v3030
        %v3116 = vunpack.c.l.b16 %v3031
        %v3117 = vunpack.c.h.b16 %v3031
        %v3118 = vunpack.c.l.b16 %v3032
        %v3119 = vunpack.c.h.b16 %v3032
        %v3120 = vunpack.c.l.b16 %v3033
        %v3121 = vunpack.c.h.b16 %v3033
        %v3122 = vunpack.c.l.b16 %v3034
        %v3123 = vunpack.c.h.b16 %v3034
        %v3124 = vunpack.c.l.b16 %v3035
        %v3125 = vunpack.c.h.b16 %v3035
        %v3126 = vunpack.c.l.b16 %v3036
        %v3127 = vunpack.c.h.b16 %v3036
        %v3128 = vunpack.c.l.b16 %v3037
        %v3129 = vunpack.c.h.b16 %v3037
        %v3130 = vunpack.c.l.b16 %v3038
        %v3131 = vunpack.c.h.b16 %v3038
        %v3132 = vunpack.c.l.b16 %v3039
        %v3133 = vunpack.c.h.b16 %v3039
        %v3134 = vunpack.c.l.b16 %v3040
        %v3135 = vunpack.c.h.b16 %v3040
        %v3136 = vunpack.c.l.b16 %v3041
        %v3137 = vunpack.c.h.b16 %v3041
        %v3138 = vpack.c.b16 %v3076, %v3074
        %v3139 = vpack.c.b16 %v3077, %v3075
        %v3140 = vpack.c.b16 %v3080, %v3078
        %v3141 = vpack.c.b16 %v3081, %v3079
        %v3142 = vpack.c.b16 %v3084, %v3082
        %v3143 = vpack.c.b16 %v3085, %v3083
        %v3144 = vpack.c.b16 %v3088, %v3086
        %v3145 = vpack.c.b16 %v3089, %v3087
        %v3146 = vpack.c.b16 %v3092, %v3090
        %v3147 = vpack.c.b16 %v3093, %v3091
        %v3148 = vpack.c.b16 %v3096, %v3094
        %v3149 = vpack.c.b16 %v3097, %v3095
        %v3150 = vpack.c.b16 %v3100, %v3098
        %v3151 = vpack.c.b16 %v3101, %v3099
        %v3152 = vpack.c.b16 %v3104, %v3102
        %v3153 = vpack.c.b16 %v3105, %v3103
        %v3154 = vpack.c.b16 %v3108, %v3106
        %v3155 = vpack.c.b16 %v3109, %v3107
        %v3156 = vpack.c.b16 %v3112, %v3110
        %v3157 = vpack.c.b16 %v3113, %v3111
        %v3158 = vpack.c.b16 %v3116, %v3114
        %v3159 = vpack.c.b16 %v3117, %v3115
        %v3160 = vpack.c.b16 %v3120, %v3118
        %v3161 = vpack.c.b16 %v3121, %v3119
        %v3162 = vpack.c.b16 %v3124, %v3122
        %v3163 = vpack.c.b16 %v3125, %v3123
        %v3164 = vpack.c.b16 %v3128, %v3126
        %v3165 = vpack.c.b16 %v3129, %v3127
        %v3166 = vpack.c.b16 %v3132, %v3130
        %v3167 = vpack.c.b16 %v3133, %v3131
        %v3168 = vpack.c.b16 %v3136, %v3134
        %v3169 = vpack.c.b16 %v3137, %v3135
        %3202 = vmatprep.subr.bf16.mxu0 %v3153
        %3203 = vmatpush1.bf16.msra.mxu0 %v3152
        %3204 = vmatprep.subr.bf16.mxu0 %v3151
        %3205 = vmatpush1.bf16.msra.mxu0 %v3150
        %3206 = vmatprep.subr.bf16.mxu0 %v3149
        %3207 = vmatpush1.bf16.msra.mxu0 %v3148
        %3208 = vmatprep.subr.bf16.mxu0 %v3147
        %3209 = vmatpush1.bf16.msra.mxu0 %v3146
        %3210 = vmatprep.subr.bf16.mxu0 %v3145
        %3211 = vmatpush1.bf16.msra.mxu0 %v3144
        %3212 = vmatprep.subr.bf16.mxu0 %v3143
        %3213 = vmatpush1.bf16.msra.mxu0 %v3142
        %3214 = vmatprep.subr.bf16.mxu0 %v3141
        %3215 = vmatpush1.bf16.msra.mxu0 %v3140
        %3216 = vmatprep.subr.bf16.mxu0 %v3139
        %3217 = vmatpush1.bf16.msra.mxu0 %v3138
        %3218 = vmatprep.subr.bf16.mxu0 %v3169
        %3219 = vmatpush2.bf16.msra.mxu0 %v3168
        %3220 = vmatprep.subr.bf16.mxu0 %v3167
        %3221 = vmatpush2.bf16.msra.mxu0 %v3166
        %3222 = vmatprep.subr.bf16.mxu0 %v3165
        %3223 = vmatpush2.bf16.msra.mxu0 %v3164
        %3224 = vmatprep.subr.bf16.mxu0 %v3163
        %3225 = vmatpush2.bf16.msra.mxu0 %v3162
        %3226 = vmatprep.subr.bf16.mxu0 %v3161
        %3227 = vmatpush2.bf16.msra.mxu0 %v3160
        %3228 = vmatprep.subr.bf16.mxu0 %v3159
        %3229 = vmatpush2.bf16.msra.mxu0 %v3158
        %3230 = vmatprep.subr.bf16.mxu0 %v3157
        %3231 = vmatpush2.bf16.msra.mxu0 %v3156
        %3232 = vmatprep.subr.bf16.mxu0 %v3155
        %3233 = vmatpush2.bf16.msra.mxu0 %v3154
        %3234 = vmatprep.mubr.bf16.mxu0 %v943
        %3235 = vmatmul.mubr.bf16.gmra.mxu0 %v942
        %v3236 = vpop.f32.mrf.mxu0
        %v3237 = vadd.f32 0.0, %v3236
        %v3238 = vpop.f32.mrf.mxu0
        %v3239 = vadd.f32 0.0, %v3238
        %v3240 = vpop.f32.mrf.mxu0
        %v3241 = vpop.f32.mrf.mxu0
        %3242 = vdwg.mxu0
        %v3243 = vpack.c.bf16 %v3237, %v3237
        %v3244 = vpack.c.bf16 %v3239, %v3239
        %s3245 = scalar_lea.vmem [#allocation2], 56
        %v3246 = vld [vmem:[%s3245] sm:$0xf]
        %v3247 = vld [vmem:[%s3245 + $0x4] sm:$0xf]
        %v3250 = vunpack.c.l.b16 %v3246
        %v3251 = vunpack.c.l.b16 %v3247
        %v3252 = vpack.c.b16 %v3251, %v3250
        %v3254 = vsel %vm1395, %v3252, 0
        %v3257 = vand.u32 %v3243, %v1402
        %v3260 = vand.u32 %v3244, %v1402
        %3262 = vmatprep.subr.bf16.mxu0 0
        %3263 = vmatpush1.bf16.msra.mxu0 0
        %3264 = vmatprep.subr.bf16.mxu0 0
        %3265 = vmatpush1.bf16.msra.mxu0 0
        %3266 = vmatprep.subr.bf16.mxu0 0
        %3267 = vmatpush1.bf16.msra.mxu0 0
        %3268 = vmatprep.subr.bf16.mxu0 0
        %3269 = vmatpush1.bf16.msra.mxu0 0
        %3270 = vmatprep.subr.bf16.mxu0 0
        %3271 = vmatpush1.bf16.msra.mxu0 0
        %3272 = vmatprep.subr.bf16.mxu0 0
        %3273 = vmatpush1.bf16.msra.mxu0 0
        %3274 = vmatprep.subr.bf16.mxu0 0
        %3275 = vmatpush1.bf16.msra.mxu0 0
        %3276 = vmatprep.subr.bf16.mxu0 %v3260
        %3277 = vmatpush1.bf16.msra.mxu0 %v3257
        %3278 = vmatprep.subr.bf16.mxu0 0
        %3279 = vmatpush2.bf16.msra.mxu0 0
        %3280 = vmatprep.subr.bf16.mxu0 0
        %3281 = vmatpush2.bf16.msra.mxu0 0
        %3282 = vmatprep.subr.bf16.mxu0 0
        %3283 = vmatpush2.bf16.msra.mxu0 0
        %3284 = vmatprep.subr.bf16.mxu0 0
        %3285 = vmatpush2.bf16.msra.mxu0 0
        %3286 = vmatprep.subr.bf16.mxu0 0
        %3287 = vmatpush2.bf16.msra.mxu0 0
        %3288 = vmatprep.subr.bf16.mxu0 0
        %3289 = vmatpush2.bf16.msra.mxu0 0
        %3290 = vmatprep.subr.bf16.mxu0 0
        %3291 = vmatpush2.bf16.msra.mxu0 0
        %3292 = vmatprep.subr.bf16.mxu0 0
        %3293 = vmatpush2.bf16.msra.mxu0 0
        %3294 = vmatprep.mubr.bf16.mxu0 0
        %3295 = vmatmul.mubr.bf16.gmra.mxu0 %v3254
        %v3296 = vpop.f32.mrf.mxu0
        %v3297 = vadd.f32 0.0, %v3296
        %v3298 = vpop.f32.mrf.mxu0
        %v3299 = vadd.f32 0.0, %v3298
        %v3300 = vpop.f32.mrf.mxu0
        %v3301 = vadd.f32 0.0, %v3300
        %v3302 = vpop.f32.mrf.mxu0
        %v3303 = vadd.f32 0.0, %v3302
        %3304 = vdwg.mxu0
        %v3305 = vadd.f32 %v3005, %v3297
        %v3306 = vadd.f32 %v3006, %v3299
        %v3307 = vadd.f32 %v3007, %v3301
        %v3308 = vadd.f32 %v3008, %v3303
        %s3309 = scalar_lea.vmem [#allocation6], 2048
        %v3310 = vld [vmem:[%s3309] sm:$0xff]
        %v3311 = vld [vmem:[%s3309 + $0x8] sm:$0xff]
        %v3312 = vld [vmem:[%s3309 + $0x10] sm:$0xff]
        %v3313 = vld [vmem:[%s3309 + $0x18] sm:$0xff]
        %v3314 = vld [vmem:[%s3309 + $0x20] sm:$0xff]
        %v3315 = vld [vmem:[%s3309 + $0x28] sm:$0xff]
        %v3316 = vld [vmem:[%s3309 + $0x30] sm:$0xff]
        %v3317 = vld [vmem:[%s3309 + $0x38] sm:$0xff]
        %v3318 = vld [vmem:[%s3309 + $0x40] sm:$0xff]
        %v3319 = vld [vmem:[%s3309 + $0x48] sm:$0xff]
        %v3320 = vld [vmem:[%s3309 + $0x50] sm:$0xff]
        %v3321 = vld [vmem:[%s3309 + $0x58] sm:$0xff]
        %v3322 = vld [vmem:[%s3309 + $0x60] sm:$0xff]
        %v3323 = vld [vmem:[%s3309 + $0x68] sm:$0xff]
        %v3324 = vld [vmem:[%s3309 + $0x70] sm:$0xff]
        %v3325 = vld [vmem:[%s3309 + $0x78] sm:$0xff]
        %v3326 = vld [vmem:[%s3309 + $0x80] sm:$0xff]
        %v3327 = vld [vmem:[%s3309 + $0x88] sm:$0xff]
        %v3328 = vld [vmem:[%s3309 + $0x90] sm:$0xff]
        %v3329 = vld [vmem:[%s3309 + $0x98] sm:$0xff]
        %v3330 = vld [vmem:[%s3309 + $0xa0] sm:$0xff]
        %v3331 = vld [vmem:[%s3309 + $0xa8] sm:$0xff]
        %v3332 = vld [vmem:[%s3309 + $0xb0] sm:$0xff]
        %v3333 = vld [vmem:[%s3309 + $0xb8] sm:$0xff]
        %v3334 = vld [vmem:[%s3309 + $0xc0] sm:$0xff]
        %v3335 = vld [vmem:[%s3309 + $0xc8] sm:$0xff]
        %v3336 = vld [vmem:[%s3309 + $0xd0] sm:$0xff]
        %v3337 = vld [vmem:[%s3309 + $0xd8] sm:$0xff]
        %v3338 = vld [vmem:[%s3309 + $0xe0] sm:$0xff]
        %v3339 = vld [vmem:[%s3309 + $0xe8] sm:$0xff]
        %v3340 = vld [vmem:[%s3309 + $0xf0] sm:$0xff]
        %v3341 = vld [vmem:[%s3309 + $0xf8] sm:$0xff]
        %v3374 = vunpack.c.l.b16 %v3310
        %v3375 = vunpack.c.h.b16 %v3310
        %v3376 = vunpack.c.l.b16 %v3311
        %v3377 = vunpack.c.h.b16 %v3311
        %v3378 = vunpack.c.l.b16 %v3312
        %v3379 = vunpack.c.h.b16 %v3312
        %v3380 = vunpack.c.l.b16 %v3313
        %v3381 = vunpack.c.h.b16 %v3313
        %v3382 = vunpack.c.l.b16 %v3314
        %v3383 = vunpack.c.h.b16 %v3314
        %v3384 = vunpack.c.l.b16 %v3315
        %v3385 = vunpack.c.h.b16 %v3315
        %v3386 = vunpack.c.l.b16 %v3316
        %v3387 = vunpack.c.h.b16 %v3316
        %v3388 = vunpack.c.l.b16 %v3317
        %v3389 = vunpack.c.h.b16 %v3317
        %v3390 = vunpack.c.l.b16 %v3318
        %v3391 = vunpack.c.h.b16 %v3318
        %v3392 = vunpack.c.l.b16 %v3319
        %v3393 = vunpack.c.h.b16 %v3319
        %v3394 = vunpack.c.l.b16 %v3320
        %v3395 = vunpack.c.h.b16 %v3320
        %v3396 = vunpack.c.l.b16 %v3321
        %v3397 = vunpack.c.h.b16 %v3321
        %v3398 = vunpack.c.l.b16 %v3322
        %v3399 = vunpack.c.h.b16 %v3322
        %v3400 = vunpack.c.l.b16 %v3323
        %v3401 = vunpack.c.h.b16 %v3323
        %v3402 = vunpack.c.l.b16 %v3324
        %v3403 = vunpack.c.h.b16 %v3324
        %v3404 = vunpack.c.l.b16 %v3325
        %v3405 = vunpack.c.h.b16 %v3325
        %v3406 = vunpack.c.l.b16 %v3326
        %v3407 = vunpack.c.h.b16 %v3326
        %v3408 = vunpack.c.l.b16 %v3327
        %v3409 = vunpack.c.h.b16 %v3327
        %v3410 = vunpack.c.l.b16 %v3328
        %v3411 = vunpack.c.h.b16 %v3328
        %v3412 = vunpack.c.l.b16 %v3329
        %v3413 = vunpack.c.h.b16 %v3329
        %v3414 = vunpack.c.l.b16 %v3330
        %v3415 = vunpack.c.h.b16 %v3330
        %v3416 = vunpack.c.l.b16 %v3331
        %v3417 = vunpack.c.h.b16 %v3331
        %v3418 = vunpack.c.l.b16 %v3332
        %v3419 = vunpack.c.h.b16 %v3332
        %v3420 = vunpack.c.l.b16 %v3333
        %v3421 = vunpack.c.h.b16 %v3333
        %v3422 = vunpack.c.l.b16 %v3334
        %v3423 = vunpack.c.h.b16 %v3334
        %v3424 = vunpack.c.l.b16 %v3335
        %v3425 = vunpack.c.h.b16 %v3335
        %v3426 = vunpack.c.l.b16 %v3336
        %v3427 = vunpack.c.h.b16 %v3336
        %v3428 = vunpack.c.l.b16 %v3337
        %v3429 = vunpack.c.h.b16 %v3337
        %v3430 = vunpack.c.l.b16 %v3338
        %v3431 = vunpack.c.h.b16 %v3338
        %v3432 = vunpack.c.l.b16 %v3339
        %v3433 = vunpack.c.h.b16 %v3339
        %v3434 = vunpack.c.l.b16 %v3340
        %v3435 = vunpack.c.h.b16 %v3340
        %v3436 = vunpack.c.l.b16 %v3341
        %v3437 = vunpack.c.h.b16 %v3341
        %v3438 = vpack.c.b16 %v3376, %v3374
        %v3439 = vpack.c.b16 %v3377, %v3375
        %v3440 = vpack.c.b16 %v3380, %v3378
        %v3441 = vpack.c.b16 %v3381, %v3379
        %v3442 = vpack.c.b16 %v3384, %v3382
        %v3443 = vpack.c.b16 %v3385, %v3383
        %v3444 = vpack.c.b16 %v3388, %v3386
        %v3445 = vpack.c.b16 %v3389, %v3387
        %v3446 = vpack.c.b16 %v3392, %v3390
        %v3447 = vpack.c.b16 %v3393, %v3391
        %v3448 = vpack.c.b16 %v3396, %v3394
        %v3449 = vpack.c.b16 %v3397, %v3395
        %v3450 = vpack.c.b16 %v3400, %v3398
        %v3451 = vpack.c.b16 %v3401, %v3399
        %v3452 = vpack.c.b16 %v3404, %v3402
        %v3453 = vpack.c.b16 %v3405, %v3403
        %v3454 = vpack.c.b16 %v3408, %v3406
        %v3455 = vpack.c.b16 %v3409, %v3407
        %v3456 = vpack.c.b16 %v3412, %v3410
        %v3457 = vpack.c.b16 %v3413, %v3411
        %v3458 = vpack.c.b16 %v3416, %v3414
        %v3459 = vpack.c.b16 %v3417, %v3415
        %v3460 = vpack.c.b16 %v3420, %v3418
        %v3461 = vpack.c.b16 %v3421, %v3419
        %v3462 = vpack.c.b16 %v3424, %v3422
        %v3463 = vpack.c.b16 %v3425, %v3423
        %v3464 = vpack.c.b16 %v3428, %v3426
        %v3465 = vpack.c.b16 %v3429, %v3427
        %v3466 = vpack.c.b16 %v3432, %v3430
        %v3467 = vpack.c.b16 %v3433, %v3431
        %v3468 = vpack.c.b16 %v3436, %v3434
        %v3469 = vpack.c.b16 %v3437, %v3435
        %3502 = vmatprep.subr.bf16.mxu0 %v3453
        %3503 = vmatpush1.bf16.msra.mxu0 %v3452
        %3504 = vmatprep.subr.bf16.mxu0 %v3451
        %3505 = vmatpush1.bf16.msra.mxu0 %v3450
        %3506 = vmatprep.subr.bf16.mxu0 %v3449
        %3507 = vmatpush1.bf16.msra.mxu0 %v3448
        %3508 = vmatprep.subr.bf16.mxu0 %v3447
        %3509 = vmatpush1.bf16.msra.mxu0 %v3446
        %3510 = vmatprep.subr.bf16.mxu0 %v3445
        %3511 = vmatpush1.bf16.msra.mxu0 %v3444
        %3512 = vmatprep.subr.bf16.mxu0 %v3443
        %3513 = vmatpush1.bf16.msra.mxu0 %v3442
        %3514 = vmatprep.subr.bf16.mxu0 %v3441
        %3515 = vmatpush1.bf16.msra.mxu0 %v3440
        %3516 = vmatprep.subr.bf16.mxu0 %v3439
        %3517 = vmatpush1.bf16.msra.mxu0 %v3438
        %3518 = vmatprep.subr.bf16.mxu0 %v3469
        %3519 = vmatpush2.bf16.msra.mxu0 %v3468
        %3520 = vmatprep.subr.bf16.mxu0 %v3467
        %3521 = vmatpush2.bf16.msra.mxu0 %v3466
        %3522 = vmatprep.subr.bf16.mxu0 %v3465
        %3523 = vmatpush2.bf16.msra.mxu0 %v3464
        %3524 = vmatprep.subr.bf16.mxu0 %v3463
        %3525 = vmatpush2.bf16.msra.mxu0 %v3462
        %3526 = vmatprep.subr.bf16.mxu0 %v3461
        %3527 = vmatpush2.bf16.msra.mxu0 %v3460
        %3528 = vmatprep.subr.bf16.mxu0 %v3459
        %3529 = vmatpush2.bf16.msra.mxu0 %v3458
        %3530 = vmatprep.subr.bf16.mxu0 %v3457
        %3531 = vmatpush2.bf16.msra.mxu0 %v3456
        %3532 = vmatprep.subr.bf16.mxu0 %v3455
        %3533 = vmatpush2.bf16.msra.mxu0 %v3454
        %3534 = vmatprep.mubr.bf16.mxu0 %v943
        %3535 = vmatmul.mubr.bf16.gmra.mxu0 %v942
        %v3536 = vpop.f32.mrf.mxu0
        %v3537 = vadd.f32 0.0, %v3536
        %v3538 = vpop.f32.mrf.mxu0
        %v3539 = vadd.f32 0.0, %v3538
        %v3540 = vpop.f32.mrf.mxu0
        %v3541 = vpop.f32.mrf.mxu0
        %3542 = vdwg.mxu0
        %v3543 = vpack.c.bf16 %v3537, %v3537
        %v3544 = vpack.c.bf16 %v3539, %v3539
        %s3545 = scalar_lea.vmem [#allocation2], 64
        %v3546 = vld [vmem:[%s3545] sm:$0xf]
        %v3547 = vld [vmem:[%s3545 + $0x4] sm:$0xf]
        %v3550 = vunpack.c.l.b16 %v3546
        %v3551 = vunpack.c.l.b16 %v3547
        %v3552 = vpack.c.b16 %v3551, %v3550
        %v3554 = vsel %vm1395, %v3552, 0
        %v3557 = vand.u32 %v3543, %v1402
        %v3560 = vand.u32 %v3544, %v1402
        %3562 = vmatprep.subr.bf16.mxu0 0
        %3563 = vmatpush1.bf16.msra.mxu0 0
        %3564 = vmatprep.subr.bf16.mxu0 0
        %3565 = vmatpush1.bf16.msra.mxu0 0
        %3566 = vmatprep.subr.bf16.mxu0 0
        %3567 = vmatpush1.bf16.msra.mxu0 0
        %3568 = vmatprep.subr.bf16.mxu0 0
        %3569 = vmatpush1.bf16.msra.mxu0 0
        %3570 = vmatprep.subr.bf16.mxu0 0
        %3571 = vmatpush1.bf16.msra.mxu0 0
        %3572 = vmatprep.subr.bf16.mxu0 0
        %3573 = vmatpush1.bf16.msra.mxu0 0
        %3574 = vmatprep.subr.bf16.mxu0 0
        %3575 = vmatpush1.bf16.msra.mxu0 0
        %3576 = vmatprep.subr.bf16.mxu0 %v3560
        %3577 = vmatpush1.bf16.msra.mxu0 %v3557
        %3578 = vmatprep.subr.bf16.mxu0 0
        %3579 = vmatpush2.bf16.msra.mxu0 0
        %3580 = vmatprep.subr.bf16.mxu0 0
        %3581 = vmatpush2.bf16.msra.mxu0 0
        %3582 = vmatprep.subr.bf16.mxu0 0
        %3583 = vmatpush2.bf16.msra.mxu0 0
        %3584 = vmatprep.subr.bf16.mxu0 0
        %3585 = vmatpush2.bf16.msra.mxu0 0
        %3586 = vmatprep.subr.bf16.mxu0 0
        %3587 = vmatpush2.bf16.msra.mxu0 0
        %3588 = vmatprep.subr.bf16.mxu0 0
        %3589 = vmatpush2.bf16.msra.mxu0 0
        %3590 = vmatprep.subr.bf16.mxu0 0
        %3591 = vmatpush2.bf16.msra.mxu0 0
        %3592 = vmatprep.subr.bf16.mxu0 0
        %3593 = vmatpush2.bf16.msra.mxu0 0
        %3594 = vmatprep.mubr.bf16.mxu0 0
        %3595 = vmatmul.mubr.bf16.gmra.mxu0 %v3554
        %v3596 = vpop.f32.mrf.mxu0
        %v3597 = vadd.f32 0.0, %v3596
        %v3598 = vpop.f32.mrf.mxu0
        %v3599 = vadd.f32 0.0, %v3598
        %v3600 = vpop.f32.mrf.mxu0
        %v3601 = vadd.f32 0.0, %v3600
        %v3602 = vpop.f32.mrf.mxu0
        %v3603 = vadd.f32 0.0, %v3602
        %3604 = vdwg.mxu0
        %v3605 = vadd.f32 %v3305, %v3597
        %v3606 = vadd.f32 %v3306, %v3599
        %v3607 = vadd.f32 %v3307, %v3601
        %v3608 = vadd.f32 %v3308, %v3603
        %v3609 = vld [vmem:[#allocation4] sm:$0xff]
        %v3610 = vld [vmem:[#allocation4 + $0x8] sm:$0xff]
        %3612 = vset.pattern.permute.xlu0 0
        %3613 = vperm.xlu0 %3612, %v3609
        %v3614 = vpop.permute.xlu0 %3613
        %3617 = vset.pattern.permute.xlu0 0
        %3618 = vperm.xlu0 %3617, %v3610
        %v3619 = vpop.permute.xlu0 %3618
        %v3621 = vadd.f32 %v3605, %v3614
        %v3622 = vadd.f32 %v3606, %v3614
        %v3623 = vadd.f32 %v3607, %v3619
        %v3624 = vadd.f32 %v3608, %v3619
        %v3625 = vsub.f32 0.0, %v3621
        %v3626 = vsub.f32 0.0, %v3622
        %v3627 = vsub.f32 0.0, %v3623
        %v3628 = vsub.f32 0.0, %v3624
        %v3629 = vmul.f32 %v3625, 1.442695
        %v3630 = vpow.pop %v3629
        %v3631 = vmul.f32 %v3626, 1.442695
        %v3632 = vpow.pop %v3631
        %v3633 = vmul.f32 %v3627, 1.442695
        %v3634 = vpow.pop %v3633
        %v3635 = vmul.f32 %v3628, 1.442695
        %v3636 = vpow.pop %v3635
        %v3637 = vadd.f32 %v3630, 1.0
        %v3638 = vadd.f32 %v3632, 1.0
        %v3639 = vadd.f32 %v3634, 1.0
        %v3640 = vadd.f32 %v3636, 1.0
        %v3641 = vrcp.pop %v3637
        %v3642 = vrcp.pop %v3638
        %v3643 = vrcp.pop %v3639
        %v3644 = vrcp.pop %v3640
        %v3645 = vmul.f32 %v3621, %v3641
        %v3646 = vmul.f32 %v3622, %v3642
        %v3647 = vmul.f32 %v3623, %v3643
        %v3648 = vmul.f32 %v3624, %v3644
        %v3649 = vpack.c.bf16 %v3647, %v3645
        %v3650 = vpack.c.bf16 %v3648, %v3646
        %v3651 = vld [vmem:[#allocation7] sm:$0xf]
        %v3652 = vld [vmem:[#allocation7 + $0x4] sm:$0xf]
        %v3653 = vld [vmem:[#allocation7 + $0x8] sm:$0xf]
        %v3654 = vld [vmem:[#allocation7 + $0xc] sm:$0xf]
        %v3655 = vld [vmem:[#allocation7 + $0x10] sm:$0xf]
        %v3656 = vld [vmem:[#allocation7 + $0x14] sm:$0xf]
        %v3657 = vld [vmem:[#allocation7 + $0x18] sm:$0xf]
        %v3658 = vld [vmem:[#allocation7 + $0x1c] sm:$0xf]
        %v3659 = vld [vmem:[#allocation7 + $0x20] sm:$0xf]
        %v3660 = vld [vmem:[#allocation7 + $0x24] sm:$0xf]
        %v3661 = vld [vmem:[#allocation7 + $0x28] sm:$0xf]
        %v3662 = vld [vmem:[#allocation7 + $0x2c] sm:$0xf]
        %v3663 = vld [vmem:[#allocation7 + $0x30] sm:$0xf]
        %v3664 = vld [vmem:[#allocation7 + $0x34] sm:$0xf]
        %v3665 = vld [vmem:[#allocation7 + $0x38] sm:$0xf]
        %v3666 = vld [vmem:[#allocation7 + $0x3c] sm:$0xf]
        %v3667 = vld [vmem:[#allocation7 + $0x40] sm:$0xf]
        %v3668 = vld [vmem:[#allocation7 + $0x44] sm:$0xf]
        %v3669 = vld [vmem:[#allocation7 + $0x48] sm:$0xf]
        %v3670 = vld [vmem:[#allocation7 + $0x4c] sm:$0xf]
        %v3671 = vld [vmem:[#allocation7 + $0x50] sm:$0xf]
        %v3672 = vld [vmem:[#allocation7 + $0x54] sm:$0xf]
        %v3673 = vld [vmem:[#allocation7 + $0x58] sm:$0xf]
        %v3674 = vld [vmem:[#allocation7 + $0x5c] sm:$0xf]
        %v3675 = vld [vmem:[#allocation7 + $0x60] sm:$0xf]
        %v3676 = vld [vmem:[#allocation7 + $0x64] sm:$0xf]
        %v3677 = vld [vmem:[#allocation7 + $0x68] sm:$0xf]
        %v3678 = vld [vmem:[#allocation7 + $0x6c] sm:$0xf]
        %v3679 = vld [vmem:[#allocation7 + $0x70] sm:$0xf]
        %v3680 = vld [vmem:[#allocation7 + $0x74] sm:$0xf]
        %v3681 = vld [vmem:[#allocation7 + $0x78] sm:$0xf]
        %v3682 = vld [vmem:[#allocation7 + $0x7c] sm:$0xf]
        %v3715 = vunpack.c.l.b16 %v3651
        %v3716 = vunpack.c.l.b16 %v3652
        %v3717 = vunpack.c.l.b16 %v3653
        %v3718 = vunpack.c.l.b16 %v3654
        %v3719 = vunpack.c.l.b16 %v3655
        %v3720 = vunpack.c.l.b16 %v3656
        %v3721 = vunpack.c.l.b16 %v3657
        %v3722 = vunpack.c.l.b16 %v3658
        %v3723 = vunpack.c.l.b16 %v3659
        %v3724 = vunpack.c.l.b16 %v3660
        %v3725 = vunpack.c.l.b16 %v3661
        %v3726 = vunpack.c.l.b16 %v3662
        %v3727 = vunpack.c.l.b16 %v3663
        %v3728 = vunpack.c.l.b16 %v3664
        %v3729 = vunpack.c.l.b16 %v3665
        %v3730 = vunpack.c.l.b16 %v3666
        %v3731 = vunpack.c.l.b16 %v3667
        %v3732 = vunpack.c.l.b16 %v3668
        %v3733 = vunpack.c.l.b16 %v3669
        %v3734 = vunpack.c.l.b16 %v3670
        %v3735 = vunpack.c.l.b16 %v3671
        %v3736 = vunpack.c.l.b16 %v3672
        %v3737 = vunpack.c.l.b16 %v3673
        %v3738 = vunpack.c.l.b16 %v3674
        %v3739 = vunpack.c.l.b16 %v3675
        %v3740 = vunpack.c.l.b16 %v3676
        %v3741 = vunpack.c.l.b16 %v3677
        %v3742 = vunpack.c.l.b16 %v3678
        %v3743 = vunpack.c.l.b16 %v3679
        %v3744 = vunpack.c.l.b16 %v3680
        %v3745 = vunpack.c.l.b16 %v3681
        %v3746 = vunpack.c.l.b16 %v3682
        %v3747 = vpack.c.b16 %v3716, %v3715
        %v3748 = vpack.c.b16 %v3718, %v3717
        %v3749 = vpack.c.b16 %v3720, %v3719
        %v3750 = vpack.c.b16 %v3722, %v3721
        %v3751 = vpack.c.b16 %v3724, %v3723
        %v3752 = vpack.c.b16 %v3726, %v3725
        %v3753 = vpack.c.b16 %v3728, %v3727
        %v3754 = vpack.c.b16 %v3730, %v3729
        %v3755 = vpack.c.b16 %v3732, %v3731
        %v3756 = vpack.c.b16 %v3734, %v3733
        %v3757 = vpack.c.b16 %v3736, %v3735
        %v3758 = vpack.c.b16 %v3738, %v3737
        %v3759 = vpack.c.b16 %v3740, %v3739
        %v3760 = vpack.c.b16 %v3742, %v3741
        %v3761 = vpack.c.b16 %v3744, %v3743
        %v3762 = vpack.c.b16 %v3746, %v3745
        %3779 = vmatprep.subr.bf16.mxu0 0
        %3780 = vmatpush1.bf16.msra.mxu0 %v3754
        %3781 = vmatprep.subr.bf16.mxu0 0
        %3782 = vmatpush1.bf16.msra.mxu0 %v3753
        %3783 = vmatprep.subr.bf16.mxu0 0
        %3784 = vmatpush1.bf16.msra.mxu0 %v3752
        %3785 = vmatprep.subr.bf16.mxu0 0
        %3786 = vmatpush1.bf16.msra.mxu0 %v3751
        %3787 = vmatprep.subr.bf16.mxu0 0
        %3788 = vmatpush1.bf16.msra.mxu0 %v3750
        %3789 = vmatprep.subr.bf16.mxu0 0
        %3790 = vmatpush1.bf16.msra.mxu0 %v3749
        %3791 = vmatprep.subr.bf16.mxu0 0
        %3792 = vmatpush1.bf16.msra.mxu0 %v3748
        %3793 = vmatprep.subr.bf16.mxu0 0
        %3794 = vmatpush1.bf16.msra.mxu0 %v3747
        %3795 = vmatprep.subr.bf16.mxu0 0
        %3796 = vmatpush2.bf16.msra.mxu0 %v3762
        %3797 = vmatprep.subr.bf16.mxu0 0
        %3798 = vmatpush2.bf16.msra.mxu0 %v3761
        %3799 = vmatprep.subr.bf16.mxu0 0
        %3800 = vmatpush2.bf16.msra.mxu0 %v3760
        %3801 = vmatprep.subr.bf16.mxu0 0
        %3802 = vmatpush2.bf16.msra.mxu0 %v3759
        %3803 = vmatprep.subr.bf16.mxu0 0
        %3804 = vmatpush2.bf16.msra.mxu0 %v3758
        %3805 = vmatprep.subr.bf16.mxu0 0
        %3806 = vmatpush2.bf16.msra.mxu0 %v3757
        %3807 = vmatprep.subr.bf16.mxu0 0
        %3808 = vmatpush2.bf16.msra.mxu0 %v3756
        %3809 = vmatprep.subr.bf16.mxu0 0
        %3810 = vmatpush2.bf16.msra.mxu0 %v3755
        %3811 = vmatprep.mubr.bf16.mxu0 %v3650
        %3812 = vmatmul.mubr.bf16.gmra.mxu0 %v3649
        %v3813 = vpop.f32.mrf.mxu0
        %v3814 = vadd.f32 0.0, %v3813
        %v3815 = vpop.f32.mrf.mxu0
        %v3816 = vpop.f32.mrf.mxu0
        %v3817 = vadd.f32 0.0, %v3816
        %v3818 = vpop.f32.mrf.mxu0
        %3819 = vdwg.mxu0
        %s3820 = scalar_lea.vmem [#allocation7], 128
        %v3821 = vld [vmem:[%s3820] sm:$0xf]
        %v3822 = vld [vmem:[%s3820 + $0x4] sm:$0xf]
        %v3823 = vld [vmem:[%s3820 + $0x8] sm:$0xf]
        %v3824 = vld [vmem:[%s3820 + $0xc] sm:$0xf]
        %v3825 = vld [vmem:[%s3820 + $0x10] sm:$0xf]
        %v3826 = vld [vmem:[%s3820 + $0x14] sm:$0xf]
        %v3827 = vld [vmem:[%s3820 + $0x18] sm:$0xf]
        %v3828 = vld [vmem:[%s3820 + $0x1c] sm:$0xf]
        %v3829 = vld [vmem:[%s3820 + $0x20] sm:$0xf]
        %v3830 = vld [vmem:[%s3820 + $0x24] sm:$0xf]
        %v3831 = vld [vmem:[%s3820 + $0x28] sm:$0xf]
        %v3832 = vld [vmem:[%s3820 + $0x2c] sm:$0xf]
        %v3833 = vld [vmem:[%s3820 + $0x30] sm:$0xf]
        %v3834 = vld [vmem:[%s3820 + $0x34] sm:$0xf]
        %v3835 = vld [vmem:[%s3820 + $0x38] sm:$0xf]
        %v3836 = vld [vmem:[%s3820 + $0x3c] sm:$0xf]
        %v3837 = vld [vmem:[%s3820 + $0x40] sm:$0xf]
        %v3838 = vld [vmem:[%s3820 + $0x44] sm:$0xf]
        %v3839 = vld [vmem:[%s3820 + $0x48] sm:$0xf]
        %v3840 = vld [vmem:[%s3820 + $0x4c] sm:$0xf]
        %v3841 = vld [vmem:[%s3820 + $0x50] sm:$0xf]
        %v3842 = vld [vmem:[%s3820 + $0x54] sm:$0xf]
        %v3843 = vld [vmem:[%s3820 + $0x58] sm:$0xf]
        %v3844 = vld [vmem:[%s3820 + $0x5c] sm:$0xf]
        %v3845 = vld [vmem:[%s3820 + $0x60] sm:$0xf]
        %v3846 = vld [vmem:[%s3820 + $0x64] sm:$0xf]
        %v3847 = vld [vmem:[%s3820 + $0x68] sm:$0xf]
        %v3848 = vld [vmem:[%s3820 + $0x6c] sm:$0xf]
        %v3849 = vld [vmem:[%s3820 + $0x70] sm:$0xf]
        %v3850 = vld [vmem:[%s3820 + $0x74] sm:$0xf]
        %v3851 = vld [vmem:[%s3820 + $0x78] sm:$0xf]
        %v3852 = vld [vmem:[%s3820 + $0x7c] sm:$0xf]
        %v3885 = vunpack.c.l.b16 %v3821
        %v3886 = vunpack.c.l.b16 %v3822
        %v3887 = vunpack.c.l.b16 %v3823
        %v3888 = vunpack.c.l.b16 %v3824
        %v3889 = vunpack.c.l.b16 %v3825
        %v3890 = vunpack.c.l.b16 %v3826
        %v3891 = vunpack.c.l.b16 %v3827
        %v3892 = vunpack.c.l.b16 %v3828
        %v3893 = vunpack.c.l.b16 %v3829
        %v3894 = vunpack.c.l.b16 %v3830
        %v3895 = vunpack.c.l.b16 %v3831
        %v3896 = vunpack.c.l.b16 %v3832
        %v3897 = vunpack.c.l.b16 %v3833
        %v3898 = vunpack.c.l.b16 %v3834
        %v3899 = vunpack.c.l.b16 %v3835
        %v3900 = vunpack.c.l.b16 %v3836
        %v3901 = vunpack.c.l.b16 %v3837
        %v3902 = vunpack.c.l.b16 %v3838
        %v3903 = vunpack.c.l.b16 %v3839
        %v3904 = vunpack.c.l.b16 %v3840
        %v3905 = vunpack.c.l.b16 %v3841
        %v3906 = vunpack.c.l.b16 %v3842
        %v3907 = vunpack.c.l.b16 %v3843
        %v3908 = vunpack.c.l.b16 %v3844
        %v3909 = vunpack.c.l.b16 %v3845
        %v3910 = vunpack.c.l.b16 %v3846
        %v3911 = vunpack.c.l.b16 %v3847
        %v3912 = vunpack.c.l.b16 %v3848
        %v3913 = vunpack.c.l.b16 %v3849
        %v3914 = vunpack.c.l.b16 %v3850
        %v3915 = vunpack.c.l.b16 %v3851
        %v3916 = vunpack.c.l.b16 %v3852
        %v3917 = vpack.c.b16 %v3886, %v3885
        %v3918 = vpack.c.b16 %v3888, %v3887
        %v3919 = vpack.c.b16 %v3890, %v3889
        %v3920 = vpack.c.b16 %v3892, %v3891
        %v3921 = vpack.c.b16 %v3894, %v3893
        %v3922 = vpack.c.b16 %v3896, %v3895
        %v3923 = vpack.c.b16 %v3898, %v3897
        %v3924 = vpack.c.b16 %v3900, %v3899
        %v3925 = vpack.c.b16 %v3902, %v3901
        %v3926 = vpack.c.b16 %v3904, %v3903
        %v3927 = vpack.c.b16 %v3906, %v3905
        %v3928 = vpack.c.b16 %v3908, %v3907
        %v3929 = vpack.c.b16 %v3910, %v3909
        %v3930 = vpack.c.b16 %v3912, %v3911
        %v3931 = vpack.c.b16 %v3914, %v3913
        %v3932 = vpack.c.b16 %v3916, %v3915
        %3949 = vmatprep.subr.bf16.mxu0 0
        %3950 = vmatpush1.bf16.msra.mxu0 %v3924
        %3951 = vmatprep.subr.bf16.mxu0 0
        %3952 = vmatpush1.bf16.msra.mxu0 %v3923
        %3953 = vmatprep.subr.bf16.mxu0 0
        %3954 = vmatpush1.bf16.msra.mxu0 %v3922
        %3955 = vmatprep.subr.bf16.mxu0 0
        %3956 = vmatpush1.bf16.msra.mxu0 %v3921
        %3957 = vmatprep.subr.bf16.mxu0 0
        %3958 = vmatpush1.bf16.msra.mxu0 %v3920
        %3959 = vmatprep.subr.bf16.mxu0 0
        %3960 = vmatpush1.bf16.msra.mxu0 %v3919
        %3961 = vmatprep.subr.bf16.mxu0 0
        %3962 = vmatpush1.bf16.msra.mxu0 %v3918
        %3963 = vmatprep.subr.bf16.mxu0 0
        %3964 = vmatpush1.bf16.msra.mxu0 %v3917
        %3965 = vmatprep.subr.bf16.mxu0 0
        %3966 = vmatpush2.bf16.msra.mxu0 %v3932
        %3967 = vmatprep.subr.bf16.mxu0 0
        %3968 = vmatpush2.bf16.msra.mxu0 %v3931
        %3969 = vmatprep.subr.bf16.mxu0 0
        %3970 = vmatpush2.bf16.msra.mxu0 %v3930
        %3971 = vmatprep.subr.bf16.mxu0 0
        %3972 = vmatpush2.bf16.msra.mxu0 %v3929
        %3973 = vmatprep.subr.bf16.mxu0 0
        %3974 = vmatpush2.bf16.msra.mxu0 %v3928
        %3975 = vmatprep.subr.bf16.mxu0 0
        %3976 = vmatpush2.bf16.msra.mxu0 %v3927
        %3977 = vmatprep.subr.bf16.mxu0 0
        %3978 = vmatpush2.bf16.msra.mxu0 %v3926
        %3979 = vmatprep.subr.bf16.mxu0 0
        %3980 = vmatpush2.bf16.msra.mxu0 %v3925
        %3981 = vmatprep.mubr.bf16.mxu0 %v3650
        %3982 = vmatmul.mubr.bf16.gmra.mxu0 %v3649
        %v3983 = vpop.f32.mrf.mxu0
        %v3984 = vadd.f32 0.0, %v3983
        %v3985 = vpop.f32.mrf.mxu0
        %v3986 = vpop.f32.mrf.mxu0
        %v3987 = vadd.f32 0.0, %v3986
        %v3988 = vpop.f32.mrf.mxu0
        %3989 = vdwg.mxu0
        %v3990 = vmax.f32 %v3814, %v3984
        %v3991 = vmax.f32 %v3817, %v3987
        %s3992 = scalar_lea.vmem [#allocation7], 256
        %v3993 = vld [vmem:[%s3992] sm:$0xf]
        %v3994 = vld [vmem:[%s3992 + $0x4] sm:$0xf]
        %v3995 = vld [vmem:[%s3992 + $0x8] sm:$0xf]
        %v3996 = vld [vmem:[%s3992 + $0xc] sm:$0xf]
        %v3997 = vld [vmem:[%s3992 + $0x10] sm:$0xf]
        %v3998 = vld [vmem:[%s3992 + $0x14] sm:$0xf]
        %v3999 = vld [vmem:[%s3992 + $0x18] sm:$0xf]
        %v4000 = vld [vmem:[%s3992 + $0x1c] sm:$0xf]
        %v4001 = vld [vmem:[%s3992 + $0x20] sm:$0xf]
        %v4002 = vld [vmem:[%s3992 + $0x24] sm:$0xf]
        %v4003 = vld [vmem:[%s3992 + $0x28] sm:$0xf]
        %v4004 = vld [vmem:[%s3992 + $0x2c] sm:$0xf]
        %v4005 = vld [vmem:[%s3992 + $0x30] sm:$0xf]
        %v4006 = vld [vmem:[%s3992 + $0x34] sm:$0xf]
        %v4007 = vld [vmem:[%s3992 + $0x38] sm:$0xf]
        %v4008 = vld [vmem:[%s3992 + $0x3c] sm:$0xf]
        %v4009 = vld [vmem:[%s3992 + $0x40] sm:$0xf]
        %v4010 = vld [vmem:[%s3992 + $0x44] sm:$0xf]
        %v4011 = vld [vmem:[%s3992 + $0x48] sm:$0xf]
        %v4012 = vld [vmem:[%s3992 + $0x4c] sm:$0xf]
        %v4013 = vld [vmem:[%s3992 + $0x50] sm:$0xf]
        %v4014 = vld [vmem:[%s3992 + $0x54] sm:$0xf]
        %v4015 = vld [vmem:[%s3992 + $0x58] sm:$0xf]
        %v4016 = vld [vmem:[%s3992 + $0x5c] sm:$0xf]
        %v4017 = vld [vmem:[%s3992 + $0x60] sm:$0xf]
        %v4018 = vld [vmem:[%s3992 + $0x64] sm:$0xf]
        %v4019 = vld [vmem:[%s3992 + $0x68] sm:$0xf]
        %v4020 = vld [vmem:[%s3992 + $0x6c] sm:$0xf]
        %v4021 = vld [vmem:[%s3992 + $0x70] sm:$0xf]
        %v4022 = vld [vmem:[%s3992 + $0x74] sm:$0xf]
        %v4023 = vld [vmem:[%s3992 + $0x78] sm:$0xf]
        %v4024 = vld [vmem:[%s3992 + $0x7c] sm:$0xf]
        %v4057 = vunpack.c.l.b16 %v3993
        %v4058 = vunpack.c.l.b16 %v3994
        %v4059 = vunpack.c.l.b16 %v3995
        %v4060 = vunpack.c.l.b16 %v3996
        %v4061 = vunpack.c.l.b16 %v3997
        %v4062 = vunpack.c.l.b16 %v3998
        %v4063 = vunpack.c.l.b16 %v3999
        %v4064 = vunpack.c.l.b16 %v4000
        %v4065 = vunpack.c.l.b16 %v4001
        %v4066 = vunpack.c.l.b16 %v4002
        %v4067 = vunpack.c.l.b16 %v4003
        %v4068 = vunpack.c.l.b16 %v4004
        %v4069 = vunpack.c.l.b16 %v4005
        %v4070 = vunpack.c.l.b16 %v4006
        %v4071 = vunpack.c.l.b16 %v4007
        %v4072 = vunpack.c.l.b16 %v4008
        %v4073 = vunpack.c.l.b16 %v4009
        %v4074 = vunpack.c.l.b16 %v4010
        %v4075 = vunpack.c.l.b16 %v4011
        %v4076 = vunpack.c.l.b16 %v4012
        %v4077 = vunpack.c.l.b16 %v4013
        %v4078 = vunpack.c.l.b16 %v4014
        %v4079 = vunpack.c.l.b16 %v4015
        %v4080 = vunpack.c.l.b16 %v4016
        %v4081 = vunpack.c.l.b16 %v4017
        %v4082 = vunpack.c.l.b16 %v4018
        %v4083 = vunpack.c.l.b16 %v4019
        %v4084 = vunpack.c.l.b16 %v4020
        %v4085 = vunpack.c.l.b16 %v4021
        %v4086 = vunpack.c.l.b16 %v4022
        %v4087 = vunpack.c.l.b16 %v4023
        %v4088 = vunpack.c.l.b16 %v4024
        %v4089 = vpack.c.b16 %v4058, %v4057
        %v4090 = vpack.c.b16 %v4060, %v4059
        %v4091 = vpack.c.b16 %v4062, %v4061
        %v4092 = vpack.c.b16 %v4064, %v4063
        %v4093 = vpack.c.b16 %v4066, %v4065
        %v4094 = vpack.c.b16 %v4068, %v4067
        %v4095 = vpack.c.b16 %v4070, %v4069
        %v4096 = vpack.c.b16 %v4072, %v4071
        %v4097 = vpack.c.b16 %v4074, %v4073
        %v4098 = vpack.c.b16 %v4076, %v4075
        %v4099 = vpack.c.b16 %v4078, %v4077
        %v4100 = vpack.c.b16 %v4080, %v4079
        %v4101 = vpack.c.b16 %v4082, %v4081
        %v4102 = vpack.c.b16 %v4084, %v4083
        %v4103 = vpack.c.b16 %v4086, %v4085
        %v4104 = vpack.c.b16 %v4088, %v4087
        %4121 = vmatprep.subr.bf16.mxu0 0
        %4122 = vmatpush1.bf16.msra.mxu0 %v4096
        %4123 = vmatprep.subr.bf16.mxu0 0
        %4124 = vmatpush1.bf16.msra.mxu0 %v4095
        %4125 = vmatprep.subr.bf16.mxu0 0
        %4126 = vmatpush1.bf16.msra.mxu0 %v4094
        %4127 = vmatprep.subr.bf16.mxu0 0
        %4128 = vmatpush1.bf16.msra.mxu0 %v4093
        %4129 = vmatprep.subr.bf16.mxu0 0
        %4130 = vmatpush1.bf16.msra.mxu0 %v4092
        %4131 = vmatprep.subr.bf16.mxu0 0
        %4132 = vmatpush1.bf16.msra.mxu0 %v4091
        %4133 = vmatprep.subr.bf16.mxu0 0
        %4134 = vmatpush1.bf16.msra.mxu0 %v4090
        %4135 = vmatprep.subr.bf16.mxu0 0
        %4136 = vmatpush1.bf16.msra.mxu0 %v4089
        %4137 = vmatprep.subr.bf16.mxu0 0
        %4138 = vmatpush2.bf16.msra.mxu0 %v4104
        %4139 = vmatprep.subr.bf16.mxu0 0
        %4140 = vmatpush2.bf16.msra.mxu0 %v4103
        %4141 = vmatprep.subr.bf16.mxu0 0
        %4142 = vmatpush2.bf16.msra.mxu0 %v4102
        %4143 = vmatprep.subr.bf16.mxu0 0
        %4144 = vmatpush2.bf16.msra.mxu0 %v4101
        %4145 = vmatprep.subr.bf16.mxu0 0
        %4146 = vmatpush2.bf16.msra.mxu0 %v4100
        %4147 = vmatprep.subr.bf16.mxu0 0
        %4148 = vmatpush2.bf16.msra.mxu0 %v4099
        %4149 = vmatprep.subr.bf16.mxu0 0
        %4150 = vmatpush2.bf16.msra.mxu0 %v4098
        %4151 = vmatprep.subr.bf16.mxu0 0
        %4152 = vmatpush2.bf16.msra.mxu0 %v4097
        %4153 = vmatprep.mubr.bf16.mxu0 %v3650
        %4154 = vmatmul.mubr.bf16.gmra.mxu0 %v3649
        %v4155 = vpop.f32.mrf.mxu0
        %v4156 = vadd.f32 0.0, %v4155
        %v4157 = vpop.f32.mrf.mxu0
        %v4158 = vpop.f32.mrf.mxu0
        %v4159 = vadd.f32 0.0, %v4158
        %v4160 = vpop.f32.mrf.mxu0
        %4161 = vdwg.mxu0
        %v4162 = vmax.f32 %v3990, %v4156
        %v4163 = vmax.f32 %v3991, %v4159
        %s4164 = scalar_lea.vmem [#allocation7], 384
        %v4165 = vld [vmem:[%s4164] sm:$0xf]
        %v4166 = vld [vmem:[%s4164 + $0x4] sm:$0xf]
        %v4167 = vld [vmem:[%s4164 + $0x8] sm:$0xf]
        %v4168 = vld [vmem:[%s4164 + $0xc] sm:$0xf]
        %v4169 = vld [vmem:[%s4164 + $0x10] sm:$0xf]
        %v4170 = vld [vmem:[%s4164 + $0x14] sm:$0xf]
        %v4171 = vld [vmem:[%s4164 + $0x18] sm:$0xf]
        %v4172 = vld [vmem:[%s4164 + $0x1c] sm:$0xf]
        %v4173 = vld [vmem:[%s4164 + $0x20] sm:$0xf]
        %v4174 = vld [vmem:[%s4164 + $0x24] sm:$0xf]
        %v4175 = vld [vmem:[%s4164 + $0x28] sm:$0xf]
        %v4176 = vld [vmem:[%s4164 + $0x2c] sm:$0xf]
        %v4177 = vld [vmem:[%s4164 + $0x30] sm:$0xf]
        %v4178 = vld [vmem:[%s4164 + $0x34] sm:$0xf]
        %v4179 = vld [vmem:[%s4164 + $0x38] sm:$0xf]
        %v4180 = vld [vmem:[%s4164 + $0x3c] sm:$0xf]
        %v4181 = vld [vmem:[%s4164 + $0x40] sm:$0xf]
        %v4182 = vld [vmem:[%s4164 + $0x44] sm:$0xf]
        %v4183 = vld [vmem:[%s4164 + $0x48] sm:$0xf]
        %v4184 = vld [vmem:[%s4164 + $0x4c] sm:$0xf]
        %v4185 = vld [vmem:[%s4164 + $0x50] sm:$0xf]
        %v4186 = vld [vmem:[%s4164 + $0x54] sm:$0xf]
        %v4187 = vld [vmem:[%s4164 + $0x58] sm:$0xf]
        %v4188 = vld [vmem:[%s4164 + $0x5c] sm:$0xf]
        %v4189 = vld [vmem:[%s4164 + $0x60] sm:$0xf]
        %v4190 = vld [vmem:[%s4164 + $0x64] sm:$0xf]
        %v4191 = vld [vmem:[%s4164 + $0x68] sm:$0xf]
        %v4192 = vld [vmem:[%s4164 + $0x6c] sm:$0xf]
        %v4193 = vld [vmem:[%s4164 + $0x70] sm:$0xf]
        %v4194 = vld [vmem:[%s4164 + $0x74] sm:$0xf]
        %v4195 = vld [vmem:[%s4164 + $0x78] sm:$0xf]
        %v4196 = vld [vmem:[%s4164 + $0x7c] sm:$0xf]
        %v4229 = vunpack.c.l.b16 %v4165
        %v4230 = vunpack.c.l.b16 %v4166
        %v4231 = vunpack.c.l.b16 %v4167
        %v4232 = vunpack.c.l.b16 %v4168
        %v4233 = vunpack.c.l.b16 %v4169
        %v4234 = vunpack.c.l.b16 %v4170
        %v4235 = vunpack.c.l.b16 %v4171
        %v4236 = vunpack.c.l.b16 %v4172
        %v4237 = vunpack.c.l.b16 %v4173
        %v4238 = vunpack.c.l.b16 %v4174
        %v4239 = vunpack.c.l.b16 %v4175
        %v4240 = vunpack.c.l.b16 %v4176
        %v4241 = vunpack.c.l.b16 %v4177
        %v4242 = vunpack.c.l.b16 %v4178
        %v4243 = vunpack.c.l.b16 %v4179
        %v4244 = vunpack.c.l.b16 %v4180
        %v4245 = vunpack.c.l.b16 %v4181
        %v4246 = vunpack.c.l.b16 %v4182
        %v4247 = vunpack.c.l.b16 %v4183
        %v4248 = vunpack.c.l.b16 %v4184
        %v4249 = vunpack.c.l.b16 %v4185
        %v4250 = vunpack.c.l.b16 %v4186
        %v4251 = vunpack.c.l.b16 %v4187
        %v4252 = vunpack.c.l.b16 %v4188
        %v4253 = vunpack.c.l.b16 %v4189
        %v4254 = vunpack.c.l.b16 %v4190
        %v4255 = vunpack.c.l.b16 %v4191
        %v4256 = vunpack.c.l.b16 %v4192
        %v4257 = vunpack.c.l.b16 %v4193
        %v4258 = vunpack.c.l.b16 %v4194
        %v4259 = vunpack.c.l.b16 %v4195
        %v4260 = vunpack.c.l.b16 %v4196
        %v4261 = vpack.c.b16 %v4230, %v4229
        %v4262 = vpack.c.b16 %v4232, %v4231
        %v4263 = vpack.c.b16 %v4234, %v4233
        %v4264 = vpack.c.b16 %v4236, %v4235
        %v4265 = vpack.c.b16 %v4238, %v4237
        %v4266 = vpack.c.b16 %v4240, %v4239
        %v4267 = vpack.c.b16 %v4242, %v4241
        %v4268 = vpack.c.b16 %v4244, %v4243
        %v4269 = vpack.c.b16 %v4246, %v4245
        %v4270 = vpack.c.b16 %v4248, %v4247
        %v4271 = vpack.c.b16 %v4250, %v4249
        %v4272 = vpack.c.b16 %v4252, %v4251
        %v4273 = vpack.c.b16 %v4254, %v4253
        %v4274 = vpack.c.b16 %v4256, %v4255
        %v4275 = vpack.c.b16 %v4258, %v4257
        %v4276 = vpack.c.b16 %v4260, %v4259
        %4293 = vmatprep.subr.bf16.mxu0 0
        %4294 = vmatpush1.bf16.msra.mxu0 %v4268
        %4295 = vmatprep.subr.bf16.mxu0 0
        %4296 = vmatpush1.bf16.msra.mxu0 %v4267
        %4297 = vmatprep.subr.bf16.mxu0 0
        %4298 = vmatpush1.bf16.msra.mxu0 %v4266
        %4299 = vmatprep.subr.bf16.mxu0 0
        %4300 = vmatpush1.bf16.msra.mxu0 %v4265
        %4301 = vmatprep.subr.bf16.mxu0 0
        %4302 = vmatpush1.bf16.msra.mxu0 %v4264
        %4303 = vmatprep.subr.bf16.mxu0 0
        %4304 = vmatpush1.bf16.msra.mxu0 %v4263
        %4305 = vmatprep.subr.bf16.mxu0 0
        %4306 = vmatpush1.bf16.msra.mxu0 %v4262
        %4307 = vmatprep.subr.bf16.mxu0 0
        %4308 = vmatpush1.bf16.msra.mxu0 %v4261
        %4309 = vmatprep.subr.bf16.mxu0 0
        %4310 = vmatpush2.bf16.msra.mxu0 %v4276
        %4311 = vmatprep.subr.bf16.mxu0 0
        %4312 = vmatpush2.bf16.msra.mxu0 %v4275
        %4313 = vmatprep.subr.bf16.mxu0 0
        %4314 = vmatpush2.bf16.msra.mxu0 %v4274
        %4315 = vmatprep.subr.bf16.mxu0 0
        %4316 = vmatpush2.bf16.msra.mxu0 %v4273
        %4317 = vmatprep.subr.bf16.mxu0 0
        %4318 = vmatpush2.bf16.msra.mxu0 %v4272
        %4319 = vmatprep.subr.bf16.mxu0 0
        %4320 = vmatpush2.bf16.msra.mxu0 %v4271
        %4321 = vmatprep.subr.bf16.mxu0 0
        %4322 = vmatpush2.bf16.msra.mxu0 %v4270
        %4323 = vmatprep.subr.bf16.mxu0 0
        %4324 = vmatpush2.bf16.msra.mxu0 %v4269
        %4325 = vmatprep.mubr.bf16.mxu0 %v3650
        %4326 = vmatmul.mubr.bf16.gmra.mxu0 %v3649
        %v4327 = vpop.f32.mrf.mxu0
        %v4328 = vadd.f32 0.0, %v4327
        %v4329 = vpop.f32.mrf.mxu0
        %v4330 = vpop.f32.mrf.mxu0
        %v4331 = vadd.f32 0.0, %v4330
        %v4332 = vpop.f32.mrf.mxu0
        %4333 = vdwg.mxu0
        %v4334 = vmax.f32 %v4162, %v4328
        %v4335 = vmax.f32 %v4163, %v4331
        %v4336 = vpack.c.bf16 %v4335, %v4334
        %v4337 = vld [vmem:[#allocation12] sm:$0xf]
        %v4338 = vld [vmem:[#allocation12 + $0x4] sm:$0xf]
        %v4339 = vld [vmem:[#allocation12 + $0x8] sm:$0xf]
        %v4340 = vld [vmem:[#allocation12 + $0xc] sm:$0xf]
        %v4341 = vld [vmem:[#allocation12 + $0x10] sm:$0xf]
        %v4342 = vld [vmem:[#allocation12 + $0x14] sm:$0xf]
        %v4343 = vld [vmem:[#allocation12 + $0x18] sm:$0xf]
        %v4344 = vld [vmem:[#allocation12 + $0x1c] sm:$0xf]
        %v4353 = vunpack.c.l.b16 %v4337
        %v4354 = vunpack.c.l.b16 %v4338
        %v4355 = vunpack.c.l.b16 %v4339
        %v4356 = vunpack.c.l.b16 %v4340
        %v4357 = vunpack.c.l.b16 %v4341
        %v4358 = vunpack.c.l.b16 %v4342
        %v4359 = vunpack.c.l.b16 %v4343
        %v4360 = vunpack.c.l.b16 %v4344
        %v4361 = vpack.c.b16 %v4354, %v4353
        %v4362 = vpack.c.b16 %v4356, %v4355
        %v4363 = vpack.c.b16 %v4358, %v4357
        %v4364 = vpack.c.b16 %v4360, %v4359
        %vm4369 = vcmask 523264
        %v4371 = vsel %vm4369, %v4336, 0
        %4373 = vmatprep.subr.bf16.mxu0 0
        %4374 = vmatpush1.bf16.msra.mxu0 0
        %4375 = vmatprep.subr.bf16.mxu0 0
        %4376 = vmatpush1.bf16.msra.mxu0 0
        %4377 = vmatprep.subr.bf16.mxu0 0
        %4378 = vmatpush1.bf16.msra.mxu0 0
        %4379 = vmatprep.subr.bf16.mxu0 0
        %4380 = vmatpush1.bf16.msra.mxu0 0
        %4381 = vmatprep.subr.bf16.mxu0 0
        %4382 = vmatpush1.bf16.msra.mxu0 %v4364
        %4383 = vmatprep.subr.bf16.mxu0 0
        %4384 = vmatpush1.bf16.msra.mxu0 %v4363
        %4385 = vmatprep.subr.bf16.mxu0 0
        %4386 = vmatpush1.bf16.msra.mxu0 %v4362
        %4387 = vmatprep.subr.bf16.mxu0 0
        %4388 = vmatpush1.bf16.msra.mxu0 %v4361
        %4389 = vmatprep.subr.bf16.mxu0 0
        %4390 = vmatpush2.bf16.msra.mxu0 0
        %4391 = vmatprep.subr.bf16.mxu0 0
        %4392 = vmatpush2.bf16.msra.mxu0 0
        %4393 = vmatprep.subr.bf16.mxu0 0
        %4394 = vmatpush2.bf16.msra.mxu0 0
        %4395 = vmatprep.subr.bf16.mxu0 0
        %4396 = vmatpush2.bf16.msra.mxu0 0
        %4397 = vmatprep.subr.bf16.mxu0 0
        %4398 = vmatpush2.bf16.msra.mxu0 0
        %4399 = vmatprep.subr.bf16.mxu0 0
        %4400 = vmatpush2.bf16.msra.mxu0 0
        %4401 = vmatprep.subr.bf16.mxu0 0
        %4402 = vmatpush2.bf16.msra.mxu0 0
        %4403 = vmatprep.subr.bf16.mxu0 0
        %4404 = vmatpush2.bf16.msra.mxu0 0
        %4405 = vmatprep.mubr.bf16.mxu0 0
        %4406 = vmatmul.mubr.bf16.gmra.mxu0 %v4371
        %v4407 = vpop.f32.mrf.mxu0
        %v4408 = vadd.f32 0.0, %v4407
        %v4409 = vpop.f32.mrf.mxu0
        %v4410 = vpop.f32.mrf.mxu0
        %v4411 = vadd.f32 0.0, %v4410
        %v4412 = vpop.f32.mrf.mxu0
        %4413 = vdwg.mxu0
        %v4414 = vpack.c.bf16 %v4411, %v4408
        %v4415 = vld [vmem:[#allocation9] sm:$0xf]
        %v4416 = vld [vmem:[#allocation9 + $0x4] sm:$0xf]
        %v4417 = vld [vmem:[#allocation9 + $0x8] sm:$0xf]
        %v4418 = vld [vmem:[#allocation9 + $0xc] sm:$0xf]
        %s4419 = scalar_lea.vmem [#allocation12], 32
        %v4420 = vld [vmem:[%s4419] sm:$0xf]
        %v4421 = vld [vmem:[%s4419 + $0x4] sm:$0xf]
        %v4422 = vld [vmem:[%s4419 + $0x8] sm:$0xf]
        %v4423 = vld [vmem:[%s4419 + $0xc] sm:$0xf]
        %v4424 = vld [vmem:[%s4419 + $0x10] sm:$0xf]
        %v4425 = vld [vmem:[%s4419 + $0x14] sm:$0xf]
        %v4426 = vld [vmem:[%s4419 + $0x18] sm:$0xf]
        %v4427 = vld [vmem:[%s4419 + $0x1c] sm:$0xf]
        %v4436 = vunpack.c.l.b16 %v4420
        %v4437 = vunpack.c.l.b16 %v4421
        %v4438 = vunpack.c.l.b16 %v4422
        %v4439 = vunpack.c.l.b16 %v4423
        %v4440 = vunpack.c.l.b16 %v4424
        %v4441 = vunpack.c.l.b16 %v4425
        %v4442 = vunpack.c.l.b16 %v4426
        %v4443 = vunpack.c.l.b16 %v4427
        %v4444 = vpack.c.b16 %v4437, %v4436
        %v4445 = vpack.c.b16 %v4439, %v4438
        %v4446 = vpack.c.b16 %v4441, %v4440
        %v4447 = vpack.c.b16 %v4443, %v4442
        %4452 = vmatprep.subr.bf16.mxu0 0
        %4453 = vmatpush1.bf16.msra.mxu0 0
        %4454 = vmatprep.subr.bf16.mxu0 0
        %4455 = vmatpush1.bf16.msra.mxu0 0
        %4456 = vmatprep.subr.bf16.mxu0 0
        %4457 = vmatpush1.bf16.msra.mxu0 0
        %4458 = vmatprep.subr.bf16.mxu0 0
        %4459 = vmatpush1.bf16.msra.mxu0 0
        %4460 = vmatprep.subr.bf16.mxu0 0
        %4461 = vmatpush1.bf16.msra.mxu0 %v4447
        %4462 = vmatprep.subr.bf16.mxu0 0
        %4463 = vmatpush1.bf16.msra.mxu0 %v4446
        %4464 = vmatprep.subr.bf16.mxu0 0
        %4465 = vmatpush1.bf16.msra.mxu0 %v4445
        %4466 = vmatprep.subr.bf16.mxu0 0
        %4467 = vmatpush1.bf16.msra.mxu0 %v4444
        %4468 = vmatprep.subr.bf16.mxu0 0
        %4469 = vmatpush2.bf16.msra.mxu0 0
        %4470 = vmatprep.subr.bf16.mxu0 0
        %4471 = vmatpush2.bf16.msra.mxu0 0
        %4472 = vmatprep.subr.bf16.mxu0 0
        %4473 = vmatpush2.bf16.msra.mxu0 0
        %4474 = vmatprep.subr.bf16.mxu0 0
        %4475 = vmatpush2.bf16.msra.mxu0 0
        %4476 = vmatprep.subr.bf16.mxu0 0
        %4477 = vmatpush2.bf16.msra.mxu0 0
        %4478 = vmatprep.subr.bf16.mxu0 0
        %4479 = vmatpush2.bf16.msra.mxu0 0
        %4480 = vmatprep.subr.bf16.mxu0 0
        %4481 = vmatpush2.bf16.msra.mxu0 0
        %4482 = vmatprep.subr.bf16.mxu0 0
        %4483 = vmatpush2.bf16.msra.mxu0 0
        %4484 = vmatprep.mubr.bf16.mxu0 0
        %4485 = vmatmul.mubr.bf16.gmra.mxu0 %v4371
        %v4486 = vpop.f32.mrf.mxu0
        %v4487 = vadd.f32 0.0, %v4486
        %v4488 = vpop.f32.mrf.mxu0
        %v4489 = vpop.f32.mrf.mxu0
        %v4490 = vadd.f32 0.0, %v4489
        %v4491 = vpop.f32.mrf.mxu0
        %4492 = vdwg.mxu0
        %v4493 = vpack.c.bf16 %v4490, %v4487
        %s4494 = scalar_lea.vmem [#allocation9], 16
        %v4495 = vld [vmem:[%s4494] sm:$0xf]
        %v4496 = vld [vmem:[%s4494 + $0x4] sm:$0xf]
        %v4497 = vld [vmem:[%s4494 + $0x8] sm:$0xf]
        %v4498 = vld [vmem:[%s4494 + $0xc] sm:$0xf]
        %v4503 = vunpack.c.l.b16 %v4495
        %v4504 = vunpack.c.l.b16 %v4496
        %v4505 = vunpack.c.l.b16 %v4497
        %v4506 = vunpack.c.l.b16 %v4498
        %v4507 = vpack.c.b16 %v4504, %v4503
        %v4508 = vpack.c.b16 %v4506, %v4505
        %vm4509 = vcmask 130048
        %v4511 = vsel %vm4509, %v4507, 0
        %v4514 = vsel %vm4509, %v4508, 0
        %4516 = vmatprep.subr.bf16.mxu0 0
        %4517 = vmatpush1.bf16.msra.mxu0 0
        %4518 = vmatprep.subr.bf16.mxu0 0
        %4519 = vmatpush1.bf16.msra.mxu0 0
        %4520 = vmatprep.subr.bf16.mxu0 0
        %4521 = vmatpush1.bf16.msra.mxu0 0
        %4522 = vmatprep.subr.bf16.mxu0 0
        %4523 = vmatpush1.bf16.msra.mxu0 0
        %4524 = vmatprep.subr.bf16.mxu0 0
        %4525 = vmatpush1.bf16.msra.mxu0 0
        %4526 = vmatprep.subr.bf16.mxu0 0
        %4527 = vmatpush1.bf16.msra.mxu0 0
        %4528 = vmatprep.subr.bf16.mxu0 0
        %4529 = vmatpush1.bf16.msra.mxu0 0
        %4530 = vmatprep.subr.bf16.mxu0 0
        %4531 = vmatpush1.bf16.msra.mxu0 %v4493
        %4532 = vmatprep.subr.bf16.mxu0 0
        %4533 = vmatpush2.bf16.msra.mxu0 0
        %4534 = vmatprep.subr.bf16.mxu0 0
        %4535 = vmatpush2.bf16.msra.mxu0 0
        %4536 = vmatprep.subr.bf16.mxu0 0
        %4537 = vmatpush2.bf16.msra.mxu0 0
        %4538 = vmatprep.subr.bf16.mxu0 0
        %4539 = vmatpush2.bf16.msra.mxu0 0
        %4540 = vmatprep.subr.bf16.mxu0 0
        %4541 = vmatpush2.bf16.msra.mxu0 0
        %4542 = vmatprep.subr.bf16.mxu0 0
        %4543 = vmatpush2.bf16.msra.mxu0 0
        %4544 = vmatprep.subr.bf16.mxu0 0
        %4545 = vmatpush2.bf16.msra.mxu0 0
        %4546 = vmatprep.subr.bf16.mxu0 0
        %4547 = vmatpush2.bf16.msra.mxu0 0
        %4548 = vmatprep.mubr.bf16.mxu0 0
        %4549 = vmatmul.mubr.bf16.gmra.mxu0 %v4511
        %v4550 = vpop.f32.mrf.mxu0
        %v4551 = vadd.f32 0.0, %v4550
        %v4552 = vpop.f32.mrf.mxu0
        %v4553 = vpop.f32.mrf.mxu0
        %v4554 = vadd.f32 0.0, %v4553
        %v4555 = vpop.f32.mrf.mxu0
        %4556 = vmatprep.mubr.bf16.mxu0 0
        %4557 = vmatmul.mubr.bf16.gmra.mxu0 %v4514
        %v4558 = vpop.f32.mrf.mxu0
        %v4559 = vadd.f32 0.0, %v4558
        %v4560 = vpop.f32.mrf.mxu0
        %v4561 = vpop.f32.mrf.mxu0
        %v4562 = vadd.f32 0.0, %v4561
        %v4563 = vpop.f32.mrf.mxu0
        %4564 = vdwg.mxu0
        %v4569 = vunpack.c.l.b16 %v4415
        %v4570 = vunpack.c.l.b16 %v4416
        %v4571 = vunpack.c.l.b16 %v4417
        %v4572 = vunpack.c.l.b16 %v4418
        %v4573 = vpack.c.b16 %v4570, %v4569
        %v4574 = vpack.c.b16 %v4572, %v4571
        %v4576 = vsel %vm4509, %v4573, 0
        %v4579 = vsel %vm4509, %v4574, 0
        %4581 = vmatprep.subr.bf16.mxu0 0
        %4582 = vmatpush1.bf16.msra.mxu0 0
        %4583 = vmatprep.subr.bf16.mxu0 0
        %4584 = vmatpush1.bf16.msra.mxu0 0
        %4585 = vmatprep.subr.bf16.mxu0 0
        %4586 = vmatpush1.bf16.msra.mxu0 0
        %4587 = vmatprep.subr.bf16.mxu0 0
        %4588 = vmatpush1.bf16.msra.mxu0 0
        %4589 = vmatprep.subr.bf16.mxu0 0
        %4590 = vmatpush1.bf16.msra.mxu0 0
        %4591 = vmatprep.subr.bf16.mxu0 0
        %4592 = vmatpush1.bf16.msra.mxu0 0
        %4593 = vmatprep.subr.bf16.mxu0 0
        %4594 = vmatpush1.bf16.msra.mxu0 0
        %4595 = vmatprep.subr.bf16.mxu0 0
        %4596 = vmatpush1.bf16.msra.mxu0 %v4414
        %4597 = vmatprep.subr.bf16.mxu0 0
        %4598 = vmatpush2.bf16.msra.mxu0 0
        %4599 = vmatprep.subr.bf16.mxu0 0
        %4600 = vmatpush2.bf16.msra.mxu0 0
        %4601 = vmatprep.subr.bf16.mxu0 0
        %4602 = vmatpush2.bf16.msra.mxu0 0
        %4603 = vmatprep.subr.bf16.mxu0 0
        %4604 = vmatpush2.bf16.msra.mxu0 0
        %4605 = vmatprep.subr.bf16.mxu0 0
        %4606 = vmatpush2.bf16.msra.mxu0 0
        %4607 = vmatprep.subr.bf16.mxu0 0
        %4608 = vmatpush2.bf16.msra.mxu0 0
        %4609 = vmatprep.subr.bf16.mxu0 0
        %4610 = vmatpush2.bf16.msra.mxu0 0
        %4611 = vmatprep.subr.bf16.mxu0 0
        %4612 = vmatpush2.bf16.msra.mxu0 0
        %4613 = vmatprep.mubr.bf16.mxu0 0
        %4614 = vmatmul.mubr.bf16.gmra.mxu0 %v4576
        %v4615 = vpop.f32.mrf.mxu0
        %v4616 = vadd.f32 %v4551, %v4615
        %v4617 = vpop.f32.mrf.mxu0
        %v4618 = vpop.f32.mrf.mxu0
        %v4619 = vadd.f32 %v4554, %v4618
        %v4620 = vpop.f32.mrf.mxu0
        %4621 = vmatprep.mubr.bf16.mxu0 0
        %4622 = vmatmul.mubr.bf16.gmra.mxu0 %v4579
        %v4623 = vpop.f32.mrf.mxu0
        %v4624 = vadd.f32 %v4559, %v4623
        %v4625 = vpop.f32.mrf.mxu0
        %v4626 = vpop.f32.mrf.mxu0
        %v4627 = vadd.f32 %v4562, %v4626
        %v4628 = vpop.f32.mrf.mxu0
        %4629 = vdwg.mxu0
        %s4630 = scalar_lea.vmem [#allocation12], 64
        %v4631 = vld [vmem:[%s4630] sm:$0xf]
        %v4632 = vld [vmem:[%s4630 + $0x4] sm:$0xf]
        %v4633 = vld [vmem:[%s4630 + $0x8] sm:$0xf]
        %v4634 = vld [vmem:[%s4630 + $0xc] sm:$0xf]
        %v4635 = vld [vmem:[%s4630 + $0x10] sm:$0xf]
        %v4636 = vld [vmem:[%s4630 + $0x14] sm:$0xf]
        %v4637 = vld [vmem:[%s4630 + $0x18] sm:$0xf]
        %v4638 = vld [vmem:[%s4630 + $0x1c] sm:$0xf]
        %v4647 = vunpack.c.l.b16 %v4631
        %v4648 = vunpack.c.l.b16 %v4632
        %v4649 = vunpack.c.l.b16 %v4633
        %v4650 = vunpack.c.l.b16 %v4634
        %v4651 = vunpack.c.l.b16 %v4635
        %v4652 = vunpack.c.l.b16 %v4636
        %v4653 = vunpack.c.l.b16 %v4637
        %v4654 = vunpack.c.l.b16 %v4638
        %v4655 = vpack.c.b16 %v4648, %v4647
        %v4656 = vpack.c.b16 %v4650, %v4649
        %v4657 = vpack.c.b16 %v4652, %v4651
        %v4658 = vpack.c.b16 %v4654, %v4653
        %4663 = vmatprep.subr.bf16.mxu0 0
        %4664 = vmatpush1.bf16.msra.mxu0 0
        %4665 = vmatprep.subr.bf16.mxu0 0
        %4666 = vmatpush1.bf16.msra.mxu0 0
        %4667 = vmatprep.subr.bf16.mxu0 0
        %4668 = vmatpush1.bf16.msra.mxu0 0
        %4669 = vmatprep.subr.bf16.mxu0 0
        %4670 = vmatpush1.bf16.msra.mxu0 0
        %4671 = vmatprep.subr.bf16.mxu0 0
        %4672 = vmatpush1.bf16.msra.mxu0 %v4658
        %4673 = vmatprep.subr.bf16.mxu0 0
        %4674 = vmatpush1.bf16.msra.mxu0 %v4657
        %4675 = vmatprep.subr.bf16.mxu0 0
        %4676 = vmatpush1.bf16.msra.mxu0 %v4656
        %4677 = vmatprep.subr.bf16.mxu0 0
        %4678 = vmatpush1.bf16.msra.mxu0 %v4655
        %4679 = vmatprep.subr.bf16.mxu0 0
        %4680 = vmatpush2.bf16.msra.mxu0 0
        %4681 = vmatprep.subr.bf16.mxu0 0
        %4682 = vmatpush2.bf16.msra.mxu0 0
        %4683 = vmatprep.subr.bf16.mxu0 0
        %4684 = vmatpush2.bf16.msra.mxu0 0
        %4685 = vmatprep.subr.bf16.mxu0 0
        %4686 = vmatpush2.bf16.msra.mxu0 0
        %4687 = vmatprep.subr.bf16.mxu0 0
        %4688 = vmatpush2.bf16.msra.mxu0 0
        %4689 = vmatprep.subr.bf16.mxu0 0
        %4690 = vmatpush2.bf16.msra.mxu0 0
        %4691 = vmatprep.subr.bf16.mxu0 0
        %4692 = vmatpush2.bf16.msra.mxu0 0
        %4693 = vmatprep.subr.bf16.mxu0 0
        %4694 = vmatpush2.bf16.msra.mxu0 0
        %4695 = vmatprep.mubr.bf16.mxu0 0
        %4696 = vmatmul.mubr.bf16.gmra.mxu0 %v4371
        %v4697 = vpop.f32.mrf.mxu0
        %v4698 = vadd.f32 0.0, %v4697
        %v4699 = vpop.f32.mrf.mxu0
        %v4700 = vpop.f32.mrf.mxu0
        %v4701 = vadd.f32 0.0, %v4700
        %v4702 = vpop.f32.mrf.mxu0
        %4703 = vdwg.mxu0
        %v4704 = vpack.c.bf16 %v4701, %v4698
        %s4705 = scalar_lea.vmem [#allocation9], 32
        %v4706 = vld [vmem:[%s4705] sm:$0xf]
        %v4707 = vld [vmem:[%s4705 + $0x4] sm:$0xf]
        %v4708 = vld [vmem:[%s4705 + $0x8] sm:$0xf]
        %v4709 = vld [vmem:[%s4705 + $0xc] sm:$0xf]
        %v4714 = vunpack.c.l.b16 %v4706
        %v4715 = vunpack.c.l.b16 %v4707
        %v4716 = vunpack.c.l.b16 %v4708
        %v4717 = vunpack.c.l.b16 %v4709
        %v4718 = vpack.c.b16 %v4715, %v4714
        %v4719 = vpack.c.b16 %v4717, %v4716
        %v4721 = vsel %vm4509, %v4718, 0
        %v4724 = vsel %vm4509, %v4719, 0
        %4726 = vmatprep.subr.bf16.mxu0 0
        %4727 = vmatpush1.bf16.msra.mxu0 0
        %4728 = vmatprep.subr.bf16.mxu0 0
        %4729 = vmatpush1.bf16.msra.mxu0 0
        %4730 = vmatprep.subr.bf16.mxu0 0
        %4731 = vmatpush1.bf16.msra.mxu0 0
        %4732 = vmatprep.subr.bf16.mxu0 0
        %4733 = vmatpush1.bf16.msra.mxu0 0
        %4734 = vmatprep.subr.bf16.mxu0 0
        %4735 = vmatpush1.bf16.msra.mxu0 0
        %4736 = vmatprep.subr.bf16.mxu0 0
        %4737 = vmatpush1.bf16.msra.mxu0 0
        %4738 = vmatprep.subr.bf16.mxu0 0
        %4739 = vmatpush1.bf16.msra.mxu0 0
        %4740 = vmatprep.subr.bf16.mxu0 0
        %4741 = vmatpush1.bf16.msra.mxu0 %v4704
        %4742 = vmatprep.subr.bf16.mxu0 0
        %4743 = vmatpush2.bf16.msra.mxu0 0
        %4744 = vmatprep.subr.bf16.mxu0 0
        %4745 = vmatpush2.bf16.msra.mxu0 0
        %4746 = vmatprep.subr.bf16.mxu0 0
        %4747 = vmatpush2.bf16.msra.mxu0 0
        %4748 = vmatprep.subr.bf16.mxu0 0
        %4749 = vmatpush2.bf16.msra.mxu0 0
        %4750 = vmatprep.subr.bf16.mxu0 0
        %4751 = vmatpush2.bf16.msra.mxu0 0
        %4752 = vmatprep.subr.bf16.mxu0 0
        %4753 = vmatpush2.bf16.msra.mxu0 0
        %4754 = vmatprep.subr.bf16.mxu0 0
        %4755 = vmatpush2.bf16.msra.mxu0 0
        %4756 = vmatprep.subr.bf16.mxu0 0
        %4757 = vmatpush2.bf16.msra.mxu0 0
        %4758 = vmatprep.mubr.bf16.mxu0 0
        %4759 = vmatmul.mubr.bf16.gmra.mxu0 %v4721
        %v4760 = vpop.f32.mrf.mxu0
        %v4761 = vadd.f32 0.0, %v4760
        %v4762 = vpop.f32.mrf.mxu0
        %v4763 = vpop.f32.mrf.mxu0
        %v4764 = vadd.f32 0.0, %v4763
        %v4765 = vpop.f32.mrf.mxu0
        %4766 = vmatprep.mubr.bf16.mxu0 0
        %4767 = vmatmul.mubr.bf16.gmra.mxu0 %v4724
        %v4768 = vpop.f32.mrf.mxu0
        %v4769 = vadd.f32 0.0, %v4768
        %v4770 = vpop.f32.mrf.mxu0
        %v4771 = vpop.f32.mrf.mxu0
        %v4772 = vadd.f32 0.0, %v4771
        %v4773 = vpop.f32.mrf.mxu0
        %4774 = vdwg.mxu0
        %v4775 = vadd.f32 %v4616, %v4761
        %v4776 = vadd.f32 %v4619, %v4764
        %v4777 = vadd.f32 %v4624, %v4769
        %v4778 = vadd.f32 %v4627, %v4772
        %s4779 = scalar_lea.vmem [#allocation12], 96
        %v4780 = vld [vmem:[%s4779] sm:$0xf]
        %v4781 = vld [vmem:[%s4779 + $0x4] sm:$0xf]
        %v4782 = vld [vmem:[%s4779 + $0x8] sm:$0xf]
        %v4783 = vld [vmem:[%s4779 + $0xc] sm:$0xf]
        %v4784 = vld [vmem:[%s4779 + $0x10] sm:$0xf]
        %v4785 = vld [vmem:[%s4779 + $0x14] sm:$0xf]
        %v4786 = vld [vmem:[%s4779 + $0x18] sm:$0xf]
        %v4787 = vld [vmem:[%s4779 + $0x1c] sm:$0xf]
        %v4796 = vunpack.c.l.b16 %v4780
        %v4797 = vunpack.c.l.b16 %v4781
        %v4798 = vunpack.c.l.b16 %v4782
        %v4799 = vunpack.c.l.b16 %v4783
        %v4800 = vunpack.c.l.b16 %v4784
        %v4801 = vunpack.c.l.b16 %v4785
        %v4802 = vunpack.c.l.b16 %v4786
        %v4803 = vunpack.c.l.b16 %v4787
        %v4804 = vpack.c.b16 %v4797, %v4796
        %v4805 = vpack.c.b16 %v4799, %v4798
        %v4806 = vpack.c.b16 %v4801, %v4800
        %v4807 = vpack.c.b16 %v4803, %v4802
        %4812 = vmatprep.subr.bf16.mxu0 0
        %4813 = vmatpush1.bf16.msra.mxu0 0
        %4814 = vmatprep.subr.bf16.mxu0 0
        %4815 = vmatpush1.bf16.msra.mxu0 0
        %4816 = vmatprep.subr.bf16.mxu0 0
        %4817 = vmatpush1.bf16.msra.mxu0 0
        %4818 = vmatprep.subr.bf16.mxu0 0
        %4819 = vmatpush1.bf16.msra.mxu0 0
        %4820 = vmatprep.subr.bf16.mxu0 0
        %4821 = vmatpush1.bf16.msra.mxu0 %v4807
        %4822 = vmatprep.subr.bf16.mxu0 0
        %4823 = vmatpush1.bf16.msra.mxu0 %v4806
        %4824 = vmatprep.subr.bf16.mxu0 0
        %4825 = vmatpush1.bf16.msra.mxu0 %v4805
        %4826 = vmatprep.subr.bf16.mxu0 0
        %4827 = vmatpush1.bf16.msra.mxu0 %v4804
        %4828 = vmatprep.subr.bf16.mxu0 0
        %4829 = vmatpush2.bf16.msra.mxu0 0
        %4830 = vmatprep.subr.bf16.mxu0 0
        %4831 = vmatpush2.bf16.msra.mxu0 0
        %4832 = vmatprep.subr.bf16.mxu0 0
        %4833 = vmatpush2.bf16.msra.mxu0 0
        %4834 = vmatprep.subr.bf16.mxu0 0
        %4835 = vmatpush2.bf16.msra.mxu0 0
        %4836 = vmatprep.subr.bf16.mxu0 0
        %4837 = vmatpush2.bf16.msra.mxu0 0
        %4838 = vmatprep.subr.bf16.mxu0 0
        %4839 = vmatpush2.bf16.msra.mxu0 0
        %4840 = vmatprep.subr.bf16.mxu0 0
        %4841 = vmatpush2.bf16.msra.mxu0 0
        %4842 = vmatprep.subr.bf16.mxu0 0
        %4843 = vmatpush2.bf16.msra.mxu0 0
        %4844 = vmatprep.mubr.bf16.mxu0 0
        %4845 = vmatmul.mubr.bf16.gmra.mxu0 %v4371
        %v4846 = vpop.f32.mrf.mxu0
        %v4847 = vadd.f32 0.0, %v4846
        %v4848 = vpop.f32.mrf.mxu0
        %v4849 = vpop.f32.mrf.mxu0
        %v4850 = vadd.f32 0.0, %v4849
        %v4851 = vpop.f32.mrf.mxu0
        %4852 = vdwg.mxu0
        %v4853 = vpack.c.bf16 %v4850, %v4847
        %s4854 = scalar_lea.vmem [#allocation9], 48
        %v4855 = vld [vmem:[%s4854] sm:$0xf]
        %v4856 = vld [vmem:[%s4854 + $0x4] sm:$0xf]
        %v4857 = vld [vmem:[%s4854 + $0x8] sm:$0xf]
        %v4858 = vld [vmem:[%s4854 + $0xc] sm:$0xf]
        %v4863 = vunpack.c.l.b16 %v4855
        %v4864 = vunpack.c.l.b16 %v4856
        %v4865 = vunpack.c.l.b16 %v4857
        %v4866 = vunpack.c.l.b16 %v4858
        %v4867 = vpack.c.b16 %v4864, %v4863
        %v4868 = vpack.c.b16 %v4866, %v4865
        %v4870 = vsel %vm4509, %v4867, 0
        %v4873 = vsel %vm4509, %v4868, 0
        %4875 = vmatprep.subr.bf16.mxu0 0
        %4876 = vmatpush1.bf16.msra.mxu0 0
        %4877 = vmatprep.subr.bf16.mxu0 0
        %4878 = vmatpush1.bf16.msra.mxu0 0
        %4879 = vmatprep.subr.bf16.mxu0 0
        %4880 = vmatpush1.bf16.msra.mxu0 0
        %4881 = vmatprep.subr.bf16.mxu0 0
        %4882 = vmatpush1.bf16.msra.mxu0 0
        %4883 = vmatprep.subr.bf16.mxu0 0
        %4884 = vmatpush1.bf16.msra.mxu0 0
        %4885 = vmatprep.subr.bf16.mxu0 0
        %4886 = vmatpush1.bf16.msra.mxu0 0
        %4887 = vmatprep.subr.bf16.mxu0 0
        %4888 = vmatpush1.bf16.msra.mxu0 0
        %4889 = vmatprep.subr.bf16.mxu0 0
        %4890 = vmatpush1.bf16.msra.mxu0 %v4853
        %4891 = vmatprep.subr.bf16.mxu0 0
        %4892 = vmatpush2.bf16.msra.mxu0 0
        %4893 = vmatprep.subr.bf16.mxu0 0
        %4894 = vmatpush2.bf16.msra.mxu0 0
        %4895 = vmatprep.subr.bf16.mxu0 0
        %4896 = vmatpush2.bf16.msra.mxu0 0
        %4897 = vmatprep.subr.bf16.mxu0 0
        %4898 = vmatpush2.bf16.msra.mxu0 0
        %4899 = vmatprep.subr.bf16.mxu0 0
        %4900 = vmatpush2.bf16.msra.mxu0 0
        %4901 = vmatprep.subr.bf16.mxu0 0
        %4902 = vmatpush2.bf16.msra.mxu0 0
        %4903 = vmatprep.subr.bf16.mxu0 0
        %4904 = vmatpush2.bf16.msra.mxu0 0
        %4905 = vmatprep.subr.bf16.mxu0 0
        %4906 = vmatpush2.bf16.msra.mxu0 0
        %4907 = vmatprep.mubr.bf16.mxu0 0
        %4908 = vmatmul.mubr.bf16.gmra.mxu0 %v4870
        %v4909 = vpop.f32.mrf.mxu0
        %v4910 = vadd.f32 0.0, %v4909
        %v4911 = vpop.f32.mrf.mxu0
        %v4912 = vpop.f32.mrf.mxu0
        %v4913 = vadd.f32 0.0, %v4912
        %v4914 = vpop.f32.mrf.mxu0
        %4915 = vmatprep.mubr.bf16.mxu0 0
        %4916 = vmatmul.mubr.bf16.gmra.mxu0 %v4873
        %v4917 = vpop.f32.mrf.mxu0
        %v4918 = vadd.f32 0.0, %v4917
        %v4919 = vpop.f32.mrf.mxu0
        %v4920 = vpop.f32.mrf.mxu0
        %v4921 = vadd.f32 0.0, %v4920
        %v4922 = vpop.f32.mrf.mxu0
        %4923 = vdwg.mxu0
        %v4924 = vadd.f32 %v4775, %v4910
        %v4925 = vadd.f32 %v4776, %v4913
        %v4926 = vadd.f32 %v4777, %v4918
        %v4927 = vadd.f32 %v4778, %v4921
        %s4928 = scalar_lea.vmem [#allocation12], 128
        %v4929 = vld [vmem:[%s4928] sm:$0xf]
        %v4930 = vld [vmem:[%s4928 + $0x4] sm:$0xf]
        %v4931 = vld [vmem:[%s4928 + $0x8] sm:$0xf]
        %v4932 = vld [vmem:[%s4928 + $0xc] sm:$0xf]
        %v4933 = vld [vmem:[%s4928 + $0x10] sm:$0xf]
        %v4934 = vld [vmem:[%s4928 + $0x14] sm:$0xf]
        %v4935 = vld [vmem:[%s4928 + $0x18] sm:$0xf]
        %v4936 = vld [vmem:[%s4928 + $0x1c] sm:$0xf]
        %v4945 = vunpack.c.l.b16 %v4929
        %v4946 = vunpack.c.l.b16 %v4930
        %v4947 = vunpack.c.l.b16 %v4931
        %v4948 = vunpack.c.l.b16 %v4932
        %v4949 = vunpack.c.l.b16 %v4933
        %v4950 = vunpack.c.l.b16 %v4934
        %v4951 = vunpack.c.l.b16 %v4935
        %v4952 = vunpack.c.l.b16 %v4936
        %v4953 = vpack.c.b16 %v4946, %v4945
        %v4954 = vpack.c.b16 %v4948, %v4947
        %v4955 = vpack.c.b16 %v4950, %v4949
        %v4956 = vpack.c.b16 %v4952, %v4951
        %4961 = vmatprep.subr.bf16.mxu0 0
        %4962 = vmatpush1.bf16.msra.mxu0 0
        %4963 = vmatprep.subr.bf16.mxu0 0
        %4964 = vmatpush1.bf16.msra.mxu0 0
        %4965 = vmatprep.subr.bf16.mxu0 0
        %4966 = vmatpush1.bf16.msra.mxu0 0
        %4967 = vmatprep.subr.bf16.mxu0 0
        %4968 = vmatpush1.bf16.msra.mxu0 0
        %4969 = vmatprep.subr.bf16.mxu0 0
        %4970 = vmatpush1.bf16.msra.mxu0 %v4956
        %4971 = vmatprep.subr.bf16.mxu0 0
        %4972 = vmatpush1.bf16.msra.mxu0 %v4955
        %4973 = vmatprep.subr.bf16.mxu0 0
        %4974 = vmatpush1.bf16.msra.mxu0 %v4954
        %4975 = vmatprep.subr.bf16.mxu0 0
        %4976 = vmatpush1.bf16.msra.mxu0 %v4953
        %4977 = vmatprep.subr.bf16.mxu0 0
        %4978 = vmatpush2.bf16.msra.mxu0 0
        %4979 = vmatprep.subr.bf16.mxu0 0
        %4980 = vmatpush2.bf16.msra.mxu0 0
        %4981 = vmatprep.subr.bf16.mxu0 0
        %4982 = vmatpush2.bf16.msra.mxu0 0
        %4983 = vmatprep.subr.bf16.mxu0 0
        %4984 = vmatpush2.bf16.msra.mxu0 0
        %4985 = vmatprep.subr.bf16.mxu0 0
        %4986 = vmatpush2.bf16.msra.mxu0 0
        %4987 = vmatprep.subr.bf16.mxu0 0
        %4988 = vmatpush2.bf16.msra.mxu0 0
        %4989 = vmatprep.subr.bf16.mxu0 0
        %4990 = vmatpush2.bf16.msra.mxu0 0
        %4991 = vmatprep.subr.bf16.mxu0 0
        %4992 = vmatpush2.bf16.msra.mxu0 0
        %4993 = vmatprep.mubr.bf16.mxu0 0
        %4994 = vmatmul.mubr.bf16.gmra.mxu0 %v4371
        %v4995 = vpop.f32.mrf.mxu0
        %v4996 = vadd.f32 0.0, %v4995
        %v4997 = vpop.f32.mrf.mxu0
        %v4998 = vpop.f32.mrf.mxu0
        %v4999 = vadd.f32 0.0, %v4998
        %v5000 = vpop.f32.mrf.mxu0
        %5001 = vdwg.mxu0
        %v5002 = vpack.c.bf16 %v4999, %v4996
        %s5003 = scalar_lea.vmem [#allocation9], 64
        %v5004 = vld [vmem:[%s5003] sm:$0xf]
        %v5005 = vld [vmem:[%s5003 + $0x4] sm:$0xf]
        %v5006 = vld [vmem:[%s5003 + $0x8] sm:$0xf]
        %v5007 = vld [vmem:[%s5003 + $0xc] sm:$0xf]
        %v5012 = vunpack.c.l.b16 %v5004
        %v5013 = vunpack.c.l.b16 %v5005
        %v5014 = vunpack.c.l.b16 %v5006
        %v5015 = vunpack.c.l.b16 %v5007
        %v5016 = vpack.c.b16 %v5013, %v5012
        %v5017 = vpack.c.b16 %v5015, %v5014
        %v5019 = vsel %vm4509, %v5016, 0
        %v5022 = vsel %vm4509, %v5017, 0
        %5024 = vmatprep.subr.bf16.mxu0 0
        %5025 = vmatpush1.bf16.msra.mxu0 0
        %5026 = vmatprep.subr.bf16.mxu0 0
        %5027 = vmatpush1.bf16.msra.mxu0 0
        %5028 = vmatprep.subr.bf16.mxu0 0
        %5029 = vmatpush1.bf16.msra.mxu0 0
        %5030 = vmatprep.subr.bf16.mxu0 0
        %5031 = vmatpush1.bf16.msra.mxu0 0
        %5032 = vmatprep.subr.bf16.mxu0 0
        %5033 = vmatpush1.bf16.msra.mxu0 0
        %5034 = vmatprep.subr.bf16.mxu0 0
        %5035 = vmatpush1.bf16.msra.mxu0 0
        %5036 = vmatprep.subr.bf16.mxu0 0
        %5037 = vmatpush1.bf16.msra.mxu0 0
        %5038 = vmatprep.subr.bf16.mxu0 0
        %5039 = vmatpush1.bf16.msra.mxu0 %v5002
        %5040 = vmatprep.subr.bf16.mxu0 0
        %5041 = vmatpush2.bf16.msra.mxu0 0
        %5042 = vmatprep.subr.bf16.mxu0 0
        %5043 = vmatpush2.bf16.msra.mxu0 0
        %5044 = vmatprep.subr.bf16.mxu0 0
        %5045 = vmatpush2.bf16.msra.mxu0 0
        %5046 = vmatprep.subr.bf16.mxu0 0
        %5047 = vmatpush2.bf16.msra.mxu0 0
        %5048 = vmatprep.subr.bf16.mxu0 0
        %5049 = vmatpush2.bf16.msra.mxu0 0
        %5050 = vmatprep.subr.bf16.mxu0 0
        %5051 = vmatpush2.bf16.msra.mxu0 0
        %5052 = vmatprep.subr.bf16.mxu0 0
        %5053 = vmatpush2.bf16.msra.mxu0 0
        %5054 = vmatprep.subr.bf16.mxu0 0
        %5055 = vmatpush2.bf16.msra.mxu0 0
        %5056 = vmatprep.mubr.bf16.mxu0 0
        %5057 = vmatmul.mubr.bf16.gmra.mxu0 %v5019
        %v5058 = vpop.f32.mrf.mxu0
        %v5059 = vadd.f32 0.0, %v5058
        %v5060 = vpop.f32.mrf.mxu0
        %v5061 = vpop.f32.mrf.mxu0
        %v5062 = vadd.f32 0.0, %v5061
        %v5063 = vpop.f32.mrf.mxu0
        %5064 = vmatprep.mubr.bf16.mxu0 0
        %5065 = vmatmul.mubr.bf16.gmra.mxu0 %v5022
        %v5066 = vpop.f32.mrf.mxu0
        %v5067 = vadd.f32 0.0, %v5066
        %v5068 = vpop.f32.mrf.mxu0
        %v5069 = vpop.f32.mrf.mxu0
        %v5070 = vadd.f32 0.0, %v5069
        %v5071 = vpop.f32.mrf.mxu0
        %5072 = vdwg.mxu0
        %v5073 = vadd.f32 %v4924, %v5059
        %v5074 = vadd.f32 %v4925, %v5062
        %v5075 = vadd.f32 %v4926, %v5067
        %v5076 = vadd.f32 %v4927, %v5070
        %s5077 = scalar_lea.vmem [#allocation12], 160
        %v5078 = vld [vmem:[%s5077] sm:$0xf]
        %v5079 = vld [vmem:[%s5077 + $0x4] sm:$0xf]
        %v5080 = vld [vmem:[%s5077 + $0x8] sm:$0xf]
        %v5081 = vld [vmem:[%s5077 + $0xc] sm:$0xf]
        %v5082 = vld [vmem:[%s5077 + $0x10] sm:$0xf]
        %v5083 = vld [vmem:[%s5077 + $0x14] sm:$0xf]
        %v5084 = vld [vmem:[%s5077 + $0x18] sm:$0xf]
        %v5085 = vld [vmem:[%s5077 + $0x1c] sm:$0xf]
        %v5094 = vunpack.c.l.b16 %v5078
        %v5095 = vunpack.c.l.b16 %v5079
        %v5096 = vunpack.c.l.b16 %v5080
        %v5097 = vunpack.c.l.b16 %v5081
        %v5098 = vunpack.c.l.b16 %v5082
        %v5099 = vunpack.c.l.b16 %v5083
        %v5100 = vunpack.c.l.b16 %v5084
        %v5101 = vunpack.c.l.b16 %v5085
        %v5102 = vpack.c.b16 %v5095, %v5094
        %v5103 = vpack.c.b16 %v5097, %v5096
        %v5104 = vpack.c.b16 %v5099, %v5098
        %v5105 = vpack.c.b16 %v5101, %v5100
        %5110 = vmatprep.subr.bf16.mxu0 0
        %5111 = vmatpush1.bf16.msra.mxu0 0
        %5112 = vmatprep.subr.bf16.mxu0 0
        %5113 = vmatpush1.bf16.msra.mxu0 0
        %5114 = vmatprep.subr.bf16.mxu0 0
        %5115 = vmatpush1.bf16.msra.mxu0 0
        %5116 = vmatprep.subr.bf16.mxu0 0
        %5117 = vmatpush1.bf16.msra.mxu0 0
        %5118 = vmatprep.subr.bf16.mxu0 0
        %5119 = vmatpush1.bf16.msra.mxu0 %v5105
        %5120 = vmatprep.subr.bf16.mxu0 0
        %5121 = vmatpush1.bf16.msra.mxu0 %v5104
        %5122 = vmatprep.subr.bf16.mxu0 0
        %5123 = vmatpush1.bf16.msra.mxu0 %v5103
        %5124 = vmatprep.subr.bf16.mxu0 0
        %5125 = vmatpush1.bf16.msra.mxu0 %v5102
        %5126 = vmatprep.subr.bf16.mxu0 0
        %5127 = vmatpush2.bf16.msra.mxu0 0
        %5128 = vmatprep.subr.bf16.mxu0 0
        %5129 = vmatpush2.bf16.msra.mxu0 0
        %5130 = vmatprep.subr.bf16.mxu0 0
        %5131 = vmatpush2.bf16.msra.mxu0 0
        %5132 = vmatprep.subr.bf16.mxu0 0
        %5133 = vmatpush2.bf16.msra.mxu0 0
        %5134 = vmatprep.subr.bf16.mxu0 0
        %5135 = vmatpush2.bf16.msra.mxu0 0
        %5136 = vmatprep.subr.bf16.mxu0 0
        %5137 = vmatpush2.bf16.msra.mxu0 0
        %5138 = vmatprep.subr.bf16.mxu0 0
        %5139 = vmatpush2.bf16.msra.mxu0 0
        %5140 = vmatprep.subr.bf16.mxu0 0
        %5141 = vmatpush2.bf16.msra.mxu0 0
        %5142 = vmatprep.mubr.bf16.mxu0 0
        %5143 = vmatmul.mubr.bf16.gmra.mxu0 %v4371
        %v5144 = vpop.f32.mrf.mxu0
        %v5145 = vadd.f32 0.0, %v5144
        %v5146 = vpop.f32.mrf.mxu0
        %v5147 = vpop.f32.mrf.mxu0
        %v5148 = vadd.f32 0.0, %v5147
        %v5149 = vpop.f32.mrf.mxu0
        %5150 = vdwg.mxu0
        %v5151 = vpack.c.bf16 %v5148, %v5145
        %s5152 = scalar_lea.vmem [#allocation9], 80
        %v5153 = vld [vmem:[%s5152] sm:$0xf]
        %v5154 = vld [vmem:[%s5152 + $0x4] sm:$0xf]
        %v5155 = vld [vmem:[%s5152 + $0x8] sm:$0xf]
        %v5156 = vld [vmem:[%s5152 + $0xc] sm:$0xf]
        %v5161 = vunpack.c.l.b16 %v5153
        %v5162 = vunpack.c.l.b16 %v5154
        %v5163 = vunpack.c.l.b16 %v5155
        %v5164 = vunpack.c.l.b16 %v5156
        %v5165 = vpack.c.b16 %v5162, %v5161
        %v5166 = vpack.c.b16 %v5164, %v5163
        %v5168 = vsel %vm4509, %v5165, 0
        %v5171 = vsel %vm4509, %v5166, 0
        %5173 = vmatprep.subr.bf16.mxu0 0
        %5174 = vmatpush1.bf16.msra.mxu0 0
        %5175 = vmatprep.subr.bf16.mxu0 0
        %5176 = vmatpush1.bf16.msra.mxu0 0
        %5177 = vmatprep.subr.bf16.mxu0 0
        %5178 = vmatpush1.bf16.msra.mxu0 0
        %5179 = vmatprep.subr.bf16.mxu0 0
        %5180 = vmatpush1.bf16.msra.mxu0 0
        %5181 = vmatprep.subr.bf16.mxu0 0
        %5182 = vmatpush1.bf16.msra.mxu0 0
        %5183 = vmatprep.subr.bf16.mxu0 0
        %5184 = vmatpush1.bf16.msra.mxu0 0
        %5185 = vmatprep.subr.bf16.mxu0 0
        %5186 = vmatpush1.bf16.msra.mxu0 0
        %5187 = vmatprep.subr.bf16.mxu0 0
        %5188 = vmatpush1.bf16.msra.mxu0 %v5151
        %5189 = vmatprep.subr.bf16.mxu0 0
        %5190 = vmatpush2.bf16.msra.mxu0 0
        %5191 = vmatprep.subr.bf16.mxu0 0
        %5192 = vmatpush2.bf16.msra.mxu0 0
        %5193 = vmatprep.subr.bf16.mxu0 0
        %5194 = vmatpush2.bf16.msra.mxu0 0
        %5195 = vmatprep.subr.bf16.mxu0 0
        %5196 = vmatpush2.bf16.msra.mxu0 0
        %5197 = vmatprep.subr.bf16.mxu0 0
        %5198 = vmatpush2.bf16.msra.mxu0 0
        %5199 = vmatprep.subr.bf16.mxu0 0
        %5200 = vmatpush2.bf16.msra.mxu0 0
        %5201 = vmatprep.subr.bf16.mxu0 0
        %5202 = vmatpush2.bf16.msra.mxu0 0
        %5203 = vmatprep.subr.bf16.mxu0 0
        %5204 = vmatpush2.bf16.msra.mxu0 0
        %5205 = vmatprep.mubr.bf16.mxu0 0
        %5206 = vmatmul.mubr.bf16.gmra.mxu0 %v5168
        %v5207 = vpop.f32.mrf.mxu0
        %v5208 = vadd.f32 0.0, %v5207
        %v5209 = vpop.f32.mrf.mxu0
        %v5210 = vpop.f32.mrf.mxu0
        %v5211 = vadd.f32 0.0, %v5210
        %v5212 = vpop.f32.mrf.mxu0
        %5213 = vmatprep.mubr.bf16.mxu0 0
        %5214 = vmatmul.mubr.bf16.gmra.mxu0 %v5171
        %v5215 = vpop.f32.mrf.mxu0
        %v5216 = vadd.f32 0.0, %v5215
        %v5217 = vpop.f32.mrf.mxu0
        %v5218 = vpop.f32.mrf.mxu0
        %v5219 = vadd.f32 0.0, %v5218
        %v5220 = vpop.f32.mrf.mxu0
        %5221 = vdwg.mxu0
        %v5222 = vadd.f32 %v5073, %v5208
        %v5223 = vadd.f32 %v5074, %v5211
        %v5224 = vadd.f32 %v5075, %v5216
        %v5225 = vadd.f32 %v5076, %v5219
        %s5226 = scalar_lea.vmem [#allocation12], 192
        %v5227 = vld [vmem:[%s5226] sm:$0xf]
        %v5228 = vld [vmem:[%s5226 + $0x4] sm:$0xf]
        %v5229 = vld [vmem:[%s5226 + $0x8] sm:$0xf]
        %v5230 = vld [vmem:[%s5226 + $0xc] sm:$0xf]
        %v5231 = vld [vmem:[%s5226 + $0x10] sm:$0xf]
        %v5232 = vld [vmem:[%s5226 + $0x14] sm:$0xf]
        %v5233 = vld [vmem:[%s5226 + $0x18] sm:$0xf]
        %v5234 = vld [vmem:[%s5226 + $0x1c] sm:$0xf]
        %v5243 = vunpack.c.l.b16 %v5227
        %v5244 = vunpack.c.l.b16 %v5228
        %v5245 = vunpack.c.l.b16 %v5229
        %v5246 = vunpack.c.l.b16 %v5230
        %v5247 = vunpack.c.l.b16 %v5231
        %v5248 = vunpack.c.l.b16 %v5232
        %v5249 = vunpack.c.l.b16 %v5233
        %v5250 = vunpack.c.l.b16 %v5234
        %v5251 = vpack.c.b16 %v5244, %v5243
        %v5252 = vpack.c.b16 %v5246, %v5245
        %v5253 = vpack.c.b16 %v5248, %v5247
        %v5254 = vpack.c.b16 %v5250, %v5249
        %5259 = vmatprep.subr.bf16.mxu0 0
        %5260 = vmatpush1.bf16.msra.mxu0 0
        %5261 = vmatprep.subr.bf16.mxu0 0
        %5262 = vmatpush1.bf16.msra.mxu0 0
        %5263 = vmatprep.subr.bf16.mxu0 0
        %5264 = vmatpush1.bf16.msra.mxu0 0
        %5265 = vmatprep.subr.bf16.mxu0 0
        %5266 = vmatpush1.bf16.msra.mxu0 0
        %5267 = vmatprep.subr.bf16.mxu0 0
        %5268 = vmatpush1.bf16.msra.mxu0 %v5254
        %5269 = vmatprep.subr.bf16.mxu0 0
        %5270 = vmatpush1.bf16.msra.mxu0 %v5253
        %5271 = vmatprep.subr.bf16.mxu0 0
        %5272 = vmatpush1.bf16.msra.mxu0 %v5252
        %5273 = vmatprep.subr.bf16.mxu0 0
        %5274 = vmatpush1.bf16.msra.mxu0 %v5251
        %5275 = vmatprep.subr.bf16.mxu0 0
        %5276 = vmatpush2.bf16.msra.mxu0 0
        %5277 = vmatprep.subr.bf16.mxu0 0
        %5278 = vmatpush2.bf16.msra.mxu0 0
        %5279 = vmatprep.subr.bf16.mxu0 0
        %5280 = vmatpush2.bf16.msra.mxu0 0
        %5281 = vmatprep.subr.bf16.mxu0 0
        %5282 = vmatpush2.bf16.msra.mxu0 0
        %5283 = vmatprep.subr.bf16.mxu0 0
        %5284 = vmatpush2.bf16.msra.mxu0 0
        %5285 = vmatprep.subr.bf16.mxu0 0
        %5286 = vmatpush2.bf16.msra.mxu0 0
        %5287 = vmatprep.subr.bf16.mxu0 0
        %5288 = vmatpush2.bf16.msra.mxu0 0
        %5289 = vmatprep.subr.bf16.mxu0 0
        %5290 = vmatpush2.bf16.msra.mxu0 0
        %5291 = vmatprep.mubr.bf16.mxu0 0
        %5292 = vmatmul.mubr.bf16.gmra.mxu0 %v4371
        %v5293 = vpop.f32.mrf.mxu0
        %v5294 = vadd.f32 0.0, %v5293
        %v5295 = vpop.f32.mrf.mxu0
        %v5296 = vpop.f32.mrf.mxu0
        %v5297 = vadd.f32 0.0, %v5296
        %v5298 = vpop.f32.mrf.mxu0
        %5299 = vdwg.mxu0
        %v5300 = vpack.c.bf16 %v5297, %v5294
        %s5301 = scalar_lea.vmem [#allocation9], 96
        %v5302 = vld [vmem:[%s5301] sm:$0xf]
        %v5303 = vld [vmem:[%s5301 + $0x4] sm:$0xf]
        %v5304 = vld [vmem:[%s5301 + $0x8] sm:$0xf]
        %v5305 = vld [vmem:[%s5301 + $0xc] sm:$0xf]
        %v5310 = vunpack.c.l.b16 %v5302
        %v5311 = vunpack.c.l.b16 %v5303
        %v5312 = vunpack.c.l.b16 %v5304
        %v5313 = vunpack.c.l.b16 %v5305
        %v5314 = vpack.c.b16 %v5311, %v5310
        %v5315 = vpack.c.b16 %v5313, %v5312
        %v5317 = vsel %vm4509, %v5314, 0
        %v5320 = vsel %vm4509, %v5315, 0
        %5322 = vmatprep.subr.bf16.mxu0 0
        %5323 = vmatpush1.bf16.msra.mxu0 0
        %5324 = vmatprep.subr.bf16.mxu0 0
        %5325 = vmatpush1.bf16.msra.mxu0 0
        %5326 = vmatprep.subr.bf16.mxu0 0
        %5327 = vmatpush1.bf16.msra.mxu0 0
        %5328 = vmatprep.subr.bf16.mxu0 0
        %5329 = vmatpush1.bf16.msra.mxu0 0
        %5330 = vmatprep.subr.bf16.mxu0 0
        %5331 = vmatpush1.bf16.msra.mxu0 0
        %5332 = vmatprep.subr.bf16.mxu0 0
        %5333 = vmatpush1.bf16.msra.mxu0 0
        %5334 = vmatprep.subr.bf16.mxu0 0
        %5335 = vmatpush1.bf16.msra.mxu0 0
        %5336 = vmatprep.subr.bf16.mxu0 0
        %5337 = vmatpush1.bf16.msra.mxu0 %v5300
        %5338 = vmatprep.subr.bf16.mxu0 0
        %5339 = vmatpush2.bf16.msra.mxu0 0
        %5340 = vmatprep.subr.bf16.mxu0 0
        %5341 = vmatpush2.bf16.msra.mxu0 0
        %5342 = vmatprep.subr.bf16.mxu0 0
        %5343 = vmatpush2.bf16.msra.mxu0 0
        %5344 = vmatprep.subr.bf16.mxu0 0
        %5345 = vmatpush2.bf16.msra.mxu0 0
        %5346 = vmatprep.subr.bf16.mxu0 0
        %5347 = vmatpush2.bf16.msra.mxu0 0
        %5348 = vmatprep.subr.bf16.mxu0 0
        %5349 = vmatpush2.bf16.msra.mxu0 0
        %5350 = vmatprep.subr.bf16.mxu0 0
        %5351 = vmatpush2.bf16.msra.mxu0 0
        %5352 = vmatprep.subr.bf16.mxu0 0
        %5353 = vmatpush2.bf16.msra.mxu0 0
        %5354 = vmatprep.mubr.bf16.mxu0 0
        %5355 = vmatmul.mubr.bf16.gmra.mxu0 %v5317
        %v5356 = vpop.f32.mrf.mxu0
        %v5357 = vadd.f32 0.0, %v5356
        %v5358 = vpop.f32.mrf.mxu0
        %v5359 = vpop.f32.mrf.mxu0
        %v5360 = vadd.f32 0.0, %v5359
        %v5361 = vpop.f32.mrf.mxu0
        %5362 = vmatprep.mubr.bf16.mxu0 0
        %5363 = vmatmul.mubr.bf16.gmra.mxu0 %v5320
        %v5364 = vpop.f32.mrf.mxu0
        %v5365 = vadd.f32 0.0, %v5364
        %v5366 = vpop.f32.mrf.mxu0
        %v5367 = vpop.f32.mrf.mxu0
        %v5368 = vadd.f32 0.0, %v5367
        %v5369 = vpop.f32.mrf.mxu0
        %5370 = vdwg.mxu0
        %v5371 = vadd.f32 %v5222, %v5357
        %v5372 = vadd.f32 %v5223, %v5360
        %v5373 = vadd.f32 %v5224, %v5365
        %v5374 = vadd.f32 %v5225, %v5368
        %s5375 = scalar_lea.vmem [#allocation12], 224
        %v5376 = vld [vmem:[%s5375] sm:$0xf]
        %v5377 = vld [vmem:[%s5375 + $0x4] sm:$0xf]
        %v5378 = vld [vmem:[%s5375 + $0x8] sm:$0xf]
        %v5379 = vld [vmem:[%s5375 + $0xc] sm:$0xf]
        %v5380 = vld [vmem:[%s5375 + $0x10] sm:$0xf]
        %v5381 = vld [vmem:[%s5375 + $0x14] sm:$0xf]
        %v5382 = vld [vmem:[%s5375 + $0x18] sm:$0xf]
        %v5383 = vld [vmem:[%s5375 + $0x1c] sm:$0xf]
        %v5392 = vunpack.c.l.b16 %v5376
        %v5393 = vunpack.c.l.b16 %v5377
        %v5394 = vunpack.c.l.b16 %v5378
        %v5395 = vunpack.c.l.b16 %v5379
        %v5396 = vunpack.c.l.b16 %v5380
        %v5397 = vunpack.c.l.b16 %v5381
        %v5398 = vunpack.c.l.b16 %v5382
        %v5399 = vunpack.c.l.b16 %v5383
        %v5400 = vpack.c.b16 %v5393, %v5392
        %v5401 = vpack.c.b16 %v5395, %v5394
        %v5402 = vpack.c.b16 %v5397, %v5396
        %v5403 = vpack.c.b16 %v5399, %v5398
        %5408 = vmatprep.subr.bf16.mxu0 0
        %5409 = vmatpush1.bf16.msra.mxu0 0
        %5410 = vmatprep.subr.bf16.mxu0 0
        %5411 = vmatpush1.bf16.msra.mxu0 0
        %5412 = vmatprep.subr.bf16.mxu0 0
        %5413 = vmatpush1.bf16.msra.mxu0 0
        %5414 = vmatprep.subr.bf16.mxu0 0
        %5415 = vmatpush1.bf16.msra.mxu0 0
        %5416 = vmatprep.subr.bf16.mxu0 0
        %5417 = vmatpush1.bf16.msra.mxu0 %v5403
        %5418 = vmatprep.subr.bf16.mxu0 0
        %5419 = vmatpush1.bf16.msra.mxu0 %v5402
        %5420 = vmatprep.subr.bf16.mxu0 0
        %5421 = vmatpush1.bf16.msra.mxu0 %v5401
        %5422 = vmatprep.subr.bf16.mxu0 0
        %5423 = vmatpush1.bf16.msra.mxu0 %v5400
        %5424 = vmatprep.subr.bf16.mxu0 0
        %5425 = vmatpush2.bf16.msra.mxu0 0
        %5426 = vmatprep.subr.bf16.mxu0 0
        %5427 = vmatpush2.bf16.msra.mxu0 0
        %5428 = vmatprep.subr.bf16.mxu0 0
        %5429 = vmatpush2.bf16.msra.mxu0 0
        %5430 = vmatprep.subr.bf16.mxu0 0
        %5431 = vmatpush2.bf16.msra.mxu0 0
        %5432 = vmatprep.subr.bf16.mxu0 0
        %5433 = vmatpush2.bf16.msra.mxu0 0
        %5434 = vmatprep.subr.bf16.mxu0 0
        %5435 = vmatpush2.bf16.msra.mxu0 0
        %5436 = vmatprep.subr.bf16.mxu0 0
        %5437 = vmatpush2.bf16.msra.mxu0 0
        %5438 = vmatprep.subr.bf16.mxu0 0
        %5439 = vmatpush2.bf16.msra.mxu0 0
        %5440 = vmatprep.mubr.bf16.mxu0 0
        %5441 = vmatmul.mubr.bf16.gmra.mxu0 %v4371
        %v5442 = vpop.f32.mrf.mxu0
        %v5443 = vadd.f32 0.0, %v5442
        %v5444 = vpop.f32.mrf.mxu0
        %v5445 = vpop.f32.mrf.mxu0
        %v5446 = vadd.f32 0.0, %v5445
        %v5447 = vpop.f32.mrf.mxu0
        %5448 = vdwg.mxu0
        %v5449 = vpack.c.bf16 %v5446, %v5443
        %s5450 = scalar_lea.vmem [#allocation9], 112
        %v5451 = vld [vmem:[%s5450] sm:$0xf]
        %v5452 = vld [vmem:[%s5450 + $0x4] sm:$0xf]
        %v5453 = vld [vmem:[%s5450 + $0x8] sm:$0xf]
        %v5454 = vld [vmem:[%s5450 + $0xc] sm:$0xf]
        %v5459 = vunpack.c.l.b16 %v5451
        %v5460 = vunpack.c.l.b16 %v5452
        %v5461 = vunpack.c.l.b16 %v5453
        %v5462 = vunpack.c.l.b16 %v5454
        %v5463 = vpack.c.b16 %v5460, %v5459
        %v5464 = vpack.c.b16 %v5462, %v5461
        %v5466 = vsel %vm4509, %v5463, 0
        %v5469 = vsel %vm4509, %v5464, 0
        %5471 = vmatprep.subr.bf16.mxu0 0
        %5472 = vmatpush1.bf16.msra.mxu0 0
        %5473 = vmatprep.subr.bf16.mxu0 0
        %5474 = vmatpush1.bf16.msra.mxu0 0
        %5475 = vmatprep.subr.bf16.mxu0 0
        %5476 = vmatpush1.bf16.msra.mxu0 0
        %5477 = vmatprep.subr.bf16.mxu0 0
        %5478 = vmatpush1.bf16.msra.mxu0 0
        %5479 = vmatprep.subr.bf16.mxu0 0
        %5480 = vmatpush1.bf16.msra.mxu0 0
        %5481 = vmatprep.subr.bf16.mxu0 0
        %5482 = vmatpush1.bf16.msra.mxu0 0
        %5483 = vmatprep.subr.bf16.mxu0 0
        %5484 = vmatpush1.bf16.msra.mxu0 0
        %5485 = vmatprep.subr.bf16.mxu0 0
        %5486 = vmatpush1.bf16.msra.mxu0 %v5449
        %5487 = vmatprep.subr.bf16.mxu0 0
        %5488 = vmatpush2.bf16.msra.mxu0 0
        %5489 = vmatprep.subr.bf16.mxu0 0
        %5490 = vmatpush2.bf16.msra.mxu0 0
        %5491 = vmatprep.subr.bf16.mxu0 0
        %5492 = vmatpush2.bf16.msra.mxu0 0
        %5493 = vmatprep.subr.bf16.mxu0 0
        %5494 = vmatpush2.bf16.msra.mxu0 0
        %5495 = vmatprep.subr.bf16.mxu0 0
        %5496 = vmatpush2.bf16.msra.mxu0 0
        %5497 = vmatprep.subr.bf16.mxu0 0
        %5498 = vmatpush2.bf16.msra.mxu0 0
        %5499 = vmatprep.subr.bf16.mxu0 0
        %5500 = vmatpush2.bf16.msra.mxu0 0
        %5501 = vmatprep.subr.bf16.mxu0 0
        %5502 = vmatpush2.bf16.msra.mxu0 0
        %5503 = vmatprep.mubr.bf16.mxu0 0
        %5504 = vmatmul.mubr.bf16.gmra.mxu0 %v5466
        %v5505 = vpop.f32.mrf.mxu0
        %v5506 = vadd.f32 0.0, %v5505
        %v5507 = vpop.f32.mrf.mxu0
        %v5508 = vpop.f32.mrf.mxu0
        %v5509 = vadd.f32 0.0, %v5508
        %v5510 = vpop.f32.mrf.mxu0
        %5511 = vmatprep.mubr.bf16.mxu0 0
        %5512 = vmatmul.mubr.bf16.gmra.mxu0 %v5469
        %v5513 = vpop.f32.mrf.mxu0
        %v5514 = vadd.f32 0.0, %v5513
        %v5515 = vpop.f32.mrf.mxu0
        %v5516 = vpop.f32.mrf.mxu0
        %v5517 = vadd.f32 0.0, %v5516
        %v5518 = vpop.f32.mrf.mxu0
        %5519 = vdwg.mxu0
        %v5520 = vadd.f32 %v5371, %v5506
        %v5521 = vadd.f32 %v5372, %v5509
        %v5522 = vadd.f32 %v5373, %v5514
        %v5523 = vadd.f32 %v5374, %v5517
        %s5524 = scalar_lea.vmem [#allocation12], 256
        %v5525 = vld [vmem:[%s5524] sm:$0xf]
        %v5526 = vld [vmem:[%s5524 + $0x4] sm:$0xf]
        %v5527 = vld [vmem:[%s5524 + $0x8] sm:$0xf]
        %v5528 = vld [vmem:[%s5524 + $0xc] sm:$0xf]
        %v5529 = vld [vmem:[%s5524 + $0x10] sm:$0xf]
        %v5530 = vld [vmem:[%s5524 + $0x14] sm:$0xf]
        %v5531 = vld [vmem:[%s5524 + $0x18] sm:$0xf]
        %v5532 = vld [vmem:[%s5524 + $0x1c] sm:$0xf]
        %v5541 = vunpack.c.l.b16 %v5525
        %v5542 = vunpack.c.l.b16 %v5526
        %v5543 = vunpack.c.l.b16 %v5527
        %v5544 = vunpack.c.l.b16 %v5528
        %v5545 = vunpack.c.l.b16 %v5529
        %v5546 = vunpack.c.l.b16 %v5530
        %v5547 = vunpack.c.l.b16 %v5531
        %v5548 = vunpack.c.l.b16 %v5532
        %v5549 = vpack.c.b16 %v5542, %v5541
        %v5550 = vpack.c.b16 %v5544, %v5543
        %v5551 = vpack.c.b16 %v5546, %v5545
        %v5552 = vpack.c.b16 %v5548, %v5547
        %5557 = vmatprep.subr.bf16.mxu0 0
        %5558 = vmatpush1.bf16.msra.mxu0 0
        %5559 = vmatprep.subr.bf16.mxu0 0
        %5560 = vmatpush1.bf16.msra.mxu0 0
        %5561 = vmatprep.subr.bf16.mxu0 0
        %5562 = vmatpush1.bf16.msra.mxu0 0
        %5563 = vmatprep.subr.bf16.mxu0 0
        %5564 = vmatpush1.bf16.msra.mxu0 0
        %5565 = vmatprep.subr.bf16.mxu0 0
        %5566 = vmatpush1.bf16.msra.mxu0 %v5552
        %5567 = vmatprep.subr.bf16.mxu0 0
        %5568 = vmatpush1.bf16.msra.mxu0 %v5551
        %5569 = vmatprep.subr.bf16.mxu0 0
        %5570 = vmatpush1.bf16.msra.mxu0 %v5550
        %5571 = vmatprep.subr.bf16.mxu0 0
        %5572 = vmatpush1.bf16.msra.mxu0 %v5549
        %5573 = vmatprep.subr.bf16.mxu0 0
        %5574 = vmatpush2.bf16.msra.mxu0 0
        %5575 = vmatprep.subr.bf16.mxu0 0
        %5576 = vmatpush2.bf16.msra.mxu0 0
        %5577 = vmatprep.subr.bf16.mxu0 0
        %5578 = vmatpush2.bf16.msra.mxu0 0
        %5579 = vmatprep.subr.bf16.mxu0 0
        %5580 = vmatpush2.bf16.msra.mxu0 0
        %5581 = vmatprep.subr.bf16.mxu0 0
        %5582 = vmatpush2.bf16.msra.mxu0 0
        %5583 = vmatprep.subr.bf16.mxu0 0
        %5584 = vmatpush2.bf16.msra.mxu0 0
        %5585 = vmatprep.subr.bf16.mxu0 0
        %5586 = vmatpush2.bf16.msra.mxu0 0
        %5587 = vmatprep.subr.bf16.mxu0 0
        %5588 = vmatpush2.bf16.msra.mxu0 0
        %5589 = vmatprep.mubr.bf16.mxu0 0
        %5590 = vmatmul.mubr.bf16.gmra.mxu0 %v4371
        %v5591 = vpop.f32.mrf.mxu0
        %v5592 = vadd.f32 0.0, %v5591
        %v5593 = vpop.f32.mrf.mxu0
        %v5594 = vpop.f32.mrf.mxu0
        %v5595 = vadd.f32 0.0, %v5594
        %v5596 = vpop.f32.mrf.mxu0
        %5597 = vdwg.mxu0
        %v5598 = vpack.c.bf16 %v5595, %v5592
        %s5599 = scalar_lea.vmem [#allocation9], 128
        %v5600 = vld [vmem:[%s5599] sm:$0xf]
        %v5601 = vld [vmem:[%s5599 + $0x4] sm:$0xf]
        %v5602 = vld [vmem:[%s5599 + $0x8] sm:$0xf]
        %v5603 = vld [vmem:[%s5599 + $0xc] sm:$0xf]
        %v5608 = vunpack.c.l.b16 %v5600
        %v5609 = vunpack.c.l.b16 %v5601
        %v5610 = vunpack.c.l.b16 %v5602
        %v5611 = vunpack.c.l.b16 %v5603
        %v5612 = vpack.c.b16 %v5609, %v5608
        %v5613 = vpack.c.b16 %v5611, %v5610
        %v5615 = vsel %vm4509, %v5612, 0
        %v5618 = vsel %vm4509, %v5613, 0
        %5620 = vmatprep.subr.bf16.mxu0 0
        %5621 = vmatpush1.bf16.msra.mxu0 0
        %5622 = vmatprep.subr.bf16.mxu0 0
        %5623 = vmatpush1.bf16.msra.mxu0 0
        %5624 = vmatprep.subr.bf16.mxu0 0
        %5625 = vmatpush1.bf16.msra.mxu0 0
        %5626 = vmatprep.subr.bf16.mxu0 0
        %5627 = vmatpush1.bf16.msra.mxu0 0
        %5628 = vmatprep.subr.bf16.mxu0 0
        %5629 = vmatpush1.bf16.msra.mxu0 0
        %5630 = vmatprep.subr.bf16.mxu0 0
        %5631 = vmatpush1.bf16.msra.mxu0 0
        %5632 = vmatprep.subr.bf16.mxu0 0
        %5633 = vmatpush1.bf16.msra.mxu0 0
        %5634 = vmatprep.subr.bf16.mxu0 0
        %5635 = vmatpush1.bf16.msra.mxu0 %v5598
        %5636 = vmatprep.subr.bf16.mxu0 0
        %5637 = vmatpush2.bf16.msra.mxu0 0
        %5638 = vmatprep.subr.bf16.mxu0 0
        %5639 = vmatpush2.bf16.msra.mxu0 0
        %5640 = vmatprep.subr.bf16.mxu0 0
        %5641 = vmatpush2.bf16.msra.mxu0 0
        %5642 = vmatprep.subr.bf16.mxu0 0
        %5643 = vmatpush2.bf16.msra.mxu0 0
        %5644 = vmatprep.subr.bf16.mxu0 0
        %5645 = vmatpush2.bf16.msra.mxu0 0
        %5646 = vmatprep.subr.bf16.mxu0 0
        %5647 = vmatpush2.bf16.msra.mxu0 0
        %5648 = vmatprep.subr.bf16.mxu0 0
        %5649 = vmatpush2.bf16.msra.mxu0 0
        %5650 = vmatprep.subr.bf16.mxu0 0
        %5651 = vmatpush2.bf16.msra.mxu0 0
        %5652 = vmatprep.mubr.bf16.mxu0 0
        %5653 = vmatmul.mubr.bf16.gmra.mxu0 %v5615
        %v5654 = vpop.f32.mrf.mxu0
        %v5655 = vadd.f32 0.0, %v5654
        %v5656 = vpop.f32.mrf.mxu0
        %v5657 = vpop.f32.mrf.mxu0
        %v5658 = vadd.f32 0.0, %v5657
        %v5659 = vpop.f32.mrf.mxu0
        %5660 = vmatprep.mubr.bf16.mxu0 0
        %5661 = vmatmul.mubr.bf16.gmra.mxu0 %v5618
        %v5662 = vpop.f32.mrf.mxu0
        %v5663 = vadd.f32 0.0, %v5662
        %v5664 = vpop.f32.mrf.mxu0
        %v5665 = vpop.f32.mrf.mxu0
        %v5666 = vadd.f32 0.0, %v5665
        %v5667 = vpop.f32.mrf.mxu0
        %5668 = vdwg.mxu0
        %v5669 = vadd.f32 %v5520, %v5655
        %v5670 = vadd.f32 %v5521, %v5658
        %v5671 = vadd.f32 %v5522, %v5663
        %v5672 = vadd.f32 %v5523, %v5666
        %v5673 = vld [vmem:[#allocation10] sm:$0xff]
        %v5674 = vld [vmem:[#allocation10 + $0x8] sm:$0xff]
        %v5675 = vld [vmem:[#allocation10 + $0x10] sm:$0xff]
        %v5676 = vld [vmem:[#allocation10 + $0x18] sm:$0xff]
        %5678 = vset.pattern.permute.xlu0 0
        %5679 = vperm.xlu0 %5678, %v5673
        %v5680 = vpop.permute.xlu0 %5679
        %5683 = vset.pattern.permute.xlu0 0
        %5684 = vperm.xlu0 %5683, %v5674
        %v5685 = vpop.permute.xlu0 %5684
        %5688 = vset.pattern.permute.xlu0 0
        %5689 = vperm.xlu0 %5688, %v5675
        %v5690 = vpop.permute.xlu0 %5689
        %5693 = vset.pattern.permute.xlu0 0
        %5694 = vperm.xlu0 %5693, %v5676
        %v5695 = vpop.permute.xlu0 %5694
        %v5697 = vadd.f32 %v5669, %v5680
        %v5698 = vadd.f32 %v5670, %v5685
        %v5699 = vadd.f32 %v5671, %v5690
        %v5700 = vadd.f32 %v5672, %v5695
        %v5701 = vsub.f32 0.0, %v5697
        %v5702 = vsub.f32 0.0, %v5698
        %v5703 = vsub.f32 0.0, %v5699
        %v5704 = vsub.f32 0.0, %v5700
        %v5705 = vmul.f32 %v5701, 1.442695
        %v5706 = vpow.pop %v5705
        %v5707 = vmul.f32 %v5702, 1.442695
        %v5708 = vpow.pop %v5707
        %v5709 = vmul.f32 %v5703, 1.442695
        %v5710 = vpow.pop %v5709
        %v5711 = vmul.f32 %v5704, 1.442695
        %v5712 = vpow.pop %v5711
        %v5713 = vadd.f32 %v5706, 1.0
        %v5714 = vadd.f32 %v5708, 1.0
        %v5715 = vadd.f32 %v5710, 1.0
        %v5716 = vadd.f32 %v5712, 1.0
        %v5717 = vrcp.pop %v5713
        %v5718 = vrcp.pop %v5714
        %v5719 = vrcp.pop %v5715
        %v5720 = vrcp.pop %v5716
        %v5721 = vmul.f32 %v5697, %v5717
        %v5722 = vmul.f32 %v5698, %v5718
        %v5723 = vmul.f32 %v5699, %v5719
        %v5724 = vmul.f32 %v5700, %v5720
        %v5725 = vpack.c.bf16 %v5722, %v5721
        %v5726 = vpack.c.bf16 %v5724, %v5723
        %v5727 = vld [vmem:[#allocation13] sm:$0xf]
        %v5728 = vld [vmem:[#allocation13 + $0x4] sm:$0xf]
        %v5729 = vld [vmem:[#allocation13 + $0x8] sm:$0xf]
        %v5730 = vld [vmem:[#allocation13 + $0xc] sm:$0xf]
        %v5731 = vld [vmem:[#allocation13 + $0x10] sm:$0xf]
        %v5732 = vld [vmem:[#allocation13 + $0x14] sm:$0xf]
        %v5733 = vld [vmem:[#allocation13 + $0x18] sm:$0xf]
        %v5734 = vld [vmem:[#allocation13 + $0x1c] sm:$0xf]
        %v5743 = vunpack.c.l.b16 %v5727
        %v5744 = vunpack.c.l.b16 %v5728
        %v5745 = vunpack.c.l.b16 %v5729
        %v5746 = vunpack.c.l.b16 %v5730
        %v5747 = vunpack.c.l.b16 %v5731
        %v5748 = vunpack.c.l.b16 %v5732
        %v5749 = vunpack.c.l.b16 %v5733
        %v5750 = vunpack.c.l.b16 %v5734
        %v5751 = vpack.c.b16 %v5744, %v5743
        %v5752 = vpack.c.b16 %v5746, %v5745
        %v5753 = vpack.c.b16 %v5748, %v5747
        %v5754 = vpack.c.b16 %v5750, %v5749
        %v5760 = vsel %vm4369, %v5725, 0
        %v5763 = vsel %vm4369, %v5726, 0
        %5765 = vmatprep.subr.bf16.mxu0 0
        %5766 = vmatpush1.bf16.msra.mxu0 0
        %5767 = vmatprep.subr.bf16.mxu0 0
        %5768 = vmatpush1.bf16.msra.mxu0 0
        %5769 = vmatprep.subr.bf16.mxu0 0
        %5770 = vmatpush1.bf16.msra.mxu0 0
        %5771 = vmatprep.subr.bf16.mxu0 0
        %5772 = vmatpush1.bf16.msra.mxu0 0
        %5773 = vmatprep.subr.bf16.mxu0 0
        %5774 = vmatpush1.bf16.msra.mxu0 %v5754
        %5775 = vmatprep.subr.bf16.mxu0 0
        %5776 = vmatpush1.bf16.msra.mxu0 %v5753
        %5777 = vmatprep.subr.bf16.mxu0 0
        %5778 = vmatpush1.bf16.msra.mxu0 %v5752
        %5779 = vmatprep.subr.bf16.mxu0 0
        %5780 = vmatpush1.bf16.msra.mxu0 %v5751
        %5781 = vmatprep.subr.bf16.mxu0 0
        %5782 = vmatpush2.bf16.msra.mxu0 0
        %5783 = vmatprep.subr.bf16.mxu0 0
        %5784 = vmatpush2.bf16.msra.mxu0 0
        %5785 = vmatprep.subr.bf16.mxu0 0
        %5786 = vmatpush2.bf16.msra.mxu0 0
        %5787 = vmatprep.subr.bf16.mxu0 0
        %5788 = vmatpush2.bf16.msra.mxu0 0
        %5789 = vmatprep.subr.bf16.mxu0 0
        %5790 = vmatpush2.bf16.msra.mxu0 0
        %5791 = vmatprep.subr.bf16.mxu0 0
        %5792 = vmatpush2.bf16.msra.mxu0 0
        %5793 = vmatprep.subr.bf16.mxu0 0
        %5794 = vmatpush2.bf16.msra.mxu0 0
        %5795 = vmatprep.subr.bf16.mxu0 0
        %5796 = vmatpush2.bf16.msra.mxu0 0
        %5797 = vmatprep.mubr.bf16.mxu0 0
        %5798 = vmatmul.mubr.bf16.gmra.mxu0 %v5760
        %v5799 = vpop.f32.mrf.mxu0
        %v5800 = vadd.f32 0.0, %v5799
        %v5801 = vpop.f32.mrf.mxu0
        %v5802 = vpop.f32.mrf.mxu0
        %v5803 = vadd.f32 0.0, %v5802
        %v5804 = vpop.f32.mrf.mxu0
        %5805 = vmatprep.mubr.bf16.mxu0 0
        %5806 = vmatmul.mubr.bf16.gmra.mxu0 %v5763
        %v5807 = vpop.f32.mrf.mxu0
        %v5808 = vadd.f32 0.0, %v5807
        %v5809 = vpop.f32.mrf.mxu0
        %v5810 = vpop.f32.mrf.mxu0
        %v5811 = vadd.f32 0.0, %v5810
        %v5812 = vpop.f32.mrf.mxu0
        %5813 = vdwg.mxu0
        %s5814 = scalar_lea.vmem [#allocation13], 32
        %v5815 = vld [vmem:[%s5814] sm:$0xf]
        %v5816 = vld [vmem:[%s5814 + $0x4] sm:$0xf]
        %v5817 = vld [vmem:[%s5814 + $0x8] sm:$0xf]
        %v5818 = vld [vmem:[%s5814 + $0xc] sm:$0xf]
        %v5819 = vld [vmem:[%s5814 + $0x10] sm:$0xf]
        %v5820 = vld [vmem:[%s5814 + $0x14] sm:$0xf]
        %v5821 = vld [vmem:[%s5814 + $0x18] sm:$0xf]
        %v5822 = vld [vmem:[%s5814 + $0x1c] sm:$0xf]
        %v5831 = vunpack.c.l.b16 %v5815
        %v5832 = vunpack.c.l.b16 %v5816
        %v5833 = vunpack.c.l.b16 %v5817
        %v5834 = vunpack.c.l.b16 %v5818
        %v5835 = vunpack.c.l.b16 %v5819
        %v5836 = vunpack.c.l.b16 %v5820
        %v5837 = vunpack.c.l.b16 %v5821
        %v5838 = vunpack.c.l.b16 %v5822
        %v5839 = vpack.c.b16 %v5832, %v5831
        %v5840 = vpack.c.b16 %v5834, %v5833
        %v5841 = vpack.c.b16 %v5836, %v5835
        %v5842 = vpack.c.b16 %v5838, %v5837
        %5847 = vmatprep.subr.bf16.mxu0 0
        %5848 = vmatpush1.bf16.msra.mxu0 0
        %5849 = vmatprep.subr.bf16.mxu0 0
        %5850 = vmatpush1.bf16.msra.mxu0 0
        %5851 = vmatprep.subr.bf16.mxu0 0
        %5852 = vmatpush1.bf16.msra.mxu0 0
        %5853 = vmatprep.subr.bf16.mxu0 0
        %5854 = vmatpush1.bf16.msra.mxu0 0
        %5855 = vmatprep.subr.bf16.mxu0 0
        %5856 = vmatpush1.bf16.msra.mxu0 %v5842
        %5857 = vmatprep.subr.bf16.mxu0 0
        %5858 = vmatpush1.bf16.msra.mxu0 %v5841
        %5859 = vmatprep.subr.bf16.mxu0 0
        %5860 = vmatpush1.bf16.msra.mxu0 %v5840
        %5861 = vmatprep.subr.bf16.mxu0 0
        %5862 = vmatpush1.bf16.msra.mxu0 %v5839
        %5863 = vmatprep.subr.bf16.mxu0 0
        %5864 = vmatpush2.bf16.msra.mxu0 0
        %5865 = vmatprep.subr.bf16.mxu0 0
        %5866 = vmatpush2.bf16.msra.mxu0 0
        %5867 = vmatprep.subr.bf16.mxu0 0
        %5868 = vmatpush2.bf16.msra.mxu0 0
        %5869 = vmatprep.subr.bf16.mxu0 0
        %5870 = vmatpush2.bf16.msra.mxu0 0
        %5871 = vmatprep.subr.bf16.mxu0 0
        %5872 = vmatpush2.bf16.msra.mxu0 0
        %5873 = vmatprep.subr.bf16.mxu0 0
        %5874 = vmatpush2.bf16.msra.mxu0 0
        %5875 = vmatprep.subr.bf16.mxu0 0
        %5876 = vmatpush2.bf16.msra.mxu0 0
        %5877 = vmatprep.subr.bf16.mxu0 0
        %5878 = vmatpush2.bf16.msra.mxu0 0
        %5879 = vmatprep.mubr.bf16.mxu0 0
        %5880 = vmatmul.mubr.bf16.gmra.mxu0 %v5760
        %v5881 = vpop.f32.mrf.mxu0
        %v5882 = vadd.f32 0.0, %v5881
        %v5883 = vpop.f32.mrf.mxu0
        %v5884 = vpop.f32.mrf.mxu0
        %v5885 = vadd.f32 0.0, %v5884
        %v5886 = vpop.f32.mrf.mxu0
        %5887 = vmatprep.mubr.bf16.mxu0 0
        %5888 = vmatmul.mubr.bf16.gmra.mxu0 %v5763
        %v5889 = vpop.f32.mrf.mxu0
        %v5890 = vadd.f32 0.0, %v5889
        %v5891 = vpop.f32.mrf.mxu0
        %v5892 = vpop.f32.mrf.mxu0
        %v5893 = vadd.f32 0.0, %v5892
        %v5894 = vpop.f32.mrf.mxu0
        %5895 = vdwg.mxu0
        %v5896 = vmax.f32 %v5800, %v5882
        %v5897 = vmax.f32 %v5803, %v5885
        %v5898 = vmax.f32 %v5808, %v5890
        %v5899 = vmax.f32 %v5811, %v5893
        %s5900 = scalar_lea.vmem [#allocation13], 64
        %v5901 = vld [vmem:[%s5900] sm:$0xf]
        %v5902 = vld [vmem:[%s5900 + $0x4] sm:$0xf]
        %v5903 = vld [vmem:[%s5900 + $0x8] sm:$0xf]
        %v5904 = vld [vmem:[%s5900 + $0xc] sm:$0xf]
        %v5905 = vld [vmem:[%s5900 + $0x10] sm:$0xf]
        %v5906 = vld [vmem:[%s5900 + $0x14] sm:$0xf]
        %v5907 = vld [vmem:[%s5900 + $0x18] sm:$0xf]
        %v5908 = vld [vmem:[%s5900 + $0x1c] sm:$0xf]
        %v5917 = vunpack.c.l.b16 %v5901
        %v5918 = vunpack.c.l.b16 %v5902
        %v5919 = vunpack.c.l.b16 %v5903
        %v5920 = vunpack.c.l.b16 %v5904
        %v5921 = vunpack.c.l.b16 %v5905
        %v5922 = vunpack.c.l.b16 %v5906
        %v5923 = vunpack.c.l.b16 %v5907
        %v5924 = vunpack.c.l.b16 %v5908
        %v5925 = vpack.c.b16 %v5918, %v5917
        %v5926 = vpack.c.b16 %v5920, %v5919
        %v5927 = vpack.c.b16 %v5922, %v5921
        %v5928 = vpack.c.b16 %v5924, %v5923
        %5933 = vmatprep.subr.bf16.mxu0 0
        %5934 = vmatpush1.bf16.msra.mxu0 0
        %5935 = vmatprep.subr.bf16.mxu0 0
        %5936 = vmatpush1.bf16.msra.mxu0 0
        %5937 = vmatprep.subr.bf16.mxu0 0
        %5938 = vmatpush1.bf16.msra.mxu0 0
        %5939 = vmatprep.subr.bf16.mxu0 0
        %5940 = vmatpush1.bf16.msra.mxu0 0
        %5941 = vmatprep.subr.bf16.mxu0 0
        %5942 = vmatpush1.bf16.msra.mxu0 %v5928
        %5943 = vmatprep.subr.bf16.mxu0 0
        %5944 = vmatpush1.bf16.msra.mxu0 %v5927
        %5945 = vmatprep.subr.bf16.mxu0 0
        %5946 = vmatpush1.bf16.msra.mxu0 %v5926
        %5947 = vmatprep.subr.bf16.mxu0 0
        %5948 = vmatpush1.bf16.msra.mxu0 %v5925
        %5949 = vmatprep.subr.bf16.mxu0 0
        %5950 = vmatpush2.bf16.msra.mxu0 0
        %5951 = vmatprep.subr.bf16.mxu0 0
        %5952 = vmatpush2.bf16.msra.mxu0 0
        %5953 = vmatprep.subr.bf16.mxu0 0
        %5954 = vmatpush2.bf16.msra.mxu0 0
        %5955 = vmatprep.subr.bf16.mxu0 0
        %5956 = vmatpush2.bf16.msra.mxu0 0
        %5957 = vmatprep.subr.bf16.mxu0 0
        %5958 = vmatpush2.bf16.msra.mxu0 0
        %5959 = vmatprep.subr.bf16.mxu0 0
        %5960 = vmatpush2.bf16.msra.mxu0 0
        %5961 = vmatprep.subr.bf16.mxu0 0
        %5962 = vmatpush2.bf16.msra.mxu0 0
        %5963 = vmatprep.subr.bf16.mxu0 0
        %5964 = vmatpush2.bf16.msra.mxu0 0
        %5965 = vmatprep.mubr.bf16.mxu0 0
        %5966 = vmatmul.mubr.bf16.gmra.mxu0 %v5760
        %v5967 = vpop.f32.mrf.mxu0
        %v5968 = vadd.f32 0.0, %v5967
        %v5969 = vpop.f32.mrf.mxu0
        %v5970 = vpop.f32.mrf.mxu0
        %v5971 = vadd.f32 0.0, %v5970
        %v5972 = vpop.f32.mrf.mxu0
        %5973 = vmatprep.mubr.bf16.mxu0 0
        %5974 = vmatmul.mubr.bf16.gmra.mxu0 %v5763
        %v5975 = vpop.f32.mrf.mxu0
        %v5976 = vadd.f32 0.0, %v5975
        %v5977 = vpop.f32.mrf.mxu0
        %v5978 = vpop.f32.mrf.mxu0
        %v5979 = vadd.f32 0.0, %v5978
        %v5980 = vpop.f32.mrf.mxu0
        %5981 = vdwg.mxu0
        %v5982 = vmax.f32 %v5896, %v5968
        %v5983 = vmax.f32 %v5897, %v5971
        %v5984 = vmax.f32 %v5898, %v5976
        %v5985 = vmax.f32 %v5899, %v5979
        %s5986 = scalar_lea.vmem [#allocation13], 96
        %v5987 = vld [vmem:[%s5986] sm:$0xf]
        %v5988 = vld [vmem:[%s5986 + $0x4] sm:$0xf]
        %v5989 = vld [vmem:[%s5986 + $0x8] sm:$0xf]
        %v5990 = vld [vmem:[%s5986 + $0xc] sm:$0xf]
        %v5991 = vld [vmem:[%s5986 + $0x10] sm:$0xf]
        %v5992 = vld [vmem:[%s5986 + $0x14] sm:$0xf]
        %v5993 = vld [vmem:[%s5986 + $0x18] sm:$0xf]
        %v5994 = vld [vmem:[%s5986 + $0x1c] sm:$0xf]
        %v6003 = vunpack.c.l.b16 %v5987
        %v6004 = vunpack.c.l.b16 %v5988
        %v6005 = vunpack.c.l.b16 %v5989
        %v6006 = vunpack.c.l.b16 %v5990
        %v6007 = vunpack.c.l.b16 %v5991
        %v6008 = vunpack.c.l.b16 %v5992
        %v6009 = vunpack.c.l.b16 %v5993
        %v6010 = vunpack.c.l.b16 %v5994
        %v6011 = vpack.c.b16 %v6004, %v6003
        %v6012 = vpack.c.b16 %v6006, %v6005
        %v6013 = vpack.c.b16 %v6008, %v6007
        %v6014 = vpack.c.b16 %v6010, %v6009
        %6019 = vmatprep.subr.bf16.mxu0 0
        %6020 = vmatpush1.bf16.msra.mxu0 0
        %6021 = vmatprep.subr.bf16.mxu0 0
        %6022 = vmatpush1.bf16.msra.mxu0 0
        %6023 = vmatprep.subr.bf16.mxu0 0
        %6024 = vmatpush1.bf16.msra.mxu0 0
        %6025 = vmatprep.subr.bf16.mxu0 0
        %6026 = vmatpush1.bf16.msra.mxu0 0
        %6027 = vmatprep.subr.bf16.mxu0 0
        %6028 = vmatpush1.bf16.msra.mxu0 %v6014
        %6029 = vmatprep.subr.bf16.mxu0 0
        %6030 = vmatpush1.bf16.msra.mxu0 %v6013
        %6031 = vmatprep.subr.bf16.mxu0 0
        %6032 = vmatpush1.bf16.msra.mxu0 %v6012
        %6033 = vmatprep.subr.bf16.mxu0 0
        %6034 = vmatpush1.bf16.msra.mxu0 %v6011
        %6035 = vmatprep.subr.bf16.mxu0 0
        %6036 = vmatpush2.bf16.msra.mxu0 0
        %6037 = vmatprep.subr.bf16.mxu0 0
        %6038 = vmatpush2.bf16.msra.mxu0 0
        %6039 = vmatprep.subr.bf16.mxu0 0
        %6040 = vmatpush2.bf16.msra.mxu0 0
        %6041 = vmatprep.subr.bf16.mxu0 0
        %6042 = vmatpush2.bf16.msra.mxu0 0
        %6043 = vmatprep.subr.bf16.mxu0 0
        %6044 = vmatpush2.bf16.msra.mxu0 0
        %6045 = vmatprep.subr.bf16.mxu0 0
        %6046 = vmatpush2.bf16.msra.mxu0 0
        %6047 = vmatprep.subr.bf16.mxu0 0
        %6048 = vmatpush2.bf16.msra.mxu0 0
        %6049 = vmatprep.subr.bf16.mxu0 0
        %6050 = vmatpush2.bf16.msra.mxu0 0
        %6051 = vmatprep.mubr.bf16.mxu0 0
        %6052 = vmatmul.mubr.bf16.gmra.mxu0 %v5760
        %v6053 = vpop.f32.mrf.mxu0
        %v6054 = vadd.f32 0.0, %v6053
        %v6055 = vpop.f32.mrf.mxu0
        %v6056 = vpop.f32.mrf.mxu0
        %v6057 = vadd.f32 0.0, %v6056
        %v6058 = vpop.f32.mrf.mxu0
        %6059 = vmatprep.mubr.bf16.mxu0 0
        %6060 = vmatmul.mubr.bf16.gmra.mxu0 %v5763
        %v6061 = vpop.f32.mrf.mxu0
        %v6062 = vadd.f32 0.0, %v6061
        %v6063 = vpop.f32.mrf.mxu0
        %v6064 = vpop.f32.mrf.mxu0
        %v6065 = vadd.f32 0.0, %v6064
        %v6066 = vpop.f32.mrf.mxu0
        %6067 = vdwg.mxu0
        %v6068 = vmax.f32 %v5982, %v6054
        %v6069 = vmax.f32 %v5983, %v6057
        %v6070 = vmax.f32 %v5984, %v6062
        %v6071 = vmax.f32 %v5985, %v6065
        %v6072 = vpack.c.bf16 %v6069, %v6068
        %v6073 = vpack.c.bf16 %v6071, %v6070
        %v6074 = vld [vmem:[#allocation15] sm:$0xf]
        %v6075 = vld [vmem:[#allocation15 + $0x4] sm:$0xf]
        %v6076 = vld [vmem:[#allocation15 + $0x8] sm:$0xf]
        %v6077 = vld [vmem:[#allocation15 + $0xc] sm:$0xf]
        %v6078 = vld [vmem:[#allocation16] sm:$0xff]
        %v6079 = vld [vmem:[#allocation16 + $0x8] sm:$0xff]
        %v6080 = vld [vmem:[#allocation16 + $0x10] sm:$0xff]
        %v6081 = vld [vmem:[#allocation16 + $0x18] sm:$0xff]
        %6083 = vset.pattern.permute.xlu0 0
        %6084 = vperm.xlu0 %6083, %v6078
        %v6085 = vpop.permute.xlu0 %6084
        %6088 = vset.pattern.permute.xlu0 0
        %6089 = vperm.xlu0 %6088, %v6079
        %v6090 = vpop.permute.xlu0 %6089
        %6093 = vset.pattern.permute.xlu0 0
        %6094 = vperm.xlu0 %6093, %v6080
        %v6095 = vpop.permute.xlu0 %6094
        %6098 = vset.pattern.permute.xlu0 0
        %6099 = vperm.xlu0 %6098, %v6081
        %v6100 = vpop.permute.xlu0 %6099
        %v6106 = vunpack.c.l.b16 %v6074
        %v6107 = vunpack.c.l.b16 %v6075
        %v6108 = vunpack.c.l.b16 %v6076
        %v6109 = vunpack.c.l.b16 %v6077
        %v6110 = vpack.c.b16 %v6107, %v6106
        %v6111 = vpack.c.b16 %v6109, %v6108
        %vm6112 = vcmask 261120
        %v6114 = vsel %vm6112, %v6110, 0
        %v6117 = vsel %vm6112, %v6111, 0
        %6119 = vmatprep.subr.bf16.mxu0 0
        %6120 = vmatpush1.bf16.msra.mxu0 0
        %6121 = vmatprep.subr.bf16.mxu0 0
        %6122 = vmatpush1.bf16.msra.mxu0 0
        %6123 = vmatprep.subr.bf16.mxu0 0
        %6124 = vmatpush1.bf16.msra.mxu0 0
        %6125 = vmatprep.subr.bf16.mxu0 0
        %6126 = vmatpush1.bf16.msra.mxu0 0
        %6127 = vmatprep.subr.bf16.mxu0 0
        %6128 = vmatpush1.bf16.msra.mxu0 0
        %6129 = vmatprep.subr.bf16.mxu0 0
        %6130 = vmatpush1.bf16.msra.mxu0 0
        %6131 = vmatprep.subr.bf16.mxu0 0
        %6132 = vmatpush1.bf16.msra.mxu0 %v6073
        %6133 = vmatprep.subr.bf16.mxu0 0
        %6134 = vmatpush1.bf16.msra.mxu0 %v6072
        %6135 = vmatprep.subr.bf16.mxu0 0
        %6136 = vmatpush2.bf16.msra.mxu0 0
        %6137 = vmatprep.subr.bf16.mxu0 0
        %6138 = vmatpush2.bf16.msra.mxu0 0
        %6139 = vmatprep.subr.bf16.mxu0 0
        %6140 = vmatpush2.bf16.msra.mxu0 0
        %6141 = vmatprep.subr.bf16.mxu0 0
        %6142 = vmatpush2.bf16.msra.mxu0 0
        %6143 = vmatprep.subr.bf16.mxu0 0
        %6144 = vmatpush2.bf16.msra.mxu0 0
        %6145 = vmatprep.subr.bf16.mxu0 0
        %6146 = vmatpush2.bf16.msra.mxu0 0
        %6147 = vmatprep.subr.bf16.mxu0 0
        %6148 = vmatpush2.bf16.msra.mxu0 0
        %6149 = vmatprep.subr.bf16.mxu0 0
        %6150 = vmatpush2.bf16.msra.mxu0 0
        %6151 = vmatprep.mubr.bf16.mxu0 0
        %6152 = vmatmul.mubr.bf16.gmra.mxu0 %v6114
        %v6153 = vpop.f32.mrf.mxu0
        %v6154 = vadd.f32 %v6085, %v6153
        %v6155 = vpop.f32.mrf.mxu0
        %v6156 = vpop.f32.mrf.mxu0
        %v6157 = vadd.f32 %v6090, %v6156
        %v6158 = vpop.f32.mrf.mxu0
        %6159 = vmatprep.mubr.bf16.mxu0 0
        %6160 = vmatmul.mubr.bf16.gmra.mxu0 %v6117
        %v6161 = vpop.f32.mrf.mxu0
        %v6162 = vadd.f32 %v6095, %v6161
        %v6163 = vpop.f32.mrf.mxu0
        %v6164 = vpop.f32.mrf.mxu0
        %v6165 = vadd.f32 %v6100, %v6164
        %v6166 = vpop.f32.mrf.mxu0
        %6167 = vdwg.mxu0
        %v6168 = vsub.f32 0.0, %v6154
        %v6169 = vsub.f32 0.0, %v6157
        %v6170 = vsub.f32 0.0, %v6162
        %v6171 = vsub.f32 0.0, %v6165
        %v6172 = vmul.f32 %v6168, 1.442695
        %v6173 = vpow.pop %v6172
        %v6174 = vmul.f32 %v6169, 1.442695
        %v6175 = vpow.pop %v6174
        %v6176 = vmul.f32 %v6170, 1.442695
        %v6177 = vpow.pop %v6176
        %v6178 = vmul.f32 %v6171, 1.442695
        %v6179 = vpow.pop %v6178
        %v6180 = vadd.f32 %v6173, 1.0
        %v6181 = vadd.f32 %v6175, 1.0
        %v6182 = vadd.f32 %v6177, 1.0
        %v6183 = vadd.f32 %v6179, 1.0
        %v6184 = vrcp.pop %v6180
        %v6185 = vrcp.pop %v6181
        %v6186 = vrcp.pop %v6182
        %v6187 = vrcp.pop %v6183
        %v6188 = vmul.f32 %v6154, %v6184
        %v6189 = vmul.f32 %v6157, %v6185
        %v6190 = vmul.f32 %v6162, %v6186
        %v6191 = vmul.f32 %v6165, %v6187
        %v6192 = vpack.c.bf16 %v6189, %v6188
        %v6193 = vpack.c.bf16 %v6191, %v6190
        %v6194 = vld [vmem:[#allocation18] sm:$0xf]
        %v6195 = vld [vmem:[#allocation18 + $0x4] sm:$0xf]
        %v6198 = vunpack.c.l.b16 %v6194
        %v6199 = vunpack.c.l.b16 %v6195
        %v6200 = vpack.c.b16 %v6199, %v6198
        %v6203 = vsel %vm4509, %v6192, 0
        %v6206 = vsel %vm4509, %v6193, 0
        %6208 = vmatprep.subr.bf16.mxu0 0
        %6209 = vmatpush1.bf16.msra.mxu0 0
        %6210 = vmatprep.subr.bf16.mxu0 0
        %6211 = vmatpush1.bf16.msra.mxu0 0
        %6212 = vmatprep.subr.bf16.mxu0 0
        %6213 = vmatpush1.bf16.msra.mxu0 0
        %6214 = vmatprep.subr.bf16.mxu0 0
        %6215 = vmatpush1.bf16.msra.mxu0 0
        %6216 = vmatprep.subr.bf16.mxu0 0
        %6217 = vmatpush1.bf16.msra.mxu0 0
        %6218 = vmatprep.subr.bf16.mxu0 0
        %6219 = vmatpush1.bf16.msra.mxu0 0
        %6220 = vmatprep.subr.bf16.mxu0 0
        %6221 = vmatpush1.bf16.msra.mxu0 0
        %6222 = vmatprep.subr.bf16.mxu0 0
        %6223 = vmatpush1.bf16.msra.mxu0 %v6200
        %6224 = vmatprep.subr.bf16.mxu0 0
        %6225 = vmatpush2.bf16.msra.mxu0 0
        %6226 = vmatprep.subr.bf16.mxu0 0
        %6227 = vmatpush2.bf16.msra.mxu0 0
        %6228 = vmatprep.subr.bf16.mxu0 0
        %6229 = vmatpush2.bf16.msra.mxu0 0
        %6230 = vmatprep.subr.bf16.mxu0 0
        %6231 = vmatpush2.bf16.msra.mxu0 0
        %6232 = vmatprep.subr.bf16.mxu0 0
        %6233 = vmatpush2.bf16.msra.mxu0 0
        %6234 = vmatprep.subr.bf16.mxu0 0
        %6235 = vmatpush2.bf16.msra.mxu0 0
        %6236 = vmatprep.subr.bf16.mxu0 0
        %6237 = vmatpush2.bf16.msra.mxu0 0
        %6238 = vmatprep.subr.bf16.mxu0 0
        %6239 = vmatpush2.bf16.msra.mxu0 0
        %6240 = vmatprep.mubr.bf16.mxu0 0
        %6241 = vmatmul.mubr.bf16.gmra.mxu0 %v6203
        %v6242 = vpop.f32.mrf.mxu0
        %v6243 = vadd.f32 0.0, %v6242
        %v6244 = vpop.f32.mrf.mxu0
        %v6245 = vpop.f32.mrf.mxu0
        %v6246 = vadd.f32 0.0, %v6245
        %v6247 = vpop.f32.mrf.mxu0
        %6248 = vmatprep.mubr.bf16.mxu0 0
        %6249 = vmatmul.mubr.bf16.gmra.mxu0 %v6206
        %v6250 = vpop.f32.mrf.mxu0
        %v6251 = vadd.f32 0.0, %v6250
        %v6252 = vpop.f32.mrf.mxu0
        %v6253 = vpop.f32.mrf.mxu0
        %v6254 = vadd.f32 0.0, %v6253
        %v6255 = vpop.f32.mrf.mxu0
        %6256 = vdwg.mxu0
        %v6257 = vpack.c.bf16 %v6246, %v6243
        %v6258 = vpack.c.bf16 %v6254, %v6251
        %v6259 = vld [vmem:[#allocation19] sm:$0xf]
        %v6260 = vld [vmem:[#allocation19 + $0x4] sm:$0xf]
        %v6261 = vld [vmem:[#allocation19 + $0x8] sm:$0xf]
        %v6262 = vld [vmem:[#allocation19 + $0xc] sm:$0xf]
        %v6263 = vld [vmem:[#allocation19 + $0x10] sm:$0xf]
        %v6264 = vld [vmem:[#allocation19 + $0x14] sm:$0xf]
        %v6265 = vld [vmem:[#allocation19 + $0x18] sm:$0xf]
        %v6266 = vld [vmem:[#allocation19 + $0x1c] sm:$0xf]
        %v6267 = vld [vmem:[#allocation21] sm:$0xf]
        %v6268 = vld [vmem:[#allocation21 + $0x4] sm:$0xf]
        %v6269 = vld [vmem:[#allocation21 + $0x8] sm:$0xf]
        %v6270 = vld [vmem:[#allocation21 + $0xc] sm:$0xf]
        %v6271 = vld [vmem:[#allocation21 + $0x10] sm:$0xf]
        %v6272 = vld [vmem:[#allocation21 + $0x14] sm:$0xf]
        %v6273 = vld [vmem:[#allocation21 + $0x18] sm:$0xf]
        %v6274 = vld [vmem:[#allocation21 + $0x1c] sm:$0xf]
        %v6283 = vunpack.c.l.b16 %v6267
        %v6284 = vunpack.c.l.b16 %v6268
        %v6285 = vunpack.c.l.b16 %v6269
        %v6286 = vunpack.c.l.b16 %v6270
        %v6287 = vunpack.c.l.b16 %v6271
        %v6288 = vunpack.c.l.b16 %v6272
        %v6289 = vunpack.c.l.b16 %v6273
        %v6290 = vunpack.c.l.b16 %v6274
        %v6291 = vpack.c.b16 %v6284, %v6283
        %v6292 = vpack.c.b16 %v6286, %v6285
        %v6293 = vpack.c.b16 %v6288, %v6287
        %v6294 = vpack.c.b16 %v6290, %v6289
        %v6296 = vsel %vm6112, %v6291, 0
        %v6299 = vsel %vm6112, %v6292, 0
        %v6302 = vsel %vm6112, %v6293, 0
        %v6305 = vsel %vm6112, %v6294, 0
        %6307 = vmatprep.subr.bf16.mxu0 0
        %6308 = vmatpush1.bf16.msra.mxu0 0
        %6309 = vmatprep.subr.bf16.mxu0 0
        %6310 = vmatpush1.bf16.msra.mxu0 0
        %6311 = vmatprep.subr.bf16.mxu0 0
        %6312 = vmatpush1.bf16.msra.mxu0 0
        %6313 = vmatprep.subr.bf16.mxu0 0
        %6314 = vmatpush1.bf16.msra.mxu0 0
        %6315 = vmatprep.subr.bf16.mxu0 0
        %6316 = vmatpush1.bf16.msra.mxu0 0
        %6317 = vmatprep.subr.bf16.mxu0 0
        %6318 = vmatpush1.bf16.msra.mxu0 0
        %6319 = vmatprep.subr.bf16.mxu0 0
        %6320 = vmatpush1.bf16.msra.mxu0 %v5726
        %6321 = vmatprep.subr.bf16.mxu0 0
        %6322 = vmatpush1.bf16.msra.mxu0 %v5725
        %6323 = vmatprep.subr.bf16.mxu0 0
        %6324 = vmatpush2.bf16.msra.mxu0 0
        %6325 = vmatprep.subr.bf16.mxu0 0
        %6326 = vmatpush2.bf16.msra.mxu0 0
        %6327 = vmatprep.subr.bf16.mxu0 0
        %6328 = vmatpush2.bf16.msra.mxu0 0
        %6329 = vmatprep.subr.bf16.mxu0 0
        %6330 = vmatpush2.bf16.msra.mxu0 0
        %6331 = vmatprep.subr.bf16.mxu0 0
        %6332 = vmatpush2.bf16.msra.mxu0 0
        %6333 = vmatprep.subr.bf16.mxu0 0
        %6334 = vmatpush2.bf16.msra.mxu0 0
        %6335 = vmatprep.subr.bf16.mxu0 0
        %6336 = vmatpush2.bf16.msra.mxu0 0
        %6337 = vmatprep.subr.bf16.mxu0 0
        %6338 = vmatpush2.bf16.msra.mxu0 0
        %6339 = vmatprep.mubr.bf16.mxu0 0
        %6340 = vmatmul.mubr.bf16.gmra.mxu0 %v6296
        %v6341 = vpop.f32.mrf.mxu0
        %v6342 = vadd.f32 0.0, %v6341
        %v6343 = vpop.f32.mrf.mxu0
        %v6344 = vpop.f32.mrf.mxu0
        %v6345 = vadd.f32 0.0, %v6344
        %v6346 = vpop.f32.mrf.mxu0
        %6347 = vmatprep.mubr.bf16.mxu0 0
        %6348 = vmatmul.mubr.bf16.gmra.mxu0 %v6299
        %v6349 = vpop.f32.mrf.mxu0
        %v6350 = vadd.f32 0.0, %v6349
        %v6351 = vpop.f32.mrf.mxu0
        %v6352 = vpop.f32.mrf.mxu0
        %v6353 = vadd.f32 0.0, %v6352
        %v6354 = vpop.f32.mrf.mxu0
        %6355 = vmatprep.mubr.bf16.mxu0 0
        %6356 = vmatmul.mubr.bf16.gmra.mxu0 %v6302
        %v6357 = vpop.f32.mrf.mxu0
        %v6358 = vadd.f32 0.0, %v6357
        %v6359 = vpop.f32.mrf.mxu0
        %v6360 = vpop.f32.mrf.mxu0
        %v6361 = vadd.f32 0.0, %v6360
        %v6362 = vpop.f32.mrf.mxu0
        %6363 = vmatprep.mubr.bf16.mxu0 0
        %6364 = vmatmul.mubr.bf16.gmra.mxu0 %v6305
        %v6365 = vpop.f32.mrf.mxu0
        %v6366 = vadd.f32 0.0, %v6365
        %v6367 = vpop.f32.mrf.mxu0
        %v6368 = vpop.f32.mrf.mxu0
        %v6369 = vadd.f32 0.0, %v6368
        %v6370 = vpop.f32.mrf.mxu0
        %6371 = vdwg.mxu0
        %v6380 = vunpack.c.l.b16 %v6259
        %v6381 = vunpack.c.l.b16 %v6260
        %v6382 = vunpack.c.l.b16 %v6261
        %v6383 = vunpack.c.l.b16 %v6262
        %v6384 = vunpack.c.l.b16 %v6263
        %v6385 = vunpack.c.l.b16 %v6264
        %v6386 = vunpack.c.l.b16 %v6265
        %v6387 = vunpack.c.l.b16 %v6266
        %v6388 = vpack.c.b16 %v6381, %v6380
        %v6389 = vpack.c.b16 %v6383, %v6382
        %v6390 = vpack.c.b16 %v6385, %v6384
        %v6391 = vpack.c.b16 %v6387, %v6386
        %v6393 = vsel %vm6112, %v6388, 0
        %v6396 = vsel %vm6112, %v6389, 0
        %v6399 = vsel %vm6112, %v6390, 0
        %v6402 = vsel %vm6112, %v6391, 0
        %6404 = vmatprep.subr.bf16.mxu0 0
        %6405 = vmatpush1.bf16.msra.mxu0 0
        %6406 = vmatprep.subr.bf16.mxu0 0
        %6407 = vmatpush1.bf16.msra.mxu0 0
        %6408 = vmatprep.subr.bf16.mxu0 0
        %6409 = vmatpush1.bf16.msra.mxu0 0
        %6410 = vmatprep.subr.bf16.mxu0 0
        %6411 = vmatpush1.bf16.msra.mxu0 0
        %6412 = vmatprep.subr.bf16.mxu0 0
        %6413 = vmatpush1.bf16.msra.mxu0 0
        %6414 = vmatprep.subr.bf16.mxu0 0
        %6415 = vmatpush1.bf16.msra.mxu0 0
        %6416 = vmatprep.subr.bf16.mxu0 0
        %6417 = vmatpush1.bf16.msra.mxu0 %v6258
        %6418 = vmatprep.subr.bf16.mxu0 0
        %6419 = vmatpush1.bf16.msra.mxu0 %v6257
        %6420 = vmatprep.subr.bf16.mxu0 0
        %6421 = vmatpush2.bf16.msra.mxu0 0
        %6422 = vmatprep.subr.bf16.mxu0 0
        %6423 = vmatpush2.bf16.msra.mxu0 0
        %6424 = vmatprep.subr.bf16.mxu0 0
        %6425 = vmatpush2.bf16.msra.mxu0 0
        %6426 = vmatprep.subr.bf16.mxu0 0
        %6427 = vmatpush2.bf16.msra.mxu0 0
        %6428 = vmatprep.subr.bf16.mxu0 0
        %6429 = vmatpush2.bf16.msra.mxu0 0
        %6430 = vmatprep.subr.bf16.mxu0 0
        %6431 = vmatpush2.bf16.msra.mxu0 0
        %6432 = vmatprep.subr.bf16.mxu0 0
        %6433 = vmatpush2.bf16.msra.mxu0 0
        %6434 = vmatprep.subr.bf16.mxu0 0
        %6435 = vmatpush2.bf16.msra.mxu0 0
        %6436 = vmatprep.mubr.bf16.mxu0 0
        %6437 = vmatmul.mubr.bf16.gmra.mxu0 %v6393
        %v6438 = vpop.f32.mrf.mxu0
        %v6439 = vadd.f32 %v6342, %v6438
        %v6440 = vpop.f32.mrf.mxu0
        %v6441 = vpop.f32.mrf.mxu0
        %v6442 = vadd.f32 %v6345, %v6441
        %v6443 = vpop.f32.mrf.mxu0
        %6444 = vmatprep.mubr.bf16.mxu0 0
        %6445 = vmatmul.mubr.bf16.gmra.mxu0 %v6396
        %v6446 = vpop.f32.mrf.mxu0
        %v6447 = vadd.f32 %v6350, %v6446
        %v6448 = vpop.f32.mrf.mxu0
        %v6449 = vpop.f32.mrf.mxu0
        %v6450 = vadd.f32 %v6353, %v6449
        %v6451 = vpop.f32.mrf.mxu0
        %6452 = vmatprep.mubr.bf16.mxu0 0
        %6453 = vmatmul.mubr.bf16.gmra.mxu0 %v6399
        %v6454 = vpop.f32.mrf.mxu0
        %v6455 = vadd.f32 %v6358, %v6454
        %v6456 = vpop.f32.mrf.mxu0
        %v6457 = vpop.f32.mrf.mxu0
        %v6458 = vadd.f32 %v6361, %v6457
        %v6459 = vpop.f32.mrf.mxu0
        %6460 = vmatprep.mubr.bf16.mxu0 0
        %6461 = vmatmul.mubr.bf16.gmra.mxu0 %v6402
        %v6462 = vpop.f32.mrf.mxu0
        %v6463 = vadd.f32 %v6366, %v6462
        %v6464 = vpop.f32.mrf.mxu0
        %v6465 = vpop.f32.mrf.mxu0
        %v6466 = vadd.f32 %v6369, %v6465
        %v6467 = vpop.f32.mrf.mxu0
        %6468 = vdwg.mxu0
        %v6469 = vpack.c.bf16 %v6442, %v6439
        %v6470 = vpack.c.bf16 %v6450, %v6447
        %v6471 = vpack.c.bf16 %v6458, %v6455
        %v6472 = vpack.c.bf16 %v6466, %v6463
        %v6473 = vld [vmem:[#allocation25] sm:$0xf]
        %v6474 = vld [vmem:[#allocation25 + $0x4] sm:$0xf]
        %v6475 = vld [vmem:[#allocation25 + $0x8] sm:$0xf]
        %v6476 = vld [vmem:[#allocation25 + $0xc] sm:$0xf]
        %v6477 = vld [vmem:[#allocation25 + $0x10] sm:$0xf]
        %v6478 = vld [vmem:[#allocation25 + $0x14] sm:$0xf]
        %v6479 = vld [vmem:[#allocation25 + $0x18] sm:$0xf]
        %v6480 = vld [vmem:[#allocation25 + $0x1c] sm:$0xf]
        %v6489 = vunpack.c.l.b16 %v6473
        %v6490 = vunpack.c.l.b16 %v6474
        %v6491 = vunpack.c.l.b16 %v6475
        %v6492 = vunpack.c.l.b16 %v6476
        %v6493 = vunpack.c.l.b16 %v6477
        %v6494 = vunpack.c.l.b16 %v6478
        %v6495 = vunpack.c.l.b16 %v6479
        %v6496 = vunpack.c.l.b16 %v6480
        %v6497 = vpack.c.b16 %v6490, %v6489
        %v6498 = vpack.c.b16 %v6492, %v6491
        %v6499 = vpack.c.b16 %v6494, %v6493
        %v6500 = vpack.c.b16 %v6496, %v6495
        %v6506 = vsel %vm4369, %v6469, 0
        %v6509 = vsel %vm4369, %v6470, 0
        %v6512 = vsel %vm4369, %v6471, 0
        %v6515 = vsel %vm4369, %v6472, 0
        %6517 = vmatprep.subr.bf16.mxu0 0
        %6518 = vmatpush1.bf16.msra.mxu0 0
        %6519 = vmatprep.subr.bf16.mxu0 0
        %6520 = vmatpush1.bf16.msra.mxu0 0
        %6521 = vmatprep.subr.bf16.mxu0 0
        %6522 = vmatpush1.bf16.msra.mxu0 0
        %6523 = vmatprep.subr.bf16.mxu0 0
        %6524 = vmatpush1.bf16.msra.mxu0 0
        %6525 = vmatprep.subr.bf16.mxu0 0
        %6526 = vmatpush1.bf16.msra.mxu0 %v6500
        %6527 = vmatprep.subr.bf16.mxu0 0
        %6528 = vmatpush1.bf16.msra.mxu0 %v6499
        %6529 = vmatprep.subr.bf16.mxu0 0
        %6530 = vmatpush1.bf16.msra.mxu0 %v6498
        %6531 = vmatprep.subr.bf16.mxu0 0
        %6532 = vmatpush1.bf16.msra.mxu0 %v6497
        %6533 = vmatprep.subr.bf16.mxu0 0
        %6534 = vmatpush2.bf16.msra.mxu0 0
        %6535 = vmatprep.subr.bf16.mxu0 0
        %6536 = vmatpush2.bf16.msra.mxu0 0
        %6537 = vmatprep.subr.bf16.mxu0 0
        %6538 = vmatpush2.bf16.msra.mxu0 0
        %6539 = vmatprep.subr.bf16.mxu0 0
        %6540 = vmatpush2.bf16.msra.mxu0 0
        %6541 = vmatprep.subr.bf16.mxu0 0
        %6542 = vmatpush2.bf16.msra.mxu0 0
        %6543 = vmatprep.subr.bf16.mxu0 0
        %6544 = vmatpush2.bf16.msra.mxu0 0
        %6545 = vmatprep.subr.bf16.mxu0 0
        %6546 = vmatpush2.bf16.msra.mxu0 0
        %6547 = vmatprep.subr.bf16.mxu0 0
        %6548 = vmatpush2.bf16.msra.mxu0 0
        %6549 = vmatprep.mubr.bf16.mxu0 0
        %6550 = vmatmul.mubr.bf16.gmra.mxu0 %v6506
        %v6551 = vpop.f32.mrf.mxu0
        %v6552 = vadd.f32 0.0, %v6551
        %v6553 = vpop.f32.mrf.mxu0
        %v6554 = vpop.f32.mrf.mxu0
        %v6555 = vadd.f32 0.0, %v6554
        %v6556 = vpop.f32.mrf.mxu0
        %6557 = vmatprep.mubr.bf16.mxu0 0
        %6558 = vmatmul.mubr.bf16.gmra.mxu0 %v6509
        %v6559 = vpop.f32.mrf.mxu0
        %v6560 = vadd.f32 0.0, %v6559
        %v6561 = vpop.f32.mrf.mxu0
        %v6562 = vpop.f32.mrf.mxu0
        %v6563 = vadd.f32 0.0, %v6562
        %v6564 = vpop.f32.mrf.mxu0
        %6565 = vmatprep.mubr.bf16.mxu0 0
        %6566 = vmatmul.mubr.bf16.gmra.mxu0 %v6512
        %v6567 = vpop.f32.mrf.mxu0
        %v6568 = vadd.f32 0.0, %v6567
        %v6569 = vpop.f32.mrf.mxu0
        %v6570 = vpop.f32.mrf.mxu0
        %v6571 = vadd.f32 0.0, %v6570
        %v6572 = vpop.f32.mrf.mxu0
        %6573 = vmatprep.mubr.bf16.mxu0 0
        %6574 = vmatmul.mubr.bf16.gmra.mxu0 %v6515
        %v6575 = vpop.f32.mrf.mxu0
        %v6576 = vadd.f32 0.0, %v6575
        %v6577 = vpop.f32.mrf.mxu0
        %v6578 = vpop.f32.mrf.mxu0
        %v6579 = vadd.f32 0.0, %v6578
        %v6580 = vpop.f32.mrf.mxu0
        %6581 = vdwg.mxu0
        %v6582 = vpack.c.bf16 %v6555, %v6552
        %v6583 = vpack.c.bf16 %v6563, %v6560
        %v6584 = vpack.c.bf16 %v6571, %v6568
        %v6585 = vpack.c.bf16 %v6579, %v6576
        %v6586 = vld [vmem:[#allocation22] sm:$0xf]
        %v6587 = vld [vmem:[#allocation22 + $0x4] sm:$0xf]
        %s6588 = scalar_lea.vmem [#allocation25], 32
        %v6589 = vld [vmem:[%s6588] sm:$0xf]
        %v6590 = vld [vmem:[%s6588 + $0x4] sm:$0xf]
        %v6591 = vld [vmem:[%s6588 + $0x8] sm:$0xf]
        %v6592 = vld [vmem:[%s6588 + $0xc] sm:$0xf]
        %v6593 = vld [vmem:[%s6588 + $0x10] sm:$0xf]
        %v6594 = vld [vmem:[%s6588 + $0x14] sm:$0xf]
        %v6595 = vld [vmem:[%s6588 + $0x18] sm:$0xf]
        %v6596 = vld [vmem:[%s6588 + $0x1c] sm:$0xf]
        %v6605 = vunpack.c.l.b16 %v6589
        %v6606 = vunpack.c.l.b16 %v6590
        %v6607 = vunpack.c.l.b16 %v6591
        %v6608 = vunpack.c.l.b16 %v6592
        %v6609 = vunpack.c.l.b16 %v6593
        %v6610 = vunpack.c.l.b16 %v6594
        %v6611 = vunpack.c.l.b16 %v6595
        %v6612 = vunpack.c.l.b16 %v6596
        %v6613 = vpack.c.b16 %v6606, %v6605
        %v6614 = vpack.c.b16 %v6608, %v6607
        %v6615 = vpack.c.b16 %v6610, %v6609
        %v6616 = vpack.c.b16 %v6612, %v6611
        %6621 = vmatprep.subr.bf16.mxu0 0
        %6622 = vmatpush1.bf16.msra.mxu0 0
        %6623 = vmatprep.subr.bf16.mxu0 0
        %6624 = vmatpush1.bf16.msra.mxu0 0
        %6625 = vmatprep.subr.bf16.mxu0 0
        %6626 = vmatpush1.bf16.msra.mxu0 0
        %6627 = vmatprep.subr.bf16.mxu0 0
        %6628 = vmatpush1.bf16.msra.mxu0 0
        %6629 = vmatprep.subr.bf16.mxu0 0
        %6630 = vmatpush1.bf16.msra.mxu0 %v6616
        %6631 = vmatprep.subr.bf16.mxu0 0
        %6632 = vmatpush1.bf16.msra.mxu0 %v6615
        %6633 = vmatprep.subr.bf16.mxu0 0
        %6634 = vmatpush1.bf16.msra.mxu0 %v6614
        %6635 = vmatprep.subr.bf16.mxu0 0
        %6636 = vmatpush1.bf16.msra.mxu0 %v6613
        %6637 = vmatprep.subr.bf16.mxu0 0
        %6638 = vmatpush2.bf16.msra.mxu0 0
        %6639 = vmatprep.subr.bf16.mxu0 0
        %6640 = vmatpush2.bf16.msra.mxu0 0
        %6641 = vmatprep.subr.bf16.mxu0 0
        %6642 = vmatpush2.bf16.msra.mxu0 0
        %6643 = vmatprep.subr.bf16.mxu0 0
        %6644 = vmatpush2.bf16.msra.mxu0 0
        %6645 = vmatprep.subr.bf16.mxu0 0
        %6646 = vmatpush2.bf16.msra.mxu0 0
        %6647 = vmatprep.subr.bf16.mxu0 0
        %6648 = vmatpush2.bf16.msra.mxu0 0
        %6649 = vmatprep.subr.bf16.mxu0 0
        %6650 = vmatpush2.bf16.msra.mxu0 0
        %6651 = vmatprep.subr.bf16.mxu0 0
        %6652 = vmatpush2.bf16.msra.mxu0 0
        %6653 = vmatprep.mubr.bf16.mxu0 0
        %6654 = vmatmul.mubr.bf16.gmra.mxu0 %v6506
        %v6655 = vpop.f32.mrf.mxu0
        %v6656 = vadd.f32 0.0, %v6655
        %v6657 = vpop.f32.mrf.mxu0
        %v6658 = vpop.f32.mrf.mxu0
        %v6659 = vadd.f32 0.0, %v6658
        %v6660 = vpop.f32.mrf.mxu0
        %6661 = vmatprep.mubr.bf16.mxu0 0
        %6662 = vmatmul.mubr.bf16.gmra.mxu0 %v6509
        %v6663 = vpop.f32.mrf.mxu0
        %v6664 = vadd.f32 0.0, %v6663
        %v6665 = vpop.f32.mrf.mxu0
        %v6666 = vpop.f32.mrf.mxu0
        %v6667 = vadd.f32 0.0, %v6666
        %v6668 = vpop.f32.mrf.mxu0
        %6669 = vmatprep.mubr.bf16.mxu0 0
        %6670 = vmatmul.mubr.bf16.gmra.mxu0 %v6512
        %v6671 = vpop.f32.mrf.mxu0
        %v6672 = vadd.f32 0.0, %v6671
        %v6673 = vpop.f32.mrf.mxu0
        %v6674 = vpop.f32.mrf.mxu0
        %v6675 = vadd.f32 0.0, %v6674
        %v6676 = vpop.f32.mrf.mxu0
        %6677 = vmatprep.mubr.bf16.mxu0 0
        %6678 = vmatmul.mubr.bf16.gmra.mxu0 %v6515
        %v6679 = vpop.f32.mrf.mxu0
        %v6680 = vadd.f32 0.0, %v6679
        %v6681 = vpop.f32.mrf.mxu0
        %v6682 = vpop.f32.mrf.mxu0
        %v6683 = vadd.f32 0.0, %v6682
        %v6684 = vpop.f32.mrf.mxu0
        %6685 = vdwg.mxu0
        %v6686 = vpack.c.bf16 %v6659, %v6656
        %v6687 = vpack.c.bf16 %v6667, %v6664
        %v6688 = vpack.c.bf16 %v6675, %v6672
        %v6689 = vpack.c.bf16 %v6683, %v6680
        %s6690 = scalar_lea.vmem [#allocation22], 8
        %v6691 = vld [vmem:[%s6690] sm:$0xf]
        %v6692 = vld [vmem:[%s6690 + $0x4] sm:$0xf]
        %v6695 = vunpack.c.l.b16 %v6691
        %v6696 = vunpack.c.l.b16 %v6692
        %v6697 = vpack.c.b16 %v6696, %v6695
        %v6699 = vsel %vm4369, %v6697, 0
        %6701 = vmatprep.subr.bf16.mxu0 0
        %6702 = vmatpush1.bf16.msra.mxu0 0
        %6703 = vmatprep.subr.bf16.mxu0 0
        %6704 = vmatpush1.bf16.msra.mxu0 0
        %6705 = vmatprep.subr.bf16.mxu0 0
        %6706 = vmatpush1.bf16.msra.mxu0 0
        %6707 = vmatprep.subr.bf16.mxu0 0
        %6708 = vmatpush1.bf16.msra.mxu0 0
        %6709 = vmatprep.subr.bf16.mxu0 0
        %6710 = vmatpush1.bf16.msra.mxu0 %v6689
        %6711 = vmatprep.subr.bf16.mxu0 0
        %6712 = vmatpush1.bf16.msra.mxu0 %v6688
        %6713 = vmatprep.subr.bf16.mxu0 0
        %6714 = vmatpush1.bf16.msra.mxu0 %v6687
        %6715 = vmatprep.subr.bf16.mxu0 0
        %6716 = vmatpush1.bf16.msra.mxu0 %v6686
        %6717 = vmatprep.subr.bf16.mxu0 0
        %6718 = vmatpush2.bf16.msra.mxu0 0
        %6719 = vmatprep.subr.bf16.mxu0 0
        %6720 = vmatpush2.bf16.msra.mxu0 0
        %6721 = vmatprep.subr.bf16.mxu0 0
        %6722 = vmatpush2.bf16.msra.mxu0 0
        %6723 = vmatprep.subr.bf16.mxu0 0
        %6724 = vmatpush2.bf16.msra.mxu0 0
        %6725 = vmatprep.subr.bf16.mxu0 0
        %6726 = vmatpush2.bf16.msra.mxu0 0
        %6727 = vmatprep.subr.bf16.mxu0 0
        %6728 = vmatpush2.bf16.msra.mxu0 0
        %6729 = vmatprep.subr.bf16.mxu0 0
        %6730 = vmatpush2.bf16.msra.mxu0 0
        %6731 = vmatprep.subr.bf16.mxu0 0
        %6732 = vmatpush2.bf16.msra.mxu0 0
        %6733 = vmatprep.mubr.bf16.mxu0 0
        %6734 = vmatmul.mubr.bf16.gmra.mxu0 %v6699
        %v6735 = vpop.f32.mrf.mxu0
        %v6736 = vadd.f32 0.0, %v6735
        %v6737 = vpop.f32.mrf.mxu0
        %v6738 = vpop.f32.mrf.mxu0
        %v6739 = vadd.f32 0.0, %v6738
        %v6740 = vpop.f32.mrf.mxu0
        %6741 = vdwg.mxu0
        %v6744 = vunpack.c.l.b16 %v6586
        %v6745 = vunpack.c.l.b16 %v6587
        %v6746 = vpack.c.b16 %v6745, %v6744
        %v6748 = vsel %vm4369, %v6746, 0
        %6750 = vmatprep.subr.bf16.mxu0 0
        %6751 = vmatpush1.bf16.msra.mxu0 0
        %6752 = vmatprep.subr.bf16.mxu0 0
        %6753 = vmatpush1.bf16.msra.mxu0 0
        %6754 = vmatprep.subr.bf16.mxu0 0
        %6755 = vmatpush1.bf16.msra.mxu0 0
        %6756 = vmatprep.subr.bf16.mxu0 0
        %6757 = vmatpush1.bf16.msra.mxu0 0
        %6758 = vmatprep.subr.bf16.mxu0 0
        %6759 = vmatpush1.bf16.msra.mxu0 %v6585
        %6760 = vmatprep.subr.bf16.mxu0 0
        %6761 = vmatpush1.bf16.msra.mxu0 %v6584
        %6762 = vmatprep.subr.bf16.mxu0 0
        %6763 = vmatpush1.bf16.msra.mxu0 %v6583
        %6764 = vmatprep.subr.bf16.mxu0 0
        %6765 = vmatpush1.bf16.msra.mxu0 %v6582
        %6766 = vmatprep.subr.bf16.mxu0 0
        %6767 = vmatpush2.bf16.msra.mxu0 0
        %6768 = vmatprep.subr.bf16.mxu0 0
        %6769 = vmatpush2.bf16.msra.mxu0 0
        %6770 = vmatprep.subr.bf16.mxu0 0
        %6771 = vmatpush2.bf16.msra.mxu0 0
        %6772 = vmatprep.subr.bf16.mxu0 0
        %6773 = vmatpush2.bf16.msra.mxu0 0
        %6774 = vmatprep.subr.bf16.mxu0 0
        %6775 = vmatpush2.bf16.msra.mxu0 0
        %6776 = vmatprep.subr.bf16.mxu0 0
        %6777 = vmatpush2.bf16.msra.mxu0 0
        %6778 = vmatprep.subr.bf16.mxu0 0
        %6779 = vmatpush2.bf16.msra.mxu0 0
        %6780 = vmatprep.subr.bf16.mxu0 0
        %6781 = vmatpush2.bf16.msra.mxu0 0
        %6782 = vmatprep.mubr.bf16.mxu0 0
        %6783 = vmatmul.mubr.bf16.gmra.mxu0 %v6748
        %v6784 = vpop.f32.mrf.mxu0
        %v6785 = vadd.f32 %v6736, %v6784
        %v6786 = vpop.f32.mrf.mxu0
        %v6787 = vpop.f32.mrf.mxu0
        %v6788 = vadd.f32 %v6739, %v6787
        %v6789 = vpop.f32.mrf.mxu0
        %6790 = vdwg.mxu0
        %s6791 = scalar_lea.vmem [#allocation25], 64
        %v6792 = vld [vmem:[%s6791] sm:$0xf]
        %v6793 = vld [vmem:[%s6791 + $0x4] sm:$0xf]
        %v6794 = vld [vmem:[%s6791 + $0x8] sm:$0xf]
        %v6795 = vld [vmem:[%s6791 + $0xc] sm:$0xf]
        %v6796 = vld [vmem:[%s6791 + $0x10] sm:$0xf]
        %v6797 = vld [vmem:[%s6791 + $0x14] sm:$0xf]
        %v6798 = vld [vmem:[%s6791 + $0x18] sm:$0xf]
        %v6799 = vld [vmem:[%s6791 + $0x1c] sm:$0xf]
        %v6808 = vunpack.c.l.b16 %v6792
        %v6809 = vunpack.c.l.b16 %v6793
        %v6810 = vunpack.c.l.b16 %v6794
        %v6811 = vunpack.c.l.b16 %v6795
        %v6812 = vunpack.c.l.b16 %v6796
        %v6813 = vunpack.c.l.b16 %v6797
        %v6814 = vunpack.c.l.b16 %v6798
        %v6815 = vunpack.c.l.b16 %v6799
        %v6816 = vpack.c.b16 %v6809, %v6808
        %v6817 = vpack.c.b16 %v6811, %v6810
        %v6818 = vpack.c.b16 %v6813, %v6812
        %v6819 = vpack.c.b16 %v6815, %v6814
        %6824 = vmatprep.subr.bf16.mxu0 0
        %6825 = vmatpush1.bf16.msra.mxu0 0
        %6826 = vmatprep.subr.bf16.mxu0 0
        %6827 = vmatpush1.bf16.msra.mxu0 0
        %6828 = vmatprep.subr.bf16.mxu0 0
        %6829 = vmatpush1.bf16.msra.mxu0 0
        %6830 = vmatprep.subr.bf16.mxu0 0
        %6831 = vmatpush1.bf16.msra.mxu0 0
        %6832 = vmatprep.subr.bf16.mxu0 0
        %6833 = vmatpush1.bf16.msra.mxu0 %v6819
        %6834 = vmatprep.subr.bf16.mxu0 0
        %6835 = vmatpush1.bf16.msra.mxu0 %v6818
        %6836 = vmatprep.subr.bf16.mxu0 0
        %6837 = vmatpush1.bf16.msra.mxu0 %v6817
        %6838 = vmatprep.subr.bf16.mxu0 0
        %6839 = vmatpush1.bf16.msra.mxu0 %v6816
        %6840 = vmatprep.subr.bf16.mxu0 0
        %6841 = vmatpush2.bf16.msra.mxu0 0
        %6842 = vmatprep.subr.bf16.mxu0 0
        %6843 = vmatpush2.bf16.msra.mxu0 0
        %6844 = vmatprep.subr.bf16.mxu0 0
        %6845 = vmatpush2.bf16.msra.mxu0 0
        %6846 = vmatprep.subr.bf16.mxu0 0
        %6847 = vmatpush2.bf16.msra.mxu0 0
        %6848 = vmatprep.subr.bf16.mxu0 0
        %6849 = vmatpush2.bf16.msra.mxu0 0
        %6850 = vmatprep.subr.bf16.mxu0 0
        %6851 = vmatpush2.bf16.msra.mxu0 0
        %6852 = vmatprep.subr.bf16.mxu0 0
        %6853 = vmatpush2.bf16.msra.mxu0 0
        %6854 = vmatprep.subr.bf16.mxu0 0
        %6855 = vmatpush2.bf16.msra.mxu0 0
        %6856 = vmatprep.mubr.bf16.mxu0 0
        %6857 = vmatmul.mubr.bf16.gmra.mxu0 %v6506
        %v6858 = vpop.f32.mrf.mxu0
        %v6859 = vadd.f32 0.0, %v6858
        %v6860 = vpop.f32.mrf.mxu0
        %v6861 = vpop.f32.mrf.mxu0
        %v6862 = vadd.f32 0.0, %v6861
        %v6863 = vpop.f32.mrf.mxu0
        %6864 = vmatprep.mubr.bf16.mxu0 0
        %6865 = vmatmul.mubr.bf16.gmra.mxu0 %v6509
        %v6866 = vpop.f32.mrf.mxu0
        %v6867 = vadd.f32 0.0, %v6866
        %v6868 = vpop.f32.mrf.mxu0
        %v6869 = vpop.f32.mrf.mxu0
        %v6870 = vadd.f32 0.0, %v6869
        %v6871 = vpop.f32.mrf.mxu0
        %6872 = vmatprep.mubr.bf16.mxu0 0
        %6873 = vmatmul.mubr.bf16.gmra.mxu0 %v6512
        %v6874 = vpop.f32.mrf.mxu0
        %v6875 = vadd.f32 0.0, %v6874
        %v6876 = vpop.f32.mrf.mxu0
        %v6877 = vpop.f32.mrf.mxu0
        %v6878 = vadd.f32 0.0, %v6877
        %v6879 = vpop.f32.mrf.mxu0
        %6880 = vmatprep.mubr.bf16.mxu0 0
        %6881 = vmatmul.mubr.bf16.gmra.mxu0 %v6515
        %v6882 = vpop.f32.mrf.mxu0
        %v6883 = vadd.f32 0.0, %v6882
        %v6884 = vpop.f32.mrf.mxu0
        %v6885 = vpop.f32.mrf.mxu0
        %v6886 = vadd.f32 0.0, %v6885
        %v6887 = vpop.f32.mrf.mxu0
        %6888 = vdwg.mxu0
        %v6889 = vpack.c.bf16 %v6862, %v6859
        %v6890 = vpack.c.bf16 %v6870, %v6867
        %v6891 = vpack.c.bf16 %v6878, %v6875
        %v6892 = vpack.c.bf16 %v6886, %v6883
        %s6893 = scalar_lea.vmem [#allocation22], 16
        %v6894 = vld [vmem:[%s6893] sm:$0xf]
        %v6895 = vld [vmem:[%s6893 + $0x4] sm:$0xf]
        %v6898 = vunpack.c.l.b16 %v6894
        %v6899 = vunpack.c.l.b16 %v6895
        %v6900 = vpack.c.b16 %v6899, %v6898
        %v6902 = vsel %vm4369, %v6900, 0
        %6904 = vmatprep.subr.bf16.mxu0 0
        %6905 = vmatpush1.bf16.msra.mxu0 0
        %6906 = vmatprep.subr.bf16.mxu0 0
        %6907 = vmatpush1.bf16.msra.mxu0 0
        %6908 = vmatprep.subr.bf16.mxu0 0
        %6909 = vmatpush1.bf16.msra.mxu0 0
        %6910 = vmatprep.subr.bf16.mxu0 0
        %6911 = vmatpush1.bf16.msra.mxu0 0
        %6912 = vmatprep.subr.bf16.mxu0 0
        %6913 = vmatpush1.bf16.msra.mxu0 %v6892
        %6914 = vmatprep.subr.bf16.mxu0 0
        %6915 = vmatpush1.bf16.msra.mxu0 %v6891
        %6916 = vmatprep.subr.bf16.mxu0 0
        %6917 = vmatpush1.bf16.msra.mxu0 %v6890
        %6918 = vmatprep.subr.bf16.mxu0 0
        %6919 = vmatpush1.bf16.msra.mxu0 %v6889
        %6920 = vmatprep.subr.bf16.mxu0 0
        %6921 = vmatpush2.bf16.msra.mxu0 0
        %6922 = vmatprep.subr.bf16.mxu0 0
        %6923 = vmatpush2.bf16.msra.mxu0 0
        %6924 = vmatprep.subr.bf16.mxu0 0
        %6925 = vmatpush2.bf16.msra.mxu0 0
        %6926 = vmatprep.subr.bf16.mxu0 0
        %6927 = vmatpush2.bf16.msra.mxu0 0
        %6928 = vmatprep.subr.bf16.mxu0 0
        %6929 = vmatpush2.bf16.msra.mxu0 0
        %6930 = vmatprep.subr.bf16.mxu0 0
        %6931 = vmatpush2.bf16.msra.mxu0 0
        %6932 = vmatprep.subr.bf16.mxu0 0
        %6933 = vmatpush2.bf16.msra.mxu0 0
        %6934 = vmatprep.subr.bf16.mxu0 0
        %6935 = vmatpush2.bf16.msra.mxu0 0
        %6936 = vmatprep.mubr.bf16.mxu0 0
        %6937 = vmatmul.mubr.bf16.gmra.mxu0 %v6902
        %v6938 = vpop.f32.mrf.mxu0
        %v6939 = vadd.f32 0.0, %v6938
        %v6940 = vpop.f32.mrf.mxu0
        %v6941 = vpop.f32.mrf.mxu0
        %v6942 = vadd.f32 0.0, %v6941
        %v6943 = vpop.f32.mrf.mxu0
        %6944 = vdwg.mxu0
        %v6945 = vadd.f32 %v6785, %v6939
        %v6946 = vadd.f32 %v6788, %v6942
        %s6947 = scalar_lea.vmem [#allocation25], 96
        %v6948 = vld [vmem:[%s6947] sm:$0xf]
        %v6949 = vld [vmem:[%s6947 + $0x4] sm:$0xf]
        %v6950 = vld [vmem:[%s6947 + $0x8] sm:$0xf]
        %v6951 = vld [vmem:[%s6947 + $0xc] sm:$0xf]
        %v6952 = vld [vmem:[%s6947 + $0x10] sm:$0xf]
        %v6953 = vld [vmem:[%s6947 + $0x14] sm:$0xf]
        %v6954 = vld [vmem:[%s6947 + $0x18] sm:$0xf]
        %v6955 = vld [vmem:[%s6947 + $0x1c] sm:$0xf]
        %v6964 = vunpack.c.l.b16 %v6948
        %v6965 = vunpack.c.l.b16 %v6949
        %v6966 = vunpack.c.l.b16 %v6950
        %v6967 = vunpack.c.l.b16 %v6951
        %v6968 = vunpack.c.l.b16 %v6952
        %v6969 = vunpack.c.l.b16 %v6953
        %v6970 = vunpack.c.l.b16 %v6954
        %v6971 = vunpack.c.l.b16 %v6955
        %v6972 = vpack.c.b16 %v6965, %v6964
        %v6973 = vpack.c.b16 %v6967, %v6966
        %v6974 = vpack.c.b16 %v6969, %v6968
        %v6975 = vpack.c.b16 %v6971, %v6970
        %6980 = vmatprep.subr.bf16.mxu0 0
        %6981 = vmatpush1.bf16.msra.mxu0 0
        %6982 = vmatprep.subr.bf16.mxu0 0
        %6983 = vmatpush1.bf16.msra.mxu0 0
        %6984 = vmatprep.subr.bf16.mxu0 0
        %6985 = vmatpush1.bf16.msra.mxu0 0
        %6986 = vmatprep.subr.bf16.mxu0 0
        %6987 = vmatpush1.bf16.msra.mxu0 0
        %6988 = vmatprep.subr.bf16.mxu0 0
        %6989 = vmatpush1.bf16.msra.mxu0 %v6975
        %6990 = vmatprep.subr.bf16.mxu0 0
        %6991 = vmatpush1.bf16.msra.mxu0 %v6974
        %6992 = vmatprep.subr.bf16.mxu0 0
        %6993 = vmatpush1.bf16.msra.mxu0 %v6973
        %6994 = vmatprep.subr.bf16.mxu0 0
        %6995 = vmatpush1.bf16.msra.mxu0 %v6972
        %6996 = vmatprep.subr.bf16.mxu0 0
        %6997 = vmatpush2.bf16.msra.mxu0 0
        %6998 = vmatprep.subr.bf16.mxu0 0
        %6999 = vmatpush2.bf16.msra.mxu0 0
        %7000 = vmatprep.subr.bf16.mxu0 0
        %7001 = vmatpush2.bf16.msra.mxu0 0
        %7002 = vmatprep.subr.bf16.mxu0 0
        %7003 = vmatpush2.bf16.msra.mxu0 0
        %7004 = vmatprep.subr.bf16.mxu0 0
        %7005 = vmatpush2.bf16.msra.mxu0 0
        %7006 = vmatprep.subr.bf16.mxu0 0
        %7007 = vmatpush2.bf16.msra.mxu0 0
        %7008 = vmatprep.subr.bf16.mxu0 0
        %7009 = vmatpush2.bf16.msra.mxu0 0
        %7010 = vmatprep.subr.bf16.mxu0 0
        %7011 = vmatpush2.bf16.msra.mxu0 0
        %7012 = vmatprep.mubr.bf16.mxu0 0
        %7013 = vmatmul.mubr.bf16.gmra.mxu0 %v6506
        %v7014 = vpop.f32.mrf.mxu0
        %v7015 = vadd.f32 0.0, %v7014
        %v7016 = vpop.f32.mrf.mxu0
        %v7017 = vpop.f32.mrf.mxu0
        %v7018 = vadd.f32 0.0, %v7017
        %v7019 = vpop.f32.mrf.mxu0
        %7020 = vmatprep.mubr.bf16.mxu0 0
        %7021 = vmatmul.mubr.bf16.gmra.mxu0 %v6509
        %v7022 = vpop.f32.mrf.mxu0
        %v7023 = vadd.f32 0.0, %v7022
        %v7024 = vpop.f32.mrf.mxu0
        %v7025 = vpop.f32.mrf.mxu0
        %v7026 = vadd.f32 0.0, %v7025
        %v7027 = vpop.f32.mrf.mxu0
        %7028 = vmatprep.mubr.bf16.mxu0 0
        %7029 = vmatmul.mubr.bf16.gmra.mxu0 %v6512
        %v7030 = vpop.f32.mrf.mxu0
        %v7031 = vadd.f32 0.0, %v7030
        %v7032 = vpop.f32.mrf.mxu0
        %v7033 = vpop.f32.mrf.mxu0
        %v7034 = vadd.f32 0.0, %v7033
        %v7035 = vpop.f32.mrf.mxu0
        %7036 = vmatprep.mubr.bf16.mxu0 0
        %7037 = vmatmul.mubr.bf16.gmra.mxu0 %v6515
        %v7038 = vpop.f32.mrf.mxu0
        %v7039 = vadd.f32 0.0, %v7038
        %v7040 = vpop.f32.mrf.mxu0
        %v7041 = vpop.f32.mrf.mxu0
        %v7042 = vadd.f32 0.0, %v7041
        %v7043 = vpop.f32.mrf.mxu0
        %7044 = vdwg.mxu0
        %v7045 = vpack.c.bf16 %v7018, %v7015
        %v7046 = vpack.c.bf16 %v7026, %v7023
        %v7047 = vpack.c.bf16 %v7034, %v7031
        %v7048 = vpack.c.bf16 %v7042, %v7039
        %s7049 = scalar_lea.vmem [#allocation22], 24
        %v7050 = vld [vmem:[%s7049] sm:$0xf]
        %v7051 = vld [vmem:[%s7049 + $0x4] sm:$0xf]
        %v7054 = vunpack.c.l.b16 %v7050
        %v7055 = vunpack.c.l.b16 %v7051
        %v7056 = vpack.c.b16 %v7055, %v7054
        %v7058 = vsel %vm4369, %v7056, 0
        %7060 = vmatprep.subr.bf16.mxu0 0
        %7061 = vmatpush1.bf16.msra.mxu0 0
        %7062 = vmatprep.subr.bf16.mxu0 0
        %7063 = vmatpush1.bf16.msra.mxu0 0
        %7064 = vmatprep.subr.bf16.mxu0 0
        %7065 = vmatpush1.bf16.msra.mxu0 0
        %7066 = vmatprep.subr.bf16.mxu0 0
        %7067 = vmatpush1.bf16.msra.mxu0 0
        %7068 = vmatprep.subr.bf16.mxu0 0
        %7069 = vmatpush1.bf16.msra.mxu0 %v7048
        %7070 = vmatprep.subr.bf16.mxu0 0
        %7071 = vmatpush1.bf16.msra.mxu0 %v7047
        %7072 = vmatprep.subr.bf16.mxu0 0
        %7073 = vmatpush1.bf16.msra.mxu0 %v7046
        %7074 = vmatprep.subr.bf16.mxu0 0
        %7075 = vmatpush1.bf16.msra.mxu0 %v7045
        %7076 = vmatprep.subr.bf16.mxu0 0
        %7077 = vmatpush2.bf16.msra.mxu0 0
        %7078 = vmatprep.subr.bf16.mxu0 0
        %7079 = vmatpush2.bf16.msra.mxu0 0
        %7080 = vmatprep.subr.bf16.mxu0 0
        %7081 = vmatpush2.bf16.msra.mxu0 0
        %7082 = vmatprep.subr.bf16.mxu0 0
        %7083 = vmatpush2.bf16.msra.mxu0 0
        %7084 = vmatprep.subr.bf16.mxu0 0
        %7085 = vmatpush2.bf16.msra.mxu0 0
        %7086 = vmatprep.subr.bf16.mxu0 0
        %7087 = vmatpush2.bf16.msra.mxu0 0
        %7088 = vmatprep.subr.bf16.mxu0 0
        %7089 = vmatpush2.bf16.msra.mxu0 0
        %7090 = vmatprep.subr.bf16.mxu0 0
        %7091 = vmatpush2.bf16.msra.mxu0 0
        %7092 = vmatprep.mubr.bf16.mxu0 0
        %7093 = vmatmul.mubr.bf16.gmra.mxu0 %v7058
        %v7094 = vpop.f32.mrf.mxu0
        %v7095 = vadd.f32 0.0, %v7094
        %v7096 = vpop.f32.mrf.mxu0
        %v7097 = vpop.f32.mrf.mxu0
        %v7098 = vadd.f32 0.0, %v7097
        %v7099 = vpop.f32.mrf.mxu0
        %7100 = vdwg.mxu0
        %v7101 = vadd.f32 %v6945, %v7095
        %v7102 = vadd.f32 %v6946, %v7098
        %s7103 = scalar_lea.vmem [#allocation25], 128
        %v7104 = vld [vmem:[%s7103] sm:$0xf]
        %v7105 = vld [vmem:[%s7103 + $0x4] sm:$0xf]
        %v7106 = vld [vmem:[%s7103 + $0x8] sm:$0xf]
        %v7107 = vld [vmem:[%s7103 + $0xc] sm:$0xf]
        %v7108 = vld [vmem:[%s7103 + $0x10] sm:$0xf]
        %v7109 = vld [vmem:[%s7103 + $0x14] sm:$0xf]
        %v7110 = vld [vmem:[%s7103 + $0x18] sm:$0xf]
        %v7111 = vld [vmem:[%s7103 + $0x1c] sm:$0xf]
        %v7120 = vunpack.c.l.b16 %v7104
        %v7121 = vunpack.c.l.b16 %v7105
        %v7122 = vunpack.c.l.b16 %v7106
        %v7123 = vunpack.c.l.b16 %v7107
        %v7124 = vunpack.c.l.b16 %v7108
        %v7125 = vunpack.c.l.b16 %v7109
        %v7126 = vunpack.c.l.b16 %v7110
        %v7127 = vunpack.c.l.b16 %v7111
        %v7128 = vpack.c.b16 %v7121, %v7120
        %v7129 = vpack.c.b16 %v7123, %v7122
        %v7130 = vpack.c.b16 %v7125, %v7124
        %v7131 = vpack.c.b16 %v7127, %v7126
        %7136 = vmatprep.subr.bf16.mxu0 0
        %7137 = vmatpush1.bf16.msra.mxu0 0
        %7138 = vmatprep.subr.bf16.mxu0 0
        %7139 = vmatpush1.bf16.msra.mxu0 0
        %7140 = vmatprep.subr.bf16.mxu0 0
        %7141 = vmatpush1.bf16.msra.mxu0 0
        %7142 = vmatprep.subr.bf16.mxu0 0
        %7143 = vmatpush1.bf16.msra.mxu0 0
        %7144 = vmatprep.subr.bf16.mxu0 0
        %7145 = vmatpush1.bf16.msra.mxu0 %v7131
        %7146 = vmatprep.subr.bf16.mxu0 0
        %7147 = vmatpush1.bf16.msra.mxu0 %v7130
        %7148 = vmatprep.subr.bf16.mxu0 0
        %7149 = vmatpush1.bf16.msra.mxu0 %v7129
        %7150 = vmatprep.subr.bf16.mxu0 0
        %7151 = vmatpush1.bf16.msra.mxu0 %v7128
        %7152 = vmatprep.subr.bf16.mxu0 0
        %7153 = vmatpush2.bf16.msra.mxu0 0
        %7154 = vmatprep.subr.bf16.mxu0 0
        %7155 = vmatpush2.bf16.msra.mxu0 0
        %7156 = vmatprep.subr.bf16.mxu0 0
        %7157 = vmatpush2.bf16.msra.mxu0 0
        %7158 = vmatprep.subr.bf16.mxu0 0
        %7159 = vmatpush2.bf16.msra.mxu0 0
        %7160 = vmatprep.subr.bf16.mxu0 0
        %7161 = vmatpush2.bf16.msra.mxu0 0
        %7162 = vmatprep.subr.bf16.mxu0 0
        %7163 = vmatpush2.bf16.msra.mxu0 0
        %7164 = vmatprep.subr.bf16.mxu0 0
        %7165 = vmatpush2.bf16.msra.mxu0 0
        %7166 = vmatprep.subr.bf16.mxu0 0
        %7167 = vmatpush2.bf16.msra.mxu0 0
        %7168 = vmatprep.mubr.bf16.mxu0 0
        %7169 = vmatmul.mubr.bf16.gmra.mxu0 %v6506
        %v7170 = vpop.f32.mrf.mxu0
        %v7171 = vadd.f32 0.0, %v7170
        %v7172 = vpop.f32.mrf.mxu0
        %v7173 = vpop.f32.mrf.mxu0
        %v7174 = vadd.f32 0.0, %v7173
        %v7175 = vpop.f32.mrf.mxu0
        %7176 = vmatprep.mubr.bf16.mxu0 0
        %7177 = vmatmul.mubr.bf16.gmra.mxu0 %v6509
        %v7178 = vpop.f32.mrf.mxu0
        %v7179 = vadd.f32 0.0, %v7178
        %v7180 = vpop.f32.mrf.mxu0
        %v7181 = vpop.f32.mrf.mxu0
        %v7182 = vadd.f32 0.0, %v7181
        %v7183 = vpop.f32.mrf.mxu0
        %7184 = vmatprep.mubr.bf16.mxu0 0
        %7185 = vmatmul.mubr.bf16.gmra.mxu0 %v6512
        %v7186 = vpop.f32.mrf.mxu0
        %v7187 = vadd.f32 0.0, %v7186
        %v7188 = vpop.f32.mrf.mxu0
        %v7189 = vpop.f32.mrf.mxu0
        %v7190 = vadd.f32 0.0, %v7189
        %v7191 = vpop.f32.mrf.mxu0
        %7192 = vmatprep.mubr.bf16.mxu0 0
        %7193 = vmatmul.mubr.bf16.gmra.mxu0 %v6515
        %v7194 = vpop.f32.mrf.mxu0
        %v7195 = vadd.f32 0.0, %v7194
        %v7196 = vpop.f32.mrf.mxu0
        %v7197 = vpop.f32.mrf.mxu0
        %v7198 = vadd.f32 0.0, %v7197
        %v7199 = vpop.f32.mrf.mxu0
        %7200 = vdwg.mxu0
        %v7201 = vpack.c.bf16 %v7174, %v7171
        %v7202 = vpack.c.bf16 %v7182, %v7179
        %v7203 = vpack.c.bf16 %v7190, %v7187
        %v7204 = vpack.c.bf16 %v7198, %v7195
        %s7205 = scalar_lea.vmem [#allocation22], 32
        %v7206 = vld [vmem:[%s7205] sm:$0xf]
        %v7207 = vld [vmem:[%s7205 + $0x4] sm:$0xf]
        %v7210 = vunpack.c.l.b16 %v7206
        %v7211 = vunpack.c.l.b16 %v7207
        %v7212 = vpack.c.b16 %v7211, %v7210
        %v7214 = vsel %vm4369, %v7212, 0
        %7216 = vmatprep.subr.bf16.mxu0 0
        %7217 = vmatpush1.bf16.msra.mxu0 0
        %7218 = vmatprep.subr.bf16.mxu0 0
        %7219 = vmatpush1.bf16.msra.mxu0 0
        %7220 = vmatprep.subr.bf16.mxu0 0
        %7221 = vmatpush1.bf16.msra.mxu0 0
        %7222 = vmatprep.subr.bf16.mxu0 0
        %7223 = vmatpush1.bf16.msra.mxu0 0
        %7224 = vmatprep.subr.bf16.mxu0 0
        %7225 = vmatpush1.bf16.msra.mxu0 %v7204
        %7226 = vmatprep.subr.bf16.mxu0 0
        %7227 = vmatpush1.bf16.msra.mxu0 %v7203
        %7228 = vmatprep.subr.bf16.mxu0 0
        %7229 = vmatpush1.bf16.msra.mxu0 %v7202
        %7230 = vmatprep.subr.bf16.mxu0 0
        %7231 = vmatpush1.bf16.msra.mxu0 %v7201
        %7232 = vmatprep.subr.bf16.mxu0 0
        %7233 = vmatpush2.bf16.msra.mxu0 0
        %7234 = vmatprep.subr.bf16.mxu0 0
        %7235 = vmatpush2.bf16.msra.mxu0 0
        %7236 = vmatprep.subr.bf16.mxu0 0
        %7237 = vmatpush2.bf16.msra.mxu0 0
        %7238 = vmatprep.subr.bf16.mxu0 0
        %7239 = vmatpush2.bf16.msra.mxu0 0
        %7240 = vmatprep.subr.bf16.mxu0 0
        %7241 = vmatpush2.bf16.msra.mxu0 0
        %7242 = vmatprep.subr.bf16.mxu0 0
        %7243 = vmatpush2.bf16.msra.mxu0 0
        %7244 = vmatprep.subr.bf16.mxu0 0
        %7245 = vmatpush2.bf16.msra.mxu0 0
        %7246 = vmatprep.subr.bf16.mxu0 0
        %7247 = vmatpush2.bf16.msra.mxu0 0
        %7248 = vmatprep.mubr.bf16.mxu0 0
        %7249 = vmatmul.mubr.bf16.gmra.mxu0 %v7214
        %v7250 = vpop.f32.mrf.mxu0
        %v7251 = vadd.f32 0.0, %v7250
        %v7252 = vpop.f32.mrf.mxu0
        %v7253 = vpop.f32.mrf.mxu0
        %v7254 = vadd.f32 0.0, %v7253
        %v7255 = vpop.f32.mrf.mxu0
        %7256 = vdwg.mxu0
        %v7257 = vadd.f32 %v7101, %v7251
        %v7258 = vadd.f32 %v7102, %v7254
        %s7259 = scalar_lea.vmem [#allocation25], 160
        %v7260 = vld [vmem:[%s7259] sm:$0xf]
        %v7261 = vld [vmem:[%s7259 + $0x4] sm:$0xf]
        %v7262 = vld [vmem:[%s7259 + $0x8] sm:$0xf]
        %v7263 = vld [vmem:[%s7259 + $0xc] sm:$0xf]
        %v7264 = vld [vmem:[%s7259 + $0x10] sm:$0xf]
        %v7265 = vld [vmem:[%s7259 + $0x14] sm:$0xf]
        %v7266 = vld [vmem:[%s7259 + $0x18] sm:$0xf]
        %v7267 = vld [vmem:[%s7259 + $0x1c] sm:$0xf]
        %v7276 = vunpack.c.l.b16 %v7260
        %v7277 = vunpack.c.l.b16 %v7261
        %v7278 = vunpack.c.l.b16 %v7262
        %v7279 = vunpack.c.l.b16 %v7263
        %v7280 = vunpack.c.l.b16 %v7264
        %v7281 = vunpack.c.l.b16 %v7265
        %v7282 = vunpack.c.l.b16 %v7266
        %v7283 = vunpack.c.l.b16 %v7267
        %v7284 = vpack.c.b16 %v7277, %v7276
        %v7285 = vpack.c.b16 %v7279, %v7278
        %v7286 = vpack.c.b16 %v7281, %v7280
        %v7287 = vpack.c.b16 %v7283, %v7282
        %7292 = vmatprep.subr.bf16.mxu0 0
        %7293 = vmatpush1.bf16.msra.mxu0 0
        %7294 = vmatprep.subr.bf16.mxu0 0
        %7295 = vmatpush1.bf16.msra.mxu0 0
        %7296 = vmatprep.subr.bf16.mxu0 0
        %7297 = vmatpush1.bf16.msra.mxu0 0
        %7298 = vmatprep.subr.bf16.mxu0 0
        %7299 = vmatpush1.bf16.msra.mxu0 0
        %7300 = vmatprep.subr.bf16.mxu0 0
        %7301 = vmatpush1.bf16.msra.mxu0 %v7287
        %7302 = vmatprep.subr.bf16.mxu0 0
        %7303 = vmatpush1.bf16.msra.mxu0 %v7286
        %7304 = vmatprep.subr.bf16.mxu0 0
        %7305 = vmatpush1.bf16.msra.mxu0 %v7285
        %7306 = vmatprep.subr.bf16.mxu0 0
        %7307 = vmatpush1.bf16.msra.mxu0 %v7284
        %7308 = vmatprep.subr.bf16.mxu0 0
        %7309 = vmatpush2.bf16.msra.mxu0 0
        %7310 = vmatprep.subr.bf16.mxu0 0
        %7311 = vmatpush2.bf16.msra.mxu0 0
        %7312 = vmatprep.subr.bf16.mxu0 0
        %7313 = vmatpush2.bf16.msra.mxu0 0
        %7314 = vmatprep.subr.bf16.mxu0 0
        %7315 = vmatpush2.bf16.msra.mxu0 0
        %7316 = vmatprep.subr.bf16.mxu0 0
        %7317 = vmatpush2.bf16.msra.mxu0 0
        %7318 = vmatprep.subr.bf16.mxu0 0
        %7319 = vmatpush2.bf16.msra.mxu0 0
        %7320 = vmatprep.subr.bf16.mxu0 0
        %7321 = vmatpush2.bf16.msra.mxu0 0
        %7322 = vmatprep.subr.bf16.mxu0 0
        %7323 = vmatpush2.bf16.msra.mxu0 0
        %7324 = vmatprep.mubr.bf16.mxu0 0
        %7325 = vmatmul.mubr.bf16.gmra.mxu0 %v6506
        %v7326 = vpop.f32.mrf.mxu0
        %v7327 = vadd.f32 0.0, %v7326
        %v7328 = vpop.f32.mrf.mxu0
        %v7329 = vpop.f32.mrf.mxu0
        %v7330 = vadd.f32 0.0, %v7329
        %v7331 = vpop.f32.mrf.mxu0
        %7332 = vmatprep.mubr.bf16.mxu0 0
        %7333 = vmatmul.mubr.bf16.gmra.mxu0 %v6509
        %v7334 = vpop.f32.mrf.mxu0
        %v7335 = vadd.f32 0.0, %v7334
        %v7336 = vpop.f32.mrf.mxu0
        %v7337 = vpop.f32.mrf.mxu0
        %v7338 = vadd.f32 0.0, %v7337
        %v7339 = vpop.f32.mrf.mxu0
        %7340 = vmatprep.mubr.bf16.mxu0 0
        %7341 = vmatmul.mubr.bf16.gmra.mxu0 %v6512
        %v7342 = vpop.f32.mrf.mxu0
        %v7343 = vadd.f32 0.0, %v7342
        %v7344 = vpop.f32.mrf.mxu0
        %v7345 = vpop.f32.mrf.mxu0
        %v7346 = vadd.f32 0.0, %v7345
        %v7347 = vpop.f32.mrf.mxu0
        %7348 = vmatprep.mubr.bf16.mxu0 0
        %7349 = vmatmul.mubr.bf16.gmra.mxu0 %v6515
        %v7350 = vpop.f32.mrf.mxu0
        %v7351 = vadd.f32 0.0, %v7350
        %v7352 = vpop.f32.mrf.mxu0
        %v7353 = vpop.f32.mrf.mxu0
        %v7354 = vadd.f32 0.0, %v7353
        %v7355 = vpop.f32.mrf.mxu0
        %7356 = vdwg.mxu0
        %v7357 = vpack.c.bf16 %v7330, %v7327
        %v7358 = vpack.c.bf16 %v7338, %v7335
        %v7359 = vpack.c.bf16 %v7346, %v7343
        %v7360 = vpack.c.bf16 %v7354, %v7351
        %s7361 = scalar_lea.vmem [#allocation22], 40
        %v7362 = vld [vmem:[%s7361] sm:$0xf]
        %v7363 = vld [vmem:[%s7361 + $0x4] sm:$0xf]
        %v7366 = vunpack.c.l.b16 %v7362
        %v7367 = vunpack.c.l.b16 %v7363
        %v7368 = vpack.c.b16 %v7367, %v7366
        %v7370 = vsel %vm4369, %v7368, 0
        %7372 = vmatprep.subr.bf16.mxu0 0
        %7373 = vmatpush1.bf16.msra.mxu0 0
        %7374 = vmatprep.subr.bf16.mxu0 0
        %7375 = vmatpush1.bf16.msra.mxu0 0
        %7376 = vmatprep.subr.bf16.mxu0 0
        %7377 = vmatpush1.bf16.msra.mxu0 0
        %7378 = vmatprep.subr.bf16.mxu0 0
        %7379 = vmatpush1.bf16.msra.mxu0 0
        %7380 = vmatprep.subr.bf16.mxu0 0
        %7381 = vmatpush1.bf16.msra.mxu0 %v7360
        %7382 = vmatprep.subr.bf16.mxu0 0
        %7383 = vmatpush1.bf16.msra.mxu0 %v7359
        %7384 = vmatprep.subr.bf16.mxu0 0
        %7385 = vmatpush1.bf16.msra.mxu0 %v7358
        %7386 = vmatprep.subr.bf16.mxu0 0
        %7387 = vmatpush1.bf16.msra.mxu0 %v7357
        %7388 = vmatprep.subr.bf16.mxu0 0
        %7389 = vmatpush2.bf16.msra.mxu0 0
        %7390 = vmatprep.subr.bf16.mxu0 0
        %7391 = vmatpush2.bf16.msra.mxu0 0
        %7392 = vmatprep.subr.bf16.mxu0 0
        %7393 = vmatpush2.bf16.msra.mxu0 0
        %7394 = vmatprep.subr.bf16.mxu0 0
        %7395 = vmatpush2.bf16.msra.mxu0 0
        %7396 = vmatprep.subr.bf16.mxu0 0
        %7397 = vmatpush2.bf16.msra.mxu0 0
        %7398 = vmatprep.subr.bf16.mxu0 0
        %7399 = vmatpush2.bf16.msra.mxu0 0
        %7400 = vmatprep.subr.bf16.mxu0 0
        %7401 = vmatpush2.bf16.msra.mxu0 0
        %7402 = vmatprep.subr.bf16.mxu0 0
        %7403 = vmatpush2.bf16.msra.mxu0 0
        %7404 = vmatprep.mubr.bf16.mxu0 0
        %7405 = vmatmul.mubr.bf16.gmra.mxu0 %v7370
        %v7406 = vpop.f32.mrf.mxu0
        %v7407 = vadd.f32 0.0, %v7406
        %v7408 = vpop.f32.mrf.mxu0
        %v7409 = vpop.f32.mrf.mxu0
        %v7410 = vadd.f32 0.0, %v7409
        %v7411 = vpop.f32.mrf.mxu0
        %7412 = vdwg.mxu0
        %v7413 = vadd.f32 %v7257, %v7407
        %v7414 = vadd.f32 %v7258, %v7410
        %s7415 = scalar_lea.vmem [#allocation25], 192
        %v7416 = vld [vmem:[%s7415] sm:$0xf]
        %v7417 = vld [vmem:[%s7415 + $0x4] sm:$0xf]
        %v7418 = vld [vmem:[%s7415 + $0x8] sm:$0xf]
        %v7419 = vld [vmem:[%s7415 + $0xc] sm:$0xf]
        %v7420 = vld [vmem:[%s7415 + $0x10] sm:$0xf]
        %v7421 = vld [vmem:[%s7415 + $0x14] sm:$0xf]
        %v7422 = vld [vmem:[%s7415 + $0x18] sm:$0xf]
        %v7423 = vld [vmem:[%s7415 + $0x1c] sm:$0xf]
        %v7432 = vunpack.c.l.b16 %v7416
        %v7433 = vunpack.c.l.b16 %v7417
        %v7434 = vunpack.c.l.b16 %v7418
        %v7435 = vunpack.c.l.b16 %v7419
        %v7436 = vunpack.c.l.b16 %v7420
        %v7437 = vunpack.c.l.b16 %v7421
        %v7438 = vunpack.c.l.b16 %v7422
        %v7439 = vunpack.c.l.b16 %v7423
        %v7440 = vpack.c.b16 %v7433, %v7432
        %v7441 = vpack.c.b16 %v7435, %v7434
        %v7442 = vpack.c.b16 %v7437, %v7436
        %v7443 = vpack.c.b16 %v7439, %v7438
        %7448 = vmatprep.subr.bf16.mxu0 0
        %7449 = vmatpush1.bf16.msra.mxu0 0
        %7450 = vmatprep.subr.bf16.mxu0 0
        %7451 = vmatpush1.bf16.msra.mxu0 0
        %7452 = vmatprep.subr.bf16.mxu0 0
        %7453 = vmatpush1.bf16.msra.mxu0 0
        %7454 = vmatprep.subr.bf16.mxu0 0
        %7455 = vmatpush1.bf16.msra.mxu0 0
        %7456 = vmatprep.subr.bf16.mxu0 0
        %7457 = vmatpush1.bf16.msra.mxu0 %v7443
        %7458 = vmatprep.subr.bf16.mxu0 0
        %7459 = vmatpush1.bf16.msra.mxu0 %v7442
        %7460 = vmatprep.subr.bf16.mxu0 0
        %7461 = vmatpush1.bf16.msra.mxu0 %v7441
        %7462 = vmatprep.subr.bf16.mxu0 0
        %7463 = vmatpush1.bf16.msra.mxu0 %v7440
        %7464 = vmatprep.subr.bf16.mxu0 0
        %7465 = vmatpush2.bf16.msra.mxu0 0
        %7466 = vmatprep.subr.bf16.mxu0 0
        %7467 = vmatpush2.bf16.msra.mxu0 0
        %7468 = vmatprep.subr.bf16.mxu0 0
        %7469 = vmatpush2.bf16.msra.mxu0 0
        %7470 = vmatprep.subr.bf16.mxu0 0
        %7471 = vmatpush2.bf16.msra.mxu0 0
        %7472 = vmatprep.subr.bf16.mxu0 0
        %7473 = vmatpush2.bf16.msra.mxu0 0
        %7474 = vmatprep.subr.bf16.mxu0 0
        %7475 = vmatpush2.bf16.msra.mxu0 0
        %7476 = vmatprep.subr.bf16.mxu0 0
        %7477 = vmatpush2.bf16.msra.mxu0 0
        %7478 = vmatprep.subr.bf16.mxu0 0
        %7479 = vmatpush2.bf16.msra.mxu0 0
        %7480 = vmatprep.mubr.bf16.mxu0 0
        %7481 = vmatmul.mubr.bf16.gmra.mxu0 %v6506
        %v7482 = vpop.f32.mrf.mxu0
        %v7483 = vadd.f32 0.0, %v7482
        %v7484 = vpop.f32.mrf.mxu0
        %v7485 = vpop.f32.mrf.mxu0
        %v7486 = vadd.f32 0.0, %v7485
        %v7487 = vpop.f32.mrf.mxu0
        %7488 = vmatprep.mubr.bf16.mxu0 0
        %7489 = vmatmul.mubr.bf16.gmra.mxu0 %v6509
        %v7490 = vpop.f32.mrf.mxu0
        %v7491 = vadd.f32 0.0, %v7490
        %v7492 = vpop.f32.mrf.mxu0
        %v7493 = vpop.f32.mrf.mxu0
        %v7494 = vadd.f32 0.0, %v7493
        %v7495 = vpop.f32.mrf.mxu0
        %7496 = vmatprep.mubr.bf16.mxu0 0
        %7497 = vmatmul.mubr.bf16.gmra.mxu0 %v6512
        %v7498 = vpop.f32.mrf.mxu0
        %v7499 = vadd.f32 0.0, %v7498
        %v7500 = vpop.f32.mrf.mxu0
        %v7501 = vpop.f32.mrf.mxu0
        %v7502 = vadd.f32 0.0, %v7501
        %v7503 = vpop.f32.mrf.mxu0
        %7504 = vmatprep.mubr.bf16.mxu0 0
        %7505 = vmatmul.mubr.bf16.gmra.mxu0 %v6515
        %v7506 = vpop.f32.mrf.mxu0
        %v7507 = vadd.f32 0.0, %v7506
        %v7508 = vpop.f32.mrf.mxu0
        %v7509 = vpop.f32.mrf.mxu0
        %v7510 = vadd.f32 0.0, %v7509
        %v7511 = vpop.f32.mrf.mxu0
        %7512 = vdwg.mxu0
        %v7513 = vpack.c.bf16 %v7486, %v7483
        %v7514 = vpack.c.bf16 %v7494, %v7491
        %v7515 = vpack.c.bf16 %v7502, %v7499
        %v7516 = vpack.c.bf16 %v7510, %v7507
        %s7517 = scalar_lea.vmem [#allocation22], 48
        %v7518 = vld [vmem:[%s7517] sm:$0xf]
        %v7519 = vld [vmem:[%s7517 + $0x4] sm:$0xf]
        %v7522 = vunpack.c.l.b16 %v7518
        %v7523 = vunpack.c.l.b16 %v7519
        %v7524 = vpack.c.b16 %v7523, %v7522
        %v7526 = vsel %vm4369, %v7524, 0
        %7528 = vmatprep.subr.bf16.mxu0 0
        %7529 = vmatpush1.bf16.msra.mxu0 0
        %7530 = vmatprep.subr.bf16.mxu0 0
        %7531 = vmatpush1.bf16.msra.mxu0 0
        %7532 = vmatprep.subr.bf16.mxu0 0
        %7533 = vmatpush1.bf16.msra.mxu0 0
        %7534 = vmatprep.subr.bf16.mxu0 0
        %7535 = vmatpush1.bf16.msra.mxu0 0
        %7536 = vmatprep.subr.bf16.mxu0 0
        %7537 = vmatpush1.bf16.msra.mxu0 %v7516
        %7538 = vmatprep.subr.bf16.mxu0 0
        %7539 = vmatpush1.bf16.msra.mxu0 %v7515
        %7540 = vmatprep.subr.bf16.mxu0 0
        %7541 = vmatpush1.bf16.msra.mxu0 %v7514
        %7542 = vmatprep.subr.bf16.mxu0 0
        %7543 = vmatpush1.bf16.msra.mxu0 %v7513
        %7544 = vmatprep.subr.bf16.mxu0 0
        %7545 = vmatpush2.bf16.msra.mxu0 0
        %7546 = vmatprep.subr.bf16.mxu0 0
        %7547 = vmatpush2.bf16.msra.mxu0 0
        %7548 = vmatprep.subr.bf16.mxu0 0
        %7549 = vmatpush2.bf16.msra.mxu0 0
        %7550 = vmatprep.subr.bf16.mxu0 0
        %7551 = vmatpush2.bf16.msra.mxu0 0
        %7552 = vmatprep.subr.bf16.mxu0 0
        %7553 = vmatpush2.bf16.msra.mxu0 0
        %7554 = vmatprep.subr.bf16.mxu0 0
        %7555 = vmatpush2.bf16.msra.mxu0 0
        %7556 = vmatprep.subr.bf16.mxu0 0
        %7557 = vmatpush2.bf16.msra.mxu0 0
        %7558 = vmatprep.subr.bf16.mxu0 0
        %7559 = vmatpush2.bf16.msra.mxu0 0
        %7560 = vmatprep.mubr.bf16.mxu0 0
        %7561 = vmatmul.mubr.bf16.gmra.mxu0 %v7526
        %v7562 = vpop.f32.mrf.mxu0
        %v7563 = vadd.f32 0.0, %v7562
        %v7564 = vpop.f32.mrf.mxu0
        %v7565 = vpop.f32.mrf.mxu0
        %v7566 = vadd.f32 0.0, %v7565
        %v7567 = vpop.f32.mrf.mxu0
        %7568 = vdwg.mxu0
        %v7569 = vadd.f32 %v7413, %v7563
        %v7570 = vadd.f32 %v7414, %v7566
        %s7571 = scalar_lea.vmem [#allocation25], 224
        %v7572 = vld [vmem:[%s7571] sm:$0xf]
        %v7573 = vld [vmem:[%s7571 + $0x4] sm:$0xf]
        %v7574 = vld [vmem:[%s7571 + $0x8] sm:$0xf]
        %v7575 = vld [vmem:[%s7571 + $0xc] sm:$0xf]
        %v7576 = vld [vmem:[%s7571 + $0x10] sm:$0xf]
        %v7577 = vld [vmem:[%s7571 + $0x14] sm:$0xf]
        %v7578 = vld [vmem:[%s7571 + $0x18] sm:$0xf]
        %v7579 = vld [vmem:[%s7571 + $0x1c] sm:$0xf]
        %v7588 = vunpack.c.l.b16 %v7572
        %v7589 = vunpack.c.l.b16 %v7573
        %v7590 = vunpack.c.l.b16 %v7574
        %v7591 = vunpack.c.l.b16 %v7575
        %v7592 = vunpack.c.l.b16 %v7576
        %v7593 = vunpack.c.l.b16 %v7577
        %v7594 = vunpack.c.l.b16 %v7578
        %v7595 = vunpack.c.l.b16 %v7579
        %v7596 = vpack.c.b16 %v7589, %v7588
        %v7597 = vpack.c.b16 %v7591, %v7590
        %v7598 = vpack.c.b16 %v7593, %v7592
        %v7599 = vpack.c.b16 %v7595, %v7594
        %7604 = vmatprep.subr.bf16.mxu0 0
        %7605 = vmatpush1.bf16.msra.mxu0 0
        %7606 = vmatprep.subr.bf16.mxu0 0
        %7607 = vmatpush1.bf16.msra.mxu0 0
        %7608 = vmatprep.subr.bf16.mxu0 0
        %7609 = vmatpush1.bf16.msra.mxu0 0
        %7610 = vmatprep.subr.bf16.mxu0 0
        %7611 = vmatpush1.bf16.msra.mxu0 0
        %7612 = vmatprep.subr.bf16.mxu0 0
        %7613 = vmatpush1.bf16.msra.mxu0 %v7599
        %7614 = vmatprep.subr.bf16.mxu0 0
        %7615 = vmatpush1.bf16.msra.mxu0 %v7598
        %7616 = vmatprep.subr.bf16.mxu0 0
        %7617 = vmatpush1.bf16.msra.mxu0 %v7597
        %7618 = vmatprep.subr.bf16.mxu0 0
        %7619 = vmatpush1.bf16.msra.mxu0 %v7596
        %7620 = vmatprep.subr.bf16.mxu0 0
        %7621 = vmatpush2.bf16.msra.mxu0 0
        %7622 = vmatprep.subr.bf16.mxu0 0
        %7623 = vmatpush2.bf16.msra.mxu0 0
        %7624 = vmatprep.subr.bf16.mxu0 0
        %7625 = vmatpush2.bf16.msra.mxu0 0
        %7626 = vmatprep.subr.bf16.mxu0 0
        %7627 = vmatpush2.bf16.msra.mxu0 0
        %7628 = vmatprep.subr.bf16.mxu0 0
        %7629 = vmatpush2.bf16.msra.mxu0 0
        %7630 = vmatprep.subr.bf16.mxu0 0
        %7631 = vmatpush2.bf16.msra.mxu0 0
        %7632 = vmatprep.subr.bf16.mxu0 0
        %7633 = vmatpush2.bf16.msra.mxu0 0
        %7634 = vmatprep.subr.bf16.mxu0 0
        %7635 = vmatpush2.bf16.msra.mxu0 0
        %7636 = vmatprep.mubr.bf16.mxu0 0
        %7637 = vmatmul.mubr.bf16.gmra.mxu0 %v6506
        %v7638 = vpop.f32.mrf.mxu0
        %v7639 = vadd.f32 0.0, %v7638
        %v7640 = vpop.f32.mrf.mxu0
        %v7641 = vpop.f32.mrf.mxu0
        %v7642 = vadd.f32 0.0, %v7641
        %v7643 = vpop.f32.mrf.mxu0
        %7644 = vmatprep.mubr.bf16.mxu0 0
        %7645 = vmatmul.mubr.bf16.gmra.mxu0 %v6509
        %v7646 = vpop.f32.mrf.mxu0
        %v7647 = vadd.f32 0.0, %v7646
        %v7648 = vpop.f32.mrf.mxu0
        %v7649 = vpop.f32.mrf.mxu0
        %v7650 = vadd.f32 0.0, %v7649
        %v7651 = vpop.f32.mrf.mxu0
        %7652 = vmatprep.mubr.bf16.mxu0 0
        %7653 = vmatmul.mubr.bf16.gmra.mxu0 %v6512
        %v7654 = vpop.f32.mrf.mxu0
        %v7655 = vadd.f32 0.0, %v7654
        %v7656 = vpop.f32.mrf.mxu0
        %v7657 = vpop.f32.mrf.mxu0
        %v7658 = vadd.f32 0.0, %v7657
        %v7659 = vpop.f32.mrf.mxu0
        %7660 = vmatprep.mubr.bf16.mxu0 0
        %7661 = vmatmul.mubr.bf16.gmra.mxu0 %v6515
        %v7662 = vpop.f32.mrf.mxu0
        %v7663 = vadd.f32 0.0, %v7662
        %v7664 = vpop.f32.mrf.mxu0
        %v7665 = vpop.f32.mrf.mxu0
        %v7666 = vadd.f32 0.0, %v7665
        %v7667 = vpop.f32.mrf.mxu0
        %7668 = vdwg.mxu0
        %v7669 = vpack.c.bf16 %v7642, %v7639
        %v7670 = vpack.c.bf16 %v7650, %v7647
        %v7671 = vpack.c.bf16 %v7658, %v7655
        %v7672 = vpack.c.bf16 %v7666, %v7663
        %s7673 = scalar_lea.vmem [#allocation22], 56
        %v7674 = vld [vmem:[%s7673] sm:$0xf]
        %v7675 = vld [vmem:[%s7673 + $0x4] sm:$0xf]
        %v7678 = vunpack.c.l.b16 %v7674
        %v7679 = vunpack.c.l.b16 %v7675
        %v7680 = vpack.c.b16 %v7679, %v7678
        %v7682 = vsel %vm4369, %v7680, 0
        %7684 = vmatprep.subr.bf16.mxu0 0
        %7685 = vmatpush1.bf16.msra.mxu0 0
        %7686 = vmatprep.subr.bf16.mxu0 0
        %7687 = vmatpush1.bf16.msra.mxu0 0
        %7688 = vmatprep.subr.bf16.mxu0 0
        %7689 = vmatpush1.bf16.msra.mxu0 0
        %7690 = vmatprep.subr.bf16.mxu0 0
        %7691 = vmatpush1.bf16.msra.mxu0 0
        %7692 = vmatprep.subr.bf16.mxu0 0
        %7693 = vmatpush1.bf16.msra.mxu0 %v7672
        %7694 = vmatprep.subr.bf16.mxu0 0
        %7695 = vmatpush1.bf16.msra.mxu0 %v7671
        %7696 = vmatprep.subr.bf16.mxu0 0
        %7697 = vmatpush1.bf16.msra.mxu0 %v7670
        %7698 = vmatprep.subr.bf16.mxu0 0
        %7699 = vmatpush1.bf16.msra.mxu0 %v7669
        %7700 = vmatprep.subr.bf16.mxu0 0
        %7701 = vmatpush2.bf16.msra.mxu0 0
        %7702 = vmatprep.subr.bf16.mxu0 0
        %7703 = vmatpush2.bf16.msra.mxu0 0
        %7704 = vmatprep.subr.bf16.mxu0 0
        %7705 = vmatpush2.bf16.msra.mxu0 0
        %7706 = vmatprep.subr.bf16.mxu0 0
        %7707 = vmatpush2.bf16.msra.mxu0 0
        %7708 = vmatprep.subr.bf16.mxu0 0
        %7709 = vmatpush2.bf16.msra.mxu0 0
        %7710 = vmatprep.subr.bf16.mxu0 0
        %7711 = vmatpush2.bf16.msra.mxu0 0
        %7712 = vmatprep.subr.bf16.mxu0 0
        %7713 = vmatpush2.bf16.msra.mxu0 0
        %7714 = vmatprep.subr.bf16.mxu0 0
        %7715 = vmatpush2.bf16.msra.mxu0 0
        %7716 = vmatprep.mubr.bf16.mxu0 0
        %7717 = vmatmul.mubr.bf16.gmra.mxu0 %v7682
        %v7718 = vpop.f32.mrf.mxu0
        %v7719 = vadd.f32 0.0, %v7718
        %v7720 = vpop.f32.mrf.mxu0
        %v7721 = vpop.f32.mrf.mxu0
        %v7722 = vadd.f32 0.0, %v7721
        %v7723 = vpop.f32.mrf.mxu0
        %7724 = vdwg.mxu0
        %v7725 = vadd.f32 %v7569, %v7719
        %v7726 = vadd.f32 %v7570, %v7722
        %s7727 = scalar_lea.vmem [#allocation25], 256
        %v7728 = vld [vmem:[%s7727] sm:$0xf]
        %v7729 = vld [vmem:[%s7727 + $0x4] sm:$0xf]
        %v7730 = vld [vmem:[%s7727 + $0x8] sm:$0xf]
        %v7731 = vld [vmem:[%s7727 + $0xc] sm:$0xf]
        %v7732 = vld [vmem:[%s7727 + $0x10] sm:$0xf]
        %v7733 = vld [vmem:[%s7727 + $0x14] sm:$0xf]
        %v7734 = vld [vmem:[%s7727 + $0x18] sm:$0xf]
        %v7735 = vld [vmem:[%s7727 + $0x1c] sm:$0xf]
        %v7744 = vunpack.c.l.b16 %v7728
        %v7745 = vunpack.c.l.b16 %v7729
        %v7746 = vunpack.c.l.b16 %v7730
        %v7747 = vunpack.c.l.b16 %v7731
        %v7748 = vunpack.c.l.b16 %v7732
        %v7749 = vunpack.c.l.b16 %v7733
        %v7750 = vunpack.c.l.b16 %v7734
        %v7751 = vunpack.c.l.b16 %v7735
        %v7752 = vpack.c.b16 %v7745, %v7744
        %v7753 = vpack.c.b16 %v7747, %v7746
        %v7754 = vpack.c.b16 %v7749, %v7748
        %v7755 = vpack.c.b16 %v7751, %v7750
        %7760 = vmatprep.subr.bf16.mxu0 0
        %7761 = vmatpush1.bf16.msra.mxu0 0
        %7762 = vmatprep.subr.bf16.mxu0 0
        %7763 = vmatpush1.bf16.msra.mxu0 0
        %7764 = vmatprep.subr.bf16.mxu0 0
        %7765 = vmatpush1.bf16.msra.mxu0 0
        %7766 = vmatprep.subr.bf16.mxu0 0
        %7767 = vmatpush1.bf16.msra.mxu0 0
        %7768 = vmatprep.subr.bf16.mxu0 0
        %7769 = vmatpush1.bf16.msra.mxu0 %v7755
        %7770 = vmatprep.subr.bf16.mxu0 0
        %7771 = vmatpush1.bf16.msra.mxu0 %v7754
        %7772 = vmatprep.subr.bf16.mxu0 0
        %7773 = vmatpush1.bf16.msra.mxu0 %v7753
        %7774 = vmatprep.subr.bf16.mxu0 0
        %7775 = vmatpush1.bf16.msra.mxu0 %v7752
        %7776 = vmatprep.subr.bf16.mxu0 0
        %7777 = vmatpush2.bf16.msra.mxu0 0
        %7778 = vmatprep.subr.bf16.mxu0 0
        %7779 = vmatpush2.bf16.msra.mxu0 0
        %7780 = vmatprep.subr.bf16.mxu0 0
        %7781 = vmatpush2.bf16.msra.mxu0 0
        %7782 = vmatprep.subr.bf16.mxu0 0
        %7783 = vmatpush2.bf16.msra.mxu0 0
        %7784 = vmatprep.subr.bf16.mxu0 0
        %7785 = vmatpush2.bf16.msra.mxu0 0
        %7786 = vmatprep.subr.bf16.mxu0 0
        %7787 = vmatpush2.bf16.msra.mxu0 0
        %7788 = vmatprep.subr.bf16.mxu0 0
        %7789 = vmatpush2.bf16.msra.mxu0 0
        %7790 = vmatprep.subr.bf16.mxu0 0
        %7791 = vmatpush2.bf16.msra.mxu0 0
        %7792 = vmatprep.mubr.bf16.mxu0 0
        %7793 = vmatmul.mubr.bf16.gmra.mxu0 %v6506
        %v7794 = vpop.f32.mrf.mxu0
        %v7795 = vadd.f32 0.0, %v7794
        %v7796 = vpop.f32.mrf.mxu0
        %v7797 = vpop.f32.mrf.mxu0
        %v7798 = vadd.f32 0.0, %v7797
        %v7799 = vpop.f32.mrf.mxu0
        %7800 = vmatprep.mubr.bf16.mxu0 0
        %7801 = vmatmul.mubr.bf16.gmra.mxu0 %v6509
        %v7802 = vpop.f32.mrf.mxu0
        %v7803 = vadd.f32 0.0, %v7802
        %v7804 = vpop.f32.mrf.mxu0
        %v7805 = vpop.f32.mrf.mxu0
        %v7806 = vadd.f32 0.0, %v7805
        %v7807 = vpop.f32.mrf.mxu0
        %7808 = vmatprep.mubr.bf16.mxu0 0
        %7809 = vmatmul.mubr.bf16.gmra.mxu0 %v6512
        %v7810 = vpop.f32.mrf.mxu0
        %v7811 = vadd.f32 0.0, %v7810
        %v7812 = vpop.f32.mrf.mxu0
        %v7813 = vpop.f32.mrf.mxu0
        %v7814 = vadd.f32 0.0, %v7813
        %v7815 = vpop.f32.mrf.mxu0
        %7816 = vmatprep.mubr.bf16.mxu0 0
        %7817 = vmatmul.mubr.bf16.gmra.mxu0 %v6515
        %v7818 = vpop.f32.mrf.mxu0
        %v7819 = vadd.f32 0.0, %v7818
        %v7820 = vpop.f32.mrf.mxu0
        %v7821 = vpop.f32.mrf.mxu0
        %v7822 = vadd.f32 0.0, %v7821
        %v7823 = vpop.f32.mrf.mxu0
        %7824 = vdwg.mxu0
        %v7825 = vpack.c.bf16 %v7798, %v7795
        %v7826 = vpack.c.bf16 %v7806, %v7803
        %v7827 = vpack.c.bf16 %v7814, %v7811
        %v7828 = vpack.c.bf16 %v7822, %v7819
        %s7829 = scalar_lea.vmem [#allocation22], 64
        %v7830 = vld [vmem:[%s7829] sm:$0xf]
        %v7831 = vld [vmem:[%s7829 + $0x4] sm:$0xf]
        %v7834 = vunpack.c.l.b16 %v7830
        %v7835 = vunpack.c.l.b16 %v7831
        %v7836 = vpack.c.b16 %v7835, %v7834
        %v7838 = vsel %vm4369, %v7836, 0
        %7840 = vmatprep.subr.bf16.mxu0 0
        %7841 = vmatpush1.bf16.msra.mxu0 0
        %7842 = vmatprep.subr.bf16.mxu0 0
        %7843 = vmatpush1.bf16.msra.mxu0 0
        %7844 = vmatprep.subr.bf16.mxu0 0
        %7845 = vmatpush1.bf16.msra.mxu0 0
        %7846 = vmatprep.subr.bf16.mxu0 0
        %7847 = vmatpush1.bf16.msra.mxu0 0
        %7848 = vmatprep.subr.bf16.mxu0 0
        %7849 = vmatpush1.bf16.msra.mxu0 %v7828
        %7850 = vmatprep.subr.bf16.mxu0 0
        %7851 = vmatpush1.bf16.msra.mxu0 %v7827
        %7852 = vmatprep.subr.bf16.mxu0 0
        %7853 = vmatpush1.bf16.msra.mxu0 %v7826
        %7854 = vmatprep.subr.bf16.mxu0 0
        %7855 = vmatpush1.bf16.msra.mxu0 %v7825
        %7856 = vmatprep.subr.bf16.mxu0 0
        %7857 = vmatpush2.bf16.msra.mxu0 0
        %7858 = vmatprep.subr.bf16.mxu0 0
        %7859 = vmatpush2.bf16.msra.mxu0 0
        %7860 = vmatprep.subr.bf16.mxu0 0
        %7861 = vmatpush2.bf16.msra.mxu0 0
        %7862 = vmatprep.subr.bf16.mxu0 0
        %7863 = vmatpush2.bf16.msra.mxu0 0
        %7864 = vmatprep.subr.bf16.mxu0 0
        %7865 = vmatpush2.bf16.msra.mxu0 0
        %7866 = vmatprep.subr.bf16.mxu0 0
        %7867 = vmatpush2.bf16.msra.mxu0 0
        %7868 = vmatprep.subr.bf16.mxu0 0
        %7869 = vmatpush2.bf16.msra.mxu0 0
        %7870 = vmatprep.subr.bf16.mxu0 0
        %7871 = vmatpush2.bf16.msra.mxu0 0
        %7872 = vmatprep.mubr.bf16.mxu0 0
        %7873 = vmatmul.mubr.bf16.gmra.mxu0 %v7838
        %v7874 = vpop.f32.mrf.mxu0
        %v7875 = vadd.f32 0.0, %v7874
        %v7876 = vpop.f32.mrf.mxu0
        %v7877 = vpop.f32.mrf.mxu0
        %v7878 = vadd.f32 0.0, %v7877
        %v7879 = vpop.f32.mrf.mxu0
        %7880 = vdwg.mxu0
        %v7881 = vadd.f32 %v7725, %v7875
        %v7882 = vadd.f32 %v7726, %v7878
        %v7883 = vld [vmem:[#allocation24] sm:$0xff]
        %v7884 = vld [vmem:[#allocation24 + $0x8] sm:$0xff]
        %7886 = vset.pattern.permute.xlu0 0
        %7887 = vperm.xlu0 %7886, %v7883
        %v7888 = vpop.permute.xlu0 %7887
        %7891 = vset.pattern.permute.xlu0 0
        %7892 = vperm.xlu0 %7891, %v7884
        %v7893 = vpop.permute.xlu0 %7892
        %v7895 = vadd.f32 %v7881, %v7888
        %v7896 = vadd.f32 %v7882, %v7893
        %v7897 = vsub.f32 0.0, %v7895
        %v7898 = vsub.f32 0.0, %v7896
        %v7899 = vmul.f32 %v7897, 1.442695
        %v7900 = vpow.pop %v7899
        %v7901 = vmul.f32 %v7898, 1.442695
        %v7902 = vpow.pop %v7901
        %v7903 = vadd.f32 %v7900, 1.0
        %v7904 = vadd.f32 %v7902, 1.0
        %v7905 = vrcp.pop %v7903
        %v7906 = vrcp.pop %v7904
        %v7907 = vmul.f32 %v7895, %v7905
        %v7908 = vmul.f32 %v7896, %v7906
        %7909 = vst.msk [vmem:[%s895] sm:$0xff] %vm4369, %v7907
        %7910 = vst.msk [vmem:[%s895 + $0x8] sm:$0xff] %vm4369, %v7908
        %v7911 = vld [vmem:[#allocation27] sm:$0xf]
        %v7912 = vld [vmem:[#allocation28] sm:$0xff]
        %7914 = vset.pattern.permute.xlu0 0
        %7915 = vperm.xlu0 %7914, %v7912
        %v7916 = vpop.permute.xlu0 %7915
        %v7919 = vsel %vm4509, %v7911, 0
        %7921 = vmatprep.subr.bf16.mxu0 0
        %7922 = vmatpush1.bf16.msra.mxu0 0
        %7923 = vmatprep.subr.bf16.mxu0 0
        %7924 = vmatpush1.bf16.msra.mxu0 0
        %7925 = vmatprep.subr.bf16.mxu0 0
        %7926 = vmatpush1.bf16.msra.mxu0 0
        %7927 = vmatprep.subr.bf16.mxu0 0
        %7928 = vmatpush1.bf16.msra.mxu0 0
        %7929 = vmatprep.subr.bf16.mxu0 0
        %7930 = vmatpush1.bf16.msra.mxu0 0
        %7931 = vmatprep.subr.bf16.mxu0 0
        %7932 = vmatpush1.bf16.msra.mxu0 0
        %7933 = vmatprep.subr.bf16.mxu0 0
        %7934 = vmatpush1.bf16.msra.mxu0 0
        %7935 = vmatprep.subr.bf16.mxu0 %v3650
        %7936 = vmatpush1.bf16.msra.mxu0 %v3649
        %7937 = vmatprep.subr.bf16.mxu0 0
        %7938 = vmatpush2.bf16.msra.mxu0 0
        %7939 = vmatprep.subr.bf16.mxu0 0
        %7940 = vmatpush2.bf16.msra.mxu0 0
        %7941 = vmatprep.subr.bf16.mxu0 0
        %7942 = vmatpush2.bf16.msra.mxu0 0
        %7943 = vmatprep.subr.bf16.mxu0 0
        %7944 = vmatpush2.bf16.msra.mxu0 0
        %7945 = vmatprep.subr.bf16.mxu0 0
        %7946 = vmatpush2.bf16.msra.mxu0 0
        %7947 = vmatprep.subr.bf16.mxu0 0
        %7948 = vmatpush2.bf16.msra.mxu0 0
        %7949 = vmatprep.subr.bf16.mxu0 0
        %7950 = vmatpush2.bf16.msra.mxu0 0
        %7951 = vmatprep.subr.bf16.mxu0 0
        %7952 = vmatpush2.bf16.msra.mxu0 0
        %7953 = vmatprep.mubr.bf16.mxu0 0
        %7954 = vmatmul.mubr.bf16.gmra.mxu0 %v7919
        %v7955 = vpop.f32.mrf.mxu0
        %v7956 = vadd.f32 %v7916, %v7955
        %v7957 = vpop.f32.mrf.mxu0
        %v7958 = vadd.f32 %v7916, %v7957
        %v7959 = vpop.f32.mrf.mxu0
        %v7960 = vpop.f32.mrf.mxu0
        %7961 = vdwg.mxu0
        %v7962 = vsub.f32 0.0, %v7956
        %v7963 = vsub.f32 0.0, %v7958
        %v7964 = vmul.f32 %v7962, 1.442695
        %v7965 = vpow.pop %v7964
        %v7966 = vmul.f32 %v7963, 1.442695
        %v7967 = vpow.pop %v7966
        %v7968 = vadd.f32 %v7965, 1.0
        %v7969 = vadd.f32 %v7967, 1.0
        %v7970 = vrcp.pop %v7968
        %v7971 = vrcp.pop %v7969
        %v7972 = vmul.f32 %v7956, %v7970
        %v7973 = vmul.f32 %v7958, %v7971
        %7974 = vst [vmem:[%s900] sm:$0xff] %v7972
        %7975 = vst [vmem:[%s900 + $0x8] sm:$0xff] %v7973
        %p7976 = scmp.lt.s32.totalorder %s42, 1
        %s7977 = scalar_select %p7976, %s42, 1
        %s7978 = smul.addr %s7977, 2
        %s7979 = smul.addr %s7978, 8
        %s7980 = scalar_lea.vmem %s19, %s7979
        %p7981 = scmp.lt.s32.totalorder %s42, 1
        %s7982 = scalar_select %p7981, %s42, 1
        %s7983 = smul.addr %s7982, 2
        %s7984 = smul.addr %s7983, 8
        %s7985 = scalar_lea.vmem %s20, %s7984
        // Predicated region
        $region169: #{forward.1} parent=95 // pred_check
          %p7986 = pneg %p464
        $region170: #{forward.1} parent=95 // pred_check_branch
          %7988 = sbr.rel (%p7986) target = $region172
        $region171: #{forward.1} parent=95 // pred_region
          _
        $region172: #{forward.1} parent=95 // pred_fallthru
          _
        // Predicated region
        $region173: #{forward.1} parent=95 // pred_check
          %p7989 = pneg %p490
        $region174: #{forward.1} parent=95 // pred_check_branch
          %7991 = sbr.rel (%p7989) target = $region176
        $region175: #{forward.1} parent=95 // pred_region
          _
        $region176: #{forward.1} parent=95 // pred_fallthru
          _
      $region96: #{forward.1} parent=5 // pred_fallthru
        _
      %p7992 = scmp.le.s32.totalorder 2, %s37
      // Predicated region
      $region177: #{forward.1} parent=5 // pred_check
        %p7993 = pneg %p7992
      $region178: #{forward.1} parent=5 // pred_check_branch
        %7995 = sbr.rel (%p7993) target = $region180
      $region179: #{forward.1} parent=5 // pred_region
        %s7996 = ssub.s32 %s37, 2
        // Predicated region
        $region181: #{forward.1} parent=179 // pred_check
          %p7997 = pneg %p470
        $region182: #{forward.1} parent=179 // pred_check_branch
          %7999 = sbr.rel (%p7997) target = $region184
        $region183: #{forward.1} parent=179 // pred_region
          %p8000 = scmp.lt.s32.totalorder %s43, 1
          %s8001 = scalar_select %p8000, %s43, 1
          %s8002 = smul.addr %s8001, 2
          %s8003 = smul.addr %s8002, 8
          %s8004 = scalar_lea.vmem %s19, %s8003
        $region184: #{forward.1} parent=179 // pred_fallthru
          _
        // Predicated region
        $region185: #{forward.1} parent=179 // pred_check
          %p8005 = pneg %p496
        $region186: #{forward.1} parent=179 // pred_check_branch
          %8007 = sbr.rel (%p8005) target = $region188
        $region187: #{forward.1} parent=179 // pred_region
          %p8008 = scmp.lt.s32.totalorder %s43, 1
          %s8009 = scalar_select %p8008, %s43, 1
          %s8010 = smul.addr %s8009, 2
          %s8011 = smul.addr %s8010, 8
          %s8012 = scalar_lea.vmem %s20, %s8011
        $region188: #{forward.1} parent=179 // pred_fallthru
          _
      $region180: #{forward.1} parent=5 // pred_fallthru
        _
    $region6: #{forward.1} parent=1 // loop_footer
      %s41 = sadd.s32 1, %s37
    $region7: #{forward.1} parent=1 // loop_footer_branch
      %36 = sbr.rel target = $region3
    $region8: #{forward.1} parent=1 // loop_exit
      _
    %8013 = vsyncpa [#allocation3], 1
    %s8014 = scalar_lea.sflag [#allocation3], 1
    %8015 = vsyncpa %s8014, 1
    %8016 = vsyncpa [#allocation5], 1
    %8017 = vsyncpa [#allocation8], 1
    %8018 = vsyncpa [#allocation11], 1
    %8019 = vsyncpa [#allocation14], 1
    %8020 = vsyncpa [#allocation17], 1
    %8021 = vsyncpa [#allocation20], 1
    %8022 = vsyncpa [#allocation23], 1
    %8023 = vsyncpa [#allocation26], 1
    %8024 = vsyncpa [#allocation29], 1

</llo_original>
